<compile_context>
chip_gen: v7x
topology: tpu7x:2x2x1
jax: 0.10.0
libtpu: 0.0.40
codegen_flags: <defaults>
</compile_context>

<pallas_src>
import jax
import jax.numpy as jnp
from jax.experimental import pallas as pl
from jax.experimental.pallas import tpu as pltpu


def _row_sum_plan(w):
    """Static op plan for a circular-within-row sum of w lanes in O(log w) rotations.

    Returns [("dbl" | "res", shift), ...]:
      "dbl": seg += rot_row(seg, shift)   (doubles the covered segment length)
      "res": res += rot_row(seg, shift)   (shift == 0 means res += seg)
    """
    ops = []
    seg_len, cover, bit = 1, 0, 0
    while (1 << bit) <= w:
        if w & (1 << bit):
            ops.append(("res", cover))
            cover += seg_len
        if seg_len * 2 <= w:
            ops.append(("dbl", seg_len))
            seg_len *= 2
        bit += 1
    return ops


# -----------------------------------------------------------------------------
# Fused MultiGDFN kernel (one batch element per grid step)
# -----------------------------------------------------------------------------
def make_multi_gdfn_kernel(nb, dim, h, w, row_plan):
    hw = h * w
    # (index into the 9-entry mask table, flat lane offset) per conv tap.
    taps9 = [(ky * 3 + kx, (ky - 1) * w + (kx - 1))
             for ky in range(3) for kx in range(3)]
    taps_h = [(1, -w), (4, 0), (7, w)]     # 3-tap conv along H (rows)
    taps_w = [(3, -1), (4, 0), (5, 1)]     # 3-tap conv along W (cols)

    def _gelu(t):
        # TODO(synk): tanh approximation of nn.GELU (exact form uses erf).
        return 0.5 * t * (1.0 + jnp.tanh(0.7978845608028654 *
                                         (t + 0.044715 * t * t * t)))

    def _sigmoid(t):
        return 1.0 / (1.0 + jnp.exp(-t))

    def kernel(x_ref, m9_ref, sel_ref,
               wg1_ref, bg1_ref, w3_ref, b3_ref,
               wa1_ref, ba1_ref, wa3h_ref, wa3w_ref, ba3_ref,
               wc3h_ref, wc3w_ref, bc3_ref, mix_ref,
               wse1_ref, bse1_ref, wse2_ref, bse2_ref, wproj_ref,
               out_ref):
        f32 = jnp.float32

        def roll(t, off):
            # out[:, p] = t[:, (p + off) % hw]   (XLU lane rotation)
            off = off % hw
            if off == 0:
                return t
            return pltpu.roll(t, hw - off, axis=1)

        def stack_taps(t, taps):
            # Shifted + edge-masked tap views stacked on sublanes -> (T*Cin, hw).
            parts = []
            for tap, off in taps:
                s = roll(t, off)
                if tap != 4:                    # center tap is always valid
                    s = s * m9_ref[tap]
                parts.append(s)
            return jnp.concatenate(parts, axis=0)

        def rot_row(t, s, sel):
            # out[:, r*w + c] = t[:, r*w + (c + s) % w]
            return roll(t, s) * sel + roll(t, s - w) * (1.0 - sel)

        def row_mean(t):
            # Per-row mean over W, broadcast back over the row -> (C, hw).
            seg, res, ri = t, None, 0
            for kind, s in row_plan:
                if s == 0:
                    rotated = seg
                else:
                    rotated = rot_row(seg, s, sel_ref[ri])
                    ri += 1
                if kind == "res":
                    res = rotated if res is None else res + rotated
                else:
                    seg = seg + rotated
            return res * (1.0 / w)

        def col_max(t):
            # Per-column max over H, broadcast back over the column -> (C, hw).
            r, s = t, 1
            while s < h:
                r = jnp.maximum(r, roll(r, s * w))
                s *= 2
            return r

        def ah_attention(a, blk):
            x_h = row_mean(a)                   # (dim, hw), constant along W
            x_w = col_max(a)                    # (dim, hw), constant along H
            wa1 = wa1_ref[blk]
            ba1 = ba1_ref[blk]
            # conv1x1 + GELU on cat([x_h, x_w]) == applying it to each half.
            t_h = _gelu(jnp.dot(wa1, x_h, preferred_element_type=f32) + ba1)
            t_w = _gelu(jnp.dot(wa1, x_w, preferred_element_type=f32) + ba1)
            x1 = jnp.dot(wa3h_ref[blk], stack_taps(t_h, taps_h),
                         preferred_element_type=f32) + ba3_ref[blk]
            x2 = jnp.dot(wa3w_ref[blk], stack_taps(t_w, taps_w),
                         preferred_element_type=f32) + ba3_ref[blk]
            s1 = mix_ref[blk, 0]
            s2 = mix_ref[blk, 1]
            m1 = x_h * s1 + x1 * (1.0 - s1)
            m2 = x_w * s2 + x2 * (1.0 - s2)
            y1 = jnp.dot(wc3h_ref[blk], stack_taps(m1, taps_h),
                         preferred_element_type=f32) + bc3_ref[blk]
            y2 = jnp.dot(wc3w_ref[blk], stack_taps(m2, taps_w),
                         preferred_element_type=f32) + bc3_ref[blk]
            gate = _sigmoid(y1 * y2)            # per-channel outer product
            return a + a * gate

        def gdfn(t, blk):
            # NOTE: conv1/conv2 of the reference are dead (overwritten); only
            # conv1_1 / conv2_2 affect the output.  Both share one fused matmul.
            pre = jnp.dot(wg1_ref[blk], stack_taps(t, taps9),
                          preferred_element_type=f32) + bg1_ref[blk]
            r12 = _gelu(pre)                    # (2*dim, hw)
            a = t + r12[:dim, :] + r12[dim:, :]
            a = ah_attention(a, blk)
            res = jnp.dot(w3_ref[blk], stack_taps(a, taps9),
                          preferred_element_type=f32) + b3_ref[blk]
            return t + res

        x = x_ref[0].astype(f32)                # (dim, hw)
        gs = []
        for blk in range(nb):
            x = gdfn(x, blk)
            gs.append(_gelu(x))                 # gelu(cat(outputs))
        gs_all = jnp.concatenate(gs, axis=0)    # (nb*dim, hw)

        # SEBlock: global avg pool -> 1x1 -> ReLU -> 1x1 -> sigmoid.
        pooled = jnp.mean(gs_all, axis=1, keepdims=True)        # (nb*dim, 1)
        z = jnp.maximum(jnp.dot(wse1_ref[...], pooled,
                                preferred_element_type=f32) + bse1_ref[...],
                        0.0)
        gates = _sigmoid(jnp.dot(wse2_ref[...], z,
                                 preferred_element_type=f32) + bse2_ref[...])

        # project_out with the SE gate folded into the weight columns.
        wp = wproj_ref[...] * jnp.transpose(gates)               # (dim, nb*dim)
        out_ref[0] = jnp.dot(wp, gs_all, preferred_element_type=f32)

    return kernel


# -----------------------------------------------------------------------------
# Wrapper: PyTorch-layout params -> fused kernel layouts, pallas_call
# -----------------------------------------------------------------------------
@jax.jit
def multi_gdfn_forward(params, x):
    n, c, h, w = x.shape
    nb = params["w_conv1_1"].shape[0]
    half = c // 2
    ctot = c * nb
    cr = params["w_se1"].shape[0]
    hw = h * w
    f32 = jnp.float32

    # ---- fused weight layouts (torch conv layouts -> lane-dense matmuls) ----
    def fuse3x3(wt):
        # (nb, Cout, Cin, 3, 3) -> (nb, Cout, 9*Cin), tap-major (ky*3 + kx).
        nbb, co, ci = wt.shape[:3]
        return jnp.transpose(wt, (0, 1, 3, 4, 2)).reshape(nbb, co, 9 * ci)

    def fuse3tap(wt, along_h):
        # (nb, Cout, Cin, 3, 3) -> (nb, Cout, 3*Cin): middle column of the 3x3
        # kernel for the (H,1) map, middle row for the (1,W) map.
        nbb, co, ci = wt.shape[:3]
        sl = wt[:, :, :, :, 1] if along_h else wt[:, :, :, 1, :]
        return jnp.transpose(sl, (0, 1, 3, 2)).reshape(nbb, co, 3 * ci)

    w11f = fuse3x3(params["w_conv1_1"])                           # (nb, c, 9c)
    w22 = params["w_conv2_2"].reshape(nb, c, c)
    w22p = jnp.zeros((nb, c, 9 * c), f32).at[:, :, 4 * c:5 * c].set(w22)
    wg1 = jnp.concatenate([w11f, w22p], axis=1)                   # (nb, 2c, 9c)
    bg1 = jnp.concatenate([params["b_conv1_1"].reshape(nb, c, 1),
                           params["b_conv2_2"].reshape(nb, c, 1)], axis=1)
    w3f = fuse3x3(params["w_conv3"])                              # (nb, c, 9c)
    b3 = params["b_conv3"].reshape(nb, c, 1)
    wa1 = params["w_att1x1"].reshape(nb, half, c)
    ba1 = params["b_att1x1"].reshape(nb, half, 1)
    wa3h = fuse3tap(params["w_att3x3"], True)                     # (nb, c, 3*half)
    wa3w = fuse3tap(params["w_att3x3"], False)
    ba3 = params["b_att3x3"].reshape(nb, c, 1)
    wc3h = fuse3tap(params["w_attcon3x3"], True)                  # (nb, c, 3c)
    wc3w = fuse3tap(params["w_attcon3x3"], False)
    bc3 = params["b_attcon3x3"].reshape(nb, c, 1)
    # Mix: sigmoid(w) precomputed (same math, just outside the kernel).
    mix = jax.nn.sigmoid(jnp.stack([params["mix1_w"], params["mix2_w"]],
                                   axis=1)).astype(f32)           # (nb, 2)
    wse1 = params["w_se1"].reshape(cr, ctot)
    bse1 = params["b_se1"].reshape(cr, 1)
    wse2 = params["w_se2"].reshape(ctot, cr)
    bse2 = params["b_se2"].reshape(ctot, 1)
    wproj = params["w_proj"].reshape(c, ctot)

    # ---- flat pixel layout + precomputed edge / rotation masks ----
    x_flat = x.reshape(n, c, hw).astype(f32)
    pidx = jnp.arange(hw, dtype=jnp.int32)
    row = pidx // w
    col = pidx % w
    m_rows = []
    for ky in range(3):
        for kx in range(3):
            rr, cc = row + (ky - 1), col + (kx - 1)
            m_rows.append(((rr >= 0) & (rr < h) &
                           (cc >= 0) & (cc < w)).astype(f32))
    masks9 = jnp.stack(m_rows, axis=0).reshape(9, 1, hw)

    row_plan = _row_sum_plan(w)
    sel_rows = [(col + s < w).astype(f32) for _, s in row_plan if s > 0]
    if not sel_rows:
        sel_rows = [jnp.zeros((hw,), f32)]
    selmasks = jnp.stack(sel_rows, axis=0).reshape(len(sel_rows), 1, hw)

    kernel = make_multi_gdfn_kernel(nb, c, h, w, row_plan)

    def full(shape):
        zeros = (0,) * len(shape)
        return pl.BlockSpec(shape, lambda b, z=zeros: z)

    out_flat = pl.pallas_call(
        kernel,
        out_shape=jax.ShapeDtypeStruct((n, c, hw), f32),
        grid=(n,),
        in_specs=[
            pl.BlockSpec((1, c, hw), lambda b: (b, 0, 0)),
            full((9, 1, hw)), full((selmasks.shape[0], 1, hw)),
            full((nb, 2 * c, 9 * c)), full((nb, 2 * c, 1)),
            full((nb, c, 9 * c)), full((nb, c, 1)),
            full((nb, half, c)), full((nb, half, 1)),
            full((nb, c, 3 * half)), full((nb, c, 3 * half)), full((nb, c, 1)),
            full((nb, c, 3 * c)), full((nb, c, 3 * c)), full((nb, c, 1)),
            pl.BlockSpec((nb, 2), lambda b: (0, 0),
                         memory_space=pltpu.MemorySpace.SMEM),
            full((cr, ctot)), full((cr, 1)),
            full((ctot, cr)), full((ctot, 1)),
            full((c, ctot)),
        ],
        out_specs=pl.BlockSpec((1, c, hw), lambda b: (b, 0, 0)),
        compiler_params=pltpu.CompilerParams(
            dimension_semantics=("parallel",)),
    )(x_flat, masks9, selmasks,
      wg1, bg1, w3f, b3,
      wa1, ba1, wa3h, wa3w, ba3,
      wc3h, wc3w, bc3, mix,
      wse1, bse1, wse2, bse2, wproj)

    return out_flat.reshape(n, c, h, w)


# -----------------------------------------------------------------------------
# Parameter init (PyTorch-style layouts; conv1/conv2 of GDFN are dead in the
# reference forward, so they are not created)
# -----------------------------------------------------------------------------
def init_params(key, num_blocks, dim, reduction=16):
    half = dim // 2
    ctot = dim * num_blocks
    cr = max(ctot // reduction, 1)
    keys = iter(jax.random.split(key, 20))
    sc = 0.1

    def rnd(shape):
        return jax.random.normal(next(keys), shape, jnp.float32) * sc

    return {
        "w_conv1_1": rnd((num_blocks, dim, dim, 3, 3)),
        "b_conv1_1": rnd((num_blocks, dim)),
        "w_conv2_2": rnd((num_blocks, dim, dim, 1, 1)),
        "b_conv2_2": rnd((num_blocks, dim)),
        "w_conv3": rnd((num_blocks, dim, dim, 3, 3)),
        "b_conv3": rnd((num_blocks, dim)),
        "w_att1x1": rnd((num_blocks, half, dim, 1, 1)),
        "b_att1x1": rnd((num_blocks, half)),
        "w_att3x3": rnd((num_blocks, dim, half, 3, 3)),
        "b_att3x3": rnd((num_blocks, dim)),
        "w_attcon3x3": rnd((num_blocks, dim, dim, 3, 3)),
        "b_attcon3x3": rnd((num_blocks, dim)),
        "mix1_w": jnp.full((num_blocks,), -1.0, jnp.float32),   # Mix(m=-1)
        "mix2_w": jnp.full((num_blocks,), -0.6, jnp.float32),   # Mix(m=-0.6)
        "w_se1": rnd((cr, ctot, 1, 1)),
        "b_se1": rnd((cr,)),
        "w_se2": rnd((ctot, cr, 1, 1)),
        "b_se2": rnd((ctot,)),
        "w_proj": rnd((dim, ctot, 1, 1)),     # project_out, bias=False
    }


if __name__ == "__main__":
    key = jax.random.PRNGKey(0)
    kp, kx = jax.random.split(key)

    num_blocks, dim = 3, 16
    N, H, W = 2, 16, 16

    params = init_params(kp, num_blocks, dim)
    x = jax.random.normal(kx, (N, dim, H, W), jnp.float32)

    out = multi_gdfn_forward(params, x)
    out = jax.block_until_ready(out)

    assert out.shape == (N, dim, H, W), out.shape
    assert bool(jnp.all(jnp.isfinite(out)))
    print("KERNEL_OK")
</pallas_src>

<mosaic_0001>
module attributes {stable_mosaic.version = 11 : i64} {
  func.func @kernel(%arg0: i32, %arg1: memref<1x16x256xf32, #tpu.memory_space<vmem>>, %arg2: memref<9x1x256xf32, #tpu.memory_space<vmem>>, %arg3: memref<4x1x256xf32, #tpu.memory_space<vmem>>, %arg4: memref<3x32x144xf32, #tpu.memory_space<vmem>>, %arg5: memref<3x32x1xf32, #tpu.memory_space<vmem>>, %arg6: memref<3x16x144xf32, #tpu.memory_space<vmem>>, %arg7: memref<3x16x1xf32, #tpu.memory_space<vmem>>, %arg8: memref<3x8x16xf32, #tpu.memory_space<vmem>>, %arg9: memref<3x8x1xf32, #tpu.memory_space<vmem>>, %arg10: memref<3x16x24xf32, #tpu.memory_space<vmem>>, %arg11: memref<3x16x24xf32, #tpu.memory_space<vmem>>, %arg12: memref<3x16x1xf32, #tpu.memory_space<vmem>>, %arg13: memref<3x16x48xf32, #tpu.memory_space<vmem>>, %arg14: memref<3x16x48xf32, #tpu.memory_space<vmem>>, %arg15: memref<3x16x1xf32, #tpu.memory_space<vmem>>, %arg16: memref<3x2xf32, #tpu.memory_space<smem>>, %arg17: memref<3x48xf32, #tpu.memory_space<vmem>>, %arg18: memref<3x1xf32, #tpu.memory_space<vmem>>, %arg19: memref<48x3xf32, #tpu.memory_space<vmem>>, %arg20: memref<48x1xf32, #tpu.memory_space<vmem>>, %arg21: memref<16x48xf32, #tpu.memory_space<vmem>>, %arg22: memref<1x16x256xf32, #tpu.memory_space<vmem>>) attributes {dimension_semantics = [#tpu.dimension_semantics<parallel>], iteration_bounds = array<i64: 2>, scalar_prefetch = 0 : i64, scratch_operands = 0 : i64, tpu.core_type = #tpu.core_type<tc>, window_params = [{transform_indices = @transform_0, window_bounds = array<i64: 1, 16, 256>}, {pipeline_mode = #tpu.pipeline_mode<synchronous>, transform_indices = @transform_1, window_bounds = array<i64: 9, 1, 256>}, {pipeline_mode = #tpu.pipeline_mode<synchronous>, transform_indices = @transform_2, window_bounds = array<i64: 4, 1, 256>}, {pipeline_mode = #tpu.pipeline_mode<synchronous>, transform_indices = @transform_3, window_bounds = array<i64: 3, 32, 144>}, {pipeline_mode = #tpu.pipeline_mode<synchronous>, transform_indices = @transform_4, window_bounds = array<i64: 3, 32, 1>}, {pipeline_mode = #tpu.pipeline_mode<synchronous>, transform_indices = @transform_5, window_bounds = array<i64: 3, 16, 144>}, {pipeline_mode = #tpu.pipeline_mode<synchronous>, transform_indices = @transform_6, window_bounds = array<i64: 3, 16, 1>}, {pipeline_mode = #tpu.pipeline_mode<synchronous>, transform_indices = @transform_7, window_bounds = array<i64: 3, 8, 16>}, {pipeline_mode = #tpu.pipeline_mode<synchronous>, transform_indices = @transform_8, window_bounds = array<i64: 3, 8, 1>}, {pipeline_mode = #tpu.pipeline_mode<synchronous>, transform_indices = @transform_9, window_bounds = array<i64: 3, 16, 24>}, {pipeline_mode = #tpu.pipeline_mode<synchronous>, transform_indices = @transform_10, window_bounds = array<i64: 3, 16, 24>}, {pipeline_mode = #tpu.pipeline_mode<synchronous>, transform_indices = @transform_11, window_bounds = array<i64: 3, 16, 1>}, {pipeline_mode = #tpu.pipeline_mode<synchronous>, transform_indices = @transform_12, window_bounds = array<i64: 3, 16, 48>}, {pipeline_mode = #tpu.pipeline_mode<synchronous>, transform_indices = @transform_13, window_bounds = array<i64: 3, 16, 48>}, {pipeline_mode = #tpu.pipeline_mode<synchronous>, transform_indices = @transform_14, window_bounds = array<i64: 3, 16, 1>}, {transform_indices = @transform_15, window_bounds = array<i64: 3, 2>}, {pipeline_mode = #tpu.pipeline_mode<synchronous>, transform_indices = @transform_16, window_bounds = array<i64: 3, 48>}, {pipeline_mode = #tpu.pipeline_mode<synchronous>, transform_indices = @transform_17, window_bounds = array<i64: 3, 1>}, {pipeline_mode = #tpu.pipeline_mode<synchronous>, transform_indices = @transform_18, window_bounds = array<i64: 48, 3>}, {pipeline_mode = #tpu.pipeline_mode<synchronous>, transform_indices = @transform_19, window_bounds = array<i64: 48, 1>}, {pipeline_mode = #tpu.pipeline_mode<synchronous>, transform_indices = @transform_20, window_bounds = array<i64: 16, 48>}, {transform_indices = @transform_21, window_bounds = array<i64: 1, 16, 256>}]} {
    %c0 = arith.constant 0 : index
    %c0_0 = arith.constant 0 : index
    %c0_1 = arith.constant 0 : index
    %0 = vector.load %arg1[%c0, %c0_0, %c0_1] : memref<1x16x256xf32, #tpu.memory_space<vmem>>, vector<1x16x256xf32>
    %1 = vector.shape_cast %0 : vector<1x16x256xf32> to vector<16x256xf32>
    %c0_2 = arith.constant 0 : index
    %c0_3 = arith.constant 0 : index
    %c0_4 = arith.constant 0 : index
    %2 = vector.load %arg4[%c0_2, %c0_3, %c0_4] : memref<3x32x144xf32, #tpu.memory_space<vmem>>, vector<1x32x144xf32>
    %3 = vector.shape_cast %2 : vector<1x32x144xf32> to vector<32x144xf32>
    %c17_i32 = arith.constant 17 : i32
    %4 = tpu.dynamic_rotate %1 by %c17_i32 dim 1 : vector<16x256xf32>, i32 -> vector<16x256xf32>
    %c0_5 = arith.constant 0 : index
    %c0_6 = arith.constant 0 : index
    %c0_7 = arith.constant 0 : index
    %5 = vector.load %arg2[%c0_5, %c0_6, %c0_7] : memref<9x1x256xf32, #tpu.memory_space<vmem>>, vector<1x1x256xf32>
    %6 = vector.shape_cast %5 : vector<1x1x256xf32> to vector<1x256xf32>
    %7 = vector.broadcast %6 : vector<1x256xf32> to vector<16x256xf32>
    %8 = arith.mulf %4, %7 : vector<16x256xf32>
    %c16_i32 = arith.constant 16 : i32
    %9 = tpu.dynamic_rotate %1 by %c16_i32 dim 1 : vector<16x256xf32>, i32 -> vector<16x256xf32>
    %c1 = arith.constant 1 : index
    %c0_8 = arith.constant 0 : index
    %c0_9 = arith.constant 0 : index
    %10 = vector.load %arg2[%c1, %c0_8, %c0_9] : memref<9x1x256xf32, #tpu.memory_space<vmem>>, vector<1x1x256xf32>
    %11 = vector.shape_cast %10 : vector<1x1x256xf32> to vector<1x256xf32>
    %12 = vector.broadcast %11 : vector<1x256xf32> to vector<16x256xf32>
    %13 = arith.mulf %9, %12 : vector<16x256xf32>
    %c15_i32 = arith.constant 15 : i32
    %14 = tpu.dynamic_rotate %1 by %c15_i32 dim 1 : vector<16x256xf32>, i32 -> vector<16x256xf32>
    %c2 = arith.constant 2 : index
    %c0_10 = arith.constant 0 : index
    %c0_11 = arith.constant 0 : index
    %15 = vector.load %arg2[%c2, %c0_10, %c0_11] : memref<9x1x256xf32, #tpu.memory_space<vmem>>, vector<1x1x256xf32>
    %16 = vector.shape_cast %15 : vector<1x1x256xf32> to vector<1x256xf32>
    %17 = vector.broadcast %16 : vector<1x256xf32> to vector<16x256xf32>
    %18 = arith.mulf %14, %17 : vector<16x256xf32>
    %c1_i32 = arith.constant 1 : i32
    %19 = tpu.dynamic_rotate %1 by %c1_i32 dim 1 : vector<16x256xf32>, i32 -> vector<16x256xf32>
    %c3 = arith.constant 3 : index
    %c0_12 = arith.constant 0 : index
    %c0_13 = arith.constant 0 : index
    %20 = vector.load %arg2[%c3, %c0_12, %c0_13] : memref<9x1x256xf32, #tpu.memory_space<vmem>>, vector<1x1x256xf32>
    %21 = vector.shape_cast %20 : vector<1x1x256xf32> to vector<1x256xf32>
    %22 = vector.broadcast %21 : vector<1x256xf32> to vector<16x256xf32>
    %23 = arith.mulf %19, %22 : vector<16x256xf32>
    %c255_i32 = arith.constant 255 : i32
    %24 = tpu.dynamic_rotate %1 by %c255_i32 dim 1 : vector<16x256xf32>, i32 -> vector<16x256xf32>
    %c5 = arith.constant 5 : index
    %c0_14 = arith.constant 0 : index
    %c0_15 = arith.constant 0 : index
    %25 = vector.load %arg2[%c5, %c0_14, %c0_15] : memref<9x1x256xf32, #tpu.memory_space<vmem>>, vector<1x1x256xf32>
    %26 = vector.shape_cast %25 : vector<1x1x256xf32> to vector<1x256xf32>
    %27 = vector.broadcast %26 : vector<1x256xf32> to vector<16x256xf32>
    %28 = arith.mulf %24, %27 : vector<16x256xf32>
    %c241_i32 = arith.constant 241 : i32
    %29 = tpu.dynamic_rotate %1 by %c241_i32 dim 1 : vector<16x256xf32>, i32 -> vector<16x256xf32>
    %c6 = arith.constant 6 : index
    %c0_16 = arith.constant 0 : index
    %c0_17 = arith.constant 0 : index
    %30 = vector.load %arg2[%c6, %c0_16, %c0_17] : memref<9x1x256xf32, #tpu.memory_space<vmem>>, vector<1x1x256xf32>
    %31 = vector.shape_cast %30 : vector<1x1x256xf32> to vector<1x256xf32>
    %32 = vector.broadcast %31 : vector<1x256xf32> to vector<16x256xf32>
    %33 = arith.mulf %29, %32 : vector<16x256xf32>
    %c240_i32 = arith.constant 240 : i32
    %34 = tpu.dynamic_rotate %1 by %c240_i32 dim 1 : vector<16x256xf32>, i32 -> vector<16x256xf32>
    %c7 = arith.constant 7 : index
    %c0_18 = arith.constant 0 : index
    %c0_19 = arith.constant 0 : index
    %35 = vector.load %arg2[%c7, %c0_18, %c0_19] : memref<9x1x256xf32, #tpu.memory_space<vmem>>, vector<1x1x256xf32>
    %36 = vector.shape_cast %35 : vector<1x1x256xf32> to vector<1x256xf32>
    %37 = vector.broadcast %36 : vector<1x256xf32> to vector<16x256xf32>
    %38 = arith.mulf %34, %37 : vector<16x256xf32>
    %c239_i32 = arith.constant 239 : i32
    %39 = tpu.dynamic_rotate %1 by %c239_i32 dim 1 : vector<16x256xf32>, i32 -> vector<16x256xf32>
    %c8 = arith.constant 8 : index
    %c0_20 = arith.constant 0 : index
    %c0_21 = arith.constant 0 : index
    %40 = vector.load %arg2[%c8, %c0_20, %c0_21] : memref<9x1x256xf32, #tpu.memory_space<vmem>>, vector<1x1x256xf32>
    %41 = vector.shape_cast %40 : vector<1x1x256xf32> to vector<1x256xf32>
    %42 = vector.broadcast %41 : vector<1x256xf32> to vector<16x256xf32>
    %43 = arith.mulf %39, %42 : vector<16x256xf32>
    %44 = tpu.concatenate %8, %13, %18, %23, %1, %28, %33, %38, %43 in 0 : vector<16x256xf32>, vector<16x256xf32>, vector<16x256xf32>, vector<16x256xf32>, vector<16x256xf32>, vector<16x256xf32>, vector<16x256xf32>, vector<16x256xf32>, vector<16x256xf32> -> vector<144x256xf32>
    %cst = arith.constant dense<0.000000e+00> : vector<32x256xf32>
    %45 = tpu.matmul %3, %44, %cst {dimension_numbers = #tpu.dot_dimension_numbers<[1], [0], [0], [1], [0, 0, 1, 1], [], []>} : vector<32x144xf32>, vector<144x256xf32>, vector<32x256xf32> -> vector<32x256xf32>
    %c0_22 = arith.constant 0 : index
    %c0_23 = arith.constant 0 : index
    %c0_24 = arith.constant 0 : index
    %46 = vector.load %arg5[%c0_22, %c0_23, %c0_24] : memref<3x32x1xf32, #tpu.memory_space<vmem>>, vector<1x32x1xf32>
    %47 = vector.shape_cast %46 : vector<1x32x1xf32> to vector<32x1xf32>
    %48 = vector.broadcast %47 : vector<32x1xf32> to vector<32x256xf32>
    %49 = arith.addf %45, %48 : vector<32x256xf32>
    %cst_25 = arith.constant 5.000000e-01 : f32
    %50 = vector.broadcast %cst_25 : f32 to vector<32x256xf32>
    %51 = arith.mulf %50, %49 : vector<32x256xf32>
    %cst_26 = arith.constant 4.471500e-02 : f32
    %52 = vector.broadcast %cst_26 : f32 to vector<32x256xf32>
    %53 = arith.mulf %52, %49 : vector<32x256xf32>
    %54 = arith.mulf %53, %49 : vector<32x256xf32>
    %55 = arith.mulf %54, %49 : vector<32x256xf32>
    %56 = arith.addf %49, %55 : vector<32x256xf32>
    %cst_27 = arith.constant 0.797884583 : f32
    %57 = vector.broadcast %cst_27 : f32 to vector<32x256xf32>
    %58 = arith.mulf %57, %56 : vector<32x256xf32>
    %59 = math.tanh %58 : vector<32x256xf32>
    %cst_28 = arith.constant 1.000000e+00 : f32
    %60 = vector.broadcast %cst_28 : f32 to vector<32x256xf32>
    %61 = arith.addf %60, %59 : vector<32x256xf32>
    %62 = arith.mulf %51, %61 : vector<32x256xf32>
    %63 = vector.extract_strided_slice %62 {offsets = [0, 0], sizes = [16, 256], strides = [1, 1]} : vector<32x256xf32> to vector<16x256xf32>
    %64 = arith.addf %1, %63 : vector<16x256xf32>
    %65 = vector.extract_strided_slice %62 {offsets = [16, 0], sizes = [16, 256], strides = [1, 1]} : vector<32x256xf32> to vector<16x256xf32>
    %66 = arith.addf %64, %65 : vector<16x256xf32>
    %c0_29 = arith.constant 0 : index
    %c0_30 = arith.constant 0 : index
    %c0_31 = arith.constant 0 : index
    %67 = vector.load %arg3[%c0_29, %c0_30, %c0_31] : memref<4x1x256xf32, #tpu.memory_space<vmem>>, vector<1x1x256xf32>
    %68 = vector.shape_cast %67 : vector<1x1x256xf32> to vector<1x256xf32>
    %c255_i32_32 = arith.constant 255 : i32
    %69 = tpu.dynamic_rotate %66 by %c255_i32_32 dim 1 : vector<16x256xf32>, i32 -> vector<16x256xf32>
    %70 = vector.broadcast %68 : vector<1x256xf32> to vector<16x256xf32>
    %71 = arith.mulf %69, %70 : vector<16x256xf32>
    %c15_i32_33 = arith.constant 15 : i32
    %72 = tpu.dynamic_rotate %66 by %c15_i32_33 dim 1 : vector<16x256xf32>, i32 -> vector<16x256xf32>
    %cst_34 = arith.constant 1.000000e+00 : f32
    %73 = vector.broadcast %cst_34 : f32 to vector<1x256xf32>
    %74 = arith.subf %73, %68 : vector<1x256xf32>
    %75 = vector.broadcast %74 : vector<1x256xf32> to vector<16x256xf32>
    %76 = arith.mulf %72, %75 : vector<16x256xf32>
    %77 = arith.addf %71, %76 : vector<16x256xf32>
    %78 = arith.addf %66, %77 : vector<16x256xf32>
    %c1_35 = arith.constant 1 : index
    %c0_36 = arith.constant 0 : index
    %c0_37 = arith.constant 0 : index
    %79 = vector.load %arg3[%c1_35, %c0_36, %c0_37] : memref<4x1x256xf32, #tpu.memory_space<vmem>>, vector<1x1x256xf32>
    %80 = vector.shape_cast %79 : vector<1x1x256xf32> to vector<1x256xf32>
    %c254_i32 = arith.constant 254 : i32
    %81 = tpu.dynamic_rotate %78 by %c254_i32 dim 1 : vector<16x256xf32>, i32 -> vector<16x256xf32>
    %82 = vector.broadcast %80 : vector<1x256xf32> to vector<16x256xf32>
    %83 = arith.mulf %81, %82 : vector<16x256xf32>
    %c14_i32 = arith.constant 14 : i32
    %84 = tpu.dynamic_rotate %78 by %c14_i32 dim 1 : vector<16x256xf32>, i32 -> vector<16x256xf32>
    %cst_38 = arith.constant 1.000000e+00 : f32
    %85 = vector.broadcast %cst_38 : f32 to vector<1x256xf32>
    %86 = arith.subf %85, %80 : vector<1x256xf32>
    %87 = vector.broadcast %86 : vector<1x256xf32> to vector<16x256xf32>
    %88 = arith.mulf %84, %87 : vector<16x256xf32>
    %89 = arith.addf %83, %88 : vector<16x256xf32>
    %90 = arith.addf %78, %89 : vector<16x256xf32>
    %c2_39 = arith.constant 2 : index
    %c0_40 = arith.constant 0 : index
    %c0_41 = arith.constant 0 : index
    %91 = vector.load %arg3[%c2_39, %c0_40, %c0_41] : memref<4x1x256xf32, #tpu.memory_space<vmem>>, vector<1x1x256xf32>
    %92 = vector.shape_cast %91 : vector<1x1x256xf32> to vector<1x256xf32>
    %c252_i32 = arith.constant 252 : i32
    %93 = tpu.dynamic_rotate %90 by %c252_i32 dim 1 : vector<16x256xf32>, i32 -> vector<16x256xf32>
    %94 = vector.broadcast %92 : vector<1x256xf32> to vector<16x256xf32>
    %95 = arith.mulf %93, %94 : vector<16x256xf32>
    %c12_i32 = arith.constant 12 : i32
    %96 = tpu.dynamic_rotate %90 by %c12_i32 dim 1 : vector<16x256xf32>, i32 -> vector<16x256xf32>
    %cst_42 = arith.constant 1.000000e+00 : f32
    %97 = vector.broadcast %cst_42 : f32 to vector<1x256xf32>
    %98 = arith.subf %97, %92 : vector<1x256xf32>
    %99 = vector.broadcast %98 : vector<1x256xf32> to vector<16x256xf32>
    %100 = arith.mulf %96, %99 : vector<16x256xf32>
    %101 = arith.addf %95, %100 : vector<16x256xf32>
    %102 = arith.addf %90, %101 : vector<16x256xf32>
    %c3_43 = arith.constant 3 : index
    %c0_44 = arith.constant 0 : index
    %c0_45 = arith.constant 0 : index
    %103 = vector.load %arg3[%c3_43, %c0_44, %c0_45] : memref<4x1x256xf32, #tpu.memory_space<vmem>>, vector<1x1x256xf32>
    %104 = vector.shape_cast %103 : vector<1x1x256xf32> to vector<1x256xf32>
    %c248_i32 = arith.constant 248 : i32
    %105 = tpu.dynamic_rotate %102 by %c248_i32 dim 1 : vector<16x256xf32>, i32 -> vector<16x256xf32>
    %106 = vector.broadcast %104 : vector<1x256xf32> to vector<16x256xf32>
    %107 = arith.mulf %105, %106 : vector<16x256xf32>
    %c8_i32 = arith.constant 8 : i32
    %108 = tpu.dynamic_rotate %102 by %c8_i32 dim 1 : vector<16x256xf32>, i32 -> vector<16x256xf32>
    %cst_46 = arith.constant 1.000000e+00 : f32
    %109 = vector.broadcast %cst_46 : f32 to vector<1x256xf32>
    %110 = arith.subf %109, %104 : vector<1x256xf32>
    %111 = vector.broadcast %110 : vector<1x256xf32> to vector<16x256xf32>
    %112 = arith.mulf %108, %111 : vector<16x256xf32>
    %113 = arith.addf %107, %112 : vector<16x256xf32>
    %114 = arith.addf %102, %113 : vector<16x256xf32>
    %cst_47 = arith.constant 6.250000e-02 : f32
    %115 = vector.broadcast %cst_47 : f32 to vector<16x256xf32>
    %116 = arith.mulf %114, %115 : vector<16x256xf32>
    %c240_i32_48 = arith.constant 240 : i32
    %117 = tpu.dynamic_rotate %66 by %c240_i32_48 dim 1 : vector<16x256xf32>, i32 -> vector<16x256xf32>
    %118 = arith.maximumf %66, %117 : vector<16x256xf32>
    %c224_i32 = arith.constant 224 : i32
    %119 = tpu.dynamic_rotate %118 by %c224_i32 dim 1 : vector<16x256xf32>, i32 -> vector<16x256xf32>
    %120 = arith.maximumf %118, %119 : vector<16x256xf32>
    %c192_i32 = arith.constant 192 : i32
    %121 = tpu.dynamic_rotate %120 by %c192_i32 dim 1 : vector<16x256xf32>, i32 -> vector<16x256xf32>
    %122 = arith.maximumf %120, %121 : vector<16x256xf32>
    %c128_i32 = arith.constant 128 : i32
    %123 = tpu.dynamic_rotate %122 by %c128_i32 dim 1 : vector<16x256xf32>, i32 -> vector<16x256xf32>
    %124 = arith.maximumf %122, %123 : vector<16x256xf32>
    %c0_49 = arith.constant 0 : index
    %c0_50 = arith.constant 0 : index
    %c0_51 = arith.constant 0 : index
    %125 = vector.load %arg8[%c0_49, %c0_50, %c0_51] : memref<3x8x16xf32, #tpu.memory_space<vmem>>, vector<1x8x16xf32>
    %126 = vector.shape_cast %125 : vector<1x8x16xf32> to vector<8x16xf32>
    %c0_52 = arith.constant 0 : index
    %c0_53 = arith.constant 0 : index
    %c0_54 = arith.constant 0 : index
    %127 = vector.load %arg9[%c0_52, %c0_53, %c0_54] : memref<3x8x1xf32, #tpu.memory_space<vmem>>, vector<1x8x1xf32>
    %128 = vector.shape_cast %127 : vector<1x8x1xf32> to vector<8x1xf32>
    %cst_55 = arith.constant dense<0.000000e+00> : vector<8x256xf32>
    %129 = tpu.matmul %126, %116, %cst_55 {dimension_numbers = #tpu.dot_dimension_numbers<[1], [0], [0], [1], [0, 0, 1, 1], [], []>} : vector<8x16xf32>, vector<16x256xf32>, vector<8x256xf32> -> vector<8x256xf32>
    %130 = vector.broadcast %128 : vector<8x1xf32> to vector<8x256xf32>
    %131 = arith.addf %129, %130 : vector<8x256xf32>
    %cst_56 = arith.constant 5.000000e-01 : f32
    %132 = vector.broadcast %cst_56 : f32 to vector<8x256xf32>
    %133 = arith.mulf %132, %131 : vector<8x256xf32>
    %cst_57 = arith.constant 4.471500e-02 : f32
    %134 = vector.broadcast %cst_57 : f32 to vector<8x256xf32>
    %135 = arith.mulf %134, %131 : vector<8x256xf32>
    %136 = arith.mulf %135, %131 : vector<8x256xf32>
    %137 = arith.mulf %136, %131 : vector<8x256xf32>
    %138 = arith.addf %131, %137 : vector<8x256xf32>
    %cst_58 = arith.constant 0.797884583 : f32
    %139 = vector.broadcast %cst_58 : f32 to vector<8x256xf32>
    %140 = arith.mulf %139, %138 : vector<8x256xf32>
    %141 = math.tanh %140 : vector<8x256xf32>
    %cst_59 = arith.constant 1.000000e+00 : f32
    %142 = vector.broadcast %cst_59 : f32 to vector<8x256xf32>
    %143 = arith.addf %142, %141 : vector<8x256xf32>
    %144 = arith.mulf %133, %143 : vector<8x256xf32>
    %cst_60 = arith.constant dense<0.000000e+00> : vector<8x256xf32>
    %145 = tpu.matmul %126, %124, %cst_60 {dimension_numbers = #tpu.dot_dimension_numbers<[1], [0], [0], [1], [0, 0, 1, 1], [], []>} : vector<8x16xf32>, vector<16x256xf32>, vector<8x256xf32> -> vector<8x256xf32>
    %146 = vector.broadcast %128 : vector<8x1xf32> to vector<8x256xf32>
    %147 = arith.addf %145, %146 : vector<8x256xf32>
    %cst_61 = arith.constant 5.000000e-01 : f32
    %148 = vector.broadcast %cst_61 : f32 to vector<8x256xf32>
    %149 = arith.mulf %148, %147 : vector<8x256xf32>
    %cst_62 = arith.constant 4.471500e-02 : f32
    %150 = vector.broadcast %cst_62 : f32 to vector<8x256xf32>
    %151 = arith.mulf %150, %147 : vector<8x256xf32>
    %152 = arith.mulf %151, %147 : vector<8x256xf32>
    %153 = arith.mulf %152, %147 : vector<8x256xf32>
    %154 = arith.addf %147, %153 : vector<8x256xf32>
    %cst_63 = arith.constant 0.797884583 : f32
    %155 = vector.broadcast %cst_63 : f32 to vector<8x256xf32>
    %156 = arith.mulf %155, %154 : vector<8x256xf32>
    %157 = math.tanh %156 : vector<8x256xf32>
    %cst_64 = arith.constant 1.000000e+00 : f32
    %158 = vector.broadcast %cst_64 : f32 to vector<8x256xf32>
    %159 = arith.addf %158, %157 : vector<8x256xf32>
    %160 = arith.mulf %149, %159 : vector<8x256xf32>
    %c0_65 = arith.constant 0 : index
    %c0_66 = arith.constant 0 : index
    %c0_67 = arith.constant 0 : index
    %161 = vector.load %arg10[%c0_65, %c0_66, %c0_67] : memref<3x16x24xf32, #tpu.memory_space<vmem>>, vector<1x16x24xf32>
    %162 = vector.shape_cast %161 : vector<1x16x24xf32> to vector<16x24xf32>
    %c16_i32_68 = arith.constant 16 : i32
    %163 = tpu.dynamic_rotate %144 by %c16_i32_68 dim 1 : vector<8x256xf32>, i32 -> vector<8x256xf32>
    %c1_69 = arith.constant 1 : index
    %c0_70 = arith.constant 0 : index
    %c0_71 = arith.constant 0 : index
    %164 = vector.load %arg2[%c1_69, %c0_70, %c0_71] : memref<9x1x256xf32, #tpu.memory_space<vmem>>, vector<1x1x256xf32>
    %165 = vector.shape_cast %164 : vector<1x1x256xf32> to vector<1x256xf32>
    %166 = vector.broadcast %165 : vector<1x256xf32> to vector<8x256xf32>
    %167 = arith.mulf %163, %166 : vector<8x256xf32>
    %c240_i32_72 = arith.constant 240 : i32
    %168 = tpu.dynamic_rotate %144 by %c240_i32_72 dim 1 : vector<8x256xf32>, i32 -> vector<8x256xf32>
    %c7_73 = arith.constant 7 : index
    %c0_74 = arith.constant 0 : index
    %c0_75 = arith.constant 0 : index
    %169 = vector.load %arg2[%c7_73, %c0_74, %c0_75] : memref<9x1x256xf32, #tpu.memory_space<vmem>>, vector<1x1x256xf32>
    %170 = vector.shape_cast %169 : vector<1x1x256xf32> to vector<1x256xf32>
    %171 = vector.broadcast %170 : vector<1x256xf32> to vector<8x256xf32>
    %172 = arith.mulf %168, %171 : vector<8x256xf32>
    %173 = tpu.concatenate %167, %144, %172 in 0 : vector<8x256xf32>, vector<8x256xf32>, vector<8x256xf32> -> vector<24x256xf32>
    %cst_76 = arith.constant dense<0.000000e+00> : vector<16x256xf32>
    %174 = tpu.matmul %162, %173, %cst_76 {dimension_numbers = #tpu.dot_dimension_numbers<[1], [0], [0], [1], [0, 0, 1, 1], [], []>} : vector<16x24xf32>, vector<24x256xf32>, vector<16x256xf32> -> vector<16x256xf32>
    %c0_77 = arith.constant 0 : index
    %c0_78 = arith.constant 0 : index
    %c0_79 = arith.constant 0 : index
    %175 = vector.load %arg12[%c0_77, %c0_78, %c0_79] : memref<3x16x1xf32, #tpu.memory_space<vmem>>, vector<1x16x1xf32>
    %176 = vector.shape_cast %175 : vector<1x16x1xf32> to vector<16x1xf32>
    %177 = vector.broadcast %176 : vector<16x1xf32> to vector<16x256xf32>
    %178 = arith.addf %174, %177 : vector<16x256xf32>
    %c0_80 = arith.constant 0 : index
    %c0_81 = arith.constant 0 : index
    %c0_82 = arith.constant 0 : index
    %179 = vector.load %arg11[%c0_80, %c0_81, %c0_82] : memref<3x16x24xf32, #tpu.memory_space<vmem>>, vector<1x16x24xf32>
    %180 = vector.shape_cast %179 : vector<1x16x24xf32> to vector<16x24xf32>
    %c1_i32_83 = arith.constant 1 : i32
    %181 = tpu.dynamic_rotate %160 by %c1_i32_83 dim 1 : vector<8x256xf32>, i32 -> vector<8x256xf32>
    %c3_84 = arith.constant 3 : index
    %c0_85 = arith.constant 0 : index
    %c0_86 = arith.constant 0 : index
    %182 = vector.load %arg2[%c3_84, %c0_85, %c0_86] : memref<9x1x256xf32, #tpu.memory_space<vmem>>, vector<1x1x256xf32>
    %183 = vector.shape_cast %182 : vector<1x1x256xf32> to vector<1x256xf32>
    %184 = vector.broadcast %183 : vector<1x256xf32> to vector<8x256xf32>
    %185 = arith.mulf %181, %184 : vector<8x256xf32>
    %c255_i32_87 = arith.constant 255 : i32
    %186 = tpu.dynamic_rotate %160 by %c255_i32_87 dim 1 : vector<8x256xf32>, i32 -> vector<8x256xf32>
    %c5_88 = arith.constant 5 : index
    %c0_89 = arith.constant 0 : index
    %c0_90 = arith.constant 0 : index
    %187 = vector.load %arg2[%c5_88, %c0_89, %c0_90] : memref<9x1x256xf32, #tpu.memory_space<vmem>>, vector<1x1x256xf32>
    %188 = vector.shape_cast %187 : vector<1x1x256xf32> to vector<1x256xf32>
    %189 = vector.broadcast %188 : vector<1x256xf32> to vector<8x256xf32>
    %190 = arith.mulf %186, %189 : vector<8x256xf32>
    %191 = tpu.concatenate %185, %160, %190 in 0 : vector<8x256xf32>, vector<8x256xf32>, vector<8x256xf32> -> vector<24x256xf32>
    %cst_91 = arith.constant dense<0.000000e+00> : vector<16x256xf32>
    %192 = tpu.matmul %180, %191, %cst_91 {dimension_numbers = #tpu.dot_dimension_numbers<[1], [0], [0], [1], [0, 0, 1, 1], [], []>} : vector<16x24xf32>, vector<24x256xf32>, vector<16x256xf32> -> vector<16x256xf32>
    %c0_92 = arith.constant 0 : index
    %c0_93 = arith.constant 0 : index
    %c0_94 = arith.constant 0 : index
    %193 = vector.load %arg12[%c0_92, %c0_93, %c0_94] : memref<3x16x1xf32, #tpu.memory_space<vmem>>, vector<1x16x1xf32>
    %194 = vector.shape_cast %193 : vector<1x16x1xf32> to vector<16x1xf32>
    %195 = vector.broadcast %194 : vector<16x1xf32> to vector<16x256xf32>
    %196 = arith.addf %192, %195 : vector<16x256xf32>
    %c0_95 = arith.constant 0 : index
    %c0_96 = arith.constant 0 : index
    %197 = memref.load %arg16[%c0_95, %c0_96] : memref<3x2xf32, #tpu.memory_space<smem>>
    %c0_97 = arith.constant 0 : index
    %c1_98 = arith.constant 1 : index
    %198 = memref.load %arg16[%c0_97, %c1_98] : memref<3x2xf32, #tpu.memory_space<smem>>
    %199 = vector.broadcast %197 : f32 to vector<16x256xf32>
    %200 = arith.mulf %116, %199 : vector<16x256xf32>
    %cst_99 = arith.constant 1.000000e+00 : f32
    %201 = arith.subf %cst_99, %197 : f32
    %202 = vector.broadcast %201 : f32 to vector<16x256xf32>
    %203 = arith.mulf %178, %202 : vector<16x256xf32>
    %204 = arith.addf %200, %203 : vector<16x256xf32>
    %205 = vector.broadcast %198 : f32 to vector<16x256xf32>
    %206 = arith.mulf %124, %205 : vector<16x256xf32>
    %cst_100 = arith.constant 1.000000e+00 : f32
    %207 = arith.subf %cst_100, %198 : f32
    %208 = vector.broadcast %207 : f32 to vector<16x256xf32>
    %209 = arith.mulf %196, %208 : vector<16x256xf32>
    %210 = arith.addf %206, %209 : vector<16x256xf32>
    %c0_101 = arith.constant 0 : index
    %c0_102 = arith.constant 0 : index
    %c0_103 = arith.constant 0 : index
    %211 = vector.load %arg13[%c0_101, %c0_102, %c0_103] : memref<3x16x48xf32, #tpu.memory_space<vmem>>, vector<1x16x48xf32>
    %212 = vector.shape_cast %211 : vector<1x16x48xf32> to vector<16x48xf32>
    %c16_i32_104 = arith.constant 16 : i32
    %213 = tpu.dynamic_rotate %204 by %c16_i32_104 dim 1 : vector<16x256xf32>, i32 -> vector<16x256xf32>
    %c1_105 = arith.constant 1 : index
    %c0_106 = arith.constant 0 : index
    %c0_107 = arith.constant 0 : index
    %214 = vector.load %arg2[%c1_105, %c0_106, %c0_107] : memref<9x1x256xf32, #tpu.memory_space<vmem>>, vector<1x1x256xf32>
    %215 = vector.shape_cast %214 : vector<1x1x256xf32> to vector<1x256xf32>
    %216 = vector.broadcast %215 : vector<1x256xf32> to vector<16x256xf32>
    %217 = arith.mulf %213, %216 : vector<16x256xf32>
    %c240_i32_108 = arith.constant 240 : i32
    %218 = tpu.dynamic_rotate %204 by %c240_i32_108 dim 1 : vector<16x256xf32>, i32 -> vector<16x256xf32>
    %c7_109 = arith.constant 7 : index
    %c0_110 = arith.constant 0 : index
    %c0_111 = arith.constant 0 : index
    %219 = vector.load %arg2[%c7_109, %c0_110, %c0_111] : memref<9x1x256xf32, #tpu.memory_space<vmem>>, vector<1x1x256xf32>
    %220 = vector.shape_cast %219 : vector<1x1x256xf32> to vector<1x256xf32>
    %221 = vector.broadcast %220 : vector<1x256xf32> to vector<16x256xf32>
    %222 = arith.mulf %218, %221 : vector<16x256xf32>
    %223 = tpu.concatenate %217, %204, %222 in 0 : vector<16x256xf32>, vector<16x256xf32>, vector<16x256xf32> -> vector<48x256xf32>
    %cst_112 = arith.constant dense<0.000000e+00> : vector<16x256xf32>
    %224 = tpu.matmul %212, %223, %cst_112 {dimension_numbers = #tpu.dot_dimension_numbers<[1], [0], [0], [1], [0, 0, 1, 1], [], []>} : vector<16x48xf32>, vector<48x256xf32>, vector<16x256xf32> -> vector<16x256xf32>
    %c0_113 = arith.constant 0 : index
    %c0_114 = arith.constant 0 : index
    %c0_115 = arith.constant 0 : index
    %225 = vector.load %arg15[%c0_113, %c0_114, %c0_115] : memref<3x16x1xf32, #tpu.memory_space<vmem>>, vector<1x16x1xf32>
    %226 = vector.shape_cast %225 : vector<1x16x1xf32> to vector<16x1xf32>
    %227 = vector.broadcast %226 : vector<16x1xf32> to vector<16x256xf32>
    %228 = arith.addf %224, %227 : vector<16x256xf32>
    %c0_116 = arith.constant 0 : index
    %c0_117 = arith.constant 0 : index
    %c0_118 = arith.constant 0 : index
    %229 = vector.load %arg14[%c0_116, %c0_117, %c0_118] : memref<3x16x48xf32, #tpu.memory_space<vmem>>, vector<1x16x48xf32>
    %230 = vector.shape_cast %229 : vector<1x16x48xf32> to vector<16x48xf32>
    %c1_i32_119 = arith.constant 1 : i32
    %231 = tpu.dynamic_rotate %210 by %c1_i32_119 dim 1 : vector<16x256xf32>, i32 -> vector<16x256xf32>
    %c3_120 = arith.constant 3 : index
    %c0_121 = arith.constant 0 : index
    %c0_122 = arith.constant 0 : index
    %232 = vector.load %arg2[%c3_120, %c0_121, %c0_122] : memref<9x1x256xf32, #tpu.memory_space<vmem>>, vector<1x1x256xf32>
    %233 = vector.shape_cast %232 : vector<1x1x256xf32> to vector<1x256xf32>
    %234 = vector.broadcast %233 : vector<1x256xf32> to vector<16x256xf32>
    %235 = arith.mulf %231, %234 : vector<16x256xf32>
    %c255_i32_123 = arith.constant 255 : i32
    %236 = tpu.dynamic_rotate %210 by %c255_i32_123 dim 1 : vector<16x256xf32>, i32 -> vector<16x256xf32>
    %c5_124 = arith.constant 5 : index
    %c0_125 = arith.constant 0 : index
    %c0_126 = arith.constant 0 : index
    %237 = vector.load %arg2[%c5_124, %c0_125, %c0_126] : memref<9x1x256xf32, #tpu.memory_space<vmem>>, vector<1x1x256xf32>
    %238 = vector.shape_cast %237 : vector<1x1x256xf32> to vector<1x256xf32>
    %239 = vector.broadcast %238 : vector<1x256xf32> to vector<16x256xf32>
    %240 = arith.mulf %236, %239 : vector<16x256xf32>
    %241 = tpu.concatenate %235, %210, %240 in 0 : vector<16x256xf32>, vector<16x256xf32>, vector<16x256xf32> -> vector<48x256xf32>
    %cst_127 = arith.constant dense<0.000000e+00> : vector<16x256xf32>
    %242 = tpu.matmul %230, %241, %cst_127 {dimension_numbers = #tpu.dot_dimension_numbers<[1], [0], [0], [1], [0, 0, 1, 1], [], []>} : vector<16x48xf32>, vector<48x256xf32>, vector<16x256xf32> -> vector<16x256xf32>
    %c0_128 = arith.constant 0 : index
    %c0_129 = arith.constant 0 : index
    %c0_130 = arith.constant 0 : index
    %243 = vector.load %arg15[%c0_128, %c0_129, %c0_130] : memref<3x16x1xf32, #tpu.memory_space<vmem>>, vector<1x16x1xf32>
    %244 = vector.shape_cast %243 : vector<1x16x1xf32> to vector<16x1xf32>
    %245 = vector.broadcast %244 : vector<16x1xf32> to vector<16x256xf32>
    %246 = arith.addf %242, %245 : vector<16x256xf32>
    %247 = arith.mulf %228, %246 : vector<16x256xf32>
    %cst_131 = arith.constant 0.000000e+00 : f32
    %248 = vector.broadcast %cst_131 : f32 to vector<16x256xf32>
    %249 = arith.subf %248, %247 : vector<16x256xf32>
    %250 = math.exp %249 : vector<16x256xf32>
    %cst_132 = arith.constant 1.000000e+00 : f32
    %251 = vector.broadcast %cst_132 : f32 to vector<16x256xf32>
    %252 = arith.addf %251, %250 : vector<16x256xf32>
    %cst_133 = arith.constant 1.000000e+00 : f32
    %253 = vector.broadcast %cst_133 : f32 to vector<16x256xf32>
    %254 = arith.divf %253, %252 : vector<16x256xf32>
    %255 = arith.mulf %66, %254 : vector<16x256xf32>
    %256 = arith.addf %66, %255 : vector<16x256xf32>
    %c0_134 = arith.constant 0 : index
    %c0_135 = arith.constant 0 : index
    %c0_136 = arith.constant 0 : index
    %257 = vector.load %arg6[%c0_134, %c0_135, %c0_136] : memref<3x16x144xf32, #tpu.memory_space<vmem>>, vector<1x16x144xf32>
    %258 = vector.shape_cast %257 : vector<1x16x144xf32> to vector<16x144xf32>
    %c17_i32_137 = arith.constant 17 : i32
    %259 = tpu.dynamic_rotate %256 by %c17_i32_137 dim 1 : vector<16x256xf32>, i32 -> vector<16x256xf32>
    %c0_138 = arith.constant 0 : index
    %c0_139 = arith.constant 0 : index
    %c0_140 = arith.constant 0 : index
    %260 = vector.load %arg2[%c0_138, %c0_139, %c0_140] : memref<9x1x256xf32, #tpu.memory_space<vmem>>, vector<1x1x256xf32>
    %261 = vector.shape_cast %260 : vector<1x1x256xf32> to vector<1x256xf32>
    %262 = vector.broadcast %261 : vector<1x256xf32> to vector<16x256xf32>
    %263 = arith.mulf %259, %262 : vector<16x256xf32>
    %c16_i32_141 = arith.constant 16 : i32
    %264 = tpu.dynamic_rotate %256 by %c16_i32_141 dim 1 : vector<16x256xf32>, i32 -> vector<16x256xf32>
    %c1_142 = arith.constant 1 : index
    %c0_143 = arith.constant 0 : index
    %c0_144 = arith.constant 0 : index
    %265 = vector.load %arg2[%c1_142, %c0_143, %c0_144] : memref<9x1x256xf32, #tpu.memory_space<vmem>>, vector<1x1x256xf32>
    %266 = vector.shape_cast %265 : vector<1x1x256xf32> to vector<1x256xf32>
    %267 = vector.broadcast %266 : vector<1x256xf32> to vector<16x256xf32>
    %268 = arith.mulf %264, %267 : vector<16x256xf32>
    %c15_i32_145 = arith.constant 15 : i32
    %269 = tpu.dynamic_rotate %256 by %c15_i32_145 dim 1 : vector<16x256xf32>, i32 -> vector<16x256xf32>
    %c2_146 = arith.constant 2 : index
    %c0_147 = arith.constant 0 : index
    %c0_148 = arith.constant 0 : index
    %270 = vector.load %arg2[%c2_146, %c0_147, %c0_148] : memref<9x1x256xf32, #tpu.memory_space<vmem>>, vector<1x1x256xf32>
    %271 = vector.shape_cast %270 : vector<1x1x256xf32> to vector<1x256xf32>
    %272 = vector.broadcast %271 : vector<1x256xf32> to vector<16x256xf32>
    %273 = arith.mulf %269, %272 : vector<16x256xf32>
    %c1_i32_149 = arith.constant 1 : i32
    %274 = tpu.dynamic_rotate %256 by %c1_i32_149 dim 1 : vector<16x256xf32>, i32 -> vector<16x256xf32>
    %c3_150 = arith.constant 3 : index
    %c0_151 = arith.constant 0 : index
    %c0_152 = arith.constant 0 : index
    %275 = vector.load %arg2[%c3_150, %c0_151, %c0_152] : memref<9x1x256xf32, #tpu.memory_space<vmem>>, vector<1x1x256xf32>
    %276 = vector.shape_cast %275 : vector<1x1x256xf32> to vector<1x256xf32>
    %277 = vector.broadcast %276 : vector<1x256xf32> to vector<16x256xf32>
    %278 = arith.mulf %274, %277 : vector<16x256xf32>
    %c255_i32_153 = arith.constant 255 : i32
    %279 = tpu.dynamic_rotate %256 by %c255_i32_153 dim 1 : vector<16x256xf32>, i32 -> vector<16x256xf32>
    %c5_154 = arith.constant 5 : index
    %c0_155 = arith.constant 0 : index
    %c0_156 = arith.constant 0 : index
    %280 = vector.load %arg2[%c5_154, %c0_155, %c0_156] : memref<9x1x256xf32, #tpu.memory_space<vmem>>, vector<1x1x256xf32>
    %281 = vector.shape_cast %280 : vector<1x1x256xf32> to vector<1x256xf32>
    %282 = vector.broadcast %281 : vector<1x256xf32> to vector<16x256xf32>
    %283 = arith.mulf %279, %282 : vector<16x256xf32>
    %c241_i32_157 = arith.constant 241 : i32
    %284 = tpu.dynamic_rotate %256 by %c241_i32_157 dim 1 : vector<16x256xf32>, i32 -> vector<16x256xf32>
    %c6_158 = arith.constant 6 : index
    %c0_159 = arith.constant 0 : index
    %c0_160 = arith.constant 0 : index
    %285 = vector.load %arg2[%c6_158, %c0_159, %c0_160] : memref<9x1x256xf32, #tpu.memory_space<vmem>>, vector<1x1x256xf32>
    %286 = vector.shape_cast %285 : vector<1x1x256xf32> to vector<1x256xf32>
    %287 = vector.broadcast %286 : vector<1x256xf32> to vector<16x256xf32>
    %288 = arith.mulf %284, %287 : vector<16x256xf32>
    %c240_i32_161 = arith.constant 240 : i32
    %289 = tpu.dynamic_rotate %256 by %c240_i32_161 dim 1 : vector<16x256xf32>, i32 -> vector<16x256xf32>
    %c7_162 = arith.constant 7 : index
    %c0_163 = arith.constant 0 : index
    %c0_164 = arith.constant 0 : index
    %290 = vector.load %arg2[%c7_162, %c0_163, %c0_164] : memref<9x1x256xf32, #tpu.memory_space<vmem>>, vector<1x1x256xf32>
    %291 = vector.shape_cast %290 : vector<1x1x256xf32> to vector<1x256xf32>
    %292 = vector.broadcast %291 : vector<1x256xf32> to vector<16x256xf32>
    %293 = arith.mulf %289, %292 : vector<16x256xf32>
    %c239_i32_165 = arith.constant 239 : i32
    %294 = tpu.dynamic_rotate %256 by %c239_i32_165 dim 1 : vector<16x256xf32>, i32 -> vector<16x256xf32>
    %c8_166 = arith.constant 8 : index
    %c0_167 = arith.constant 0 : index
    %c0_168 = arith.constant 0 : index
    %295 = vector.load %arg2[%c8_166, %c0_167, %c0_168] : memref<9x1x256xf32, #tpu.memory_space<vmem>>, vector<1x1x256xf32>
    %296 = vector.shape_cast %295 : vector<1x1x256xf32> to vector<1x256xf32>
    %297 = vector.broadcast %296 : vector<1x256xf32> to vector<16x256xf32>
    %298 = arith.mulf %294, %297 : vector<16x256xf32>
    %299 = tpu.concatenate %263, %268, %273, %278, %256, %283, %288, %293, %298 in 0 : vector<16x256xf32>, vector<16x256xf32>, vector<16x256xf32>, vector<16x256xf32>, vector<16x256xf32>, vector<16x256xf32>, vector<16x256xf32>, vector<16x256xf32>, vector<16x256xf32> -> vector<144x256xf32>
    %cst_169 = arith.constant dense<0.000000e+00> : vector<16x256xf32>
    %300 = tpu.matmul %258, %299, %cst_169 {dimension_numbers = #tpu.dot_dimension_numbers<[1], [0], [0], [1], [0, 0, 1, 1], [], []>} : vector<16x144xf32>, vector<144x256xf32>, vector<16x256xf32> -> vector<16x256xf32>
    %c0_170 = arith.constant 0 : index
    %c0_171 = arith.constant 0 : index
    %c0_172 = arith.constant 0 : index
    %301 = vector.load %arg7[%c0_170, %c0_171, %c0_172] : memref<3x16x1xf32, #tpu.memory_space<vmem>>, vector<1x16x1xf32>
    %302 = vector.shape_cast %301 : vector<1x16x1xf32> to vector<16x1xf32>
    %303 = vector.broadcast %302 : vector<16x1xf32> to vector<16x256xf32>
    %304 = arith.addf %300, %303 : vector<16x256xf32>
    %305 = arith.addf %1, %304 : vector<16x256xf32>
    %cst_173 = arith.constant 5.000000e-01 : f32
    %306 = vector.broadcast %cst_173 : f32 to vector<16x256xf32>
    %307 = arith.mulf %306, %305 : vector<16x256xf32>
    %cst_174 = arith.constant 4.471500e-02 : f32
    %308 = vector.broadcast %cst_174 : f32 to vector<16x256xf32>
    %309 = arith.mulf %308, %305 : vector<16x256xf32>
    %310 = arith.mulf %309, %305 : vector<16x256xf32>
    %311 = arith.mulf %310, %305 : vector<16x256xf32>
    %312 = arith.addf %305, %311 : vector<16x256xf32>
    %cst_175 = arith.constant 0.797884583 : f32
    %313 = vector.broadcast %cst_175 : f32 to vector<16x256xf32>
    %314 = arith.mulf %313, %312 : vector<16x256xf32>
    %315 = math.tanh %314 : vector<16x256xf32>
    %cst_176 = arith.constant 1.000000e+00 : f32
    %316 = vector.broadcast %cst_176 : f32 to vector<16x256xf32>
    %317 = arith.addf %316, %315 : vector<16x256xf32>
    %318 = arith.mulf %307, %317 : vector<16x256xf32>
    %c1_177 = arith.constant 1 : index
    %c0_178 = arith.constant 0 : index
    %c0_179 = arith.constant 0 : index
    %319 = vector.load %arg4[%c1_177, %c0_178, %c0_179] : memref<3x32x144xf32, #tpu.memory_space<vmem>>, vector<1x32x144xf32>
    %320 = vector.shape_cast %319 : vector<1x32x144xf32> to vector<32x144xf32>
    %c17_i32_180 = arith.constant 17 : i32
    %321 = tpu.dynamic_rotate %305 by %c17_i32_180 dim 1 : vector<16x256xf32>, i32 -> vector<16x256xf32>
    %c0_181 = arith.constant 0 : index
    %c0_182 = arith.constant 0 : index
    %c0_183 = arith.constant 0 : index
    %322 = vector.load %arg2[%c0_181, %c0_182, %c0_183] : memref<9x1x256xf32, #tpu.memory_space<vmem>>, vector<1x1x256xf32>
    %323 = vector.shape_cast %322 : vector<1x1x256xf32> to vector<1x256xf32>
    %324 = vector.broadcast %323 : vector<1x256xf32> to vector<16x256xf32>
    %325 = arith.mulf %321, %324 : vector<16x256xf32>
    %c16_i32_184 = arith.constant 16 : i32
    %326 = tpu.dynamic_rotate %305 by %c16_i32_184 dim 1 : vector<16x256xf32>, i32 -> vector<16x256xf32>
    %c1_185 = arith.constant 1 : index
    %c0_186 = arith.constant 0 : index
    %c0_187 = arith.constant 0 : index
    %327 = vector.load %arg2[%c1_185, %c0_186, %c0_187] : memref<9x1x256xf32, #tpu.memory_space<vmem>>, vector<1x1x256xf32>
    %328 = vector.shape_cast %327 : vector<1x1x256xf32> to vector<1x256xf32>
    %329 = vector.broadcast %328 : vector<1x256xf32> to vector<16x256xf32>
    %330 = arith.mulf %326, %329 : vector<16x256xf32>
    %c15_i32_188 = arith.constant 15 : i32
    %331 = tpu.dynamic_rotate %305 by %c15_i32_188 dim 1 : vector<16x256xf32>, i32 -> vector<16x256xf32>
    %c2_189 = arith.constant 2 : index
    %c0_190 = arith.constant 0 : index
    %c0_191 = arith.constant 0 : index
    %332 = vector.load %arg2[%c2_189, %c0_190, %c0_191] : memref<9x1x256xf32, #tpu.memory_space<vmem>>, vector<1x1x256xf32>
    %333 = vector.shape_cast %332 : vector<1x1x256xf32> to vector<1x256xf32>
    %334 = vector.broadcast %333 : vector<1x256xf32> to vector<16x256xf32>
    %335 = arith.mulf %331, %334 : vector<16x256xf32>
    %c1_i32_192 = arith.constant 1 : i32
    %336 = tpu.dynamic_rotate %305 by %c1_i32_192 dim 1 : vector<16x256xf32>, i32 -> vector<16x256xf32>
    %c3_193 = arith.constant 3 : index
    %c0_194 = arith.constant 0 : index
    %c0_195 = arith.constant 0 : index
    %337 = vector.load %arg2[%c3_193, %c0_194, %c0_195] : memref<9x1x256xf32, #tpu.memory_space<vmem>>, vector<1x1x256xf32>
    %338 = vector.shape_cast %337 : vector<1x1x256xf32> to vector<1x256xf32>
    %339 = vector.broadcast %338 : vector<1x256xf32> to vector<16x256xf32>
    %340 = arith.mulf %336, %339 : vector<16x256xf32>
    %c255_i32_196 = arith.constant 255 : i32
    %341 = tpu.dynamic_rotate %305 by %c255_i32_196 dim 1 : vector<16x256xf32>, i32 -> vector<16x256xf32>
    %c5_197 = arith.constant 5 : index
    %c0_198 = arith.constant 0 : index
    %c0_199 = arith.constant 0 : index
    %342 = vector.load %arg2[%c5_197, %c0_198, %c0_199] : memref<9x1x256xf32, #tpu.memory_space<vmem>>, vector<1x1x256xf32>
    %343 = vector.shape_cast %342 : vector<1x1x256xf32> to vector<1x256xf32>
    %344 = vector.broadcast %343 : vector<1x256xf32> to vector<16x256xf32>
    %345 = arith.mulf %341, %344 : vector<16x256xf32>
    %c241_i32_200 = arith.constant 241 : i32
    %346 = tpu.dynamic_rotate %305 by %c241_i32_200 dim 1 : vector<16x256xf32>, i32 -> vector<16x256xf32>
    %c6_201 = arith.constant 6 : index
    %c0_202 = arith.constant 0 : index
    %c0_203 = arith.constant 0 : index
    %347 = vector.load %arg2[%c6_201, %c0_202, %c0_203] : memref<9x1x256xf32, #tpu.memory_space<vmem>>, vector<1x1x256xf32>
    %348 = vector.shape_cast %347 : vector<1x1x256xf32> to vector<1x256xf32>
    %349 = vector.broadcast %348 : vector<1x256xf32> to vector<16x256xf32>
    %350 = arith.mulf %346, %349 : vector<16x256xf32>
    %c240_i32_204 = arith.constant 240 : i32
    %351 = tpu.dynamic_rotate %305 by %c240_i32_204 dim 1 : vector<16x256xf32>, i32 -> vector<16x256xf32>
    %c7_205 = arith.constant 7 : index
    %c0_206 = arith.constant 0 : index
    %c0_207 = arith.constant 0 : index
    %352 = vector.load %arg2[%c7_205, %c0_206, %c0_207] : memref<9x1x256xf32, #tpu.memory_space<vmem>>, vector<1x1x256xf32>
    %353 = vector.shape_cast %352 : vector<1x1x256xf32> to vector<1x256xf32>
    %354 = vector.broadcast %353 : vector<1x256xf32> to vector<16x256xf32>
    %355 = arith.mulf %351, %354 : vector<16x256xf32>
    %c239_i32_208 = arith.constant 239 : i32
    %356 = tpu.dynamic_rotate %305 by %c239_i32_208 dim 1 : vector<16x256xf32>, i32 -> vector<16x256xf32>
    %c8_209 = arith.constant 8 : index
    %c0_210 = arith.constant 0 : index
    %c0_211 = arith.constant 0 : index
    %357 = vector.load %arg2[%c8_209, %c0_210, %c0_211] : memref<9x1x256xf32, #tpu.memory_space<vmem>>, vector<1x1x256xf32>
    %358 = vector.shape_cast %357 : vector<1x1x256xf32> to vector<1x256xf32>
    %359 = vector.broadcast %358 : vector<1x256xf32> to vector<16x256xf32>
    %360 = arith.mulf %356, %359 : vector<16x256xf32>
    %361 = tpu.concatenate %325, %330, %335, %340, %305, %345, %350, %355, %360 in 0 : vector<16x256xf32>, vector<16x256xf32>, vector<16x256xf32>, vector<16x256xf32>, vector<16x256xf32>, vector<16x256xf32>, vector<16x256xf32>, vector<16x256xf32>, vector<16x256xf32> -> vector<144x256xf32>
    %cst_212 = arith.constant dense<0.000000e+00> : vector<32x256xf32>
    %362 = tpu.matmul %320, %361, %cst_212 {dimension_numbers = #tpu.dot_dimension_numbers<[1], [0], [0], [1], [0, 0, 1, 1], [], []>} : vector<32x144xf32>, vector<144x256xf32>, vector<32x256xf32> -> vector<32x256xf32>
    %c1_213 = arith.constant 1 : index
    %c0_214 = arith.constant 0 : index
    %c0_215 = arith.constant 0 : index
    %363 = vector.load %arg5[%c1_213, %c0_214, %c0_215] : memref<3x32x1xf32, #tpu.memory_space<vmem>>, vector<1x32x1xf32>
    %364 = vector.shape_cast %363 : vector<1x32x1xf32> to vector<32x1xf32>
    %365 = vector.broadcast %364 : vector<32x1xf32> to vector<32x256xf32>
    %366 = arith.addf %362, %365 : vector<32x256xf32>
    %cst_216 = arith.constant 5.000000e-01 : f32
    %367 = vector.broadcast %cst_216 : f32 to vector<32x256xf32>
    %368 = arith.mulf %367, %366 : vector<32x256xf32>
    %cst_217 = arith.constant 4.471500e-02 : f32
    %369 = vector.broadcast %cst_217 : f32 to vector<32x256xf32>
    %370 = arith.mulf %369, %366 : vector<32x256xf32>
    %371 = arith.mulf %370, %366 : vector<32x256xf32>
    %372 = arith.mulf %371, %366 : vector<32x256xf32>
    %373 = arith.addf %366, %372 : vector<32x256xf32>
    %cst_218 = arith.constant 0.797884583 : f32
    %374 = vector.broadcast %cst_218 : f32 to vector<32x256xf32>
    %375 = arith.mulf %374, %373 : vector<32x256xf32>
    %376 = math.tanh %375 : vector<32x256xf32>
    %cst_219 = arith.constant 1.000000e+00 : f32
    %377 = vector.broadcast %cst_219 : f32 to vector<32x256xf32>
    %378 = arith.addf %377, %376 : vector<32x256xf32>
    %379 = arith.mulf %368, %378 : vector<32x256xf32>
    %380 = vector.extract_strided_slice %379 {offsets = [0, 0], sizes = [16, 256], strides = [1, 1]} : vector<32x256xf32> to vector<16x256xf32>
    %381 = arith.addf %305, %380 : vector<16x256xf32>
    %382 = vector.extract_strided_slice %379 {offsets = [16, 0], sizes = [16, 256], strides = [1, 1]} : vector<32x256xf32> to vector<16x256xf32>
    %383 = arith.addf %381, %382 : vector<16x256xf32>
    %c0_220 = arith.constant 0 : index
    %c0_221 = arith.constant 0 : index
    %c0_222 = arith.constant 0 : index
    %384 = vector.load %arg3[%c0_220, %c0_221, %c0_222] : memref<4x1x256xf32, #tpu.memory_space<vmem>>, vector<1x1x256xf32>
    %385 = vector.shape_cast %384 : vector<1x1x256xf32> to vector<1x256xf32>
    %c255_i32_223 = arith.constant 255 : i32
    %386 = tpu.dynamic_rotate %383 by %c255_i32_223 dim 1 : vector<16x256xf32>, i32 -> vector<16x256xf32>
    %387 = vector.broadcast %385 : vector<1x256xf32> to vector<16x256xf32>
    %388 = arith.mulf %386, %387 : vector<16x256xf32>
    %c15_i32_224 = arith.constant 15 : i32
    %389 = tpu.dynamic_rotate %383 by %c15_i32_224 dim 1 : vector<16x256xf32>, i32 -> vector<16x256xf32>
    %cst_225 = arith.constant 1.000000e+00 : f32
    %390 = vector.broadcast %cst_225 : f32 to vector<1x256xf32>
    %391 = arith.subf %390, %385 : vector<1x256xf32>
    %392 = vector.broadcast %391 : vector<1x256xf32> to vector<16x256xf32>
    %393 = arith.mulf %389, %392 : vector<16x256xf32>
    %394 = arith.addf %388, %393 : vector<16x256xf32>
    %395 = arith.addf %383, %394 : vector<16x256xf32>
    %c1_226 = arith.constant 1 : index
    %c0_227 = arith.constant 0 : index
    %c0_228 = arith.constant 0 : index
    %396 = vector.load %arg3[%c1_226, %c0_227, %c0_228] : memref<4x1x256xf32, #tpu.memory_space<vmem>>, vector<1x1x256xf32>
    %397 = vector.shape_cast %396 : vector<1x1x256xf32> to vector<1x256xf32>
    %c254_i32_229 = arith.constant 254 : i32
    %398 = tpu.dynamic_rotate %395 by %c254_i32_229 dim 1 : vector<16x256xf32>, i32 -> vector<16x256xf32>
    %399 = vector.broadcast %397 : vector<1x256xf32> to vector<16x256xf32>
    %400 = arith.mulf %398, %399 : vector<16x256xf32>
    %c14_i32_230 = arith.constant 14 : i32
    %401 = tpu.dynamic_rotate %395 by %c14_i32_230 dim 1 : vector<16x256xf32>, i32 -> vector<16x256xf32>
    %cst_231 = arith.constant 1.000000e+00 : f32
    %402 = vector.broadcast %cst_231 : f32 to vector<1x256xf32>
    %403 = arith.subf %402, %397 : vector<1x256xf32>
    %404 = vector.broadcast %403 : vector<1x256xf32> to vector<16x256xf32>
    %405 = arith.mulf %401, %404 : vector<16x256xf32>
    %406 = arith.addf %400, %405 : vector<16x256xf32>
    %407 = arith.addf %395, %406 : vector<16x256xf32>
    %c2_232 = arith.constant 2 : index
    %c0_233 = arith.constant 0 : index
    %c0_234 = arith.constant 0 : index
    %408 = vector.load %arg3[%c2_232, %c0_233, %c0_234] : memref<4x1x256xf32, #tpu.memory_space<vmem>>, vector<1x1x256xf32>
    %409 = vector.shape_cast %408 : vector<1x1x256xf32> to vector<1x256xf32>
    %c252_i32_235 = arith.constant 252 : i32
    %410 = tpu.dynamic_rotate %407 by %c252_i32_235 dim 1 : vector<16x256xf32>, i32 -> vector<16x256xf32>
    %411 = vector.broadcast %409 : vector<1x256xf32> to vector<16x256xf32>
    %412 = arith.mulf %410, %411 : vector<16x256xf32>
    %c12_i32_236 = arith.constant 12 : i32
    %413 = tpu.dynamic_rotate %407 by %c12_i32_236 dim 1 : vector<16x256xf32>, i32 -> vector<16x256xf32>
    %cst_237 = arith.constant 1.000000e+00 : f32
    %414 = vector.broadcast %cst_237 : f32 to vector<1x256xf32>
    %415 = arith.subf %414, %409 : vector<1x256xf32>
    %416 = vector.broadcast %415 : vector<1x256xf32> to vector<16x256xf32>
    %417 = arith.mulf %413, %416 : vector<16x256xf32>
    %418 = arith.addf %412, %417 : vector<16x256xf32>
    %419 = arith.addf %407, %418 : vector<16x256xf32>
    %c3_238 = arith.constant 3 : index
    %c0_239 = arith.constant 0 : index
    %c0_240 = arith.constant 0 : index
    %420 = vector.load %arg3[%c3_238, %c0_239, %c0_240] : memref<4x1x256xf32, #tpu.memory_space<vmem>>, vector<1x1x256xf32>
    %421 = vector.shape_cast %420 : vector<1x1x256xf32> to vector<1x256xf32>
    %c248_i32_241 = arith.constant 248 : i32
    %422 = tpu.dynamic_rotate %419 by %c248_i32_241 dim 1 : vector<16x256xf32>, i32 -> vector<16x256xf32>
    %423 = vector.broadcast %421 : vector<1x256xf32> to vector<16x256xf32>
    %424 = arith.mulf %422, %423 : vector<16x256xf32>
    %c8_i32_242 = arith.constant 8 : i32
    %425 = tpu.dynamic_rotate %419 by %c8_i32_242 dim 1 : vector<16x256xf32>, i32 -> vector<16x256xf32>
    %cst_243 = arith.constant 1.000000e+00 : f32
    %426 = vector.broadcast %cst_243 : f32 to vector<1x256xf32>
    %427 = arith.subf %426, %421 : vector<1x256xf32>
    %428 = vector.broadcast %427 : vector<1x256xf32> to vector<16x256xf32>
    %429 = arith.mulf %425, %428 : vector<16x256xf32>
    %430 = arith.addf %424, %429 : vector<16x256xf32>
    %431 = arith.addf %419, %430 : vector<16x256xf32>
    %cst_244 = arith.constant 6.250000e-02 : f32
    %432 = vector.broadcast %cst_244 : f32 to vector<16x256xf32>
    %433 = arith.mulf %431, %432 : vector<16x256xf32>
    %c240_i32_245 = arith.constant 240 : i32
    %434 = tpu.dynamic_rotate %383 by %c240_i32_245 dim 1 : vector<16x256xf32>, i32 -> vector<16x256xf32>
    %435 = arith.maximumf %383, %434 : vector<16x256xf32>
    %c224_i32_246 = arith.constant 224 : i32
    %436 = tpu.dynamic_rotate %435 by %c224_i32_246 dim 1 : vector<16x256xf32>, i32 -> vector<16x256xf32>
    %437 = arith.maximumf %435, %436 : vector<16x256xf32>
    %c192_i32_247 = arith.constant 192 : i32
    %438 = tpu.dynamic_rotate %437 by %c192_i32_247 dim 1 : vector<16x256xf32>, i32 -> vector<16x256xf32>
    %439 = arith.maximumf %437, %438 : vector<16x256xf32>
    %c128_i32_248 = arith.constant 128 : i32
    %440 = tpu.dynamic_rotate %439 by %c128_i32_248 dim 1 : vector<16x256xf32>, i32 -> vector<16x256xf32>
    %441 = arith.maximumf %439, %440 : vector<16x256xf32>
    %c1_249 = arith.constant 1 : index
    %c0_250 = arith.constant 0 : index
    %c0_251 = arith.constant 0 : index
    %442 = vector.load %arg8[%c1_249, %c0_250, %c0_251] : memref<3x8x16xf32, #tpu.memory_space<vmem>>, vector<1x8x16xf32>
    %443 = vector.shape_cast %442 : vector<1x8x16xf32> to vector<8x16xf32>
    %c1_252 = arith.constant 1 : index
    %c0_253 = arith.constant 0 : index
    %c0_254 = arith.constant 0 : index
    %444 = vector.load %arg9[%c1_252, %c0_253, %c0_254] : memref<3x8x1xf32, #tpu.memory_space<vmem>>, vector<1x8x1xf32>
    %445 = vector.shape_cast %444 : vector<1x8x1xf32> to vector<8x1xf32>
    %cst_255 = arith.constant dense<0.000000e+00> : vector<8x256xf32>
    %446 = tpu.matmul %443, %433, %cst_255 {dimension_numbers = #tpu.dot_dimension_numbers<[1], [0], [0], [1], [0, 0, 1, 1], [], []>} : vector<8x16xf32>, vector<16x256xf32>, vector<8x256xf32> -> vector<8x256xf32>
    %447 = vector.broadcast %445 : vector<8x1xf32> to vector<8x256xf32>
    %448 = arith.addf %446, %447 : vector<8x256xf32>
    %cst_256 = arith.constant 5.000000e-01 : f32
    %449 = vector.broadcast %cst_256 : f32 to vector<8x256xf32>
    %450 = arith.mulf %449, %448 : vector<8x256xf32>
    %cst_257 = arith.constant 4.471500e-02 : f32
    %451 = vector.broadcast %cst_257 : f32 to vector<8x256xf32>
    %452 = arith.mulf %451, %448 : vector<8x256xf32>
    %453 = arith.mulf %452, %448 : vector<8x256xf32>
    %454 = arith.mulf %453, %448 : vector<8x256xf32>
    %455 = arith.addf %448, %454 : vector<8x256xf32>
    %cst_258 = arith.constant 0.797884583 : f32
    %456 = vector.broadcast %cst_258 : f32 to vector<8x256xf32>
    %457 = arith.mulf %456, %455 : vector<8x256xf32>
    %458 = math.tanh %457 : vector<8x256xf32>
    %cst_259 = arith.constant 1.000000e+00 : f32
    %459 = vector.broadcast %cst_259 : f32 to vector<8x256xf32>
    %460 = arith.addf %459, %458 : vector<8x256xf32>
    %461 = arith.mulf %450, %460 : vector<8x256xf32>
    %cst_260 = arith.constant dense<0.000000e+00> : vector<8x256xf32>
    %462 = tpu.matmul %443, %441, %cst_260 {dimension_numbers = #tpu.dot_dimension_numbers<[1], [0], [0], [1], [0, 0, 1, 1], [], []>} : vector<8x16xf32>, vector<16x256xf32>, vector<8x256xf32> -> vector<8x256xf32>
    %463 = vector.broadcast %445 : vector<8x1xf32> to vector<8x256xf32>
    %464 = arith.addf %462, %463 : vector<8x256xf32>
    %cst_261 = arith.constant 5.000000e-01 : f32
    %465 = vector.broadcast %cst_261 : f32 to vector<8x256xf32>
    %466 = arith.mulf %465, %464 : vector<8x256xf32>
    %cst_262 = arith.constant 4.471500e-02 : f32
    %467 = vector.broadcast %cst_262 : f32 to vector<8x256xf32>
    %468 = arith.mulf %467, %464 : vector<8x256xf32>
    %469 = arith.mulf %468, %464 : vector<8x256xf32>
    %470 = arith.mulf %469, %464 : vector<8x256xf32>
    %471 = arith.addf %464, %470 : vector<8x256xf32>
    %cst_263 = arith.constant 0.797884583 : f32
    %472 = vector.broadcast %cst_263 : f32 to vector<8x256xf32>
    %473 = arith.mulf %472, %471 : vector<8x256xf32>
    %474 = math.tanh %473 : vector<8x256xf32>
    %cst_264 = arith.constant 1.000000e+00 : f32
    %475 = vector.broadcast %cst_264 : f32 to vector<8x256xf32>
    %476 = arith.addf %475, %474 : vector<8x256xf32>
    %477 = arith.mulf %466, %476 : vector<8x256xf32>
    %c1_265 = arith.constant 1 : index
    %c0_266 = arith.constant 0 : index
    %c0_267 = arith.constant 0 : index
    %478 = vector.load %arg10[%c1_265, %c0_266, %c0_267] : memref<3x16x24xf32, #tpu.memory_space<vmem>>, vector<1x16x24xf32>
    %479 = vector.shape_cast %478 : vector<1x16x24xf32> to vector<16x24xf32>
    %c16_i32_268 = arith.constant 16 : i32
    %480 = tpu.dynamic_rotate %461 by %c16_i32_268 dim 1 : vector<8x256xf32>, i32 -> vector<8x256xf32>
    %c1_269 = arith.constant 1 : index
    %c0_270 = arith.constant 0 : index
    %c0_271 = arith.constant 0 : index
    %481 = vector.load %arg2[%c1_269, %c0_270, %c0_271] : memref<9x1x256xf32, #tpu.memory_space<vmem>>, vector<1x1x256xf32>
    %482 = vector.shape_cast %481 : vector<1x1x256xf32> to vector<1x256xf32>
    %483 = vector.broadcast %482 : vector<1x256xf32> to vector<8x256xf32>
    %484 = arith.mulf %480, %483 : vector<8x256xf32>
    %c240_i32_272 = arith.constant 240 : i32
    %485 = tpu.dynamic_rotate %461 by %c240_i32_272 dim 1 : vector<8x256xf32>, i32 -> vector<8x256xf32>
    %c7_273 = arith.constant 7 : index
    %c0_274 = arith.constant 0 : index
    %c0_275 = arith.constant 0 : index
    %486 = vector.load %arg2[%c7_273, %c0_274, %c0_275] : memref<9x1x256xf32, #tpu.memory_space<vmem>>, vector<1x1x256xf32>
    %487 = vector.shape_cast %486 : vector<1x1x256xf32> to vector<1x256xf32>
    %488 = vector.broadcast %487 : vector<1x256xf32> to vector<8x256xf32>
    %489 = arith.mulf %485, %488 : vector<8x256xf32>
    %490 = tpu.concatenate %484, %461, %489 in 0 : vector<8x256xf32>, vector<8x256xf32>, vector<8x256xf32> -> vector<24x256xf32>
    %cst_276 = arith.constant dense<0.000000e+00> : vector<16x256xf32>
    %491 = tpu.matmul %479, %490, %cst_276 {dimension_numbers = #tpu.dot_dimension_numbers<[1], [0], [0], [1], [0, 0, 1, 1], [], []>} : vector<16x24xf32>, vector<24x256xf32>, vector<16x256xf32> -> vector<16x256xf32>
    %c1_277 = arith.constant 1 : index
    %c0_278 = arith.constant 0 : index
    %c0_279 = arith.constant 0 : index
    %492 = vector.load %arg12[%c1_277, %c0_278, %c0_279] : memref<3x16x1xf32, #tpu.memory_space<vmem>>, vector<1x16x1xf32>
    %493 = vector.shape_cast %492 : vector<1x16x1xf32> to vector<16x1xf32>
    %494 = vector.broadcast %493 : vector<16x1xf32> to vector<16x256xf32>
    %495 = arith.addf %491, %494 : vector<16x256xf32>
    %c1_280 = arith.constant 1 : index
    %c0_281 = arith.constant 0 : index
    %c0_282 = arith.constant 0 : index
    %496 = vector.load %arg11[%c1_280, %c0_281, %c0_282] : memref<3x16x24xf32, #tpu.memory_space<vmem>>, vector<1x16x24xf32>
    %497 = vector.shape_cast %496 : vector<1x16x24xf32> to vector<16x24xf32>
    %c1_i32_283 = arith.constant 1 : i32
    %498 = tpu.dynamic_rotate %477 by %c1_i32_283 dim 1 : vector<8x256xf32>, i32 -> vector<8x256xf32>
    %c3_284 = arith.constant 3 : index
    %c0_285 = arith.constant 0 : index
    %c0_286 = arith.constant 0 : index
    %499 = vector.load %arg2[%c3_284, %c0_285, %c0_286] : memref<9x1x256xf32, #tpu.memory_space<vmem>>, vector<1x1x256xf32>
    %500 = vector.shape_cast %499 : vector<1x1x256xf32> to vector<1x256xf32>
    %501 = vector.broadcast %500 : vector<1x256xf32> to vector<8x256xf32>
    %502 = arith.mulf %498, %501 : vector<8x256xf32>
    %c255_i32_287 = arith.constant 255 : i32
    %503 = tpu.dynamic_rotate %477 by %c255_i32_287 dim 1 : vector<8x256xf32>, i32 -> vector<8x256xf32>
    %c5_288 = arith.constant 5 : index
    %c0_289 = arith.constant 0 : index
    %c0_290 = arith.constant 0 : index
    %504 = vector.load %arg2[%c5_288, %c0_289, %c0_290] : memref<9x1x256xf32, #tpu.memory_space<vmem>>, vector<1x1x256xf32>
    %505 = vector.shape_cast %504 : vector<1x1x256xf32> to vector<1x256xf32>
    %506 = vector.broadcast %505 : vector<1x256xf32> to vector<8x256xf32>
    %507 = arith.mulf %503, %506 : vector<8x256xf32>
    %508 = tpu.concatenate %502, %477, %507 in 0 : vector<8x256xf32>, vector<8x256xf32>, vector<8x256xf32> -> vector<24x256xf32>
    %cst_291 = arith.constant dense<0.000000e+00> : vector<16x256xf32>
    %509 = tpu.matmul %497, %508, %cst_291 {dimension_numbers = #tpu.dot_dimension_numbers<[1], [0], [0], [1], [0, 0, 1, 1], [], []>} : vector<16x24xf32>, vector<24x256xf32>, vector<16x256xf32> -> vector<16x256xf32>
    %c1_292 = arith.constant 1 : index
    %c0_293 = arith.constant 0 : index
    %c0_294 = arith.constant 0 : index
    %510 = vector.load %arg12[%c1_292, %c0_293, %c0_294] : memref<3x16x1xf32, #tpu.memory_space<vmem>>, vector<1x16x1xf32>
    %511 = vector.shape_cast %510 : vector<1x16x1xf32> to vector<16x1xf32>
    %512 = vector.broadcast %511 : vector<16x1xf32> to vector<16x256xf32>
    %513 = arith.addf %509, %512 : vector<16x256xf32>
    %c1_295 = arith.constant 1 : index
    %c0_296 = arith.constant 0 : index
    %514 = memref.load %arg16[%c1_295, %c0_296] : memref<3x2xf32, #tpu.memory_space<smem>>
    %c1_297 = arith.constant 1 : index
    %c1_298 = arith.constant 1 : index
    %515 = memref.load %arg16[%c1_297, %c1_298] : memref<3x2xf32, #tpu.memory_space<smem>>
    %516 = vector.broadcast %514 : f32 to vector<16x256xf32>
    %517 = arith.mulf %433, %516 : vector<16x256xf32>
    %cst_299 = arith.constant 1.000000e+00 : f32
    %518 = arith.subf %cst_299, %514 : f32
    %519 = vector.broadcast %518 : f32 to vector<16x256xf32>
    %520 = arith.mulf %495, %519 : vector<16x256xf32>
    %521 = arith.addf %517, %520 : vector<16x256xf32>
    %522 = vector.broadcast %515 : f32 to vector<16x256xf32>
    %523 = arith.mulf %441, %522 : vector<16x256xf32>
    %cst_300 = arith.constant 1.000000e+00 : f32
    %524 = arith.subf %cst_300, %515 : f32
    %525 = vector.broadcast %524 : f32 to vector<16x256xf32>
    %526 = arith.mulf %513, %525 : vector<16x256xf32>
    %527 = arith.addf %523, %526 : vector<16x256xf32>
    %c1_301 = arith.constant 1 : index
    %c0_302 = arith.constant 0 : index
    %c0_303 = arith.constant 0 : index
    %528 = vector.load %arg13[%c1_301, %c0_302, %c0_303] : memref<3x16x48xf32, #tpu.memory_space<vmem>>, vector<1x16x48xf32>
    %529 = vector.shape_cast %528 : vector<1x16x48xf32> to vector<16x48xf32>
    %c16_i32_304 = arith.constant 16 : i32
    %530 = tpu.dynamic_rotate %521 by %c16_i32_304 dim 1 : vector<16x256xf32>, i32 -> vector<16x256xf32>
    %c1_305 = arith.constant 1 : index
    %c0_306 = arith.constant 0 : index
    %c0_307 = arith.constant 0 : index
    %531 = vector.load %arg2[%c1_305, %c0_306, %c0_307] : memref<9x1x256xf32, #tpu.memory_space<vmem>>, vector<1x1x256xf32>
    %532 = vector.shape_cast %531 : vector<1x1x256xf32> to vector<1x256xf32>
    %533 = vector.broadcast %532 : vector<1x256xf32> to vector<16x256xf32>
    %534 = arith.mulf %530, %533 : vector<16x256xf32>
    %c240_i32_308 = arith.constant 240 : i32
    %535 = tpu.dynamic_rotate %521 by %c240_i32_308 dim 1 : vector<16x256xf32>, i32 -> vector<16x256xf32>
    %c7_309 = arith.constant 7 : index
    %c0_310 = arith.constant 0 : index
    %c0_311 = arith.constant 0 : index
    %536 = vector.load %arg2[%c7_309, %c0_310, %c0_311] : memref<9x1x256xf32, #tpu.memory_space<vmem>>, vector<1x1x256xf32>
    %537 = vector.shape_cast %536 : vector<1x1x256xf32> to vector<1x256xf32>
    %538 = vector.broadcast %537 : vector<1x256xf32> to vector<16x256xf32>
    %539 = arith.mulf %535, %538 : vector<16x256xf32>
    %540 = tpu.concatenate %534, %521, %539 in 0 : vector<16x256xf32>, vector<16x256xf32>, vector<16x256xf32> -> vector<48x256xf32>
    %cst_312 = arith.constant dense<0.000000e+00> : vector<16x256xf32>
    %541 = tpu.matmul %529, %540, %cst_312 {dimension_numbers = #tpu.dot_dimension_numbers<[1], [0], [0], [1], [0, 0, 1, 1], [], []>} : vector<16x48xf32>, vector<48x256xf32>, vector<16x256xf32> -> vector<16x256xf32>
    %c1_313 = arith.constant 1 : index
    %c0_314 = arith.constant 0 : index
    %c0_315 = arith.constant 0 : index
    %542 = vector.load %arg15[%c1_313, %c0_314, %c0_315] : memref<3x16x1xf32, #tpu.memory_space<vmem>>, vector<1x16x1xf32>
    %543 = vector.shape_cast %542 : vector<1x16x1xf32> to vector<16x1xf32>
    %544 = vector.broadcast %543 : vector<16x1xf32> to vector<16x256xf32>
    %545 = arith.addf %541, %544 : vector<16x256xf32>
    %c1_316 = arith.constant 1 : index
    %c0_317 = arith.constant 0 : index
    %c0_318 = arith.constant 0 : index
    %546 = vector.load %arg14[%c1_316, %c0_317, %c0_318] : memref<3x16x48xf32, #tpu.memory_space<vmem>>, vector<1x16x48xf32>
    %547 = vector.shape_cast %546 : vector<1x16x48xf32> to vector<16x48xf32>
    %c1_i32_319 = arith.constant 1 : i32
    %548 = tpu.dynamic_rotate %527 by %c1_i32_319 dim 1 : vector<16x256xf32>, i32 -> vector<16x256xf32>
    %c3_320 = arith.constant 3 : index
    %c0_321 = arith.constant 0 : index
    %c0_322 = arith.constant 0 : index
    %549 = vector.load %arg2[%c3_320, %c0_321, %c0_322] : memref<9x1x256xf32, #tpu.memory_space<vmem>>, vector<1x1x256xf32>
    %550 = vector.shape_cast %549 : vector<1x1x256xf32> to vector<1x256xf32>
    %551 = vector.broadcast %550 : vector<1x256xf32> to vector<16x256xf32>
    %552 = arith.mulf %548, %551 : vector<16x256xf32>
    %c255_i32_323 = arith.constant 255 : i32
    %553 = tpu.dynamic_rotate %527 by %c255_i32_323 dim 1 : vector<16x256xf32>, i32 -> vector<16x256xf32>
    %c5_324 = arith.constant 5 : index
    %c0_325 = arith.constant 0 : index
    %c0_326 = arith.constant 0 : index
    %554 = vector.load %arg2[%c5_324, %c0_325, %c0_326] : memref<9x1x256xf32, #tpu.memory_space<vmem>>, vector<1x1x256xf32>
    %555 = vector.shape_cast %554 : vector<1x1x256xf32> to vector<1x256xf32>
    %556 = vector.broadcast %555 : vector<1x256xf32> to vector<16x256xf32>
    %557 = arith.mulf %553, %556 : vector<16x256xf32>
    %558 = tpu.concatenate %552, %527, %557 in 0 : vector<16x256xf32>, vector<16x256xf32>, vector<16x256xf32> -> vector<48x256xf32>
    %cst_327 = arith.constant dense<0.000000e+00> : vector<16x256xf32>
    %559 = tpu.matmul %547, %558, %cst_327 {dimension_numbers = #tpu.dot_dimension_numbers<[1], [0], [0], [1], [0, 0, 1, 1], [], []>} : vector<16x48xf32>, vector<48x256xf32>, vector<16x256xf32> -> vector<16x256xf32>
    %c1_328 = arith.constant 1 : index
    %c0_329 = arith.constant 0 : index
    %c0_330 = arith.constant 0 : index
    %560 = vector.load %arg15[%c1_328, %c0_329, %c0_330] : memref<3x16x1xf32, #tpu.memory_space<vmem>>, vector<1x16x1xf32>
    %561 = vector.shape_cast %560 : vector<1x16x1xf32> to vector<16x1xf32>
    %562 = vector.broadcast %561 : vector<16x1xf32> to vector<16x256xf32>
    %563 = arith.addf %559, %562 : vector<16x256xf32>
    %564 = arith.mulf %545, %563 : vector<16x256xf32>
    %cst_331 = arith.constant 0.000000e+00 : f32
    %565 = vector.broadcast %cst_331 : f32 to vector<16x256xf32>
    %566 = arith.subf %565, %564 : vector<16x256xf32>
    %567 = math.exp %566 : vector<16x256xf32>
    %cst_332 = arith.constant 1.000000e+00 : f32
    %568 = vector.broadcast %cst_332 : f32 to vector<16x256xf32>
    %569 = arith.addf %568, %567 : vector<16x256xf32>
    %cst_333 = arith.constant 1.000000e+00 : f32
    %570 = vector.broadcast %cst_333 : f32 to vector<16x256xf32>
    %571 = arith.divf %570, %569 : vector<16x256xf32>
    %572 = arith.mulf %383, %571 : vector<16x256xf32>
    %573 = arith.addf %383, %572 : vector<16x256xf32>
    %c1_334 = arith.constant 1 : index
    %c0_335 = arith.constant 0 : index
    %c0_336 = arith.constant 0 : index
    %574 = vector.load %arg6[%c1_334, %c0_335, %c0_336] : memref<3x16x144xf32, #tpu.memory_space<vmem>>, vector<1x16x144xf32>
    %575 = vector.shape_cast %574 : vector<1x16x144xf32> to vector<16x144xf32>
    %c17_i32_337 = arith.constant 17 : i32
    %576 = tpu.dynamic_rotate %573 by %c17_i32_337 dim 1 : vector<16x256xf32>, i32 -> vector<16x256xf32>
    %c0_338 = arith.constant 0 : index
    %c0_339 = arith.constant 0 : index
    %c0_340 = arith.constant 0 : index
    %577 = vector.load %arg2[%c0_338, %c0_339, %c0_340] : memref<9x1x256xf32, #tpu.memory_space<vmem>>, vector<1x1x256xf32>
    %578 = vector.shape_cast %577 : vector<1x1x256xf32> to vector<1x256xf32>
    %579 = vector.broadcast %578 : vector<1x256xf32> to vector<16x256xf32>
    %580 = arith.mulf %576, %579 : vector<16x256xf32>
    %c16_i32_341 = arith.constant 16 : i32
    %581 = tpu.dynamic_rotate %573 by %c16_i32_341 dim 1 : vector<16x256xf32>, i32 -> vector<16x256xf32>
    %c1_342 = arith.constant 1 : index
    %c0_343 = arith.constant 0 : index
    %c0_344 = arith.constant 0 : index
    %582 = vector.load %arg2[%c1_342, %c0_343, %c0_344] : memref<9x1x256xf32, #tpu.memory_space<vmem>>, vector<1x1x256xf32>
    %583 = vector.shape_cast %582 : vector<1x1x256xf32> to vector<1x256xf32>
    %584 = vector.broadcast %583 : vector<1x256xf32> to vector<16x256xf32>
    %585 = arith.mulf %581, %584 : vector<16x256xf32>
    %c15_i32_345 = arith.constant 15 : i32
    %586 = tpu.dynamic_rotate %573 by %c15_i32_345 dim 1 : vector<16x256xf32>, i32 -> vector<16x256xf32>
    %c2_346 = arith.constant 2 : index
    %c0_347 = arith.constant 0 : index
    %c0_348 = arith.constant 0 : index
    %587 = vector.load %arg2[%c2_346, %c0_347, %c0_348] : memref<9x1x256xf32, #tpu.memory_space<vmem>>, vector<1x1x256xf32>
    %588 = vector.shape_cast %587 : vector<1x1x256xf32> to vector<1x256xf32>
    %589 = vector.broadcast %588 : vector<1x256xf32> to vector<16x256xf32>
    %590 = arith.mulf %586, %589 : vector<16x256xf32>
    %c1_i32_349 = arith.constant 1 : i32
    %591 = tpu.dynamic_rotate %573 by %c1_i32_349 dim 1 : vector<16x256xf32>, i32 -> vector<16x256xf32>
    %c3_350 = arith.constant 3 : index
    %c0_351 = arith.constant 0 : index
    %c0_352 = arith.constant 0 : index
    %592 = vector.load %arg2[%c3_350, %c0_351, %c0_352] : memref<9x1x256xf32, #tpu.memory_space<vmem>>, vector<1x1x256xf32>
    %593 = vector.shape_cast %592 : vector<1x1x256xf32> to vector<1x256xf32>
    %594 = vector.broadcast %593 : vector<1x256xf32> to vector<16x256xf32>
    %595 = arith.mulf %591, %594 : vector<16x256xf32>
    %c255_i32_353 = arith.constant 255 : i32
    %596 = tpu.dynamic_rotate %573 by %c255_i32_353 dim 1 : vector<16x256xf32>, i32 -> vector<16x256xf32>
    %c5_354 = arith.constant 5 : index
    %c0_355 = arith.constant 0 : index
    %c0_356 = arith.constant 0 : index
    %597 = vector.load %arg2[%c5_354, %c0_355, %c0_356] : memref<9x1x256xf32, #tpu.memory_space<vmem>>, vector<1x1x256xf32>
    %598 = vector.shape_cast %597 : vector<1x1x256xf32> to vector<1x256xf32>
    %599 = vector.broadcast %598 : vector<1x256xf32> to vector<16x256xf32>
    %600 = arith.mulf %596, %599 : vector<16x256xf32>
    %c241_i32_357 = arith.constant 241 : i32
    %601 = tpu.dynamic_rotate %573 by %c241_i32_357 dim 1 : vector<16x256xf32>, i32 -> vector<16x256xf32>
    %c6_358 = arith.constant 6 : index
    %c0_359 = arith.constant 0 : index
    %c0_360 = arith.constant 0 : index
    %602 = vector.load %arg2[%c6_358, %c0_359, %c0_360] : memref<9x1x256xf32, #tpu.memory_space<vmem>>, vector<1x1x256xf32>
    %603 = vector.shape_cast %602 : vector<1x1x256xf32> to vector<1x256xf32>
    %604 = vector.broadcast %603 : vector<1x256xf32> to vector<16x256xf32>
    %605 = arith.mulf %601, %604 : vector<16x256xf32>
    %c240_i32_361 = arith.constant 240 : i32
    %606 = tpu.dynamic_rotate %573 by %c240_i32_361 dim 1 : vector<16x256xf32>, i32 -> vector<16x256xf32>
    %c7_362 = arith.constant 7 : index
    %c0_363 = arith.constant 0 : index
    %c0_364 = arith.constant 0 : index
    %607 = vector.load %arg2[%c7_362, %c0_363, %c0_364] : memref<9x1x256xf32, #tpu.memory_space<vmem>>, vector<1x1x256xf32>
    %608 = vector.shape_cast %607 : vector<1x1x256xf32> to vector<1x256xf32>
    %609 = vector.broadcast %608 : vector<1x256xf32> to vector<16x256xf32>
    %610 = arith.mulf %606, %609 : vector<16x256xf32>
    %c239_i32_365 = arith.constant 239 : i32
    %611 = tpu.dynamic_rotate %573 by %c239_i32_365 dim 1 : vector<16x256xf32>, i32 -> vector<16x256xf32>
    %c8_366 = arith.constant 8 : index
    %c0_367 = arith.constant 0 : index
    %c0_368 = arith.constant 0 : index
    %612 = vector.load %arg2[%c8_366, %c0_367, %c0_368] : memref<9x1x256xf32, #tpu.memory_space<vmem>>, vector<1x1x256xf32>
    %613 = vector.shape_cast %612 : vector<1x1x256xf32> to vector<1x256xf32>
    %614 = vector.broadcast %613 : vector<1x256xf32> to vector<16x256xf32>
    %615 = arith.mulf %611, %614 : vector<16x256xf32>
    %616 = tpu.concatenate %580, %585, %590, %595, %573, %600, %605, %610, %615 in 0 : vector<16x256xf32>, vector<16x256xf32>, vector<16x256xf32>, vector<16x256xf32>, vector<16x256xf32>, vector<16x256xf32>, vector<16x256xf32>, vector<16x256xf32>, vector<16x256xf32> -> vector<144x256xf32>
    %cst_369 = arith.constant dense<0.000000e+00> : vector<16x256xf32>
    %617 = tpu.matmul %575, %616, %cst_369 {dimension_numbers = #tpu.dot_dimension_numbers<[1], [0], [0], [1], [0, 0, 1, 1], [], []>} : vector<16x144xf32>, vector<144x256xf32>, vector<16x256xf32> -> vector<16x256xf32>
    %c1_370 = arith.constant 1 : index
    %c0_371 = arith.constant 0 : index
    %c0_372 = arith.constant 0 : index
    %618 = vector.load %arg7[%c1_370, %c0_371, %c0_372] : memref<3x16x1xf32, #tpu.memory_space<vmem>>, vector<1x16x1xf32>
    %619 = vector.shape_cast %618 : vector<1x16x1xf32> to vector<16x1xf32>
    %620 = vector.broadcast %619 : vector<16x1xf32> to vector<16x256xf32>
    %621 = arith.addf %617, %620 : vector<16x256xf32>
    %622 = arith.addf %305, %621 : vector<16x256xf32>
    %cst_373 = arith.constant 5.000000e-01 : f32
    %623 = vector.broadcast %cst_373 : f32 to vector<16x256xf32>
    %624 = arith.mulf %623, %622 : vector<16x256xf32>
    %cst_374 = arith.constant 4.471500e-02 : f32
    %625 = vector.broadcast %cst_374 : f32 to vector<16x256xf32>
    %626 = arith.mulf %625, %622 : vector<16x256xf32>
    %627 = arith.mulf %626, %622 : vector<16x256xf32>
    %628 = arith.mulf %627, %622 : vector<16x256xf32>
    %629 = arith.addf %622, %628 : vector<16x256xf32>
    %cst_375 = arith.constant 0.797884583 : f32
    %630 = vector.broadcast %cst_375 : f32 to vector<16x256xf32>
    %631 = arith.mulf %630, %629 : vector<16x256xf32>
    %632 = math.tanh %631 : vector<16x256xf32>
    %cst_376 = arith.constant 1.000000e+00 : f32
    %633 = vector.broadcast %cst_376 : f32 to vector<16x256xf32>
    %634 = arith.addf %633, %632 : vector<16x256xf32>
    %635 = arith.mulf %624, %634 : vector<16x256xf32>
    %c2_377 = arith.constant 2 : index
    %c0_378 = arith.constant 0 : index
    %c0_379 = arith.constant 0 : index
    %636 = vector.load %arg4[%c2_377, %c0_378, %c0_379] : memref<3x32x144xf32, #tpu.memory_space<vmem>>, vector<1x32x144xf32>
    %637 = vector.shape_cast %636 : vector<1x32x144xf32> to vector<32x144xf32>
    %c17_i32_380 = arith.constant 17 : i32
    %638 = tpu.dynamic_rotate %622 by %c17_i32_380 dim 1 : vector<16x256xf32>, i32 -> vector<16x256xf32>
    %c0_381 = arith.constant 0 : index
    %c0_382 = arith.constant 0 : index
    %c0_383 = arith.constant 0 : index
    %639 = vector.load %arg2[%c0_381, %c0_382, %c0_383] : memref<9x1x256xf32, #tpu.memory_space<vmem>>, vector<1x1x256xf32>
    %640 = vector.shape_cast %639 : vector<1x1x256xf32> to vector<1x256xf32>
    %641 = vector.broadcast %640 : vector<1x256xf32> to vector<16x256xf32>
    %642 = arith.mulf %638, %641 : vector<16x256xf32>
    %c16_i32_384 = arith.constant 16 : i32
    %643 = tpu.dynamic_rotate %622 by %c16_i32_384 dim 1 : vector<16x256xf32>, i32 -> vector<16x256xf32>
    %c1_385 = arith.constant 1 : index
    %c0_386 = arith.constant 0 : index
    %c0_387 = arith.constant 0 : index
    %644 = vector.load %arg2[%c1_385, %c0_386, %c0_387] : memref<9x1x256xf32, #tpu.memory_space<vmem>>, vector<1x1x256xf32>
    %645 = vector.shape_cast %644 : vector<1x1x256xf32> to vector<1x256xf32>
    %646 = vector.broadcast %645 : vector<1x256xf32> to vector<16x256xf32>
    %647 = arith.mulf %643, %646 : vector<16x256xf32>
    %c15_i32_388 = arith.constant 15 : i32
    %648 = tpu.dynamic_rotate %622 by %c15_i32_388 dim 1 : vector<16x256xf32>, i32 -> vector<16x256xf32>
    %c2_389 = arith.constant 2 : index
    %c0_390 = arith.constant 0 : index
    %c0_391 = arith.constant 0 : index
    %649 = vector.load %arg2[%c2_389, %c0_390, %c0_391] : memref<9x1x256xf32, #tpu.memory_space<vmem>>, vector<1x1x256xf32>
    %650 = vector.shape_cast %649 : vector<1x1x256xf32> to vector<1x256xf32>
    %651 = vector.broadcast %650 : vector<1x256xf32> to vector<16x256xf32>
    %652 = arith.mulf %648, %651 : vector<16x256xf32>
    %c1_i32_392 = arith.constant 1 : i32
    %653 = tpu.dynamic_rotate %622 by %c1_i32_392 dim 1 : vector<16x256xf32>, i32 -> vector<16x256xf32>
    %c3_393 = arith.constant 3 : index
    %c0_394 = arith.constant 0 : index
    %c0_395 = arith.constant 0 : index
    %654 = vector.load %arg2[%c3_393, %c0_394, %c0_395] : memref<9x1x256xf32, #tpu.memory_space<vmem>>, vector<1x1x256xf32>
    %655 = vector.shape_cast %654 : vector<1x1x256xf32> to vector<1x256xf32>
    %656 = vector.broadcast %655 : vector<1x256xf32> to vector<16x256xf32>
    %657 = arith.mulf %653, %656 : vector<16x256xf32>
    %c255_i32_396 = arith.constant 255 : i32
    %658 = tpu.dynamic_rotate %622 by %c255_i32_396 dim 1 : vector<16x256xf32>, i32 -> vector<16x256xf32>
    %c5_397 = arith.constant 5 : index
    %c0_398 = arith.constant 0 : index
    %c0_399 = arith.constant 0 : index
    %659 = vector.load %arg2[%c5_397, %c0_398, %c0_399] : memref<9x1x256xf32, #tpu.memory_space<vmem>>, vector<1x1x256xf32>
    %660 = vector.shape_cast %659 : vector<1x1x256xf32> to vector<1x256xf32>
    %661 = vector.broadcast %660 : vector<1x256xf32> to vector<16x256xf32>
    %662 = arith.mulf %658, %661 : vector<16x256xf32>
    %c241_i32_400 = arith.constant 241 : i32
    %663 = tpu.dynamic_rotate %622 by %c241_i32_400 dim 1 : vector<16x256xf32>, i32 -> vector<16x256xf32>
    %c6_401 = arith.constant 6 : index
    %c0_402 = arith.constant 0 : index
    %c0_403 = arith.constant 0 : index
    %664 = vector.load %arg2[%c6_401, %c0_402, %c0_403] : memref<9x1x256xf32, #tpu.memory_space<vmem>>, vector<1x1x256xf32>
    %665 = vector.shape_cast %664 : vector<1x1x256xf32> to vector<1x256xf32>
    %666 = vector.broadcast %665 : vector<1x256xf32> to vector<16x256xf32>
    %667 = arith.mulf %663, %666 : vector<16x256xf32>
    %c240_i32_404 = arith.constant 240 : i32
    %668 = tpu.dynamic_rotate %622 by %c240_i32_404 dim 1 : vector<16x256xf32>, i32 -> vector<16x256xf32>
    %c7_405 = arith.constant 7 : index
    %c0_406 = arith.constant 0 : index
    %c0_407 = arith.constant 0 : index
    %669 = vector.load %arg2[%c7_405, %c0_406, %c0_407] : memref<9x1x256xf32, #tpu.memory_space<vmem>>, vector<1x1x256xf32>
    %670 = vector.shape_cast %669 : vector<1x1x256xf32> to vector<1x256xf32>
    %671 = vector.broadcast %670 : vector<1x256xf32> to vector<16x256xf32>
    %672 = arith.mulf %668, %671 : vector<16x256xf32>
    %c239_i32_408 = arith.constant 239 : i32
    %673 = tpu.dynamic_rotate %622 by %c239_i32_408 dim 1 : vector<16x256xf32>, i32 -> vector<16x256xf32>
    %c8_409 = arith.constant 8 : index
    %c0_410 = arith.constant 0 : index
    %c0_411 = arith.constant 0 : index
    %674 = vector.load %arg2[%c8_409, %c0_410, %c0_411] : memref<9x1x256xf32, #tpu.memory_space<vmem>>, vector<1x1x256xf32>
    %675 = vector.shape_cast %674 : vector<1x1x256xf32> to vector<1x256xf32>
    %676 = vector.broadcast %675 : vector<1x256xf32> to vector<16x256xf32>
    %677 = arith.mulf %673, %676 : vector<16x256xf32>
    %678 = tpu.concatenate %642, %647, %652, %657, %622, %662, %667, %672, %677 in 0 : vector<16x256xf32>, vector<16x256xf32>, vector<16x256xf32>, vector<16x256xf32>, vector<16x256xf32>, vector<16x256xf32>, vector<16x256xf32>, vector<16x256xf32>, vector<16x256xf32> -> vector<144x256xf32>
    %cst_412 = arith.constant dense<0.000000e+00> : vector<32x256xf32>
    %679 = tpu.matmul %637, %678, %cst_412 {dimension_numbers = #tpu.dot_dimension_numbers<[1], [0], [0], [1], [0, 0, 1, 1], [], []>} : vector<32x144xf32>, vector<144x256xf32>, vector<32x256xf32> -> vector<32x256xf32>
    %c2_413 = arith.constant 2 : index
    %c0_414 = arith.constant 0 : index
    %c0_415 = arith.constant 0 : index
    %680 = vector.load %arg5[%c2_413, %c0_414, %c0_415] : memref<3x32x1xf32, #tpu.memory_space<vmem>>, vector<1x32x1xf32>
    %681 = vector.shape_cast %680 : vector<1x32x1xf32> to vector<32x1xf32>
    %682 = vector.broadcast %681 : vector<32x1xf32> to vector<32x256xf32>
    %683 = arith.addf %679, %682 : vector<32x256xf32>
    %cst_416 = arith.constant 5.000000e-01 : f32
    %684 = vector.broadcast %cst_416 : f32 to vector<32x256xf32>
    %685 = arith.mulf %684, %683 : vector<32x256xf32>
    %cst_417 = arith.constant 4.471500e-02 : f32
    %686 = vector.broadcast %cst_417 : f32 to vector<32x256xf32>
    %687 = arith.mulf %686, %683 : vector<32x256xf32>
    %688 = arith.mulf %687, %683 : vector<32x256xf32>
    %689 = arith.mulf %688, %683 : vector<32x256xf32>
    %690 = arith.addf %683, %689 : vector<32x256xf32>
    %cst_418 = arith.constant 0.797884583 : f32
    %691 = vector.broadcast %cst_418 : f32 to vector<32x256xf32>
    %692 = arith.mulf %691, %690 : vector<32x256xf32>
    %693 = math.tanh %692 : vector<32x256xf32>
    %cst_419 = arith.constant 1.000000e+00 : f32
    %694 = vector.broadcast %cst_419 : f32 to vector<32x256xf32>
    %695 = arith.addf %694, %693 : vector<32x256xf32>
    %696 = arith.mulf %685, %695 : vector<32x256xf32>
    %697 = vector.extract_strided_slice %696 {offsets = [0, 0], sizes = [16, 256], strides = [1, 1]} : vector<32x256xf32> to vector<16x256xf32>
    %698 = arith.addf %622, %697 : vector<16x256xf32>
    %699 = vector.extract_strided_slice %696 {offsets = [16, 0], sizes = [16, 256], strides = [1, 1]} : vector<32x256xf32> to vector<16x256xf32>
    %700 = arith.addf %698, %699 : vector<16x256xf32>
    %c0_420 = arith.constant 0 : index
    %c0_421 = arith.constant 0 : index
    %c0_422 = arith.constant 0 : index
    %701 = vector.load %arg3[%c0_420, %c0_421, %c0_422] : memref<4x1x256xf32, #tpu.memory_space<vmem>>, vector<1x1x256xf32>
    %702 = vector.shape_cast %701 : vector<1x1x256xf32> to vector<1x256xf32>
    %c255_i32_423 = arith.constant 255 : i32
    %703 = tpu.dynamic_rotate %700 by %c255_i32_423 dim 1 : vector<16x256xf32>, i32 -> vector<16x256xf32>
    %704 = vector.broadcast %702 : vector<1x256xf32> to vector<16x256xf32>
    %705 = arith.mulf %703, %704 : vector<16x256xf32>
    %c15_i32_424 = arith.constant 15 : i32
    %706 = tpu.dynamic_rotate %700 by %c15_i32_424 dim 1 : vector<16x256xf32>, i32 -> vector<16x256xf32>
    %cst_425 = arith.constant 1.000000e+00 : f32
    %707 = vector.broadcast %cst_425 : f32 to vector<1x256xf32>
    %708 = arith.subf %707, %702 : vector<1x256xf32>
    %709 = vector.broadcast %708 : vector<1x256xf32> to vector<16x256xf32>
    %710 = arith.mulf %706, %709 : vector<16x256xf32>
    %711 = arith.addf %705, %710 : vector<16x256xf32>
    %712 = arith.addf %700, %711 : vector<16x256xf32>
    %c1_426 = arith.constant 1 : index
    %c0_427 = arith.constant 0 : index
    %c0_428 = arith.constant 0 : index
    %713 = vector.load %arg3[%c1_426, %c0_427, %c0_428] : memref<4x1x256xf32, #tpu.memory_space<vmem>>, vector<1x1x256xf32>
    %714 = vector.shape_cast %713 : vector<1x1x256xf32> to vector<1x256xf32>
    %c254_i32_429 = arith.constant 254 : i32
    %715 = tpu.dynamic_rotate %712 by %c254_i32_429 dim 1 : vector<16x256xf32>, i32 -> vector<16x256xf32>
    %716 = vector.broadcast %714 : vector<1x256xf32> to vector<16x256xf32>
    %717 = arith.mulf %715, %716 : vector<16x256xf32>
    %c14_i32_430 = arith.constant 14 : i32
    %718 = tpu.dynamic_rotate %712 by %c14_i32_430 dim 1 : vector<16x256xf32>, i32 -> vector<16x256xf32>
    %cst_431 = arith.constant 1.000000e+00 : f32
    %719 = vector.broadcast %cst_431 : f32 to vector<1x256xf32>
    %720 = arith.subf %719, %714 : vector<1x256xf32>
    %721 = vector.broadcast %720 : vector<1x256xf32> to vector<16x256xf32>
    %722 = arith.mulf %718, %721 : vector<16x256xf32>
    %723 = arith.addf %717, %722 : vector<16x256xf32>
    %724 = arith.addf %712, %723 : vector<16x256xf32>
    %c2_432 = arith.constant 2 : index
    %c0_433 = arith.constant 0 : index
    %c0_434 = arith.constant 0 : index
    %725 = vector.load %arg3[%c2_432, %c0_433, %c0_434] : memref<4x1x256xf32, #tpu.memory_space<vmem>>, vector<1x1x256xf32>
    %726 = vector.shape_cast %725 : vector<1x1x256xf32> to vector<1x256xf32>
    %c252_i32_435 = arith.constant 252 : i32
    %727 = tpu.dynamic_rotate %724 by %c252_i32_435 dim 1 : vector<16x256xf32>, i32 -> vector<16x256xf32>
    %728 = vector.broadcast %726 : vector<1x256xf32> to vector<16x256xf32>
    %729 = arith.mulf %727, %728 : vector<16x256xf32>
    %c12_i32_436 = arith.constant 12 : i32
    %730 = tpu.dynamic_rotate %724 by %c12_i32_436 dim 1 : vector<16x256xf32>, i32 -> vector<16x256xf32>
    %cst_437 = arith.constant 1.000000e+00 : f32
    %731 = vector.broadcast %cst_437 : f32 to vector<1x256xf32>
    %732 = arith.subf %731, %726 : vector<1x256xf32>
    %733 = vector.broadcast %732 : vector<1x256xf32> to vector<16x256xf32>
    %734 = arith.mulf %730, %733 : vector<16x256xf32>
    %735 = arith.addf %729, %734 : vector<16x256xf32>
    %736 = arith.addf %724, %735 : vector<16x256xf32>
    %c3_438 = arith.constant 3 : index
    %c0_439 = arith.constant 0 : index
    %c0_440 = arith.constant 0 : index
    %737 = vector.load %arg3[%c3_438, %c0_439, %c0_440] : memref<4x1x256xf32, #tpu.memory_space<vmem>>, vector<1x1x256xf32>
    %738 = vector.shape_cast %737 : vector<1x1x256xf32> to vector<1x256xf32>
    %c248_i32_441 = arith.constant 248 : i32
    %739 = tpu.dynamic_rotate %736 by %c248_i32_441 dim 1 : vector<16x256xf32>, i32 -> vector<16x256xf32>
    %740 = vector.broadcast %738 : vector<1x256xf32> to vector<16x256xf32>
    %741 = arith.mulf %739, %740 : vector<16x256xf32>
    %c8_i32_442 = arith.constant 8 : i32
    %742 = tpu.dynamic_rotate %736 by %c8_i32_442 dim 1 : vector<16x256xf32>, i32 -> vector<16x256xf32>
    %cst_443 = arith.constant 1.000000e+00 : f32
    %743 = vector.broadcast %cst_443 : f32 to vector<1x256xf32>
    %744 = arith.subf %743, %738 : vector<1x256xf32>
    %745 = vector.broadcast %744 : vector<1x256xf32> to vector<16x256xf32>
    %746 = arith.mulf %742, %745 : vector<16x256xf32>
    %747 = arith.addf %741, %746 : vector<16x256xf32>
    %748 = arith.addf %736, %747 : vector<16x256xf32>
    %cst_444 = arith.constant 6.250000e-02 : f32
    %749 = vector.broadcast %cst_444 : f32 to vector<16x256xf32>
    %750 = arith.mulf %748, %749 : vector<16x256xf32>
    %c240_i32_445 = arith.constant 240 : i32
    %751 = tpu.dynamic_rotate %700 by %c240_i32_445 dim 1 : vector<16x256xf32>, i32 -> vector<16x256xf32>
    %752 = arith.maximumf %700, %751 : vector<16x256xf32>
    %c224_i32_446 = arith.constant 224 : i32
    %753 = tpu.dynamic_rotate %752 by %c224_i32_446 dim 1 : vector<16x256xf32>, i32 -> vector<16x256xf32>
    %754 = arith.maximumf %752, %753 : vector<16x256xf32>
    %c192_i32_447 = arith.constant 192 : i32
    %755 = tpu.dynamic_rotate %754 by %c192_i32_447 dim 1 : vector<16x256xf32>, i32 -> vector<16x256xf32>
    %756 = arith.maximumf %754, %755 : vector<16x256xf32>
    %c128_i32_448 = arith.constant 128 : i32
    %757 = tpu.dynamic_rotate %756 by %c128_i32_448 dim 1 : vector<16x256xf32>, i32 -> vector<16x256xf32>
    %758 = arith.maximumf %756, %757 : vector<16x256xf32>
    %c2_449 = arith.constant 2 : index
    %c0_450 = arith.constant 0 : index
    %c0_451 = arith.constant 0 : index
    %759 = vector.load %arg8[%c2_449, %c0_450, %c0_451] : memref<3x8x16xf32, #tpu.memory_space<vmem>>, vector<1x8x16xf32>
    %760 = vector.shape_cast %759 : vector<1x8x16xf32> to vector<8x16xf32>
    %c2_452 = arith.constant 2 : index
    %c0_453 = arith.constant 0 : index
    %c0_454 = arith.constant 0 : index
    %761 = vector.load %arg9[%c2_452, %c0_453, %c0_454] : memref<3x8x1xf32, #tpu.memory_space<vmem>>, vector<1x8x1xf32>
    %762 = vector.shape_cast %761 : vector<1x8x1xf32> to vector<8x1xf32>
    %cst_455 = arith.constant dense<0.000000e+00> : vector<8x256xf32>
    %763 = tpu.matmul %760, %750, %cst_455 {dimension_numbers = #tpu.dot_dimension_numbers<[1], [0], [0], [1], [0, 0, 1, 1], [], []>} : vector<8x16xf32>, vector<16x256xf32>, vector<8x256xf32> -> vector<8x256xf32>
    %764 = vector.broadcast %762 : vector<8x1xf32> to vector<8x256xf32>
    %765 = arith.addf %763, %764 : vector<8x256xf32>
    %cst_456 = arith.constant 5.000000e-01 : f32
    %766 = vector.broadcast %cst_456 : f32 to vector<8x256xf32>
    %767 = arith.mulf %766, %765 : vector<8x256xf32>
    %cst_457 = arith.constant 4.471500e-02 : f32
    %768 = vector.broadcast %cst_457 : f32 to vector<8x256xf32>
    %769 = arith.mulf %768, %765 : vector<8x256xf32>
    %770 = arith.mulf %769, %765 : vector<8x256xf32>
    %771 = arith.mulf %770, %765 : vector<8x256xf32>
    %772 = arith.addf %765, %771 : vector<8x256xf32>
    %cst_458 = arith.constant 0.797884583 : f32
    %773 = vector.broadcast %cst_458 : f32 to vector<8x256xf32>
    %774 = arith.mulf %773, %772 : vector<8x256xf32>
    %775 = math.tanh %774 : vector<8x256xf32>
    %cst_459 = arith.constant 1.000000e+00 : f32
    %776 = vector.broadcast %cst_459 : f32 to vector<8x256xf32>
    %777 = arith.addf %776, %775 : vector<8x256xf32>
    %778 = arith.mulf %767, %777 : vector<8x256xf32>
    %cst_460 = arith.constant dense<0.000000e+00> : vector<8x256xf32>
    %779 = tpu.matmul %760, %758, %cst_460 {dimension_numbers = #tpu.dot_dimension_numbers<[1], [0], [0], [1], [0, 0, 1, 1], [], []>} : vector<8x16xf32>, vector<16x256xf32>, vector<8x256xf32> -> vector<8x256xf32>
    %780 = vector.broadcast %762 : vector<8x1xf32> to vector<8x256xf32>
    %781 = arith.addf %779, %780 : vector<8x256xf32>
    %cst_461 = arith.constant 5.000000e-01 : f32
    %782 = vector.broadcast %cst_461 : f32 to vector<8x256xf32>
    %783 = arith.mulf %782, %781 : vector<8x256xf32>
    %cst_462 = arith.constant 4.471500e-02 : f32
    %784 = vector.broadcast %cst_462 : f32 to vector<8x256xf32>
    %785 = arith.mulf %784, %781 : vector<8x256xf32>
    %786 = arith.mulf %785, %781 : vector<8x256xf32>
    %787 = arith.mulf %786, %781 : vector<8x256xf32>
    %788 = arith.addf %781, %787 : vector<8x256xf32>
    %cst_463 = arith.constant 0.797884583 : f32
    %789 = vector.broadcast %cst_463 : f32 to vector<8x256xf32>
    %790 = arith.mulf %789, %788 : vector<8x256xf32>
    %791 = math.tanh %790 : vector<8x256xf32>
    %cst_464 = arith.constant 1.000000e+00 : f32
    %792 = vector.broadcast %cst_464 : f32 to vector<8x256xf32>
    %793 = arith.addf %792, %791 : vector<8x256xf32>
    %794 = arith.mulf %783, %793 : vector<8x256xf32>
    %c2_465 = arith.constant 2 : index
    %c0_466 = arith.constant 0 : index
    %c0_467 = arith.constant 0 : index
    %795 = vector.load %arg10[%c2_465, %c0_466, %c0_467] : memref<3x16x24xf32, #tpu.memory_space<vmem>>, vector<1x16x24xf32>
    %796 = vector.shape_cast %795 : vector<1x16x24xf32> to vector<16x24xf32>
    %c16_i32_468 = arith.constant 16 : i32
    %797 = tpu.dynamic_rotate %778 by %c16_i32_468 dim 1 : vector<8x256xf32>, i32 -> vector<8x256xf32>
    %c1_469 = arith.constant 1 : index
    %c0_470 = arith.constant 0 : index
    %c0_471 = arith.constant 0 : index
    %798 = vector.load %arg2[%c1_469, %c0_470, %c0_471] : memref<9x1x256xf32, #tpu.memory_space<vmem>>, vector<1x1x256xf32>
    %799 = vector.shape_cast %798 : vector<1x1x256xf32> to vector<1x256xf32>
    %800 = vector.broadcast %799 : vector<1x256xf32> to vector<8x256xf32>
    %801 = arith.mulf %797, %800 : vector<8x256xf32>
    %c240_i32_472 = arith.constant 240 : i32
    %802 = tpu.dynamic_rotate %778 by %c240_i32_472 dim 1 : vector<8x256xf32>, i32 -> vector<8x256xf32>
    %c7_473 = arith.constant 7 : index
    %c0_474 = arith.constant 0 : index
    %c0_475 = arith.constant 0 : index
    %803 = vector.load %arg2[%c7_473, %c0_474, %c0_475] : memref<9x1x256xf32, #tpu.memory_space<vmem>>, vector<1x1x256xf32>
    %804 = vector.shape_cast %803 : vector<1x1x256xf32> to vector<1x256xf32>
    %805 = vector.broadcast %804 : vector<1x256xf32> to vector<8x256xf32>
    %806 = arith.mulf %802, %805 : vector<8x256xf32>
    %807 = tpu.concatenate %801, %778, %806 in 0 : vector<8x256xf32>, vector<8x256xf32>, vector<8x256xf32> -> vector<24x256xf32>
    %cst_476 = arith.constant dense<0.000000e+00> : vector<16x256xf32>
    %808 = tpu.matmul %796, %807, %cst_476 {dimension_numbers = #tpu.dot_dimension_numbers<[1], [0], [0], [1], [0, 0, 1, 1], [], []>} : vector<16x24xf32>, vector<24x256xf32>, vector<16x256xf32> -> vector<16x256xf32>
    %c2_477 = arith.constant 2 : index
    %c0_478 = arith.constant 0 : index
    %c0_479 = arith.constant 0 : index
    %809 = vector.load %arg12[%c2_477, %c0_478, %c0_479] : memref<3x16x1xf32, #tpu.memory_space<vmem>>, vector<1x16x1xf32>
    %810 = vector.shape_cast %809 : vector<1x16x1xf32> to vector<16x1xf32>
    %811 = vector.broadcast %810 : vector<16x1xf32> to vector<16x256xf32>
    %812 = arith.addf %808, %811 : vector<16x256xf32>
    %c2_480 = arith.constant 2 : index
    %c0_481 = arith.constant 0 : index
    %c0_482 = arith.constant 0 : index
    %813 = vector.load %arg11[%c2_480, %c0_481, %c0_482] : memref<3x16x24xf32, #tpu.memory_space<vmem>>, vector<1x16x24xf32>
    %814 = vector.shape_cast %813 : vector<1x16x24xf32> to vector<16x24xf32>
    %c1_i32_483 = arith.constant 1 : i32
    %815 = tpu.dynamic_rotate %794 by %c1_i32_483 dim 1 : vector<8x256xf32>, i32 -> vector<8x256xf32>
    %c3_484 = arith.constant 3 : index
    %c0_485 = arith.constant 0 : index
    %c0_486 = arith.constant 0 : index
    %816 = vector.load %arg2[%c3_484, %c0_485, %c0_486] : memref<9x1x256xf32, #tpu.memory_space<vmem>>, vector<1x1x256xf32>
    %817 = vector.shape_cast %816 : vector<1x1x256xf32> to vector<1x256xf32>
    %818 = vector.broadcast %817 : vector<1x256xf32> to vector<8x256xf32>
    %819 = arith.mulf %815, %818 : vector<8x256xf32>
    %c255_i32_487 = arith.constant 255 : i32
    %820 = tpu.dynamic_rotate %794 by %c255_i32_487 dim 1 : vector<8x256xf32>, i32 -> vector<8x256xf32>
    %c5_488 = arith.constant 5 : index
    %c0_489 = arith.constant 0 : index
    %c0_490 = arith.constant 0 : index
    %821 = vector.load %arg2[%c5_488, %c0_489, %c0_490] : memref<9x1x256xf32, #tpu.memory_space<vmem>>, vector<1x1x256xf32>
    %822 = vector.shape_cast %821 : vector<1x1x256xf32> to vector<1x256xf32>
    %823 = vector.broadcast %822 : vector<1x256xf32> to vector<8x256xf32>
    %824 = arith.mulf %820, %823 : vector<8x256xf32>
    %825 = tpu.concatenate %819, %794, %824 in 0 : vector<8x256xf32>, vector<8x256xf32>, vector<8x256xf32> -> vector<24x256xf32>
    %cst_491 = arith.constant dense<0.000000e+00> : vector<16x256xf32>
    %826 = tpu.matmul %814, %825, %cst_491 {dimension_numbers = #tpu.dot_dimension_numbers<[1], [0], [0], [1], [0, 0, 1, 1], [], []>} : vector<16x24xf32>, vector<24x256xf32>, vector<16x256xf32> -> vector<16x256xf32>
    %c2_492 = arith.constant 2 : index
    %c0_493 = arith.constant 0 : index
    %c0_494 = arith.constant 0 : index
    %827 = vector.load %arg12[%c2_492, %c0_493, %c0_494] : memref<3x16x1xf32, #tpu.memory_space<vmem>>, vector<1x16x1xf32>
    %828 = vector.shape_cast %827 : vector<1x16x1xf32> to vector<16x1xf32>
    %829 = vector.broadcast %828 : vector<16x1xf32> to vector<16x256xf32>
    %830 = arith.addf %826, %829 : vector<16x256xf32>
    %c2_495 = arith.constant 2 : index
    %c0_496 = arith.constant 0 : index
    %831 = memref.load %arg16[%c2_495, %c0_496] : memref<3x2xf32, #tpu.memory_space<smem>>
    %c2_497 = arith.constant 2 : index
    %c1_498 = arith.constant 1 : index
    %832 = memref.load %arg16[%c2_497, %c1_498] : memref<3x2xf32, #tpu.memory_space<smem>>
    %833 = vector.broadcast %831 : f32 to vector<16x256xf32>
    %834 = arith.mulf %750, %833 : vector<16x256xf32>
    %cst_499 = arith.constant 1.000000e+00 : f32
    %835 = arith.subf %cst_499, %831 : f32
    %836 = vector.broadcast %835 : f32 to vector<16x256xf32>
    %837 = arith.mulf %812, %836 : vector<16x256xf32>
    %838 = arith.addf %834, %837 : vector<16x256xf32>
    %839 = vector.broadcast %832 : f32 to vector<16x256xf32>
    %840 = arith.mulf %758, %839 : vector<16x256xf32>
    %cst_500 = arith.constant 1.000000e+00 : f32
    %841 = arith.subf %cst_500, %832 : f32
    %842 = vector.broadcast %841 : f32 to vector<16x256xf32>
    %843 = arith.mulf %830, %842 : vector<16x256xf32>
    %844 = arith.addf %840, %843 : vector<16x256xf32>
    %c2_501 = arith.constant 2 : index
    %c0_502 = arith.constant 0 : index
    %c0_503 = arith.constant 0 : index
    %845 = vector.load %arg13[%c2_501, %c0_502, %c0_503] : memref<3x16x48xf32, #tpu.memory_space<vmem>>, vector<1x16x48xf32>
    %846 = vector.shape_cast %845 : vector<1x16x48xf32> to vector<16x48xf32>
    %c16_i32_504 = arith.constant 16 : i32
    %847 = tpu.dynamic_rotate %838 by %c16_i32_504 dim 1 : vector<16x256xf32>, i32 -> vector<16x256xf32>
    %c1_505 = arith.constant 1 : index
    %c0_506 = arith.constant 0 : index
    %c0_507 = arith.constant 0 : index
    %848 = vector.load %arg2[%c1_505, %c0_506, %c0_507] : memref<9x1x256xf32, #tpu.memory_space<vmem>>, vector<1x1x256xf32>
    %849 = vector.shape_cast %848 : vector<1x1x256xf32> to vector<1x256xf32>
    %850 = vector.broadcast %849 : vector<1x256xf32> to vector<16x256xf32>
    %851 = arith.mulf %847, %850 : vector<16x256xf32>
    %c240_i32_508 = arith.constant 240 : i32
    %852 = tpu.dynamic_rotate %838 by %c240_i32_508 dim 1 : vector<16x256xf32>, i32 -> vector<16x256xf32>
    %c7_509 = arith.constant 7 : index
    %c0_510 = arith.constant 0 : index
    %c0_511 = arith.constant 0 : index
    %853 = vector.load %arg2[%c7_509, %c0_510, %c0_511] : memref<9x1x256xf32, #tpu.memory_space<vmem>>, vector<1x1x256xf32>
    %854 = vector.shape_cast %853 : vector<1x1x256xf32> to vector<1x256xf32>
    %855 = vector.broadcast %854 : vector<1x256xf32> to vector<16x256xf32>
    %856 = arith.mulf %852, %855 : vector<16x256xf32>
    %857 = tpu.concatenate %851, %838, %856 in 0 : vector<16x256xf32>, vector<16x256xf32>, vector<16x256xf32> -> vector<48x256xf32>
    %cst_512 = arith.constant dense<0.000000e+00> : vector<16x256xf32>
    %858 = tpu.matmul %846, %857, %cst_512 {dimension_numbers = #tpu.dot_dimension_numbers<[1], [0], [0], [1], [0, 0, 1, 1], [], []>} : vector<16x48xf32>, vector<48x256xf32>, vector<16x256xf32> -> vector<16x256xf32>
    %c2_513 = arith.constant 2 : index
    %c0_514 = arith.constant 0 : index
    %c0_515 = arith.constant 0 : index
    %859 = vector.load %arg15[%c2_513, %c0_514, %c0_515] : memref<3x16x1xf32, #tpu.memory_space<vmem>>, vector<1x16x1xf32>
    %860 = vector.shape_cast %859 : vector<1x16x1xf32> to vector<16x1xf32>
    %861 = vector.broadcast %860 : vector<16x1xf32> to vector<16x256xf32>
    %862 = arith.addf %858, %861 : vector<16x256xf32>
    %c2_516 = arith.constant 2 : index
    %c0_517 = arith.constant 0 : index
    %c0_518 = arith.constant 0 : index
    %863 = vector.load %arg14[%c2_516, %c0_517, %c0_518] : memref<3x16x48xf32, #tpu.memory_space<vmem>>, vector<1x16x48xf32>
    %864 = vector.shape_cast %863 : vector<1x16x48xf32> to vector<16x48xf32>
    %c1_i32_519 = arith.constant 1 : i32
    %865 = tpu.dynamic_rotate %844 by %c1_i32_519 dim 1 : vector<16x256xf32>, i32 -> vector<16x256xf32>
    %c3_520 = arith.constant 3 : index
    %c0_521 = arith.constant 0 : index
    %c0_522 = arith.constant 0 : index
    %866 = vector.load %arg2[%c3_520, %c0_521, %c0_522] : memref<9x1x256xf32, #tpu.memory_space<vmem>>, vector<1x1x256xf32>
    %867 = vector.shape_cast %866 : vector<1x1x256xf32> to vector<1x256xf32>
    %868 = vector.broadcast %867 : vector<1x256xf32> to vector<16x256xf32>
    %869 = arith.mulf %865, %868 : vector<16x256xf32>
    %c255_i32_523 = arith.constant 255 : i32
    %870 = tpu.dynamic_rotate %844 by %c255_i32_523 dim 1 : vector<16x256xf32>, i32 -> vector<16x256xf32>
    %c5_524 = arith.constant 5 : index
    %c0_525 = arith.constant 0 : index
    %c0_526 = arith.constant 0 : index
    %871 = vector.load %arg2[%c5_524, %c0_525, %c0_526] : memref<9x1x256xf32, #tpu.memory_space<vmem>>, vector<1x1x256xf32>
    %872 = vector.shape_cast %871 : vector<1x1x256xf32> to vector<1x256xf32>
    %873 = vector.broadcast %872 : vector<1x256xf32> to vector<16x256xf32>
    %874 = arith.mulf %870, %873 : vector<16x256xf32>
    %875 = tpu.concatenate %869, %844, %874 in 0 : vector<16x256xf32>, vector<16x256xf32>, vector<16x256xf32> -> vector<48x256xf32>
    %cst_527 = arith.constant dense<0.000000e+00> : vector<16x256xf32>
    %876 = tpu.matmul %864, %875, %cst_527 {dimension_numbers = #tpu.dot_dimension_numbers<[1], [0], [0], [1], [0, 0, 1, 1], [], []>} : vector<16x48xf32>, vector<48x256xf32>, vector<16x256xf32> -> vector<16x256xf32>
    %c2_528 = arith.constant 2 : index
    %c0_529 = arith.constant 0 : index
    %c0_530 = arith.constant 0 : index
    %877 = vector.load %arg15[%c2_528, %c0_529, %c0_530] : memref<3x16x1xf32, #tpu.memory_space<vmem>>, vector<1x16x1xf32>
    %878 = vector.shape_cast %877 : vector<1x16x1xf32> to vector<16x1xf32>
    %879 = vector.broadcast %878 : vector<16x1xf32> to vector<16x256xf32>
    %880 = arith.addf %876, %879 : vector<16x256xf32>
    %881 = arith.mulf %862, %880 : vector<16x256xf32>
    %cst_531 = arith.constant 0.000000e+00 : f32
    %882 = vector.broadcast %cst_531 : f32 to vector<16x256xf32>
    %883 = arith.subf %882, %881 : vector<16x256xf32>
    %884 = math.exp %883 : vector<16x256xf32>
    %cst_532 = arith.constant 1.000000e+00 : f32
    %885 = vector.broadcast %cst_532 : f32 to vector<16x256xf32>
    %886 = arith.addf %885, %884 : vector<16x256xf32>
    %cst_533 = arith.constant 1.000000e+00 : f32
    %887 = vector.broadcast %cst_533 : f32 to vector<16x256xf32>
    %888 = arith.divf %887, %886 : vector<16x256xf32>
    %889 = arith.mulf %700, %888 : vector<16x256xf32>
    %890 = arith.addf %700, %889 : vector<16x256xf32>
    %c2_534 = arith.constant 2 : index
    %c0_535 = arith.constant 0 : index
    %c0_536 = arith.constant 0 : index
    %891 = vector.load %arg6[%c2_534, %c0_535, %c0_536] : memref<3x16x144xf32, #tpu.memory_space<vmem>>, vector<1x16x144xf32>
    %892 = vector.shape_cast %891 : vector<1x16x144xf32> to vector<16x144xf32>
    %c17_i32_537 = arith.constant 17 : i32
    %893 = tpu.dynamic_rotate %890 by %c17_i32_537 dim 1 : vector<16x256xf32>, i32 -> vector<16x256xf32>
    %c0_538 = arith.constant 0 : index
    %c0_539 = arith.constant 0 : index
    %c0_540 = arith.constant 0 : index
    %894 = vector.load %arg2[%c0_538, %c0_539, %c0_540] : memref<9x1x256xf32, #tpu.memory_space<vmem>>, vector<1x1x256xf32>
    %895 = vector.shape_cast %894 : vector<1x1x256xf32> to vector<1x256xf32>
    %896 = vector.broadcast %895 : vector<1x256xf32> to vector<16x256xf32>
    %897 = arith.mulf %893, %896 : vector<16x256xf32>
    %c16_i32_541 = arith.constant 16 : i32
    %898 = tpu.dynamic_rotate %890 by %c16_i32_541 dim 1 : vector<16x256xf32>, i32 -> vector<16x256xf32>
    %c1_542 = arith.constant 1 : index
    %c0_543 = arith.constant 0 : index
    %c0_544 = arith.constant 0 : index
    %899 = vector.load %arg2[%c1_542, %c0_543, %c0_544] : memref<9x1x256xf32, #tpu.memory_space<vmem>>, vector<1x1x256xf32>
    %900 = vector.shape_cast %899 : vector<1x1x256xf32> to vector<1x256xf32>
    %901 = vector.broadcast %900 : vector<1x256xf32> to vector<16x256xf32>
    %902 = arith.mulf %898, %901 : vector<16x256xf32>
    %c15_i32_545 = arith.constant 15 : i32
    %903 = tpu.dynamic_rotate %890 by %c15_i32_545 dim 1 : vector<16x256xf32>, i32 -> vector<16x256xf32>
    %c2_546 = arith.constant 2 : index
    %c0_547 = arith.constant 0 : index
    %c0_548 = arith.constant 0 : index
    %904 = vector.load %arg2[%c2_546, %c0_547, %c0_548] : memref<9x1x256xf32, #tpu.memory_space<vmem>>, vector<1x1x256xf32>
    %905 = vector.shape_cast %904 : vector<1x1x256xf32> to vector<1x256xf32>
    %906 = vector.broadcast %905 : vector<1x256xf32> to vector<16x256xf32>
    %907 = arith.mulf %903, %906 : vector<16x256xf32>
    %c1_i32_549 = arith.constant 1 : i32
    %908 = tpu.dynamic_rotate %890 by %c1_i32_549 dim 1 : vector<16x256xf32>, i32 -> vector<16x256xf32>
    %c3_550 = arith.constant 3 : index
    %c0_551 = arith.constant 0 : index
    %c0_552 = arith.constant 0 : index
    %909 = vector.load %arg2[%c3_550, %c0_551, %c0_552] : memref<9x1x256xf32, #tpu.memory_space<vmem>>, vector<1x1x256xf32>
    %910 = vector.shape_cast %909 : vector<1x1x256xf32> to vector<1x256xf32>
    %911 = vector.broadcast %910 : vector<1x256xf32> to vector<16x256xf32>
    %912 = arith.mulf %908, %911 : vector<16x256xf32>
    %c255_i32_553 = arith.constant 255 : i32
    %913 = tpu.dynamic_rotate %890 by %c255_i32_553 dim 1 : vector<16x256xf32>, i32 -> vector<16x256xf32>
    %c5_554 = arith.constant 5 : index
    %c0_555 = arith.constant 0 : index
    %c0_556 = arith.constant 0 : index
    %914 = vector.load %arg2[%c5_554, %c0_555, %c0_556] : memref<9x1x256xf32, #tpu.memory_space<vmem>>, vector<1x1x256xf32>
    %915 = vector.shape_cast %914 : vector<1x1x256xf32> to vector<1x256xf32>
    %916 = vector.broadcast %915 : vector<1x256xf32> to vector<16x256xf32>
    %917 = arith.mulf %913, %916 : vector<16x256xf32>
    %c241_i32_557 = arith.constant 241 : i32
    %918 = tpu.dynamic_rotate %890 by %c241_i32_557 dim 1 : vector<16x256xf32>, i32 -> vector<16x256xf32>
    %c6_558 = arith.constant 6 : index
    %c0_559 = arith.constant 0 : index
    %c0_560 = arith.constant 0 : index
    %919 = vector.load %arg2[%c6_558, %c0_559, %c0_560] : memref<9x1x256xf32, #tpu.memory_space<vmem>>, vector<1x1x256xf32>
    %920 = vector.shape_cast %919 : vector<1x1x256xf32> to vector<1x256xf32>
    %921 = vector.broadcast %920 : vector<1x256xf32> to vector<16x256xf32>
    %922 = arith.mulf %918, %921 : vector<16x256xf32>
    %c240_i32_561 = arith.constant 240 : i32
    %923 = tpu.dynamic_rotate %890 by %c240_i32_561 dim 1 : vector<16x256xf32>, i32 -> vector<16x256xf32>
    %c7_562 = arith.constant 7 : index
    %c0_563 = arith.constant 0 : index
    %c0_564 = arith.constant 0 : index
    %924 = vector.load %arg2[%c7_562, %c0_563, %c0_564] : memref<9x1x256xf32, #tpu.memory_space<vmem>>, vector<1x1x256xf32>
    %925 = vector.shape_cast %924 : vector<1x1x256xf32> to vector<1x256xf32>
    %926 = vector.broadcast %925 : vector<1x256xf32> to vector<16x256xf32>
    %927 = arith.mulf %923, %926 : vector<16x256xf32>
    %c239_i32_565 = arith.constant 239 : i32
    %928 = tpu.dynamic_rotate %890 by %c239_i32_565 dim 1 : vector<16x256xf32>, i32 -> vector<16x256xf32>
    %c8_566 = arith.constant 8 : index
    %c0_567 = arith.constant 0 : index
    %c0_568 = arith.constant 0 : index
    %929 = vector.load %arg2[%c8_566, %c0_567, %c0_568] : memref<9x1x256xf32, #tpu.memory_space<vmem>>, vector<1x1x256xf32>
    %930 = vector.shape_cast %929 : vector<1x1x256xf32> to vector<1x256xf32>
    %931 = vector.broadcast %930 : vector<1x256xf32> to vector<16x256xf32>
    %932 = arith.mulf %928, %931 : vector<16x256xf32>
    %933 = tpu.concatenate %897, %902, %907, %912, %890, %917, %922, %927, %932 in 0 : vector<16x256xf32>, vector<16x256xf32>, vector<16x256xf32>, vector<16x256xf32>, vector<16x256xf32>, vector<16x256xf32>, vector<16x256xf32>, vector<16x256xf32>, vector<16x256xf32> -> vector<144x256xf32>
    %cst_569 = arith.constant dense<0.000000e+00> : vector<16x256xf32>
    %934 = tpu.matmul %892, %933, %cst_569 {dimension_numbers = #tpu.dot_dimension_numbers<[1], [0], [0], [1], [0, 0, 1, 1], [], []>} : vector<16x144xf32>, vector<144x256xf32>, vector<16x256xf32> -> vector<16x256xf32>
    %c2_570 = arith.constant 2 : index
    %c0_571 = arith.constant 0 : index
    %c0_572 = arith.constant 0 : index
    %935 = vector.load %arg7[%c2_570, %c0_571, %c0_572] : memref<3x16x1xf32, #tpu.memory_space<vmem>>, vector<1x16x1xf32>
    %936 = vector.shape_cast %935 : vector<1x16x1xf32> to vector<16x1xf32>
    %937 = vector.broadcast %936 : vector<16x1xf32> to vector<16x256xf32>
    %938 = arith.addf %934, %937 : vector<16x256xf32>
    %939 = arith.addf %622, %938 : vector<16x256xf32>
    %cst_573 = arith.constant 5.000000e-01 : f32
    %940 = vector.broadcast %cst_573 : f32 to vector<16x256xf32>
    %941 = arith.mulf %940, %939 : vector<16x256xf32>
    %cst_574 = arith.constant 4.471500e-02 : f32
    %942 = vector.broadcast %cst_574 : f32 to vector<16x256xf32>
    %943 = arith.mulf %942, %939 : vector<16x256xf32>
    %944 = arith.mulf %943, %939 : vector<16x256xf32>
    %945 = arith.mulf %944, %939 : vector<16x256xf32>
    %946 = arith.addf %939, %945 : vector<16x256xf32>
    %cst_575 = arith.constant 0.797884583 : f32
    %947 = vector.broadcast %cst_575 : f32 to vector<16x256xf32>
    %948 = arith.mulf %947, %946 : vector<16x256xf32>
    %949 = math.tanh %948 : vector<16x256xf32>
    %cst_576 = arith.constant 1.000000e+00 : f32
    %950 = vector.broadcast %cst_576 : f32 to vector<16x256xf32>
    %951 = arith.addf %950, %949 : vector<16x256xf32>
    %952 = arith.mulf %941, %951 : vector<16x256xf32>
    %953 = tpu.concatenate %318, %635, %952 in 0 : vector<16x256xf32>, vector<16x256xf32>, vector<16x256xf32> -> vector<48x256xf32>
    %cst_577 = arith.constant dense<0.000000e+00> : vector<48xf32>
    %954 = vector.multi_reduction <add>, %953, %cst_577 [1] : vector<48x256xf32> to vector<48xf32>
    %955 = vector.shape_cast %954 : vector<48xf32> to vector<48x1xf32>
    %cst_578 = arith.constant 2.560000e+02 : f32
    %956 = vector.broadcast %cst_578 : f32 to vector<48x1xf32>
    %957 = arith.divf %955, %956 : vector<48x1xf32>
    %c0_579 = arith.constant 0 : index
    %c0_580 = arith.constant 0 : index
    %958 = vector.load %arg17[%c0_579, %c0_580] : memref<3x48xf32, #tpu.memory_space<vmem>>, vector<3x48xf32>
    %cst_581 = arith.constant dense<0.000000e+00> : vector<3x1xf32>
    %959 = tpu.matmul %958, %957, %cst_581 {dimension_numbers = #tpu.dot_dimension_numbers<[1], [0], [0], [1], [0, 0, 1, 1], [], []>} : vector<3x48xf32>, vector<48x1xf32>, vector<3x1xf32> -> vector<3x1xf32>
    %c0_582 = arith.constant 0 : index
    %c0_583 = arith.constant 0 : index
    %960 = vector.load %arg18[%c0_582, %c0_583] : memref<3x1xf32, #tpu.memory_space<vmem>>, vector<3x1xf32>
    %961 = arith.addf %959, %960 : vector<3x1xf32>
    %cst_584 = arith.constant 0.000000e+00 : f32
    %962 = vector.broadcast %cst_584 : f32 to vector<3x1xf32>
    %963 = arith.maximumf %961, %962 : vector<3x1xf32>
    %c0_585 = arith.constant 0 : index
    %c0_586 = arith.constant 0 : index
    %964 = vector.load %arg19[%c0_585, %c0_586] : memref<48x3xf32, #tpu.memory_space<vmem>>, vector<48x3xf32>
    %cst_587 = arith.constant dense<0.000000e+00> : vector<48x1xf32>
    %965 = tpu.matmul %964, %963, %cst_587 {dimension_numbers = #tpu.dot_dimension_numbers<[1], [0], [0], [1], [0, 0, 1, 1], [], []>} : vector<48x3xf32>, vector<3x1xf32>, vector<48x1xf32> -> vector<48x1xf32>
    %c0_588 = arith.constant 0 : index
    %c0_589 = arith.constant 0 : index
    %966 = vector.load %arg20[%c0_588, %c0_589] : memref<48x1xf32, #tpu.memory_space<vmem>>, vector<48x1xf32>
    %967 = arith.addf %965, %966 : vector<48x1xf32>
    %cst_590 = arith.constant 0.000000e+00 : f32
    %968 = vector.broadcast %cst_590 : f32 to vector<48x1xf32>
    %969 = arith.subf %968, %967 : vector<48x1xf32>
    %970 = math.exp %969 : vector<48x1xf32>
    %cst_591 = arith.constant 1.000000e+00 : f32
    %971 = vector.broadcast %cst_591 : f32 to vector<48x1xf32>
    %972 = arith.addf %971, %970 : vector<48x1xf32>
    %cst_592 = arith.constant 1.000000e+00 : f32
    %973 = vector.broadcast %cst_592 : f32 to vector<48x1xf32>
    %974 = arith.divf %973, %972 : vector<48x1xf32>
    %c0_593 = arith.constant 0 : index
    %c0_594 = arith.constant 0 : index
    %975 = vector.load %arg21[%c0_593, %c0_594] : memref<16x48xf32, #tpu.memory_space<vmem>>, vector<16x48xf32>
    %976 = tpu.transpose %974, [1, 0] : vector<48x1xf32> -> vector<1x48xf32>
    %977 = vector.broadcast %976 : vector<1x48xf32> to vector<16x48xf32>
    %978 = arith.mulf %975, %977 : vector<16x48xf32>
    %cst_595 = arith.constant dense<0.000000e+00> : vector<16x256xf32>
    %979 = tpu.matmul %978, %953, %cst_595 {dimension_numbers = #tpu.dot_dimension_numbers<[1], [0], [0], [1], [0, 0, 1, 1], [], []>} : vector<16x48xf32>, vector<48x256xf32>, vector<16x256xf32> -> vector<16x256xf32>
    %c0_596 = arith.constant 0 : index
    %c0_597 = arith.constant 0 : index
    %c0_598 = arith.constant 0 : index
    %980 = vector.load %arg22[%c0_596, %c0_597, %c0_598] : memref<1x16x256xf32, #tpu.memory_space<vmem>>, vector<1x16x256xf32>
    %981 = vector.shape_cast %980 : vector<1x16x256xf32> to vector<16x256xf32>
    %982 = vector.shape_cast %979 : vector<16x256xf32> to vector<1x16x256xf32>
    tpu.vector_store %arg22[%c0_596, %c0_597, %c0_598], %982 {strides = array<i32>} : memref<1x16x256xf32, #tpu.memory_space<vmem>>, vector<1x16x256xf32>,
    return
  }
  func.func @transform_0(%arg0: i32) -> (i32, i32, i32) {
    %c0_i32 = arith.constant 0 : i32
    %c0_i32_0 = arith.constant 0 : i32
    %c0_i32_1 = arith.constant 0 : i32
    return %arg0, %c0_i32, %c0_i32_0 : i32, i32, i32
  }
  func.func @transform_1(%arg0: i32) -> (i32, i32, i32) {
    %c0_i32 = arith.constant 0 : i32
    %c0_i32_0 = arith.constant 0 : i32
    %c0_i32_1 = arith.constant 0 : i32
    %c0_i32_2 = arith.constant 0 : i32
    return %c0_i32, %c0_i32_0, %c0_i32_1 : i32, i32, i32
  }
  func.func @transform_2(%arg0: i32) -> (i32, i32, i32) {
    %c0_i32 = arith.constant 0 : i32
    %c0_i32_0 = arith.constant 0 : i32
    %c0_i32_1 = arith.constant 0 : i32
    %c0_i32_2 = arith.constant 0 : i32
    return %c0_i32, %c0_i32_0, %c0_i32_1 : i32, i32, i32
  }
  func.func @transform_3(%arg0: i32) -> (i32, i32, i32) {
    %c0_i32 = arith.constant 0 : i32
    %c0_i32_0 = arith.constant 0 : i32
    %c0_i32_1 = arith.constant 0 : i32
    %c0_i32_2 = arith.constant 0 : i32
    return %c0_i32, %c0_i32_0, %c0_i32_1 : i32, i32, i32
  }
  func.func @transform_4(%arg0: i32) -> (i32, i32, i32) {
    %c0_i32 = arith.constant 0 : i32
    %c0_i32_0 = arith.constant 0 : i32
    %c0_i32_1 = arith.constant 0 : i32
    %c0_i32_2 = arith.constant 0 : i32
    return %c0_i32, %c0_i32_0, %c0_i32_1 : i32, i32, i32
  }
  func.func @transform_5(%arg0: i32) -> (i32, i32, i32) {
    %c0_i32 = arith.constant 0 : i32
    %c0_i32_0 = arith.constant 0 : i32
    %c0_i32_1 = arith.constant 0 : i32
    %c0_i32_2 = arith.constant 0 : i32
    return %c0_i32, %c0_i32_0, %c0_i32_1 : i32, i32, i32
  }
  func.func @transform_6(%arg0: i32) -> (i32, i32, i32) {
    %c0_i32 = arith.constant 0 : i32
    %c0_i32_0 = arith.constant 0 : i32
    %c0_i32_1 = arith.constant 0 : i32
    %c0_i32_2 = arith.constant 0 : i32
    return %c0_i32, %c0_i32_0, %c0_i32_1 : i32, i32, i32
  }
  func.func @transform_7(%arg0: i32) -> (i32, i32, i32) {
    %c0_i32 = arith.constant 0 : i32
    %c0_i32_0 = arith.constant 0 : i32
    %c0_i32_1 = arith.constant 0 : i32
    %c0_i32_2 = arith.constant 0 : i32
    return %c0_i32, %c0_i32_0, %c0_i32_1 : i32, i32, i32
  }
  func.func @transform_8(%arg0: i32) -> (i32, i32, i32) {
    %c0_i32 = arith.constant 0 : i32
    %c0_i32_0 = arith.constant 0 : i32
    %c0_i32_1 = arith.constant 0 : i32
    %c0_i32_2 = arith.constant 0 : i32
    return %c0_i32, %c0_i32_0, %c0_i32_1 : i32, i32, i32
  }
  func.func @transform_9(%arg0: i32) -> (i32, i32, i32) {
    %c0_i32 = arith.constant 0 : i32
    %c0_i32_0 = arith.constant 0 : i32
    %c0_i32_1 = arith.constant 0 : i32
    %c0_i32_2 = arith.constant 0 : i32
    return %c0_i32, %c0_i32_0, %c0_i32_1 : i32, i32, i32
  }
  func.func @transform_10(%arg0: i32) -> (i32, i32, i32) {
    %c0_i32 = arith.constant 0 : i32
    %c0_i32_0 = arith.constant 0 : i32
    %c0_i32_1 = arith.constant 0 : i32
    %c0_i32_2 = arith.constant 0 : i32
    return %c0_i32, %c0_i32_0, %c0_i32_1 : i32, i32, i32
  }
  func.func @transform_11(%arg0: i32) -> (i32, i32, i32) {
    %c0_i32 = arith.constant 0 : i32
    %c0_i32_0 = arith.constant 0 : i32
    %c0_i32_1 = arith.constant 0 : i32
    %c0_i32_2 = arith.constant 0 : i32
    return %c0_i32, %c0_i32_0, %c0_i32_1 : i32, i32, i32
  }
  func.func @transform_12(%arg0: i32) -> (i32, i32, i32) {
    %c0_i32 = arith.constant 0 : i32
    %c0_i32_0 = arith.constant 0 : i32
    %c0_i32_1 = arith.constant 0 : i32
    %c0_i32_2 = arith.constant 0 : i32
    return %c0_i32, %c0_i32_0, %c0_i32_1 : i32, i32, i32
  }
  func.func @transform_13(%arg0: i32) -> (i32, i32, i32) {
    %c0_i32 = arith.constant 0 : i32
    %c0_i32_0 = arith.constant 0 : i32
    %c0_i32_1 = arith.constant 0 : i32
    %c0_i32_2 = arith.constant 0 : i32
    return %c0_i32, %c0_i32_0, %c0_i32_1 : i32, i32, i32
  }
  func.func @transform_14(%arg0: i32) -> (i32, i32, i32) {
    %c0_i32 = arith.constant 0 : i32
    %c0_i32_0 = arith.constant 0 : i32
    %c0_i32_1 = arith.constant 0 : i32
    %c0_i32_2 = arith.constant 0 : i32
    return %c0_i32, %c0_i32_0, %c0_i32_1 : i32, i32, i32
  }
  func.func @transform_15(%arg0: i32) -> (i32, i32) {
    %c0_i32 = arith.constant 0 : i32
    %c0_i32_0 = arith.constant 0 : i32
    %c0_i32_1 = arith.constant 0 : i32
    return %c0_i32, %c0_i32_0 : i32, i32
  }
  func.func @transform_16(%arg0: i32) -> (i32, i32) {
    %c0_i32 = arith.constant 0 : i32
    %c0_i32_0 = arith.constant 0 : i32
    %c0_i32_1 = arith.constant 0 : i32
    return %c0_i32, %c0_i32_0 : i32, i32
  }
  func.func @transform_17(%arg0: i32) -> (i32, i32) {
    %c0_i32 = arith.constant 0 : i32
    %c0_i32_0 = arith.constant 0 : i32
    %c0_i32_1 = arith.constant 0 : i32
    return %c0_i32, %c0_i32_0 : i32, i32
  }
  func.func @transform_18(%arg0: i32) -> (i32, i32) {
    %c0_i32 = arith.constant 0 : i32
    %c0_i32_0 = arith.constant 0 : i32
    %c0_i32_1 = arith.constant 0 : i32
    return %c0_i32, %c0_i32_0 : i32, i32
  }
  func.func @transform_19(%arg0: i32) -> (i32, i32) {
    %c0_i32 = arith.constant 0 : i32
    %c0_i32_0 = arith.constant 0 : i32
    %c0_i32_1 = arith.constant 0 : i32
    return %c0_i32, %c0_i32_0 : i32, i32
  }
  func.func @transform_20(%arg0: i32) -> (i32, i32) {
    %c0_i32 = arith.constant 0 : i32
    %c0_i32_0 = arith.constant 0 : i32
    %c0_i32_1 = arith.constant 0 : i32
    return %c0_i32, %c0_i32_0 : i32, i32
  }
  func.func @transform_21(%arg0: i32) -> (i32, i32, i32) {
    %c0_i32 = arith.constant 0 : i32
    %c0_i32_0 = arith.constant 0 : i32
    %c0_i32_1 = arith.constant 0 : i32
    return %arg0, %c0_i32, %c0_i32_0 : i32, i32, i32
  }
}

</mosaic_0001>

<llo_original>
// kernel: multi_gdfn_forward.1
$region0: #{multi_gdfn_forward.1}
  #allocation0 [shape = 'u32[]', space=smem, size = 0x4, offset = 0x4, fixed_abs, tag = 'smem constant byte address 0x4 - core index']
  #allocation1 [shape = 'u32[144,128]{1,0:T(1,128)}', space=vmem, size = 0x12000, scoped, tag = 'internal scratch']
  %s0 = inlined_call_operand.vmem [shape: f32[2,16,256], index: 0, kind: input, shape index: {}]
  %s1 = inlined_call_operand.vmem [shape: f32[9,1,256], index: 1, kind: input, shape index: {}]
  %s2 = inlined_call_operand.vmem [shape: f32[4,1,256], index: 2, kind: input, shape index: {}]
  %s3 = inlined_call_operand.vmem [shape: f32[3,32,144], index: 3, kind: input, shape index: {}]
  %s4 = inlined_call_operand.vmem [shape: f32[3,32,1], index: 4, kind: input, shape index: {}]
  %s5 = inlined_call_operand.vmem [shape: f32[3,16,144], index: 5, kind: input, shape index: {}]
  %s6 = inlined_call_operand.vmem [shape: f32[3,16,1], index: 6, kind: input, shape index: {}]
  %s7 = inlined_call_operand.vmem [shape: f32[3,8,16], index: 7, kind: input, shape index: {}]
  %s8 = inlined_call_operand.vmem [shape: f32[3,8,1], index: 8, kind: input, shape index: {}]
  %s9 = inlined_call_operand.vmem [shape: f32[3,16,24], index: 9, kind: input, shape index: {}]
  %s10 = inlined_call_operand.vmem [shape: f32[3,16,24], index: 10, kind: input, shape index: {}]
  %s11 = inlined_call_operand.vmem [shape: f32[3,16,1], index: 11, kind: input, shape index: {}]
  %s12 = inlined_call_operand.vmem [shape: f32[3,16,48], index: 12, kind: input, shape index: {}]
  %s13 = inlined_call_operand.vmem [shape: f32[3,16,48], index: 13, kind: input, shape index: {}]
  %s14 = inlined_call_operand.vmem [shape: f32[3,16,1], index: 14, kind: input, shape index: {}]
  %s15 = inlined_call_operand.vmem [shape: f32[3,2], index: 15, kind: input, shape index: {}]
  %s16 = inlined_call_operand.vmem [shape: f32[3,48], index: 16, kind: input, shape index: {}]
  %s17 = inlined_call_operand.vmem [shape: f32[3,1], index: 17, kind: input, shape index: {}]
  %s18 = inlined_call_operand.vmem [shape: f32[48,3], index: 18, kind: input, shape index: {}]
  %s19 = inlined_call_operand.vmem [shape: f32[48,1], index: 19, kind: input, shape index: {}]
  %s20 = inlined_call_operand.vmem [shape: f32[16,48], index: 20, kind: input, shape index: {}]
  %s21 = inlined_call_operand.vmem [shape: f32[2,16,256], index: 21, kind: output, shape index: {}]
  %s22 = sld [smem:[#allocation0]]
  $region121: #{multi_gdfn_forward.1} parent=0
    _
  %s24 = ssub.s32 1, %s22
  %s25 = scalar_select 0, %s24, %s22
  $region1: #{multi_gdfn_forward.1} parent=0
    #allocation2 [shape = 'u8[2048]{0}', space=smem, size = 0x800, scoped, tag = 'input window, operand 15, single buffered']
    #allocation3 [shape = 's32[2]{0}', space=sflag, size = 0x8, scoped, tag = 'scoped memory for multi_gdfn_forward.1']
    %26 = vsyncpa [#allocation3], 0
    loop: start=0, step=1, limit=4
    $region2: #{multi_gdfn_forward.1} parent=1 // loop_pre_header
      _
    $region3: #{multi_gdfn_forward.1} parent=1 // loop_header
      %s28 = sphi 0, %s32
      %p29 = scmp.ge.s32.totalorder %s28, 4
      %s38 = sphi 0, %s40
      %s41 = sphi 0, %s38
      %s42 = sphi 0, %s41
      %s58 = sphi 0, %s42
      %s62 = sphi 0, %s62
      %s64 = sphi 0, %s62
      %s65 = sphi 0, %s64
      %s79 = sphi 0, %s65
      %s83 = sphi 0, %s83
      %s85 = sphi 0, %s83
      %s86 = sphi 0, %s85
      %s100 = sphi 0, %s86
      %s104 = sphi 0, %s104
      %s106 = sphi 0, %s104
      %s107 = sphi 0, %s106
      %s121 = sphi 0, %s107
      %s125 = sphi 0, %s125
      %s127 = sphi 0, %s125
      %s128 = sphi 0, %s127
      %s142 = sphi 0, %s128
      %s146 = sphi 0, %s146
      %s148 = sphi 0, %s146
      %s149 = sphi 0, %s148
      %s163 = sphi 0, %s149
      %s167 = sphi 0, %s167
      %s169 = sphi 0, %s167
      %s170 = sphi 0, %s169
      %s184 = sphi 0, %s170
      %s188 = sphi 0, %s188
      %s190 = sphi 0, %s188
      %s191 = sphi 0, %s190
      %s205 = sphi 0, %s191
      %s209 = sphi 0, %s209
      %s211 = sphi 0, %s209
      %s212 = sphi 0, %s211
      %s226 = sphi 0, %s212
      %s230 = sphi 0, %s230
      %s232 = sphi 0, %s230
      %s233 = sphi 0, %s232
      %s247 = sphi 0, %s233
      %s251 = sphi 0, %s251
      %s253 = sphi 0, %s251
      %s254 = sphi 0, %s253
      %s268 = sphi 0, %s254
      %s272 = sphi 0, %s272
      %s274 = sphi 0, %s272
      %s275 = sphi 0, %s274
      %s289 = sphi 0, %s275
      %s293 = sphi 0, %s293
      %s295 = sphi 0, %s293
      %s296 = sphi 0, %s295
      %s310 = sphi 0, %s296
      %s314 = sphi 0, %s314
      %s316 = sphi 0, %s314
      %s317 = sphi 0, %s316
      %s331 = sphi 0, %s317
      %s335 = sphi 0, %s335
      %s337 = sphi 0, %s335
      %s338 = sphi 0, %s337
      %s352 = sphi 0, %s338
      %s356 = sphi 0, %s356
      %s358 = sphi 0, %s356
      %s359 = sphi 0, %s358
      %s373 = sphi 0, %s359
      %s377 = sphi 0, %s377
      %s379 = sphi 0, %s377
      %s380 = sphi 0, %s379
      %s394 = sphi 0, %s380
      %s398 = sphi 0, %s398
      %s400 = sphi 0, %s398
      %s401 = sphi 0, %s400
      %s415 = sphi 0, %s401
      %s419 = sphi 0, %s419
      %s421 = sphi 0, %s419
      %s422 = sphi 0, %s421
      %s436 = sphi 0, %s422
      %s440 = sphi 0, %s440
      %s442 = sphi 0, %s440
      %s443 = sphi 0, %s442
      %s457 = sphi 0, %s443
      %s461 = sphi 0, %s461
      %s463 = sphi 0, %s461
      %s464 = sphi 0, %s463
      %s478 = sphi 0, %s464
      %s484 = sphi 0, %s486
      %s487 = sphi 0, %s484
      %s488 = sphi 0, %s487
      %s504 = sphi 0, %s488
    $region4: #{multi_gdfn_forward.1} parent=1 // loop_header_branch
      %31 = sbr.rel (%p29) target = $region8
    $region5: #{multi_gdfn_forward.1} parent=1 // loop_body
      %s33 = ssub.s32 %s28, 1
      %s34 = ssub.s32 %s28, 2
      %s35 = sadd.s32 %s28, 1
      %s36 = ssub.s32 %s28, %s35
      %p37 = scmp.eq.s32.totalorder %s36, 0
      %s39 = sadd.s32 %s38, 1
      %s40 = scalar_select %p37, %s38, %s39
      %p43 = pneg %p37
      %p44 = scmp.eq.s32.totalorder %s28, 1
      %p45 = por %p43, %p44
      %p46 = scmp.ne.s32.totalorder %s38, %s41
      %p47 = scmp.eq.s32.totalorder %s28, 0
      %p48 = por %p46, %p47
      %p49 = scmp.ne.s32.totalorder %s38, %s41
      %p50 = scmp.eq.s32.totalorder %s33, 1
      %p51 = por %p49, %p50
      %p52 = scmp.ne.s32.totalorder %s41, %s42
      %p53 = scmp.eq.s32.totalorder %s33, 0
      %p54 = por %p52, %p53
      %p55 = scmp.ne.s32.totalorder %s41, %s42
      %p56 = scmp.eq.s32.totalorder %s34, 1
      %p57 = por %p55, %p56
      %p59 = scmp.ne.s32.totalorder %s42, %s58
      %p60 = scmp.eq.s32.totalorder %s34, 0
      %p61 = por %p59, %p60
      %s63 = sadd.s32 %s62, 1
      %p66 = scmp.eq.s32.totalorder %s28, 1
      %p67 = scmp.ne.s32.totalorder %s62, %s64
      %p68 = scmp.eq.s32.totalorder %s28, 0
      %p69 = por %p67, %p68
      %p70 = scmp.ne.s32.totalorder %s62, %s64
      %p71 = scmp.eq.s32.totalorder %s33, 1
      %p72 = por %p70, %p71
      %p73 = scmp.ne.s32.totalorder %s64, %s65
      %p74 = scmp.eq.s32.totalorder %s33, 0
      %p75 = por %p73, %p74
      %p76 = scmp.ne.s32.totalorder %s64, %s65
      %p77 = scmp.eq.s32.totalorder %s34, 1
      %p78 = por %p76, %p77
      %p80 = scmp.ne.s32.totalorder %s65, %s79
      %p81 = scmp.eq.s32.totalorder %s34, 0
      %p82 = por %p80, %p81
      %s84 = sadd.s32 %s83, 1
      %p87 = scmp.eq.s32.totalorder %s28, 1
      %p88 = scmp.ne.s32.totalorder %s83, %s85
      %p89 = scmp.eq.s32.totalorder %s28, 0
      %p90 = por %p88, %p89
      %p91 = scmp.ne.s32.totalorder %s83, %s85
      %p92 = scmp.eq.s32.totalorder %s33, 1
      %p93 = por %p91, %p92
      %p94 = scmp.ne.s32.totalorder %s85, %s86
      %p95 = scmp.eq.s32.totalorder %s33, 0
      %p96 = por %p94, %p95
      %p97 = scmp.ne.s32.totalorder %s85, %s86
      %p98 = scmp.eq.s32.totalorder %s34, 1
      %p99 = por %p97, %p98
      %p101 = scmp.ne.s32.totalorder %s86, %s100
      %p102 = scmp.eq.s32.totalorder %s34, 0
      %p103 = por %p101, %p102
      %s105 = sadd.s32 %s104, 1
      %p108 = scmp.eq.s32.totalorder %s28, 1
      %p109 = scmp.ne.s32.totalorder %s104, %s106
      %p110 = scmp.eq.s32.totalorder %s28, 0
      %p111 = por %p109, %p110
      %p112 = scmp.ne.s32.totalorder %s104, %s106
      %p113 = scmp.eq.s32.totalorder %s33, 1
      %p114 = por %p112, %p113
      %p115 = scmp.ne.s32.totalorder %s106, %s107
      %p116 = scmp.eq.s32.totalorder %s33, 0
      %p117 = por %p115, %p116
      %p118 = scmp.ne.s32.totalorder %s106, %s107
      %p119 = scmp.eq.s32.totalorder %s34, 1
      %p120 = por %p118, %p119
      %p122 = scmp.ne.s32.totalorder %s107, %s121
      %p123 = scmp.eq.s32.totalorder %s34, 0
      %p124 = por %p122, %p123
      %s126 = sadd.s32 %s125, 1
      %p129 = scmp.eq.s32.totalorder %s28, 1
      %p130 = scmp.ne.s32.totalorder %s125, %s127
      %p131 = scmp.eq.s32.totalorder %s28, 0
      %p132 = por %p130, %p131
      %p133 = scmp.ne.s32.totalorder %s125, %s127
      %p134 = scmp.eq.s32.totalorder %s33, 1
      %p135 = por %p133, %p134
      %p136 = scmp.ne.s32.totalorder %s127, %s128
      %p137 = scmp.eq.s32.totalorder %s33, 0
      %p138 = por %p136, %p137
      %p139 = scmp.ne.s32.totalorder %s127, %s128
      %p140 = scmp.eq.s32.totalorder %s34, 1
      %p141 = por %p139, %p140
      %p143 = scmp.ne.s32.totalorder %s128, %s142
      %p144 = scmp.eq.s32.totalorder %s34, 0
      %p145 = por %p143, %p144
      %s147 = sadd.s32 %s146, 1
      %p150 = scmp.eq.s32.totalorder %s28, 1
      %p151 = scmp.ne.s32.totalorder %s146, %s148
      %p152 = scmp.eq.s32.totalorder %s28, 0
      %p153 = por %p151, %p152
      %p154 = scmp.ne.s32.totalorder %s146, %s148
      %p155 = scmp.eq.s32.totalorder %s33, 1
      %p156 = por %p154, %p155
      %p157 = scmp.ne.s32.totalorder %s148, %s149
      %p158 = scmp.eq.s32.totalorder %s33, 0
      %p159 = por %p157, %p158
      %p160 = scmp.ne.s32.totalorder %s148, %s149
      %p161 = scmp.eq.s32.totalorder %s34, 1
      %p162 = por %p160, %p161
      %p164 = scmp.ne.s32.totalorder %s149, %s163
      %p165 = scmp.eq.s32.totalorder %s34, 0
      %p166 = por %p164, %p165
      %s168 = sadd.s32 %s167, 1
      %p171 = scmp.eq.s32.totalorder %s28, 1
      %p172 = scmp.ne.s32.totalorder %s167, %s169
      %p173 = scmp.eq.s32.totalorder %s28, 0
      %p174 = por %p172, %p173
      %p175 = scmp.ne.s32.totalorder %s167, %s169
      %p176 = scmp.eq.s32.totalorder %s33, 1
      %p177 = por %p175, %p176
      %p178 = scmp.ne.s32.totalorder %s169, %s170
      %p179 = scmp.eq.s32.totalorder %s33, 0
      %p180 = por %p178, %p179
      %p181 = scmp.ne.s32.totalorder %s169, %s170
      %p182 = scmp.eq.s32.totalorder %s34, 1
      %p183 = por %p181, %p182
      %p185 = scmp.ne.s32.totalorder %s170, %s184
      %p186 = scmp.eq.s32.totalorder %s34, 0
      %p187 = por %p185, %p186
      %s189 = sadd.s32 %s188, 1
      %p192 = scmp.eq.s32.totalorder %s28, 1
      %p193 = scmp.ne.s32.totalorder %s188, %s190
      %p194 = scmp.eq.s32.totalorder %s28, 0
      %p195 = por %p193, %p194
      %p196 = scmp.ne.s32.totalorder %s188, %s190
      %p197 = scmp.eq.s32.totalorder %s33, 1
      %p198 = por %p196, %p197
      %p199 = scmp.ne.s32.totalorder %s190, %s191
      %p200 = scmp.eq.s32.totalorder %s33, 0
      %p201 = por %p199, %p200
      %p202 = scmp.ne.s32.totalorder %s190, %s191
      %p203 = scmp.eq.s32.totalorder %s34, 1
      %p204 = por %p202, %p203
      %p206 = scmp.ne.s32.totalorder %s191, %s205
      %p207 = scmp.eq.s32.totalorder %s34, 0
      %p208 = por %p206, %p207
      %s210 = sadd.s32 %s209, 1
      %p213 = scmp.eq.s32.totalorder %s28, 1
      %p214 = scmp.ne.s32.totalorder %s209, %s211
      %p215 = scmp.eq.s32.totalorder %s28, 0
      %p216 = por %p214, %p215
      %p217 = scmp.ne.s32.totalorder %s209, %s211
      %p218 = scmp.eq.s32.totalorder %s33, 1
      %p219 = por %p217, %p218
      %p220 = scmp.ne.s32.totalorder %s211, %s212
      %p221 = scmp.eq.s32.totalorder %s33, 0
      %p222 = por %p220, %p221
      %p223 = scmp.ne.s32.totalorder %s211, %s212
      %p224 = scmp.eq.s32.totalorder %s34, 1
      %p225 = por %p223, %p224
      %p227 = scmp.ne.s32.totalorder %s212, %s226
      %p228 = scmp.eq.s32.totalorder %s34, 0
      %p229 = por %p227, %p228
      %s231 = sadd.s32 %s230, 1
      %p234 = scmp.eq.s32.totalorder %s28, 1
      %p235 = scmp.ne.s32.totalorder %s230, %s232
      %p236 = scmp.eq.s32.totalorder %s28, 0
      %p237 = por %p235, %p236
      %p238 = scmp.ne.s32.totalorder %s230, %s232
      %p239 = scmp.eq.s32.totalorder %s33, 1
      %p240 = por %p238, %p239
      %p241 = scmp.ne.s32.totalorder %s232, %s233
      %p242 = scmp.eq.s32.totalorder %s33, 0
      %p243 = por %p241, %p242
      %p244 = scmp.ne.s32.totalorder %s232, %s233
      %p245 = scmp.eq.s32.totalorder %s34, 1
      %p246 = por %p244, %p245
      %p248 = scmp.ne.s32.totalorder %s233, %s247
      %p249 = scmp.eq.s32.totalorder %s34, 0
      %p250 = por %p248, %p249
      %s252 = sadd.s32 %s251, 1
      %p255 = scmp.eq.s32.totalorder %s28, 1
      %p256 = scmp.ne.s32.totalorder %s251, %s253
      %p257 = scmp.eq.s32.totalorder %s28, 0
      %p258 = por %p256, %p257
      %p259 = scmp.ne.s32.totalorder %s251, %s253
      %p260 = scmp.eq.s32.totalorder %s33, 1
      %p261 = por %p259, %p260
      %p262 = scmp.ne.s32.totalorder %s253, %s254
      %p263 = scmp.eq.s32.totalorder %s33, 0
      %p264 = por %p262, %p263
      %p265 = scmp.ne.s32.totalorder %s253, %s254
      %p266 = scmp.eq.s32.totalorder %s34, 1
      %p267 = por %p265, %p266
      %p269 = scmp.ne.s32.totalorder %s254, %s268
      %p270 = scmp.eq.s32.totalorder %s34, 0
      %p271 = por %p269, %p270
      %s273 = sadd.s32 %s272, 1
      %p276 = scmp.eq.s32.totalorder %s28, 1
      %p277 = scmp.ne.s32.totalorder %s272, %s274
      %p278 = scmp.eq.s32.totalorder %s28, 0
      %p279 = por %p277, %p278
      %p280 = scmp.ne.s32.totalorder %s272, %s274
      %p281 = scmp.eq.s32.totalorder %s33, 1
      %p282 = por %p280, %p281
      %p283 = scmp.ne.s32.totalorder %s274, %s275
      %p284 = scmp.eq.s32.totalorder %s33, 0
      %p285 = por %p283, %p284
      %p286 = scmp.ne.s32.totalorder %s274, %s275
      %p287 = scmp.eq.s32.totalorder %s34, 1
      %p288 = por %p286, %p287
      %p290 = scmp.ne.s32.totalorder %s275, %s289
      %p291 = scmp.eq.s32.totalorder %s34, 0
      %p292 = por %p290, %p291
      %s294 = sadd.s32 %s293, 1
      %p297 = scmp.eq.s32.totalorder %s28, 1
      %p298 = scmp.ne.s32.totalorder %s293, %s295
      %p299 = scmp.eq.s32.totalorder %s28, 0
      %p300 = por %p298, %p299
      %p301 = scmp.ne.s32.totalorder %s293, %s295
      %p302 = scmp.eq.s32.totalorder %s33, 1
      %p303 = por %p301, %p302
      %p304 = scmp.ne.s32.totalorder %s295, %s296
      %p305 = scmp.eq.s32.totalorder %s33, 0
      %p306 = por %p304, %p305
      %p307 = scmp.ne.s32.totalorder %s295, %s296
      %p308 = scmp.eq.s32.totalorder %s34, 1
      %p309 = por %p307, %p308
      %p311 = scmp.ne.s32.totalorder %s296, %s310
      %p312 = scmp.eq.s32.totalorder %s34, 0
      %p313 = por %p311, %p312
      %s315 = sadd.s32 %s314, 1
      %p318 = scmp.eq.s32.totalorder %s28, 1
      %p319 = scmp.ne.s32.totalorder %s314, %s316
      %p320 = scmp.eq.s32.totalorder %s28, 0
      %p321 = por %p319, %p320
      %p322 = scmp.ne.s32.totalorder %s314, %s316
      %p323 = scmp.eq.s32.totalorder %s33, 1
      %p324 = por %p322, %p323
      %p325 = scmp.ne.s32.totalorder %s316, %s317
      %p326 = scmp.eq.s32.totalorder %s33, 0
      %p327 = por %p325, %p326
      %p328 = scmp.ne.s32.totalorder %s316, %s317
      %p329 = scmp.eq.s32.totalorder %s34, 1
      %p330 = por %p328, %p329
      %p332 = scmp.ne.s32.totalorder %s317, %s331
      %p333 = scmp.eq.s32.totalorder %s34, 0
      %p334 = por %p332, %p333
      %s336 = sadd.s32 %s335, 1
      %p339 = scmp.eq.s32.totalorder %s28, 1
      %p340 = scmp.ne.s32.totalorder %s335, %s337
      %p341 = scmp.eq.s32.totalorder %s28, 0
      %p342 = por %p340, %p341
      %p343 = scmp.ne.s32.totalorder %s335, %s337
      %p344 = scmp.eq.s32.totalorder %s33, 1
      %p345 = por %p343, %p344
      %p346 = scmp.ne.s32.totalorder %s337, %s338
      %p347 = scmp.eq.s32.totalorder %s33, 0
      %p348 = por %p346, %p347
      %p349 = scmp.ne.s32.totalorder %s337, %s338
      %p350 = scmp.eq.s32.totalorder %s34, 1
      %p351 = por %p349, %p350
      %p353 = scmp.ne.s32.totalorder %s338, %s352
      %p354 = scmp.eq.s32.totalorder %s34, 0
      %p355 = por %p353, %p354
      %s357 = sadd.s32 %s356, 1
      %p360 = scmp.eq.s32.totalorder %s28, 1
      %p361 = scmp.ne.s32.totalorder %s356, %s358
      %p362 = scmp.eq.s32.totalorder %s28, 0
      %p363 = por %p361, %p362
      %p364 = scmp.ne.s32.totalorder %s356, %s358
      %p365 = scmp.eq.s32.totalorder %s33, 1
      %p366 = por %p364, %p365
      %p367 = scmp.ne.s32.totalorder %s358, %s359
      %p368 = scmp.eq.s32.totalorder %s33, 0
      %p369 = por %p367, %p368
      %p370 = scmp.ne.s32.totalorder %s358, %s359
      %p371 = scmp.eq.s32.totalorder %s34, 1
      %p372 = por %p370, %p371
      %p374 = scmp.ne.s32.totalorder %s359, %s373
      %p375 = scmp.eq.s32.totalorder %s34, 0
      %p376 = por %p374, %p375
      %s378 = sadd.s32 %s377, 1
      %p381 = scmp.eq.s32.totalorder %s28, 1
      %p382 = scmp.ne.s32.totalorder %s377, %s379
      %p383 = scmp.eq.s32.totalorder %s28, 0
      %p384 = por %p382, %p383
      %p385 = scmp.ne.s32.totalorder %s377, %s379
      %p386 = scmp.eq.s32.totalorder %s33, 1
      %p387 = por %p385, %p386
      %p388 = scmp.ne.s32.totalorder %s379, %s380
      %p389 = scmp.eq.s32.totalorder %s33, 0
      %p390 = por %p388, %p389
      %p391 = scmp.ne.s32.totalorder %s379, %s380
      %p392 = scmp.eq.s32.totalorder %s34, 1
      %p393 = por %p391, %p392
      %p395 = scmp.ne.s32.totalorder %s380, %s394
      %p396 = scmp.eq.s32.totalorder %s34, 0
      %p397 = por %p395, %p396
      %s399 = sadd.s32 %s398, 1
      %p402 = scmp.eq.s32.totalorder %s28, 1
      %p403 = scmp.ne.s32.totalorder %s398, %s400
      %p404 = scmp.eq.s32.totalorder %s28, 0
      %p405 = por %p403, %p404
      %p406 = scmp.ne.s32.totalorder %s398, %s400
      %p407 = scmp.eq.s32.totalorder %s33, 1
      %p408 = por %p406, %p407
      %p409 = scmp.ne.s32.totalorder %s400, %s401
      %p410 = scmp.eq.s32.totalorder %s33, 0
      %p411 = por %p409, %p410
      %p412 = scmp.ne.s32.totalorder %s400, %s401
      %p413 = scmp.eq.s32.totalorder %s34, 1
      %p414 = por %p412, %p413
      %p416 = scmp.ne.s32.totalorder %s401, %s415
      %p417 = scmp.eq.s32.totalorder %s34, 0
      %p418 = por %p416, %p417
      %s420 = sadd.s32 %s419, 1
      %p423 = scmp.eq.s32.totalorder %s28, 1
      %p424 = scmp.ne.s32.totalorder %s419, %s421
      %p425 = scmp.eq.s32.totalorder %s28, 0
      %p426 = por %p424, %p425
      %p427 = scmp.ne.s32.totalorder %s419, %s421
      %p428 = scmp.eq.s32.totalorder %s33, 1
      %p429 = por %p427, %p428
      %p430 = scmp.ne.s32.totalorder %s421, %s422
      %p431 = scmp.eq.s32.totalorder %s33, 0
      %p432 = por %p430, %p431
      %p433 = scmp.ne.s32.totalorder %s421, %s422
      %p434 = scmp.eq.s32.totalorder %s34, 1
      %p435 = por %p433, %p434
      %p437 = scmp.ne.s32.totalorder %s422, %s436
      %p438 = scmp.eq.s32.totalorder %s34, 0
      %p439 = por %p437, %p438
      %s441 = sadd.s32 %s440, 1
      %p444 = scmp.eq.s32.totalorder %s28, 1
      %p445 = scmp.ne.s32.totalorder %s440, %s442
      %p446 = scmp.eq.s32.totalorder %s28, 0
      %p447 = por %p445, %p446
      %p448 = scmp.ne.s32.totalorder %s440, %s442
      %p449 = scmp.eq.s32.totalorder %s33, 1
      %p450 = por %p448, %p449
      %p451 = scmp.ne.s32.totalorder %s442, %s443
      %p452 = scmp.eq.s32.totalorder %s33, 0
      %p453 = por %p451, %p452
      %p454 = scmp.ne.s32.totalorder %s442, %s443
      %p455 = scmp.eq.s32.totalorder %s34, 1
      %p456 = por %p454, %p455
      %p458 = scmp.ne.s32.totalorder %s443, %s457
      %p459 = scmp.eq.s32.totalorder %s34, 0
      %p460 = por %p458, %p459
      %s462 = sadd.s32 %s461, 1
      %p465 = scmp.eq.s32.totalorder %s28, 1
      %p466 = scmp.ne.s32.totalorder %s461, %s463
      %p467 = scmp.eq.s32.totalorder %s28, 0
      %p468 = por %p466, %p467
      %p469 = scmp.ne.s32.totalorder %s461, %s463
      %p470 = scmp.eq.s32.totalorder %s33, 1
      %p471 = por %p469, %p470
      %p472 = scmp.ne.s32.totalorder %s463, %s464
      %p473 = scmp.eq.s32.totalorder %s33, 0
      %p474 = por %p472, %p473
      %p475 = scmp.ne.s32.totalorder %s463, %s464
      %p476 = scmp.eq.s32.totalorder %s34, 1
      %p477 = por %p475, %p476
      %p479 = scmp.ne.s32.totalorder %s464, %s478
      %p480 = scmp.eq.s32.totalorder %s34, 0
      %p481 = por %p479, %p480
      %s482 = ssub.s32 %s28, %s35
      %p483 = scmp.eq.s32.totalorder %s482, 0
      %s485 = sadd.s32 %s484, 1
      %s486 = scalar_select %p483, %s484, %s485
      %p489 = pneg %p483
      %p490 = scmp.eq.s32.totalorder %s28, 1
      %p491 = por %p489, %p490
      %p492 = scmp.ne.s32.totalorder %s484, %s487
      %p493 = scmp.eq.s32.totalorder %s28, 0
      %p494 = por %p492, %p493
      %p495 = scmp.ne.s32.totalorder %s484, %s487
      %p496 = scmp.eq.s32.totalorder %s33, 1
      %p497 = por %p495, %p496
      %p498 = scmp.ne.s32.totalorder %s487, %s488
      %p499 = scmp.eq.s32.totalorder %s33, 0
      %p500 = por %p498, %p499
      %p501 = scmp.ne.s32.totalorder %s487, %s488
      %p502 = scmp.eq.s32.totalorder %s34, 1
      %p503 = por %p501, %p502
      %p505 = scmp.ne.s32.totalorder %s488, %s504
      %p506 = scmp.eq.s32.totalorder %s34, 0
      %p507 = por %p505, %p506
      %p508 = scmp.le.s32.totalorder 1, %s28
      %p509 = scmp.lt.s32.totalorder %s28, 3
      %p510 = pnand %p508, %p509
      %p511 = pneg %p510
      // Predicated region
      $region9: #{multi_gdfn_forward.1} parent=5 // pred_check
        _
      $region10: #{multi_gdfn_forward.1} parent=5 // pred_check_branch
        %513 = sbr.rel (%p510) target = $region12
      $region11: #{multi_gdfn_forward.1} parent=5 // pred_region
        %s514 = ssub.s32 %s28, 1
        // Predicated region
        $region13: #{multi_gdfn_forward.1} parent=11 // pred_check
          %p515 = pneg %p75
        $region14: #{multi_gdfn_forward.1} parent=11 // pred_check_branch
          %517 = sbr.rel (%p515) target = $region16
        $region15: #{multi_gdfn_forward.1} parent=11 // pred_region
          _
        $region16: #{multi_gdfn_forward.1} parent=11 // pred_fallthru
          _
        // Predicated region
        $region17: #{multi_gdfn_forward.1} parent=11 // pred_check
          %p518 = pneg %p96
        $region18: #{multi_gdfn_forward.1} parent=11 // pred_check_branch
          %520 = sbr.rel (%p518) target = $region20
        $region19: #{multi_gdfn_forward.1} parent=11 // pred_region
          _
        $region20: #{multi_gdfn_forward.1} parent=11 // pred_fallthru
          _
        // Predicated region
        $region21: #{multi_gdfn_forward.1} parent=11 // pred_check
          %p521 = pneg %p117
        $region22: #{multi_gdfn_forward.1} parent=11 // pred_check_branch
          %523 = sbr.rel (%p521) target = $region24
        $region23: #{multi_gdfn_forward.1} parent=11 // pred_region
          _
        $region24: #{multi_gdfn_forward.1} parent=11 // pred_fallthru
          _
        // Predicated region
        $region25: #{multi_gdfn_forward.1} parent=11 // pred_check
          %p524 = pneg %p138
        $region26: #{multi_gdfn_forward.1} parent=11 // pred_check_branch
          %526 = sbr.rel (%p524) target = $region28
        $region27: #{multi_gdfn_forward.1} parent=11 // pred_region
          _
        $region28: #{multi_gdfn_forward.1} parent=11 // pred_fallthru
          _
        // Predicated region
        $region29: #{multi_gdfn_forward.1} parent=11 // pred_check
          %p527 = pneg %p159
        $region30: #{multi_gdfn_forward.1} parent=11 // pred_check_branch
          %529 = sbr.rel (%p527) target = $region32
        $region31: #{multi_gdfn_forward.1} parent=11 // pred_region
          _
        $region32: #{multi_gdfn_forward.1} parent=11 // pred_fallthru
          _
        // Predicated region
        $region33: #{multi_gdfn_forward.1} parent=11 // pred_check
          %p530 = pneg %p180
        $region34: #{multi_gdfn_forward.1} parent=11 // pred_check_branch
          %532 = sbr.rel (%p530) target = $region36
        $region35: #{multi_gdfn_forward.1} parent=11 // pred_region
          _
        $region36: #{multi_gdfn_forward.1} parent=11 // pred_fallthru
          _
        // Predicated region
        $region37: #{multi_gdfn_forward.1} parent=11 // pred_check
          %p533 = pneg %p201
        $region38: #{multi_gdfn_forward.1} parent=11 // pred_check_branch
          %535 = sbr.rel (%p533) target = $region40
        $region39: #{multi_gdfn_forward.1} parent=11 // pred_region
          _
        $region40: #{multi_gdfn_forward.1} parent=11 // pred_fallthru
          _
        // Predicated region
        $region41: #{multi_gdfn_forward.1} parent=11 // pred_check
          %p536 = pneg %p222
        $region42: #{multi_gdfn_forward.1} parent=11 // pred_check_branch
          %538 = sbr.rel (%p536) target = $region44
        $region43: #{multi_gdfn_forward.1} parent=11 // pred_region
          _
        $region44: #{multi_gdfn_forward.1} parent=11 // pred_fallthru
          _
        // Predicated region
        $region45: #{multi_gdfn_forward.1} parent=11 // pred_check
          %p539 = pneg %p243
        $region46: #{multi_gdfn_forward.1} parent=11 // pred_check_branch
          %541 = sbr.rel (%p539) target = $region48
        $region47: #{multi_gdfn_forward.1} parent=11 // pred_region
          _
        $region48: #{multi_gdfn_forward.1} parent=11 // pred_fallthru
          _
        // Predicated region
        $region49: #{multi_gdfn_forward.1} parent=11 // pred_check
          %p542 = pneg %p264
        $region50: #{multi_gdfn_forward.1} parent=11 // pred_check_branch
          %544 = sbr.rel (%p542) target = $region52
        $region51: #{multi_gdfn_forward.1} parent=11 // pred_region
          _
        $region52: #{multi_gdfn_forward.1} parent=11 // pred_fallthru
          _
        // Predicated region
        $region53: #{multi_gdfn_forward.1} parent=11 // pred_check
          %p545 = pneg %p285
        $region54: #{multi_gdfn_forward.1} parent=11 // pred_check_branch
          %547 = sbr.rel (%p545) target = $region56
        $region55: #{multi_gdfn_forward.1} parent=11 // pred_region
          _
        $region56: #{multi_gdfn_forward.1} parent=11 // pred_fallthru
          _
        // Predicated region
        $region57: #{multi_gdfn_forward.1} parent=11 // pred_check
          %p548 = pneg %p306
        $region58: #{multi_gdfn_forward.1} parent=11 // pred_check_branch
          %550 = sbr.rel (%p548) target = $region60
        $region59: #{multi_gdfn_forward.1} parent=11 // pred_region
          _
        $region60: #{multi_gdfn_forward.1} parent=11 // pred_fallthru
          _
        // Predicated region
        $region61: #{multi_gdfn_forward.1} parent=11 // pred_check
          %p551 = pneg %p327
        $region62: #{multi_gdfn_forward.1} parent=11 // pred_check_branch
          %553 = sbr.rel (%p551) target = $region64
        $region63: #{multi_gdfn_forward.1} parent=11 // pred_region
          _
        $region64: #{multi_gdfn_forward.1} parent=11 // pred_fallthru
          _
        // Predicated region
        $region65: #{multi_gdfn_forward.1} parent=11 // pred_check
          %p554 = pneg %p348
        $region66: #{multi_gdfn_forward.1} parent=11 // pred_check_branch
          %556 = sbr.rel (%p554) target = $region68
        $region67: #{multi_gdfn_forward.1} parent=11 // pred_region
          _
        $region68: #{multi_gdfn_forward.1} parent=11 // pred_fallthru
          _
        // Predicated region
        $region69: #{multi_gdfn_forward.1} parent=11 // pred_check
          %p557 = pneg %p369
        $region70: #{multi_gdfn_forward.1} parent=11 // pred_check_branch
          %559 = sbr.rel (%p557) target = $region72
        $region71: #{multi_gdfn_forward.1} parent=11 // pred_region
          %s561 = ssub.s32 64, 64
          %562 = vsyncadd [#allocation3], %s561
          %s564 = sshll.u32 %s15, 4
          %s565 = int_to_ptr.vmem [resolvable:$true] %s564
          %567 = dma.vmem_to_smem %s565, 64, [#allocation2], [#allocation3]
        $region72: #{multi_gdfn_forward.1} parent=11 // pred_fallthru
          _
        // Predicated region
        $region73: #{multi_gdfn_forward.1} parent=11 // pred_check
          %p568 = pneg %p390
        $region74: #{multi_gdfn_forward.1} parent=11 // pred_check_branch
          %570 = sbr.rel (%p568) target = $region76
        $region75: #{multi_gdfn_forward.1} parent=11 // pred_region
          _
        $region76: #{multi_gdfn_forward.1} parent=11 // pred_fallthru
          _
        // Predicated region
        $region77: #{multi_gdfn_forward.1} parent=11 // pred_check
          %p571 = pneg %p411
        $region78: #{multi_gdfn_forward.1} parent=11 // pred_check_branch
          %573 = sbr.rel (%p571) target = $region80
        $region79: #{multi_gdfn_forward.1} parent=11 // pred_region
          _
        $region80: #{multi_gdfn_forward.1} parent=11 // pred_fallthru
          _
        // Predicated region
        $region81: #{multi_gdfn_forward.1} parent=11 // pred_check
          %p574 = pneg %p432
        $region82: #{multi_gdfn_forward.1} parent=11 // pred_check_branch
          %576 = sbr.rel (%p574) target = $region84
        $region83: #{multi_gdfn_forward.1} parent=11 // pred_region
          _
        $region84: #{multi_gdfn_forward.1} parent=11 // pred_fallthru
          _
        // Predicated region
        $region85: #{multi_gdfn_forward.1} parent=11 // pred_check
          %p577 = pneg %p453
        $region86: #{multi_gdfn_forward.1} parent=11 // pred_check_branch
          %579 = sbr.rel (%p577) target = $region88
        $region87: #{multi_gdfn_forward.1} parent=11 // pred_region
          _
        $region88: #{multi_gdfn_forward.1} parent=11 // pred_fallthru
          _
        // Predicated region
        $region89: #{multi_gdfn_forward.1} parent=11 // pred_check
          %p580 = pneg %p474
        $region90: #{multi_gdfn_forward.1} parent=11 // pred_check_branch
          %582 = sbr.rel (%p580) target = $region92
        $region91: #{multi_gdfn_forward.1} parent=11 // pred_region
          _
        $region92: #{multi_gdfn_forward.1} parent=11 // pred_fallthru
          _
      $region12: #{multi_gdfn_forward.1} parent=5 // pred_fallthru
        _
      %p583 = scmp.lt.s32.totalorder %s28, 2
      // Predicated region
      $region93: #{multi_gdfn_forward.1} parent=5 // pred_check
        %p584 = pneg %p583
      $region94: #{multi_gdfn_forward.1} parent=5 // pred_check_branch
        %586 = sbr.rel (%p584) target = $region96
      $region95: #{multi_gdfn_forward.1} parent=5 // pred_region
        // Predicated region
        $region97: #{multi_gdfn_forward.1} parent=95 // pred_check
          %p587 = pneg %p48
        $region98: #{multi_gdfn_forward.1} parent=95 // pred_check_branch
          %589 = sbr.rel (%p587) target = $region100
        $region99: #{multi_gdfn_forward.1} parent=95 // pred_region
          %p590 = scmp.lt.s32.totalorder %s28, 1
          %s591 = scalar_select %p590, %s28, 1
          %s592 = smul.addr %s591, 4
          %s593 = smul.addr %s592, 8
          %s594 = scalar_lea.vmem %s0, %s593
        $region100: #{multi_gdfn_forward.1} parent=95 // pred_fallthru
          _
      $region96: #{multi_gdfn_forward.1} parent=5 // pred_fallthru
        _
      %p595 = scmp.le.s32.totalorder 1, %s28
      %p596 = scmp.lt.s32.totalorder %s28, 3
      %p597 = pnand %p595, %p596
      %p598 = pneg %p597
      // Predicated region
      $region101: #{multi_gdfn_forward.1} parent=5 // pred_check
        _
      $region102: #{multi_gdfn_forward.1} parent=5 // pred_check_branch
        %600 = sbr.rel (%p597) target = $region104
      $region103: #{multi_gdfn_forward.1} parent=5 // pred_region
        %s601 = ssub.s32 %s28, 1
        // Predicated region
        $region105: #{multi_gdfn_forward.1} parent=103 // pred_check
          %p602 = pneg %p369
        $region106: #{multi_gdfn_forward.1} parent=103 // pred_check_branch
          %604 = sbr.rel (%p602) target = $region108
        $region107: #{multi_gdfn_forward.1} parent=103 // pred_region
          %605 = dma.done [#allocation3], 64
        $region108: #{multi_gdfn_forward.1} parent=103 // pred_fallthru
          _
        %606 = sfence
        %p607 = scmp.lt.s32.totalorder %s33, 1
        %s608 = scalar_select %p607, %s33, 1
        %s609 = smul.addr %s608, 4
        %s610 = smul.addr %s609, 8
        %s611 = scalar_lea.vmem %s0, %s610
        %p612 = pneg %p54
        %p613 = pneg %p51
        %p614 = pneg %p75
        %p615 = pneg %p72
        %p616 = pneg %p96
        %p617 = pneg %p93
        %p618 = pneg %p117
        %p619 = pneg %p114
        %p620 = pneg %p138
        %p621 = pneg %p135
        %p622 = pneg %p159
        %p623 = pneg %p156
        %p624 = pneg %p180
        %p625 = pneg %p177
        %p626 = pneg %p201
        %p627 = pneg %p198
        %p628 = pneg %p222
        %p629 = pneg %p219
        %p630 = pneg %p243
        %p631 = pneg %p240
        %p632 = pneg %p264
        %p633 = pneg %p261
        %p634 = pneg %p285
        %p635 = pneg %p282
        %p636 = pneg %p306
        %p637 = pneg %p303
        %p638 = pneg %p327
        %p639 = pneg %p324
        %p640 = pneg %p348
        %p641 = pneg %p345
        %p642 = pneg %p369
        %p643 = pneg %p366
        %p644 = pneg %p390
        %p645 = pneg %p387
        %p646 = pneg %p411
        %p647 = pneg %p408
        %p648 = pneg %p432
        %p649 = pneg %p429
        %p650 = pneg %p453
        %p651 = pneg %p450
        %p652 = pneg %p474
        %p653 = pneg %p471
        %p654 = pneg %p500
        %p655 = pneg %p497
        %p656 = scmp.lt.s32.totalorder %s33, 1
        %s657 = scalar_select %p656, %s33, 1
        %s658 = smul.addr %s657, 4
        %s659 = smul.addr %s658, 8
        %s660 = scalar_lea.vmem %s21, %s659
        %p661 = scmp.lt.s32.totalorder %s33, 1
        %s662 = scalar_select %p661, %s33, 1
        %s663 = smul.addr %s662, 4
        %s664 = smul.addr %s663, 8
        %s665 = scalar_lea.vmem %s0, %s664
        %p666 = scmp.lt.s32.totalorder %s33, 1
        %s667 = scalar_select %p666, %s33, 1
        %s668 = smul.addr %s667, 4
        %s669 = smul.addr %s668, 8
        %s670 = scalar_lea.vmem %s21, %s669
        %v671 = vld [vmem:[%s665] sm:$0xff]
        %v672 = vld [vmem:[%s665 + $0x8] sm:$0xff]
        %v673 = vld [vmem:[%s665 + $0x10] sm:$0xff]
        %v674 = vld [vmem:[%s665 + $0x18] sm:$0xff]
        %v675 = vld [vmem:[%s3] sm:$0xff]
        %v676 = vld [vmem:[%s3 + $0x8] sm:$0xff]
        %v677 = vld [vmem:[%s3 + $0x10] sm:$0xff]
        %v678 = vld [vmem:[%s3 + $0x18] sm:$0xff]
        %v679 = vld [vmem:[%s3 + $0x20] sm:$0xff]
        %v680 = vld [vmem:[%s3 + $0x28] sm:$0xff]
        %v681 = vld [vmem:[%s3 + $0x30] sm:$0xff]
        %v682 = vld [vmem:[%s3 + $0x38] sm:$0xff]
        %683 = vrot.lane.b32.xlu0 %v671, 17
        %v684 = vpop.permute.xlu0 %683
        %685 = vrot.lane.b32.xlu0 %v673, 17
        %v686 = vpop.permute.xlu0 %685
        %687 = vrot.lane.b32.xlu0 %v672, 17
        %v688 = vpop.permute.xlu0 %687
        %689 = vrot.lane.b32.xlu0 %v674, 17
        %v690 = vpop.permute.xlu0 %689
        %v691 = vlaneseq
        %v692 = vand.u32 %v691, 127
        %vm693 = vcmp.lt.s32.totalorder %v692, 17
        %v694 = vsel %vm693, %v684, %v688
        %v695 = vsel %vm693, %v686, %v690
        %v696 = vsel %vm693, %v688, %v684
        %v697 = vsel %vm693, %v690, %v686
        %v698 = vld [vmem:[%s1] sm:$0x3]
        %v700 = vlaneseq
        %v701 = vshrl.u32 %v700, 7
        %v702 = vsub.s32 0, %v701
        %v703 = vrot.slane %v698, %v702
        %v704 = vlaneseq
        %v705 = vshrl.u32 %v704, 7
        %v706 = vsub.s32 1, %v705
        %v707 = vrot.slane %v698, %v706
        %v710 = vmul.f32 %v696, %v703
        %v711 = vmul.f32 %v694, %v707
        %v712 = vmul.f32 %v697, %v703
        %v713 = vmul.f32 %v695, %v707
        %714 = vrot.lane.b32.xlu0 %v671, 16
        %v715 = vpop.permute.xlu0 %714
        %716 = vrot.lane.b32.xlu0 %v673, 16
        %v717 = vpop.permute.xlu0 %716
        %718 = vrot.lane.b32.xlu0 %v672, 16
        %v719 = vpop.permute.xlu0 %718
        %720 = vrot.lane.b32.xlu0 %v674, 16
        %v721 = vpop.permute.xlu0 %720
        %vm722 = vcmp.lt.s32.totalorder %v692, 16
        %v723 = vsel %vm722, %v715, %v719
        %v724 = vsel %vm722, %v717, %v721
        %v725 = vsel %vm722, %v719, %v715
        %v726 = vsel %vm722, %v721, %v717
        %s727 = scalar_lea.vmem %s1, 2
        %v728 = vld [vmem:[%s727] sm:$0x3]
        %v730 = vlaneseq
        %v731 = vshrl.u32 %v730, 7
        %v732 = vsub.s32 0, %v731
        %v733 = vrot.slane %v728, %v732
        %v734 = vlaneseq
        %v735 = vshrl.u32 %v734, 7
        %v736 = vsub.s32 1, %v735
        %v737 = vrot.slane %v728, %v736
        %v740 = vmul.f32 %v725, %v733
        %v741 = vmul.f32 %v723, %v737
        %v742 = vmul.f32 %v726, %v733
        %v743 = vmul.f32 %v724, %v737
        %744 = vrot.lane.b32.xlu0 %v671, 15
        %v745 = vpop.permute.xlu0 %744
        %746 = vrot.lane.b32.xlu0 %v673, 15
        %v747 = vpop.permute.xlu0 %746
        %748 = vrot.lane.b32.xlu0 %v672, 15
        %v749 = vpop.permute.xlu0 %748
        %750 = vrot.lane.b32.xlu0 %v674, 15
        %v751 = vpop.permute.xlu0 %750
        %vm752 = vcmp.lt.s32.totalorder %v692, 15
        %v753 = vsel %vm752, %v745, %v749
        %v754 = vsel %vm752, %v747, %v751
        %v755 = vsel %vm752, %v749, %v745
        %v756 = vsel %vm752, %v751, %v747
        %s757 = scalar_lea.vmem %s1, 4
        %v758 = vld [vmem:[%s757] sm:$0x3]
        %v760 = vlaneseq
        %v761 = vshrl.u32 %v760, 7
        %v762 = vsub.s32 0, %v761
        %v763 = vrot.slane %v758, %v762
        %v764 = vlaneseq
        %v765 = vshrl.u32 %v764, 7
        %v766 = vsub.s32 1, %v765
        %v767 = vrot.slane %v758, %v766
        %v770 = vmul.f32 %v755, %v763
        %v771 = vmul.f32 %v753, %v767
        %v772 = vmul.f32 %v756, %v763
        %v773 = vmul.f32 %v754, %v767
        %774 = vrot.lane.b32.xlu0 %v671, 1
        %v775 = vpop.permute.xlu0 %774
        %776 = vrot.lane.b32.xlu0 %v673, 1
        %v777 = vpop.permute.xlu0 %776
        %778 = vrot.lane.b32.xlu0 %v672, 1
        %v779 = vpop.permute.xlu0 %778
        %780 = vrot.lane.b32.xlu0 %v674, 1
        %v781 = vpop.permute.xlu0 %780
        %vm782 = vcmp.lt.s32.totalorder %v692, 1
        %v783 = vsel %vm782, %v775, %v779
        %v784 = vsel %vm782, %v777, %v781
        %v785 = vsel %vm782, %v779, %v775
        %v786 = vsel %vm782, %v781, %v777
        %s787 = scalar_lea.vmem %s1, 6
        %v788 = vld [vmem:[%s787] sm:$0x3]
        %v790 = vlaneseq
        %v791 = vshrl.u32 %v790, 7
        %v792 = vsub.s32 0, %v791
        %v793 = vrot.slane %v788, %v792
        %v794 = vlaneseq
        %v795 = vshrl.u32 %v794, 7
        %v796 = vsub.s32 1, %v795
        %v797 = vrot.slane %v788, %v796
        %v800 = vmul.f32 %v785, %v793
        %v801 = vmul.f32 %v783, %v797
        %v802 = vmul.f32 %v786, %v793
        %v803 = vmul.f32 %v784, %v797
        %804 = vrot.lane.b32.xlu0 %v671, 127
        %v805 = vpop.permute.xlu0 %804
        %806 = vrot.lane.b32.xlu0 %v673, 127
        %v807 = vpop.permute.xlu0 %806
        %808 = vrot.lane.b32.xlu0 %v672, 127
        %v809 = vpop.permute.xlu0 %808
        %810 = vrot.lane.b32.xlu0 %v674, 127
        %v811 = vpop.permute.xlu0 %810
        %vm812 = vcmp.lt.s32.totalorder %v692, 127
        %v813 = vsel %vm812, %v805, %v809
        %v814 = vsel %vm812, %v807, %v811
        %v815 = vsel %vm812, %v809, %v805
        %v816 = vsel %vm812, %v811, %v807
        %s817 = scalar_lea.vmem %s1, 10
        %v818 = vld [vmem:[%s817] sm:$0x3]
        %v820 = vlaneseq
        %v821 = vshrl.u32 %v820, 7
        %v822 = vsub.s32 0, %v821
        %v823 = vrot.slane %v818, %v822
        %v824 = vlaneseq
        %v825 = vshrl.u32 %v824, 7
        %v826 = vsub.s32 1, %v825
        %v827 = vrot.slane %v818, %v826
        %v830 = vmul.f32 %v813, %v823
        %v831 = vmul.f32 %v815, %v827
        %v832 = vmul.f32 %v814, %v823
        %v833 = vmul.f32 %v816, %v827
        %834 = vrot.lane.b32.xlu0 %v671, 113
        %v835 = vpop.permute.xlu0 %834
        %836 = vrot.lane.b32.xlu0 %v673, 113
        %v837 = vpop.permute.xlu0 %836
        %838 = vrot.lane.b32.xlu0 %v672, 113
        %v839 = vpop.permute.xlu0 %838
        %840 = vrot.lane.b32.xlu0 %v674, 113
        %v841 = vpop.permute.xlu0 %840
        %vm842 = vcmp.lt.s32.totalorder %v692, 113
        %v843 = vsel %vm842, %v835, %v839
        %v844 = vsel %vm842, %v837, %v841
        %v845 = vsel %vm842, %v839, %v835
        %v846 = vsel %vm842, %v841, %v837
        %s847 = scalar_lea.vmem %s1, 12
        %v848 = vld [vmem:[%s847] sm:$0x3]
        %v850 = vlaneseq
        %v851 = vshrl.u32 %v850, 7
        %v852 = vsub.s32 0, %v851
        %v853 = vrot.slane %v848, %v852
        %v854 = vlaneseq
        %v855 = vshrl.u32 %v854, 7
        %v856 = vsub.s32 1, %v855
        %v857 = vrot.slane %v848, %v856
        %v860 = vmul.f32 %v843, %v853
        %v861 = vmul.f32 %v845, %v857
        %v862 = vmul.f32 %v844, %v853
        %v863 = vmul.f32 %v846, %v857
        %864 = vrot.lane.b32.xlu0 %v671, 112
        %v865 = vpop.permute.xlu0 %864
        %866 = vrot.lane.b32.xlu0 %v673, 112
        %v867 = vpop.permute.xlu0 %866
        %868 = vrot.lane.b32.xlu0 %v672, 112
        %v869 = vpop.permute.xlu0 %868
        %870 = vrot.lane.b32.xlu0 %v674, 112
        %v871 = vpop.permute.xlu0 %870
        %vm872 = vcmp.lt.s32.totalorder %v692, 112
        %v873 = vsel %vm872, %v865, %v869
        %v874 = vsel %vm872, %v867, %v871
        %v875 = vsel %vm872, %v869, %v865
        %v876 = vsel %vm872, %v871, %v867
        %s877 = scalar_lea.vmem %s1, 14
        %v878 = vld [vmem:[%s877] sm:$0x3]
        %v880 = vlaneseq
        %v881 = vshrl.u32 %v880, 7
        %v882 = vsub.s32 0, %v881
        %v883 = vrot.slane %v878, %v882
        %v884 = vlaneseq
        %v885 = vshrl.u32 %v884, 7
        %v886 = vsub.s32 1, %v885
        %v887 = vrot.slane %v878, %v886
        %v890 = vmul.f32 %v873, %v883
        %v891 = vmul.f32 %v875, %v887
        %v892 = vmul.f32 %v874, %v883
        %v893 = vmul.f32 %v876, %v887
        %894 = vrot.lane.b32.xlu0 %v671, 111
        %v895 = vpop.permute.xlu0 %894
        %896 = vrot.lane.b32.xlu0 %v673, 111
        %v897 = vpop.permute.xlu0 %896
        %898 = vrot.lane.b32.xlu0 %v672, 111
        %v899 = vpop.permute.xlu0 %898
        %900 = vrot.lane.b32.xlu0 %v674, 111
        %v901 = vpop.permute.xlu0 %900
        %vm902 = vcmp.lt.s32.totalorder %v692, 111
        %v903 = vsel %vm902, %v895, %v899
        %v904 = vsel %vm902, %v897, %v901
        %v905 = vsel %vm902, %v899, %v895
        %v906 = vsel %vm902, %v901, %v897
        %s907 = scalar_lea.vmem %s1, 16
        %v908 = vld [vmem:[%s907] sm:$0x3]
        %v910 = vlaneseq
        %v911 = vshrl.u32 %v910, 7
        %v912 = vsub.s32 0, %v911
        %v913 = vrot.slane %v908, %v912
        %v914 = vlaneseq
        %v915 = vshrl.u32 %v914, 7
        %v916 = vsub.s32 1, %v915
        %v917 = vrot.slane %v908, %v916
        %v920 = vmul.f32 %v903, %v913
        %v921 = vmul.f32 %v905, %v917
        %v922 = vmul.f32 %v904, %v913
        %v923 = vmul.f32 %v906, %v917
        %v924 = vld [vmem:[%s4] sm:$0xff]
        %v925 = vld [vmem:[%s4 + $0x8] sm:$0xff]
        %v926 = vld [vmem:[%s4 + $0x10] sm:$0xff]
        %v927 = vld [vmem:[%s4 + $0x18] sm:$0xff]
        %929 = vset.pattern.permute.xlu0 0
        %930 = vperm.xlu0 %929, %v924
        %v931 = vpop.permute.xlu0 %930
        %934 = vset.pattern.permute.xlu0 0
        %935 = vperm.xlu0 %934, %v925
        %v936 = vpop.permute.xlu0 %935
        %939 = vset.pattern.permute.xlu0 0
        %940 = vperm.xlu0 %939, %v926
        %v941 = vpop.permute.xlu0 %940
        %944 = vset.pattern.permute.xlu0 0
        %945 = vperm.xlu0 %944, %v927
        %v946 = vpop.permute.xlu0 %945
        %vm948 = vcmask 130048
        %v950 = vsel %vm948, %v676, 0
        %v953 = vsel %vm948, %v678, 0
        %v956 = vsel %vm948, %v680, 0
        %v959 = vsel %vm948, %v682, 0
        %961 = vmatprep.subr.mxu0 %v711
        %962 = vmatpush1.msra.mxu0 %v710
        %963 = vmatprep.subr.mxu0 %v713
        %964 = vmatpush1.msra.mxu0 %v712
        %965 = vmatprep.subr.mxu0 %v741
        %966 = vmatpush1.msra.mxu0 %v740
        %967 = vmatprep.subr.mxu0 %v743
        %968 = vmatpush1.msra.mxu0 %v742
        %969 = vmatprep.subr.mxu0 %v771
        %970 = vmatpush1.msra.mxu0 %v770
        %971 = vmatprep.subr.mxu0 %v773
        %972 = vmatpush1.msra.mxu0 %v772
        %973 = vmatprep.subr.mxu0 %v801
        %974 = vmatpush1.msra.mxu0 %v800
        %975 = vmatprep.subr.mxu0 %v803
        %976 = vmatpush1.msra.mxu0 %v802
        %977 = vmatprep.subr.mxu0 %v672
        %978 = vmatpush1.msra.mxu0 %v671
        %979 = vmatprep.subr.mxu0 %v674
        %980 = vmatpush1.msra.mxu0 %v673
        %981 = vmatprep.subr.mxu0 %v831
        %982 = vmatpush1.msra.mxu0 %v830
        %983 = vmatprep.subr.mxu0 %v833
        %984 = vmatpush1.msra.mxu0 %v832
        %985 = vmatprep.subr.mxu0 %v861
        %986 = vmatpush1.msra.mxu0 %v860
        %987 = vmatprep.subr.mxu0 %v863
        %988 = vmatpush1.msra.mxu0 %v862
        %989 = vmatprep.subr.mxu0 %v891
        %990 = vmatpush1.msra.mxu0 %v890
        %991 = vmatprep.subr.mxu0 %v893
        %992 = vmatpush1.msra.mxu0 %v892
        %993 = vmatprep.subr.mxu0 %v921
        %994 = vmatpush1.msra.mxu0 %v920
        %995 = vmatprep.subr.mxu0 %v923
        %996 = vmatpush1.msra.mxu0 %v922
        %997 = vmatprep.subr.mxu0 0.0
        %998 = vmatpush1.msra.mxu0 0.0
        %999 = vmatprep.subr.mxu0 0.0
        %1000 = vmatpush1.msra.mxu0 0.0
        %1001 = vmatprep.subr.mxu0 0.0
        %1002 = vmatpush1.msra.mxu0 0.0
        %1003 = vmatprep.subr.mxu0 0.0
        %1004 = vmatpush1.msra.mxu0 0.0
        %1005 = vmatprep.subr.mxu0 0.0
        %1006 = vmatpush1.msra.mxu0 0.0
        %1007 = vmatprep.subr.mxu0 0.0
        %1008 = vmatpush1.msra.mxu0 0.0
        %1009 = vmatprep.subr.mxu0 0.0
        %1010 = vmatpush1.msra.mxu0 0.0
        %1011 = vmatprep.subr.mxu0 0.0
        %1012 = vmatpush1.msra.mxu0 0.0
        %1013 = vmatprep.subr.mxu0 0.0
        %1014 = vmatpush1.msra.mxu0 0.0
        %1015 = vmatprep.subr.mxu0 0.0
        %1016 = vmatpush1.msra.mxu0 0.0
        %1017 = vmatprep.subr.mxu0 0.0
        %1018 = vmatpush1.msra.mxu0 0.0
        %1019 = vmatprep.subr.mxu0 0.0
        %1020 = vmatpush1.msra.mxu0 0.0
        %1021 = vmatprep.subr.mxu0 0.0
        %1022 = vmatpush1.msra.mxu0 0.0
        %1023 = vmatprep.subr.mxu0 0.0
        %1024 = vmatpush1.msra.mxu0 0.0
        %1025 = vmatprep.mubr.f32.mxu0 %v950
        %1026 = vmatmul.mubr.f32.gmra.mrb[0].mxu0 %v675
        %v1027 = vpop.f32.mrb[0].mxu0
        %v1028 = vadd.f32 %v931, %v1027
        %v1029 = vpop.f32.mrb[0].mxu0
        %v1030 = vadd.f32 %v931, %v1029
        %1031 = vmatprep.mubr.f32.mxu0 %v953
        %1032 = vmatmul.mubr.f32.gmra.mrb[0].mxu0 %v677
        %v1033 = vpop.f32.mrb[0].mxu0
        %v1034 = vadd.f32 %v936, %v1033
        %v1035 = vpop.f32.mrb[0].mxu0
        %v1036 = vadd.f32 %v936, %v1035
        %1037 = vmatprep.mubr.f32.mxu0 %v956
        %1038 = vmatmul.mubr.f32.gmra.mrb[0].mxu0 %v679
        %v1039 = vpop.f32.mrb[0].mxu0
        %v1040 = vadd.f32 %v941, %v1039
        %v1041 = vpop.f32.mrb[0].mxu0
        %v1042 = vadd.f32 %v941, %v1041
        %1043 = vmatprep.mubr.f32.mxu0 %v959
        %1044 = vmatmul.mubr.f32.gmra.mrb[0].mxu0 %v681
        %v1045 = vpop.f32.mrb[0].mxu0
        %v1046 = vadd.f32 %v946, %v1045
        %v1047 = vpop.f32.mrb[0].mxu0
        %v1048 = vadd.f32 %v946, %v1047
        %1049 = vdwg.mxu0
        %v1050 = vmul.f32 %v1028, 0.5
        %v1051 = vmul.f32 %v1030, 0.5
        %v1052 = vmul.f32 %v1034, 0.5
        %v1053 = vmul.f32 %v1036, 0.5
        %v1054 = vmul.f32 %v1040, 0.5
        %v1055 = vmul.f32 %v1042, 0.5
        %v1056 = vmul.f32 %v1046, 0.5
        %v1057 = vmul.f32 %v1048, 0.5
        %v1058 = vmul.f32 %v1028, 0.044715
        %v1059 = vmul.f32 %v1030, 0.044715
        %v1060 = vmul.f32 %v1034, 0.044715
        %v1061 = vmul.f32 %v1036, 0.044715
        %v1062 = vmul.f32 %v1040, 0.044715
        %v1063 = vmul.f32 %v1042, 0.044715
        %v1064 = vmul.f32 %v1046, 0.044715
        %v1065 = vmul.f32 %v1048, 0.044715
        %v1066 = vmul.f32 %v1058, %v1028
        %v1067 = vmul.f32 %v1059, %v1030
        %v1068 = vmul.f32 %v1060, %v1034
        %v1069 = vmul.f32 %v1061, %v1036
        %v1070 = vmul.f32 %v1062, %v1040
        %v1071 = vmul.f32 %v1063, %v1042
        %v1072 = vmul.f32 %v1064, %v1046
        %v1073 = vmul.f32 %v1065, %v1048
        %v1074 = vmul.f32 %v1066, %v1028
        %v1075 = vmul.f32 %v1067, %v1030
        %v1076 = vmul.f32 %v1068, %v1034
        %v1077 = vmul.f32 %v1069, %v1036
        %v1078 = vmul.f32 %v1070, %v1040
        %v1079 = vmul.f32 %v1071, %v1042
        %v1080 = vmul.f32 %v1072, %v1046
        %v1081 = vmul.f32 %v1073, %v1048
        %v1082 = vadd.f32 %v1028, %v1074
        %v1083 = vadd.f32 %v1030, %v1075
        %v1084 = vadd.f32 %v1034, %v1076
        %v1085 = vadd.f32 %v1036, %v1077
        %v1086 = vadd.f32 %v1040, %v1078
        %v1087 = vadd.f32 %v1042, %v1079
        %v1088 = vadd.f32 %v1046, %v1080
        %v1089 = vadd.f32 %v1048, %v1081
        %v1090 = vmul.f32 %v1082, 0.7978846
        %v1091 = vmul.f32 %v1083, 0.7978846
        %v1092 = vmul.f32 %v1084, 0.7978846
        %v1093 = vmul.f32 %v1085, 0.7978846
        %v1094 = vmul.f32 %v1086, 0.7978846
        %v1095 = vmul.f32 %v1087, 0.7978846
        %v1096 = vmul.f32 %v1088, 0.7978846
        %v1097 = vmul.f32 %v1089, 0.7978846
        %v1098 = vtanh.pop %v1090
        %v1099 = vtanh.pop %v1091
        %v1100 = vtanh.pop %v1092
        %v1101 = vtanh.pop %v1093
        %v1102 = vtanh.pop %v1094
        %v1103 = vtanh.pop %v1095
        %v1104 = vtanh.pop %v1096
        %v1105 = vtanh.pop %v1097
        %v1106 = vadd.f32 %v1098, 1.0
        %v1107 = vadd.f32 %v1099, 1.0
        %v1108 = vadd.f32 %v1100, 1.0
        %v1109 = vadd.f32 %v1101, 1.0
        %v1110 = vadd.f32 %v1102, 1.0
        %v1111 = vadd.f32 %v1103, 1.0
        %v1112 = vadd.f32 %v1104, 1.0
        %v1113 = vadd.f32 %v1105, 1.0
        %v1114 = vmul.f32 %v1050, %v1106
        %v1115 = vmul.f32 %v1051, %v1107
        %v1116 = vmul.f32 %v1052, %v1108
        %v1117 = vmul.f32 %v1053, %v1109
        %v1118 = vmul.f32 %v1054, %v1110
        %v1119 = vmul.f32 %v1055, %v1111
        %v1120 = vmul.f32 %v1056, %v1112
        %v1121 = vmul.f32 %v1057, %v1113
        %v1122 = vadd.f32 %v671, %v1114
        %v1123 = vadd.f32 %v672, %v1115
        %v1124 = vadd.f32 %v673, %v1116
        %v1125 = vadd.f32 %v674, %v1117
        %v1126 = vadd.f32 %v1122, %v1118
        %v1127 = vadd.f32 %v1123, %v1119
        %v1128 = vadd.f32 %v1124, %v1120
        %v1129 = vadd.f32 %v1125, %v1121
        %v1130 = vld [vmem:[%s2] sm:$0x3]
        %1131 = vrot.lane.b32.xlu0 %v1126, 127
        %v1132 = vpop.permute.xlu0 %1131
        %1133 = vrot.lane.b32.xlu0 %v1128, 127
        %v1134 = vpop.permute.xlu0 %1133
        %1135 = vrot.lane.b32.xlu0 %v1127, 127
        %v1136 = vpop.permute.xlu0 %1135
        %1137 = vrot.lane.b32.xlu0 %v1129, 127
        %v1138 = vpop.permute.xlu0 %1137
        %v1139 = vsel %vm812, %v1132, %v1136
        %v1140 = vsel %vm812, %v1134, %v1138
        %v1141 = vsel %vm812, %v1136, %v1132
        %v1142 = vsel %vm812, %v1138, %v1134
        %v1144 = vlaneseq
        %v1145 = vshrl.u32 %v1144, 7
        %v1146 = vsub.s32 0, %v1145
        %v1147 = vrot.slane %v1130, %v1146
        %v1148 = vlaneseq
        %v1149 = vshrl.u32 %v1148, 7
        %v1150 = vsub.s32 1, %v1149
        %v1151 = vrot.slane %v1130, %v1150
        %v1154 = vmul.f32 %v1139, %v1147
        %v1155 = vmul.f32 %v1141, %v1151
        %v1156 = vmul.f32 %v1140, %v1147
        %v1157 = vmul.f32 %v1142, %v1151
        %1158 = vrot.lane.b32.xlu0 %v1126, 15
        %v1159 = vpop.permute.xlu0 %1158
        %1160 = vrot.lane.b32.xlu0 %v1128, 15
        %v1161 = vpop.permute.xlu0 %1160
        %1162 = vrot.lane.b32.xlu0 %v1127, 15
        %v1163 = vpop.permute.xlu0 %1162
        %1164 = vrot.lane.b32.xlu0 %v1129, 15
        %v1165 = vpop.permute.xlu0 %1164
        %v1166 = vsel %vm752, %v1159, %v1163
        %v1167 = vsel %vm752, %v1161, %v1165
        %v1168 = vsel %vm752, %v1163, %v1159
        %v1169 = vsel %vm752, %v1165, %v1161
        %v1170 = vsub.f32 1.0, %v1130
        %v1172 = vlaneseq
        %v1173 = vshrl.u32 %v1172, 7
        %v1174 = vsub.s32 0, %v1173
        %v1175 = vrot.slane %v1170, %v1174
        %v1176 = vlaneseq
        %v1177 = vshrl.u32 %v1176, 7
        %v1178 = vsub.s32 1, %v1177
        %v1179 = vrot.slane %v1170, %v1178
        %v1182 = vmul.f32 %v1168, %v1175
        %v1183 = vmul.f32 %v1166, %v1179
        %v1184 = vmul.f32 %v1169, %v1175
        %v1185 = vmul.f32 %v1167, %v1179
        %v1186 = vadd.f32 %v1154, %v1182
        %v1187 = vadd.f32 %v1155, %v1183
        %v1188 = vadd.f32 %v1156, %v1184
        %v1189 = vadd.f32 %v1157, %v1185
        %v1190 = vadd.f32 %v1126, %v1186
        %v1191 = vadd.f32 %v1127, %v1187
        %v1192 = vadd.f32 %v1128, %v1188
        %v1193 = vadd.f32 %v1129, %v1189
        %s1194 = scalar_lea.vmem %s2, 2
        %v1195 = vld [vmem:[%s1194] sm:$0x3]
        %1196 = vrot.lane.b32.xlu0 %v1190, 126
        %v1197 = vpop.permute.xlu0 %1196
        %1198 = vrot.lane.b32.xlu0 %v1192, 126
        %v1199 = vpop.permute.xlu0 %1198
        %1200 = vrot.lane.b32.xlu0 %v1191, 126
        %v1201 = vpop.permute.xlu0 %1200
        %1202 = vrot.lane.b32.xlu0 %v1193, 126
        %v1203 = vpop.permute.xlu0 %1202
        %vm1204 = vcmp.lt.s32.totalorder %v692, 126
        %v1205 = vsel %vm1204, %v1197, %v1201
        %v1206 = vsel %vm1204, %v1199, %v1203
        %v1207 = vsel %vm1204, %v1201, %v1197
        %v1208 = vsel %vm1204, %v1203, %v1199
        %v1210 = vlaneseq
        %v1211 = vshrl.u32 %v1210, 7
        %v1212 = vsub.s32 0, %v1211
        %v1213 = vrot.slane %v1195, %v1212
        %v1214 = vlaneseq
        %v1215 = vshrl.u32 %v1214, 7
        %v1216 = vsub.s32 1, %v1215
        %v1217 = vrot.slane %v1195, %v1216
        %v1220 = vmul.f32 %v1205, %v1213
        %v1221 = vmul.f32 %v1207, %v1217
        %v1222 = vmul.f32 %v1206, %v1213
        %v1223 = vmul.f32 %v1208, %v1217
        %1224 = vrot.lane.b32.xlu0 %v1190, 14
        %v1225 = vpop.permute.xlu0 %1224
        %1226 = vrot.lane.b32.xlu0 %v1192, 14
        %v1227 = vpop.permute.xlu0 %1226
        %1228 = vrot.lane.b32.xlu0 %v1191, 14
        %v1229 = vpop.permute.xlu0 %1228
        %1230 = vrot.lane.b32.xlu0 %v1193, 14
        %v1231 = vpop.permute.xlu0 %1230
        %vm1232 = vcmp.lt.s32.totalorder %v692, 14
        %v1233 = vsel %vm1232, %v1225, %v1229
        %v1234 = vsel %vm1232, %v1227, %v1231
        %v1235 = vsel %vm1232, %v1229, %v1225
        %v1236 = vsel %vm1232, %v1231, %v1227
        %v1237 = vsub.f32 1.0, %v1195
        %v1239 = vlaneseq
        %v1240 = vshrl.u32 %v1239, 7
        %v1241 = vsub.s32 0, %v1240
        %v1242 = vrot.slane %v1237, %v1241
        %v1243 = vlaneseq
        %v1244 = vshrl.u32 %v1243, 7
        %v1245 = vsub.s32 1, %v1244
        %v1246 = vrot.slane %v1237, %v1245
        %v1249 = vmul.f32 %v1235, %v1242
        %v1250 = vmul.f32 %v1233, %v1246
        %v1251 = vmul.f32 %v1236, %v1242
        %v1252 = vmul.f32 %v1234, %v1246
        %v1253 = vadd.f32 %v1220, %v1249
        %v1254 = vadd.f32 %v1221, %v1250
        %v1255 = vadd.f32 %v1222, %v1251
        %v1256 = vadd.f32 %v1223, %v1252
        %v1257 = vadd.f32 %v1190, %v1253
        %v1258 = vadd.f32 %v1191, %v1254
        %v1259 = vadd.f32 %v1192, %v1255
        %v1260 = vadd.f32 %v1193, %v1256
        %s1261 = scalar_lea.vmem %s2, 4
        %v1262 = vld [vmem:[%s1261] sm:$0x3]
        %1263 = vrot.lane.b32.xlu0 %v1257, 124
        %v1264 = vpop.permute.xlu0 %1263
        %1265 = vrot.lane.b32.xlu0 %v1259, 124
        %v1266 = vpop.permute.xlu0 %1265
        %1267 = vrot.lane.b32.xlu0 %v1258, 124
        %v1268 = vpop.permute.xlu0 %1267
        %1269 = vrot.lane.b32.xlu0 %v1260, 124
        %v1270 = vpop.permute.xlu0 %1269
        %vm1271 = vcmp.lt.s32.totalorder %v692, 124
        %v1272 = vsel %vm1271, %v1264, %v1268
        %v1273 = vsel %vm1271, %v1266, %v1270
        %v1274 = vsel %vm1271, %v1268, %v1264
        %v1275 = vsel %vm1271, %v1270, %v1266
        %v1277 = vlaneseq
        %v1278 = vshrl.u32 %v1277, 7
        %v1279 = vsub.s32 0, %v1278
        %v1280 = vrot.slane %v1262, %v1279
        %v1281 = vlaneseq
        %v1282 = vshrl.u32 %v1281, 7
        %v1283 = vsub.s32 1, %v1282
        %v1284 = vrot.slane %v1262, %v1283
        %v1287 = vmul.f32 %v1272, %v1280
        %v1288 = vmul.f32 %v1274, %v1284
        %v1289 = vmul.f32 %v1273, %v1280
        %v1290 = vmul.f32 %v1275, %v1284
        %1291 = vrot.lane.b32.xlu0 %v1257, 12
        %v1292 = vpop.permute.xlu0 %1291
        %1293 = vrot.lane.b32.xlu0 %v1259, 12
        %v1294 = vpop.permute.xlu0 %1293
        %1295 = vrot.lane.b32.xlu0 %v1258, 12
        %v1296 = vpop.permute.xlu0 %1295
        %1297 = vrot.lane.b32.xlu0 %v1260, 12
        %v1298 = vpop.permute.xlu0 %1297
        %vm1299 = vcmp.lt.s32.totalorder %v692, 12
        %v1300 = vsel %vm1299, %v1292, %v1296
        %v1301 = vsel %vm1299, %v1294, %v1298
        %v1302 = vsel %vm1299, %v1296, %v1292
        %v1303 = vsel %vm1299, %v1298, %v1294
        %v1304 = vsub.f32 1.0, %v1262
        %v1306 = vlaneseq
        %v1307 = vshrl.u32 %v1306, 7
        %v1308 = vsub.s32 0, %v1307
        %v1309 = vrot.slane %v1304, %v1308
        %v1310 = vlaneseq
        %v1311 = vshrl.u32 %v1310, 7
        %v1312 = vsub.s32 1, %v1311
        %v1313 = vrot.slane %v1304, %v1312
        %v1316 = vmul.f32 %v1302, %v1309
        %v1317 = vmul.f32 %v1300, %v1313
        %v1318 = vmul.f32 %v1303, %v1309
        %v1319 = vmul.f32 %v1301, %v1313
        %v1320 = vadd.f32 %v1287, %v1316
        %v1321 = vadd.f32 %v1288, %v1317
        %v1322 = vadd.f32 %v1289, %v1318
        %v1323 = vadd.f32 %v1290, %v1319
        %v1324 = vadd.f32 %v1257, %v1320
        %v1325 = vadd.f32 %v1258, %v1321
        %v1326 = vadd.f32 %v1259, %v1322
        %v1327 = vadd.f32 %v1260, %v1323
        %s1328 = scalar_lea.vmem %s2, 6
        %v1329 = vld [vmem:[%s1328] sm:$0x3]
        %1330 = vrot.lane.b32.xlu0 %v1324, 120
        %v1331 = vpop.permute.xlu0 %1330
        %1332 = vrot.lane.b32.xlu0 %v1326, 120
        %v1333 = vpop.permute.xlu0 %1332
        %1334 = vrot.lane.b32.xlu0 %v1325, 120
        %v1335 = vpop.permute.xlu0 %1334
        %1336 = vrot.lane.b32.xlu0 %v1327, 120
        %v1337 = vpop.permute.xlu0 %1336
        %vm1338 = vcmp.lt.s32.totalorder %v692, 120
        %v1339 = vsel %vm1338, %v1331, %v1335
        %v1340 = vsel %vm1338, %v1333, %v1337
        %v1341 = vsel %vm1338, %v1335, %v1331
        %v1342 = vsel %vm1338, %v1337, %v1333
        %v1344 = vlaneseq
        %v1345 = vshrl.u32 %v1344, 7
        %v1346 = vsub.s32 0, %v1345
        %v1347 = vrot.slane %v1329, %v1346
        %v1348 = vlaneseq
        %v1349 = vshrl.u32 %v1348, 7
        %v1350 = vsub.s32 1, %v1349
        %v1351 = vrot.slane %v1329, %v1350
        %v1354 = vmul.f32 %v1339, %v1347
        %v1355 = vmul.f32 %v1341, %v1351
        %v1356 = vmul.f32 %v1340, %v1347
        %v1357 = vmul.f32 %v1342, %v1351
        %1358 = vrot.lane.b32.xlu0 %v1324, 8
        %v1359 = vpop.permute.xlu0 %1358
        %1360 = vrot.lane.b32.xlu0 %v1326, 8
        %v1361 = vpop.permute.xlu0 %1360
        %1362 = vrot.lane.b32.xlu0 %v1325, 8
        %v1363 = vpop.permute.xlu0 %1362
        %1364 = vrot.lane.b32.xlu0 %v1327, 8
        %v1365 = vpop.permute.xlu0 %1364
        %vm1366 = vcmp.lt.s32.totalorder %v692, 8
        %v1367 = vsel %vm1366, %v1359, %v1363
        %v1368 = vsel %vm1366, %v1361, %v1365
        %v1369 = vsel %vm1366, %v1363, %v1359
        %v1370 = vsel %vm1366, %v1365, %v1361
        %v1371 = vsub.f32 1.0, %v1329
        %v1373 = vlaneseq
        %v1374 = vshrl.u32 %v1373, 7
        %v1375 = vsub.s32 0, %v1374
        %v1376 = vrot.slane %v1371, %v1375
        %v1377 = vlaneseq
        %v1378 = vshrl.u32 %v1377, 7
        %v1379 = vsub.s32 1, %v1378
        %v1380 = vrot.slane %v1371, %v1379
        %v1383 = vmul.f32 %v1369, %v1376
        %v1384 = vmul.f32 %v1367, %v1380
        %v1385 = vmul.f32 %v1370, %v1376
        %v1386 = vmul.f32 %v1368, %v1380
        %v1387 = vadd.f32 %v1354, %v1383
        %v1388 = vadd.f32 %v1355, %v1384
        %v1389 = vadd.f32 %v1356, %v1385
        %v1390 = vadd.f32 %v1357, %v1386
        %v1391 = vadd.f32 %v1324, %v1387
        %v1392 = vadd.f32 %v1325, %v1388
        %v1393 = vadd.f32 %v1326, %v1389
        %v1394 = vadd.f32 %v1327, %v1390
        %v1395 = vmul.f32 %v1391, 0.0625
        %v1396 = vmul.f32 %v1392, 0.0625
        %v1397 = vmul.f32 %v1393, 0.0625
        %v1398 = vmul.f32 %v1394, 0.0625
        %1399 = vrot.lane.b32.xlu0 %v1126, 112
        %v1400 = vpop.permute.xlu0 %1399
        %1401 = vrot.lane.b32.xlu0 %v1128, 112
        %v1402 = vpop.permute.xlu0 %1401
        %1403 = vrot.lane.b32.xlu0 %v1127, 112
        %v1404 = vpop.permute.xlu0 %1403
        %1405 = vrot.lane.b32.xlu0 %v1129, 112
        %v1406 = vpop.permute.xlu0 %1405
        %v1407 = vsel %vm872, %v1400, %v1404
        %v1408 = vsel %vm872, %v1402, %v1406
        %v1409 = vsel %vm872, %v1404, %v1400
        %v1410 = vsel %vm872, %v1406, %v1402
        %v1411 = vmax.f32 %v1126, %v1407
        %v1412 = vmax.f32 %v1127, %v1409
        %v1413 = vmax.f32 %v1128, %v1408
        %v1414 = vmax.f32 %v1129, %v1410
        %1415 = vrot.lane.b32.xlu0 %v1411, 96
        %v1416 = vpop.permute.xlu0 %1415
        %1417 = vrot.lane.b32.xlu0 %v1413, 96
        %v1418 = vpop.permute.xlu0 %1417
        %1419 = vrot.lane.b32.xlu0 %v1412, 96
        %v1420 = vpop.permute.xlu0 %1419
        %1421 = vrot.lane.b32.xlu0 %v1414, 96
        %v1422 = vpop.permute.xlu0 %1421
        %vm1423 = vcmp.lt.s32.totalorder %v692, 96
        %v1424 = vsel %vm1423, %v1416, %v1420
        %v1425 = vsel %vm1423, %v1418, %v1422
        %v1426 = vsel %vm1423, %v1420, %v1416
        %v1427 = vsel %vm1423, %v1422, %v1418
        %v1428 = vmax.f32 %v1411, %v1424
        %v1429 = vmax.f32 %v1412, %v1426
        %v1430 = vmax.f32 %v1413, %v1425
        %v1431 = vmax.f32 %v1414, %v1427
        %1432 = vrot.lane.b32.xlu0 %v1428, 64
        %v1433 = vpop.permute.xlu0 %1432
        %1434 = vrot.lane.b32.xlu0 %v1430, 64
        %v1435 = vpop.permute.xlu0 %1434
        %1436 = vrot.lane.b32.xlu0 %v1429, 64
        %v1437 = vpop.permute.xlu0 %1436
        %1438 = vrot.lane.b32.xlu0 %v1431, 64
        %v1439 = vpop.permute.xlu0 %1438
        %vm1440 = vcmp.lt.s32.totalorder %v692, 64
        %v1441 = vsel %vm1440, %v1433, %v1437
        %v1442 = vsel %vm1440, %v1435, %v1439
        %v1443 = vsel %vm1440, %v1437, %v1433
        %v1444 = vsel %vm1440, %v1439, %v1435
        %v1445 = vmax.f32 %v1428, %v1441
        %v1446 = vmax.f32 %v1429, %v1443
        %v1447 = vmax.f32 %v1430, %v1442
        %v1448 = vmax.f32 %v1431, %v1444
        %v1449 = vmax.f32 %v1445, %v1446
        %v1450 = vmax.f32 %v1447, %v1448
        %v1451 = vld [vmem:[%s7] sm:$0xff]
        %v1452 = vld [vmem:[%s8] sm:$0xff]
        %1454 = vset.pattern.permute.xlu0 0
        %1455 = vperm.xlu0 %1454, %v1452
        %v1456 = vpop.permute.xlu0 %1455
        %v1459 = vsel %vm948, %v1451, 0
        %1461 = vmatprep.subr.mxu0 %v1396
        %1462 = vmatpush1.msra.mxu0 %v1395
        %1463 = vmatprep.subr.mxu0 %v1398
        %1464 = vmatpush1.msra.mxu0 %v1397
        %1465 = vmatprep.subr.mxu0 0.0
        %1466 = vmatpush1.msra.mxu0 0.0
        %1467 = vmatprep.subr.mxu0 0.0
        %1468 = vmatpush1.msra.mxu0 0.0
        %1469 = vmatprep.subr.mxu0 0.0
        %1470 = vmatpush1.msra.mxu0 0.0
        %1471 = vmatprep.subr.mxu0 0.0
        %1472 = vmatpush1.msra.mxu0 0.0
        %1473 = vmatprep.subr.mxu0 0.0
        %1474 = vmatpush1.msra.mxu0 0.0
        %1475 = vmatprep.subr.mxu0 0.0
        %1476 = vmatpush1.msra.mxu0 0.0
        %1477 = vmatprep.subr.mxu0 0.0
        %1478 = vmatpush1.msra.mxu0 0.0
        %1479 = vmatprep.subr.mxu0 0.0
        %1480 = vmatpush1.msra.mxu0 0.0
        %1481 = vmatprep.subr.mxu0 0.0
        %1482 = vmatpush1.msra.mxu0 0.0
        %1483 = vmatprep.subr.mxu0 0.0
        %1484 = vmatpush1.msra.mxu0 0.0
        %1485 = vmatprep.subr.mxu0 0.0
        %1486 = vmatpush1.msra.mxu0 0.0
        %1487 = vmatprep.subr.mxu0 0.0
        %1488 = vmatpush1.msra.mxu0 0.0
        %1489 = vmatprep.subr.mxu0 0.0
        %1490 = vmatpush1.msra.mxu0 0.0
        %1491 = vmatprep.subr.mxu0 0.0
        %1492 = vmatpush1.msra.mxu0 0.0
        %1493 = vmatprep.subr.mxu0 0.0
        %1494 = vmatpush1.msra.mxu0 0.0
        %1495 = vmatprep.subr.mxu0 0.0
        %1496 = vmatpush1.msra.mxu0 0.0
        %1497 = vmatprep.subr.mxu0 0.0
        %1498 = vmatpush1.msra.mxu0 0.0
        %1499 = vmatprep.subr.mxu0 0.0
        %1500 = vmatpush1.msra.mxu0 0.0
        %1501 = vmatprep.subr.mxu0 0.0
        %1502 = vmatpush1.msra.mxu0 0.0
        %1503 = vmatprep.subr.mxu0 0.0
        %1504 = vmatpush1.msra.mxu0 0.0
        %1505 = vmatprep.subr.mxu0 0.0
        %1506 = vmatpush1.msra.mxu0 0.0
        %1507 = vmatprep.subr.mxu0 0.0
        %1508 = vmatpush1.msra.mxu0 0.0
        %1509 = vmatprep.subr.mxu0 0.0
        %1510 = vmatpush1.msra.mxu0 0.0
        %1511 = vmatprep.subr.mxu0 0.0
        %1512 = vmatpush1.msra.mxu0 0.0
        %1513 = vmatprep.subr.mxu0 0.0
        %1514 = vmatpush1.msra.mxu0 0.0
        %1515 = vmatprep.subr.mxu0 0.0
        %1516 = vmatpush1.msra.mxu0 0.0
        %1517 = vmatprep.subr.mxu0 0.0
        %1518 = vmatpush1.msra.mxu0 0.0
        %1519 = vmatprep.subr.mxu0 0.0
        %1520 = vmatpush1.msra.mxu0 0.0
        %1521 = vmatprep.subr.mxu0 0.0
        %1522 = vmatpush1.msra.mxu0 0.0
        %1523 = vmatprep.subr.mxu0 0.0
        %1524 = vmatpush1.msra.mxu0 0.0
        %1525 = vmatprep.mubr.f32.mxu0 0.0
        %1526 = vmatmul.mubr.f32.gmra.mrb[0].mxu0 %v1459
        %v1527 = vpop.f32.mrb[0].mxu0
        %v1528 = vadd.f32 %v1456, %v1527
        %v1529 = vpop.f32.mrb[0].mxu0
        %v1530 = vadd.f32 %v1456, %v1529
        %1531 = vdwg.mxu0
        %v1532 = vmul.f32 %v1528, 0.5
        %v1533 = vmul.f32 %v1530, 0.5
        %v1534 = vmul.f32 %v1528, 0.044715
        %v1535 = vmul.f32 %v1530, 0.044715
        %v1536 = vmul.f32 %v1534, %v1528
        %v1537 = vmul.f32 %v1535, %v1530
        %v1538 = vmul.f32 %v1536, %v1528
        %v1539 = vmul.f32 %v1537, %v1530
        %v1540 = vadd.f32 %v1528, %v1538
        %v1541 = vadd.f32 %v1530, %v1539
        %v1542 = vmul.f32 %v1540, 0.7978846
        %v1543 = vmul.f32 %v1541, 0.7978846
        %v1544 = vtanh.pop %v1542
        %v1545 = vtanh.pop %v1543
        %v1546 = vadd.f32 %v1544, 1.0
        %v1547 = vadd.f32 %v1545, 1.0
        %v1548 = vmul.f32 %v1532, %v1546
        %v1549 = vmul.f32 %v1533, %v1547
        %1550 = vmatprep.subr.mxu0 %v1449
        %1551 = vmatpush1.msra.mxu0 %v1449
        %1552 = vmatprep.subr.mxu0 %v1450
        %1553 = vmatpush1.msra.mxu0 %v1450
        %1554 = vmatprep.subr.mxu0 0.0
        %1555 = vmatpush1.msra.mxu0 0.0
        %1556 = vmatprep.subr.mxu0 0.0
        %1557 = vmatpush1.msra.mxu0 0.0
        %1558 = vmatprep.subr.mxu0 0.0
        %1559 = vmatpush1.msra.mxu0 0.0
        %1560 = vmatprep.subr.mxu0 0.0
        %1561 = vmatpush1.msra.mxu0 0.0
        %1562 = vmatprep.subr.mxu0 0.0
        %1563 = vmatpush1.msra.mxu0 0.0
        %1564 = vmatprep.subr.mxu0 0.0
        %1565 = vmatpush1.msra.mxu0 0.0
        %1566 = vmatprep.subr.mxu0 0.0
        %1567 = vmatpush1.msra.mxu0 0.0
        %1568 = vmatprep.subr.mxu0 0.0
        %1569 = vmatpush1.msra.mxu0 0.0
        %1570 = vmatprep.subr.mxu0 0.0
        %1571 = vmatpush1.msra.mxu0 0.0
        %1572 = vmatprep.subr.mxu0 0.0
        %1573 = vmatpush1.msra.mxu0 0.0
        %1574 = vmatprep.subr.mxu0 0.0
        %1575 = vmatpush1.msra.mxu0 0.0
        %1576 = vmatprep.subr.mxu0 0.0
        %1577 = vmatpush1.msra.mxu0 0.0
        %1578 = vmatprep.subr.mxu0 0.0
        %1579 = vmatpush1.msra.mxu0 0.0
        %1580 = vmatprep.subr.mxu0 0.0
        %1581 = vmatpush1.msra.mxu0 0.0
        %1582 = vmatprep.subr.mxu0 0.0
        %1583 = vmatpush1.msra.mxu0 0.0
        %1584 = vmatprep.subr.mxu0 0.0
        %1585 = vmatpush1.msra.mxu0 0.0
        %1586 = vmatprep.subr.mxu0 0.0
        %1587 = vmatpush1.msra.mxu0 0.0
        %1588 = vmatprep.subr.mxu0 0.0
        %1589 = vmatpush1.msra.mxu0 0.0
        %1590 = vmatprep.subr.mxu0 0.0
        %1591 = vmatpush1.msra.mxu0 0.0
        %1592 = vmatprep.subr.mxu0 0.0
        %1593 = vmatpush1.msra.mxu0 0.0
        %1594 = vmatprep.subr.mxu0 0.0
        %1595 = vmatpush1.msra.mxu0 0.0
        %1596 = vmatprep.subr.mxu0 0.0
        %1597 = vmatpush1.msra.mxu0 0.0
        %1598 = vmatprep.subr.mxu0 0.0
        %1599 = vmatpush1.msra.mxu0 0.0
        %1600 = vmatprep.subr.mxu0 0.0
        %1601 = vmatpush1.msra.mxu0 0.0
        %1602 = vmatprep.subr.mxu0 0.0
        %1603 = vmatpush1.msra.mxu0 0.0
        %1604 = vmatprep.subr.mxu0 0.0
        %1605 = vmatpush1.msra.mxu0 0.0
        %1606 = vmatprep.subr.mxu0 0.0
        %1607 = vmatpush1.msra.mxu0 0.0
        %1608 = vmatprep.subr.mxu0 0.0
        %1609 = vmatpush1.msra.mxu0 0.0
        %1610 = vmatprep.subr.mxu0 0.0
        %1611 = vmatpush1.msra.mxu0 0.0
        %1612 = vmatprep.subr.mxu0 0.0
        %1613 = vmatpush1.msra.mxu0 0.0
        %1614 = vmatprep.mubr.f32.mxu0 0.0
        %1615 = vmatmul.mubr.f32.gmra.mrb[0].mxu0 %v1459
        %v1616 = vpop.f32.mrb[0].mxu0
        %v1617 = vadd.f32 %v1456, %v1616
        %v1618 = vpop.f32.mrb[0].mxu0
        %v1619 = vadd.f32 %v1456, %v1618
        %1620 = vdwg.mxu0
        %v1621 = vmul.f32 %v1617, 0.5
        %v1622 = vmul.f32 %v1619, 0.5
        %v1623 = vmul.f32 %v1617, 0.044715
        %v1624 = vmul.f32 %v1619, 0.044715
        %v1625 = vmul.f32 %v1623, %v1617
        %v1626 = vmul.f32 %v1624, %v1619
        %v1627 = vmul.f32 %v1625, %v1617
        %v1628 = vmul.f32 %v1626, %v1619
        %v1629 = vadd.f32 %v1617, %v1627
        %v1630 = vadd.f32 %v1619, %v1628
        %v1631 = vmul.f32 %v1629, 0.7978846
        %v1632 = vmul.f32 %v1630, 0.7978846
        %v1633 = vtanh.pop %v1631
        %v1634 = vtanh.pop %v1632
        %v1635 = vadd.f32 %v1633, 1.0
        %v1636 = vadd.f32 %v1634, 1.0
        %v1637 = vmul.f32 %v1621, %v1635
        %v1638 = vmul.f32 %v1622, %v1636
        %v1639 = vld [vmem:[%s9] sm:$0xff]
        %v1640 = vld [vmem:[%s9 + $0x8] sm:$0xff]
        %1641 = vrot.lane.b32.xlu0 %v1548, 16
        %v1642 = vpop.permute.xlu0 %1641
        %1643 = vrot.lane.b32.xlu0 %v1549, 16
        %v1644 = vpop.permute.xlu0 %1643
        %v1645 = vsel %vm722, %v1642, %v1644
        %v1646 = vsel %vm722, %v1644, %v1642
        %v1647 = vmul.f32 %v1646, %v733
        %v1648 = vmul.f32 %v1645, %v737
        %1649 = vrot.lane.b32.xlu0 %v1548, 112
        %v1650 = vpop.permute.xlu0 %1649
        %1651 = vrot.lane.b32.xlu0 %v1549, 112
        %v1652 = vpop.permute.xlu0 %1651
        %v1653 = vsel %vm872, %v1650, %v1652
        %v1654 = vsel %vm872, %v1652, %v1650
        %v1655 = vmul.f32 %v1653, %v883
        %v1656 = vmul.f32 %v1654, %v887
        %v1657 = vld [vmem:[%s11] sm:$0xff]
        %v1658 = vld [vmem:[%s11 + $0x8] sm:$0xff]
        %1660 = vset.pattern.permute.xlu0 0
        %1661 = vperm.xlu0 %1660, %v1657
        %v1662 = vpop.permute.xlu0 %1661
        %1665 = vset.pattern.permute.xlu0 0
        %1666 = vperm.xlu0 %1665, %v1658
        %v1667 = vpop.permute.xlu0 %1666
        %vm1669 = vcmask 195584
        %v1671 = vsel %vm1669, %v1639, 0
        %v1674 = vsel %vm1669, %v1640, 0
        %1676 = vmatprep.subr.mxu0 %v1648
        %1677 = vmatpush1.msra.mxu0 %v1647
        %1678 = vmatprep.subr.mxu0 %v1549
        %1679 = vmatpush1.msra.mxu0 %v1548
        %1680 = vmatprep.subr.mxu0 %v1656
        %1681 = vmatpush1.msra.mxu0 %v1655
        %1682 = vmatprep.subr.mxu0 0.0
        %1683 = vmatpush1.msra.mxu0 0.0
        %1684 = vmatprep.subr.mxu0 0.0
        %1685 = vmatpush1.msra.mxu0 0.0
        %1686 = vmatprep.subr.mxu0 0.0
        %1687 = vmatpush1.msra.mxu0 0.0
        %1688 = vmatprep.subr.mxu0 0.0
        %1689 = vmatpush1.msra.mxu0 0.0
        %1690 = vmatprep.subr.mxu0 0.0
        %1691 = vmatpush1.msra.mxu0 0.0
        %1692 = vmatprep.subr.mxu0 0.0
        %1693 = vmatpush1.msra.mxu0 0.0
        %1694 = vmatprep.subr.mxu0 0.0
        %1695 = vmatpush1.msra.mxu0 0.0
        %1696 = vmatprep.subr.mxu0 0.0
        %1697 = vmatpush1.msra.mxu0 0.0
        %1698 = vmatprep.subr.mxu0 0.0
        %1699 = vmatpush1.msra.mxu0 0.0
        %1700 = vmatprep.subr.mxu0 0.0
        %1701 = vmatpush1.msra.mxu0 0.0
        %1702 = vmatprep.subr.mxu0 0.0
        %1703 = vmatpush1.msra.mxu0 0.0
        %1704 = vmatprep.subr.mxu0 0.0
        %1705 = vmatpush1.msra.mxu0 0.0
        %1706 = vmatprep.subr.mxu0 0.0
        %1707 = vmatpush1.msra.mxu0 0.0
        %1708 = vmatprep.subr.mxu0 0.0
        %1709 = vmatpush1.msra.mxu0 0.0
        %1710 = vmatprep.subr.mxu0 0.0
        %1711 = vmatpush1.msra.mxu0 0.0
        %1712 = vmatprep.subr.mxu0 0.0
        %1713 = vmatpush1.msra.mxu0 0.0
        %1714 = vmatprep.subr.mxu0 0.0
        %1715 = vmatpush1.msra.mxu0 0.0
        %1716 = vmatprep.subr.mxu0 0.0
        %1717 = vmatpush1.msra.mxu0 0.0
        %1718 = vmatprep.subr.mxu0 0.0
        %1719 = vmatpush1.msra.mxu0 0.0
        %1720 = vmatprep.subr.mxu0 0.0
        %1721 = vmatpush1.msra.mxu0 0.0
        %1722 = vmatprep.subr.mxu0 0.0
        %1723 = vmatpush1.msra.mxu0 0.0
        %1724 = vmatprep.subr.mxu0 0.0
        %1725 = vmatpush1.msra.mxu0 0.0
        %1726 = vmatprep.subr.mxu0 0.0
        %1727 = vmatpush1.msra.mxu0 0.0
        %1728 = vmatprep.subr.mxu0 0.0
        %1729 = vmatpush1.msra.mxu0 0.0
        %1730 = vmatprep.subr.mxu0 0.0
        %1731 = vmatpush1.msra.mxu0 0.0
        %1732 = vmatprep.subr.mxu0 0.0
        %1733 = vmatpush1.msra.mxu0 0.0
        %1734 = vmatprep.subr.mxu0 0.0
        %1735 = vmatpush1.msra.mxu0 0.0
        %1736 = vmatprep.subr.mxu0 0.0
        %1737 = vmatpush1.msra.mxu0 0.0
        %1738 = vmatprep.subr.mxu0 0.0
        %1739 = vmatpush1.msra.mxu0 0.0
        %1740 = vmatprep.mubr.f32.mxu0 0.0
        %1741 = vmatmul.mubr.f32.gmra.mrb[0].mxu0 %v1671
        %v1742 = vpop.f32.mrb[0].mxu0
        %v1743 = vadd.f32 %v1662, %v1742
        %v1744 = vpop.f32.mrb[0].mxu0
        %v1745 = vadd.f32 %v1662, %v1744
        %1746 = vmatprep.mubr.f32.mxu0 0.0
        %1747 = vmatmul.mubr.f32.gmra.mrb[0].mxu0 %v1674
        %v1748 = vpop.f32.mrb[0].mxu0
        %v1749 = vadd.f32 %v1667, %v1748
        %v1750 = vpop.f32.mrb[0].mxu0
        %v1751 = vadd.f32 %v1667, %v1750
        %1752 = vdwg.mxu0
        %v1753 = vld [vmem:[%s10] sm:$0xff]
        %v1754 = vld [vmem:[%s10 + $0x8] sm:$0xff]
        %1755 = vrot.lane.b32.xlu0 %v1637, 1
        %v1756 = vpop.permute.xlu0 %1755
        %1757 = vrot.lane.b32.xlu0 %v1638, 1
        %v1758 = vpop.permute.xlu0 %1757
        %v1759 = vsel %vm782, %v1756, %v1758
        %v1760 = vsel %vm782, %v1758, %v1756
        %v1761 = vmul.f32 %v1760, %v793
        %v1762 = vmul.f32 %v1759, %v797
        %1763 = vrot.lane.b32.xlu0 %v1637, 127
        %v1764 = vpop.permute.xlu0 %1763
        %1765 = vrot.lane.b32.xlu0 %v1638, 127
        %v1766 = vpop.permute.xlu0 %1765
        %v1767 = vsel %vm812, %v1764, %v1766
        %v1768 = vsel %vm812, %v1766, %v1764
        %v1769 = vmul.f32 %v1767, %v823
        %v1770 = vmul.f32 %v1768, %v827
        %v1772 = vsel %vm1669, %v1753, 0
        %v1775 = vsel %vm1669, %v1754, 0
        %1777 = vmatprep.subr.mxu0 %v1762
        %1778 = vmatpush1.msra.mxu0 %v1761
        %1779 = vmatprep.subr.mxu0 %v1638
        %1780 = vmatpush1.msra.mxu0 %v1637
        %1781 = vmatprep.subr.mxu0 %v1770
        %1782 = vmatpush1.msra.mxu0 %v1769
        %1783 = vmatprep.subr.mxu0 0.0
        %1784 = vmatpush1.msra.mxu0 0.0
        %1785 = vmatprep.subr.mxu0 0.0
        %1786 = vmatpush1.msra.mxu0 0.0
        %1787 = vmatprep.subr.mxu0 0.0
        %1788 = vmatpush1.msra.mxu0 0.0
        %1789 = vmatprep.subr.mxu0 0.0
        %1790 = vmatpush1.msra.mxu0 0.0
        %1791 = vmatprep.subr.mxu0 0.0
        %1792 = vmatpush1.msra.mxu0 0.0
        %1793 = vmatprep.subr.mxu0 0.0
        %1794 = vmatpush1.msra.mxu0 0.0
        %1795 = vmatprep.subr.mxu0 0.0
        %1796 = vmatpush1.msra.mxu0 0.0
        %1797 = vmatprep.subr.mxu0 0.0
        %1798 = vmatpush1.msra.mxu0 0.0
        %1799 = vmatprep.subr.mxu0 0.0
        %1800 = vmatpush1.msra.mxu0 0.0
        %1801 = vmatprep.subr.mxu0 0.0
        %1802 = vmatpush1.msra.mxu0 0.0
        %1803 = vmatprep.subr.mxu0 0.0
        %1804 = vmatpush1.msra.mxu0 0.0
        %1805 = vmatprep.subr.mxu0 0.0
        %1806 = vmatpush1.msra.mxu0 0.0
        %1807 = vmatprep.subr.mxu0 0.0
        %1808 = vmatpush1.msra.mxu0 0.0
        %1809 = vmatprep.subr.mxu0 0.0
        %1810 = vmatpush1.msra.mxu0 0.0
        %1811 = vmatprep.subr.mxu0 0.0
        %1812 = vmatpush1.msra.mxu0 0.0
        %1813 = vmatprep.subr.mxu0 0.0
        %1814 = vmatpush1.msra.mxu0 0.0
        %1815 = vmatprep.subr.mxu0 0.0
        %1816 = vmatpush1.msra.mxu0 0.0
        %1817 = vmatprep.subr.mxu0 0.0
        %1818 = vmatpush1.msra.mxu0 0.0
        %1819 = vmatprep.subr.mxu0 0.0
        %1820 = vmatpush1.msra.mxu0 0.0
        %1821 = vmatprep.subr.mxu0 0.0
        %1822 = vmatpush1.msra.mxu0 0.0
        %1823 = vmatprep.subr.mxu0 0.0
        %1824 = vmatpush1.msra.mxu0 0.0
        %1825 = vmatprep.subr.mxu0 0.0
        %1826 = vmatpush1.msra.mxu0 0.0
        %1827 = vmatprep.subr.mxu0 0.0
        %1828 = vmatpush1.msra.mxu0 0.0
        %1829 = vmatprep.subr.mxu0 0.0
        %1830 = vmatpush1.msra.mxu0 0.0
        %1831 = vmatprep.subr.mxu0 0.0
        %1832 = vmatpush1.msra.mxu0 0.0
        %1833 = vmatprep.subr.mxu0 0.0
        %1834 = vmatpush1.msra.mxu0 0.0
        %1835 = vmatprep.subr.mxu0 0.0
        %1836 = vmatpush1.msra.mxu0 0.0
        %1837 = vmatprep.subr.mxu0 0.0
        %1838 = vmatpush1.msra.mxu0 0.0
        %1839 = vmatprep.subr.mxu0 0.0
        %1840 = vmatpush1.msra.mxu0 0.0
        %1841 = vmatprep.mubr.f32.mxu0 0.0
        %1842 = vmatmul.mubr.f32.gmra.mrb[0].mxu0 %v1772
        %v1843 = vpop.f32.mrb[0].mxu0
        %v1844 = vadd.f32 %v1662, %v1843
        %v1845 = vpop.f32.mrb[0].mxu0
        %v1846 = vadd.f32 %v1662, %v1845
        %1847 = vmatprep.mubr.f32.mxu0 0.0
        %1848 = vmatmul.mubr.f32.gmra.mrb[0].mxu0 %v1775
        %v1849 = vpop.f32.mrb[0].mxu0
        %v1850 = vadd.f32 %v1667, %v1849
        %v1851 = vpop.f32.mrb[0].mxu0
        %v1852 = vadd.f32 %v1667, %v1851
        %1853 = vdwg.mxu0
        %s1854 = sld [smem:[#allocation2]]
        %s1855 = sld [smem:[#allocation2 + $0x1]]
        %v1856 = vstv %s1854
        %v1857 = vmul.f32 %v1395, %v1856
        %v1858 = vmul.f32 %v1396, %v1856
        %v1859 = vmul.f32 %v1397, %v1856
        %v1860 = vmul.f32 %v1398, %v1856
        %s1861 = ssub.f32 1.0, %s1854
        %v1862 = vstv %s1861
        %v1863 = vmul.f32 %v1743, %v1862
        %v1864 = vmul.f32 %v1745, %v1862
        %v1865 = vmul.f32 %v1749, %v1862
        %v1866 = vmul.f32 %v1751, %v1862
        %v1867 = vadd.f32 %v1857, %v1863
        %v1868 = vadd.f32 %v1858, %v1864
        %v1869 = vadd.f32 %v1859, %v1865
        %v1870 = vadd.f32 %v1860, %v1866
        %v1871 = vstv %s1855
        %v1872 = vmul.f32 %v1449, %v1871
        %v1873 = vmul.f32 %v1450, %v1871
        %s1874 = ssub.f32 1.0, %s1855
        %v1875 = vstv %s1874
        %v1876 = vmul.f32 %v1844, %v1875
        %v1877 = vmul.f32 %v1846, %v1875
        %v1878 = vmul.f32 %v1850, %v1875
        %v1879 = vmul.f32 %v1852, %v1875
        %v1880 = vadd.f32 %v1872, %v1876
        %v1881 = vadd.f32 %v1872, %v1877
        %v1882 = vadd.f32 %v1873, %v1878
        %v1883 = vadd.f32 %v1873, %v1879
        %v1884 = vld [vmem:[%s12] sm:$0xff]
        %v1885 = vld [vmem:[%s12 + $0x8] sm:$0xff]
        %1886 = vrot.lane.b32.xlu0 %v1867, 16
        %v1887 = vpop.permute.xlu0 %1886
        %1888 = vrot.lane.b32.xlu0 %v1869, 16
        %v1889 = vpop.permute.xlu0 %1888
        %1890 = vrot.lane.b32.xlu0 %v1868, 16
        %v1891 = vpop.permute.xlu0 %1890
        %1892 = vrot.lane.b32.xlu0 %v1870, 16
        %v1893 = vpop.permute.xlu0 %1892
        %v1894 = vsel %vm722, %v1887, %v1891
        %v1895 = vsel %vm722, %v1889, %v1893
        %v1896 = vsel %vm722, %v1891, %v1887
        %v1897 = vsel %vm722, %v1893, %v1889
        %v1898 = vmul.f32 %v1896, %v733
        %v1899 = vmul.f32 %v1894, %v737
        %v1900 = vmul.f32 %v1897, %v733
        %v1901 = vmul.f32 %v1895, %v737
        %1902 = vrot.lane.b32.xlu0 %v1867, 112
        %v1903 = vpop.permute.xlu0 %1902
        %1904 = vrot.lane.b32.xlu0 %v1869, 112
        %v1905 = vpop.permute.xlu0 %1904
        %1906 = vrot.lane.b32.xlu0 %v1868, 112
        %v1907 = vpop.permute.xlu0 %1906
        %1908 = vrot.lane.b32.xlu0 %v1870, 112
        %v1909 = vpop.permute.xlu0 %1908
        %v1910 = vsel %vm872, %v1903, %v1907
        %v1911 = vsel %vm872, %v1905, %v1909
        %v1912 = vsel %vm872, %v1907, %v1903
        %v1913 = vsel %vm872, %v1909, %v1905
        %v1914 = vmul.f32 %v1910, %v883
        %v1915 = vmul.f32 %v1912, %v887
        %v1916 = vmul.f32 %v1911, %v883
        %v1917 = vmul.f32 %v1913, %v887
        %v1918 = vld [vmem:[%s14] sm:$0xff]
        %v1919 = vld [vmem:[%s14 + $0x8] sm:$0xff]
        %1921 = vset.pattern.permute.xlu0 0
        %1922 = vperm.xlu0 %1921, %v1918
        %v1923 = vpop.permute.xlu0 %1922
        %1926 = vset.pattern.permute.xlu0 0
        %1927 = vperm.xlu0 %1926, %v1919
        %v1928 = vpop.permute.xlu0 %1927
        %vm1930 = vcmask 392192
        %v1932 = vsel %vm1930, %v1884, 0
        %v1935 = vsel %vm1930, %v1885, 0
        %1937 = vmatprep.subr.mxu0 %v1899
        %1938 = vmatpush1.msra.mxu0 %v1898
        %1939 = vmatprep.subr.mxu0 %v1901
        %1940 = vmatpush1.msra.mxu0 %v1900
        %1941 = vmatprep.subr.mxu0 %v1868
        %1942 = vmatpush1.msra.mxu0 %v1867
        %1943 = vmatprep.subr.mxu0 %v1870
        %1944 = vmatpush1.msra.mxu0 %v1869
        %1945 = vmatprep.subr.mxu0 %v1915
        %1946 = vmatpush1.msra.mxu0 %v1914
        %1947 = vmatprep.subr.mxu0 %v1917
        %1948 = vmatpush1.msra.mxu0 %v1916
        %1949 = vmatprep.subr.mxu0 0.0
        %1950 = vmatpush1.msra.mxu0 0.0
        %1951 = vmatprep.subr.mxu0 0.0
        %1952 = vmatpush1.msra.mxu0 0.0
        %1953 = vmatprep.subr.mxu0 0.0
        %1954 = vmatpush1.msra.mxu0 0.0
        %1955 = vmatprep.subr.mxu0 0.0
        %1956 = vmatpush1.msra.mxu0 0.0
        %1957 = vmatprep.subr.mxu0 0.0
        %1958 = vmatpush1.msra.mxu0 0.0
        %1959 = vmatprep.subr.mxu0 0.0
        %1960 = vmatpush1.msra.mxu0 0.0
        %1961 = vmatprep.subr.mxu0 0.0
        %1962 = vmatpush1.msra.mxu0 0.0
        %1963 = vmatprep.subr.mxu0 0.0
        %1964 = vmatpush1.msra.mxu0 0.0
        %1965 = vmatprep.subr.mxu0 0.0
        %1966 = vmatpush1.msra.mxu0 0.0
        %1967 = vmatprep.subr.mxu0 0.0
        %1968 = vmatpush1.msra.mxu0 0.0
        %1969 = vmatprep.subr.mxu0 0.0
        %1970 = vmatpush1.msra.mxu0 0.0
        %1971 = vmatprep.subr.mxu0 0.0
        %1972 = vmatpush1.msra.mxu0 0.0
        %1973 = vmatprep.subr.mxu0 0.0
        %1974 = vmatpush1.msra.mxu0 0.0
        %1975 = vmatprep.subr.mxu0 0.0
        %1976 = vmatpush1.msra.mxu0 0.0
        %1977 = vmatprep.subr.mxu0 0.0
        %1978 = vmatpush1.msra.mxu0 0.0
        %1979 = vmatprep.subr.mxu0 0.0
        %1980 = vmatpush1.msra.mxu0 0.0
        %1981 = vmatprep.subr.mxu0 0.0
        %1982 = vmatpush1.msra.mxu0 0.0
        %1983 = vmatprep.subr.mxu0 0.0
        %1984 = vmatpush1.msra.mxu0 0.0
        %1985 = vmatprep.subr.mxu0 0.0
        %1986 = vmatpush1.msra.mxu0 0.0
        %1987 = vmatprep.subr.mxu0 0.0
        %1988 = vmatpush1.msra.mxu0 0.0
        %1989 = vmatprep.subr.mxu0 0.0
        %1990 = vmatpush1.msra.mxu0 0.0
        %1991 = vmatprep.subr.mxu0 0.0
        %1992 = vmatpush1.msra.mxu0 0.0
        %1993 = vmatprep.subr.mxu0 0.0
        %1994 = vmatpush1.msra.mxu0 0.0
        %1995 = vmatprep.subr.mxu0 0.0
        %1996 = vmatpush1.msra.mxu0 0.0
        %1997 = vmatprep.subr.mxu0 0.0
        %1998 = vmatpush1.msra.mxu0 0.0
        %1999 = vmatprep.subr.mxu0 0.0
        %2000 = vmatpush1.msra.mxu0 0.0
        %2001 = vmatprep.mubr.f32.mxu0 0.0
        %2002 = vmatmul.mubr.f32.gmra.mrb[0].mxu0 %v1932
        %v2003 = vpop.f32.mrb[0].mxu0
        %v2004 = vadd.f32 %v1923, %v2003
        %v2005 = vpop.f32.mrb[0].mxu0
        %v2006 = vadd.f32 %v1923, %v2005
        %2007 = vmatprep.mubr.f32.mxu0 0.0
        %2008 = vmatmul.mubr.f32.gmra.mrb[0].mxu0 %v1935
        %v2009 = vpop.f32.mrb[0].mxu0
        %v2010 = vadd.f32 %v1928, %v2009
        %v2011 = vpop.f32.mrb[0].mxu0
        %v2012 = vadd.f32 %v1928, %v2011
        %2013 = vdwg.mxu0
        %v2014 = vld [vmem:[%s13] sm:$0xff]
        %v2015 = vld [vmem:[%s13 + $0x8] sm:$0xff]
        %2016 = vrot.lane.b32.xlu0 %v1880, 1
        %v2017 = vpop.permute.xlu0 %2016
        %2018 = vrot.lane.b32.xlu0 %v1882, 1
        %v2019 = vpop.permute.xlu0 %2018
        %2020 = vrot.lane.b32.xlu0 %v1881, 1
        %v2021 = vpop.permute.xlu0 %2020
        %2022 = vrot.lane.b32.xlu0 %v1883, 1
        %v2023 = vpop.permute.xlu0 %2022
        %v2024 = vsel %vm782, %v2017, %v2021
        %v2025 = vsel %vm782, %v2019, %v2023
        %v2026 = vsel %vm782, %v2021, %v2017
        %v2027 = vsel %vm782, %v2023, %v2019
        %v2028 = vmul.f32 %v2026, %v793
        %v2029 = vmul.f32 %v2024, %v797
        %v2030 = vmul.f32 %v2027, %v793
        %v2031 = vmul.f32 %v2025, %v797
        %2032 = vrot.lane.b32.xlu0 %v1880, 127
        %v2033 = vpop.permute.xlu0 %2032
        %2034 = vrot.lane.b32.xlu0 %v1882, 127
        %v2035 = vpop.permute.xlu0 %2034
        %2036 = vrot.lane.b32.xlu0 %v1881, 127
        %v2037 = vpop.permute.xlu0 %2036
        %2038 = vrot.lane.b32.xlu0 %v1883, 127
        %v2039 = vpop.permute.xlu0 %2038
        %v2040 = vsel %vm812, %v2033, %v2037
        %v2041 = vsel %vm812, %v2035, %v2039
        %v2042 = vsel %vm812, %v2037, %v2033
        %v2043 = vsel %vm812, %v2039, %v2035
        %v2044 = vmul.f32 %v2040, %v823
        %v2045 = vmul.f32 %v2042, %v827
        %v2046 = vmul.f32 %v2041, %v823
        %v2047 = vmul.f32 %v2043, %v827
        %v2049 = vsel %vm1930, %v2014, 0
        %v2052 = vsel %vm1930, %v2015, 0
        %2054 = vmatprep.subr.mxu0 %v2029
        %2055 = vmatpush1.msra.mxu0 %v2028
        %2056 = vmatprep.subr.mxu0 %v2031
        %2057 = vmatpush1.msra.mxu0 %v2030
        %2058 = vmatprep.subr.mxu0 %v1881
        %2059 = vmatpush1.msra.mxu0 %v1880
        %2060 = vmatprep.subr.mxu0 %v1883
        %2061 = vmatpush1.msra.mxu0 %v1882
        %2062 = vmatprep.subr.mxu0 %v2045
        %2063 = vmatpush1.msra.mxu0 %v2044
        %2064 = vmatprep.subr.mxu0 %v2047
        %2065 = vmatpush1.msra.mxu0 %v2046
        %2066 = vmatprep.subr.mxu0 0.0
        %2067 = vmatpush1.msra.mxu0 0.0
        %2068 = vmatprep.subr.mxu0 0.0
        %2069 = vmatpush1.msra.mxu0 0.0
        %2070 = vmatprep.subr.mxu0 0.0
        %2071 = vmatpush1.msra.mxu0 0.0
        %2072 = vmatprep.subr.mxu0 0.0
        %2073 = vmatpush1.msra.mxu0 0.0
        %2074 = vmatprep.subr.mxu0 0.0
        %2075 = vmatpush1.msra.mxu0 0.0
        %2076 = vmatprep.subr.mxu0 0.0
        %2077 = vmatpush1.msra.mxu0 0.0
        %2078 = vmatprep.subr.mxu0 0.0
        %2079 = vmatpush1.msra.mxu0 0.0
        %2080 = vmatprep.subr.mxu0 0.0
        %2081 = vmatpush1.msra.mxu0 0.0
        %2082 = vmatprep.subr.mxu0 0.0
        %2083 = vmatpush1.msra.mxu0 0.0
        %2084 = vmatprep.subr.mxu0 0.0
        %2085 = vmatpush1.msra.mxu0 0.0
        %2086 = vmatprep.subr.mxu0 0.0
        %2087 = vmatpush1.msra.mxu0 0.0
        %2088 = vmatprep.subr.mxu0 0.0
        %2089 = vmatpush1.msra.mxu0 0.0
        %2090 = vmatprep.subr.mxu0 0.0
        %2091 = vmatpush1.msra.mxu0 0.0
        %2092 = vmatprep.subr.mxu0 0.0
        %2093 = vmatpush1.msra.mxu0 0.0
        %2094 = vmatprep.subr.mxu0 0.0
        %2095 = vmatpush1.msra.mxu0 0.0
        %2096 = vmatprep.subr.mxu0 0.0
        %2097 = vmatpush1.msra.mxu0 0.0
        %2098 = vmatprep.subr.mxu0 0.0
        %2099 = vmatpush1.msra.mxu0 0.0
        %2100 = vmatprep.subr.mxu0 0.0
        %2101 = vmatpush1.msra.mxu0 0.0
        %2102 = vmatprep.subr.mxu0 0.0
        %2103 = vmatpush1.msra.mxu0 0.0
        %2104 = vmatprep.subr.mxu0 0.0
        %2105 = vmatpush1.msra.mxu0 0.0
        %2106 = vmatprep.subr.mxu0 0.0
        %2107 = vmatpush1.msra.mxu0 0.0
        %2108 = vmatprep.subr.mxu0 0.0
        %2109 = vmatpush1.msra.mxu0 0.0
        %2110 = vmatprep.subr.mxu0 0.0
        %2111 = vmatpush1.msra.mxu0 0.0
        %2112 = vmatprep.subr.mxu0 0.0
        %2113 = vmatpush1.msra.mxu0 0.0
        %2114 = vmatprep.subr.mxu0 0.0
        %2115 = vmatpush1.msra.mxu0 0.0
        %2116 = vmatprep.subr.mxu0 0.0
        %2117 = vmatpush1.msra.mxu0 0.0
        %2118 = vmatprep.mubr.f32.mxu0 0.0
        %2119 = vmatmul.mubr.f32.gmra.mrb[0].mxu0 %v2049
        %v2120 = vpop.f32.mrb[0].mxu0
        %v2121 = vadd.f32 %v1923, %v2120
        %v2122 = vpop.f32.mrb[0].mxu0
        %v2123 = vadd.f32 %v1923, %v2122
        %2124 = vmatprep.mubr.f32.mxu0 0.0
        %2125 = vmatmul.mubr.f32.gmra.mrb[0].mxu0 %v2052
        %v2126 = vpop.f32.mrb[0].mxu0
        %v2127 = vadd.f32 %v1928, %v2126
        %v2128 = vpop.f32.mrb[0].mxu0
        %v2129 = vadd.f32 %v1928, %v2128
        %2130 = vdwg.mxu0
        %v2131 = vmul.f32 %v2004, %v2121
        %v2132 = vmul.f32 %v2006, %v2123
        %v2133 = vmul.f32 %v2010, %v2127
        %v2134 = vmul.f32 %v2012, %v2129
        %v2135 = vsub.f32 0.0, %v2131
        %v2136 = vsub.f32 0.0, %v2132
        %v2137 = vsub.f32 0.0, %v2133
        %v2138 = vsub.f32 0.0, %v2134
        %v2139 = vmul.f32 %v2135, 1.442695
        %v2140 = vpow.pop %v2139
        %v2141 = vmul.f32 %v2136, 1.442695
        %v2142 = vpow.pop %v2141
        %v2143 = vmul.f32 %v2137, 1.442695
        %v2144 = vpow.pop %v2143
        %v2145 = vmul.f32 %v2138, 1.442695
        %v2146 = vpow.pop %v2145
        %v2147 = vadd.f32 %v2140, 1.0
        %v2148 = vadd.f32 %v2142, 1.0
        %v2149 = vadd.f32 %v2144, 1.0
        %v2150 = vadd.f32 %v2146, 1.0
        %v2151 = vrcp.pop %v2147
        %v2152 = vmul.f32 1.0, %v2151
        %v2153 = vrcp.pop %v2148
        %v2154 = vmul.f32 1.0, %v2153
        %v2155 = vrcp.pop %v2149
        %v2156 = vmul.f32 1.0, %v2155
        %v2157 = vrcp.pop %v2150
        %v2158 = vmul.f32 1.0, %v2157
        %v2159 = vmul.f32 %v1126, %v2152
        %v2160 = vmul.f32 %v1127, %v2154
        %v2161 = vmul.f32 %v1128, %v2156
        %v2162 = vmul.f32 %v1129, %v2158
        %v2163 = vadd.f32 %v1126, %v2159
        %v2164 = vadd.f32 %v1127, %v2160
        %v2165 = vadd.f32 %v1128, %v2161
        %v2166 = vadd.f32 %v1129, %v2162
        %v2167 = vld [vmem:[%s5] sm:$0xff]
        %v2168 = vld [vmem:[%s5 + $0x8] sm:$0xff]
        %v2169 = vld [vmem:[%s5 + $0x10] sm:$0xff]
        %v2170 = vld [vmem:[%s5 + $0x18] sm:$0xff]
        %2171 = vrot.lane.b32.xlu0 %v2163, 17
        %v2172 = vpop.permute.xlu0 %2171
        %2173 = vrot.lane.b32.xlu0 %v2165, 17
        %v2174 = vpop.permute.xlu0 %2173
        %2175 = vrot.lane.b32.xlu0 %v2164, 17
        %v2176 = vpop.permute.xlu0 %2175
        %2177 = vrot.lane.b32.xlu0 %v2166, 17
        %v2178 = vpop.permute.xlu0 %2177
        %v2179 = vsel %vm693, %v2172, %v2176
        %v2180 = vsel %vm693, %v2174, %v2178
        %v2181 = vsel %vm693, %v2176, %v2172
        %v2182 = vsel %vm693, %v2178, %v2174
        %v2183 = vmul.f32 %v2181, %v703
        %v2184 = vmul.f32 %v2179, %v707
        %v2185 = vmul.f32 %v2182, %v703
        %v2186 = vmul.f32 %v2180, %v707
        %2187 = vrot.lane.b32.xlu0 %v2163, 16
        %v2188 = vpop.permute.xlu0 %2187
        %2189 = vrot.lane.b32.xlu0 %v2165, 16
        %v2190 = vpop.permute.xlu0 %2189
        %2191 = vrot.lane.b32.xlu0 %v2164, 16
        %v2192 = vpop.permute.xlu0 %2191
        %2193 = vrot.lane.b32.xlu0 %v2166, 16
        %v2194 = vpop.permute.xlu0 %2193
        %v2195 = vsel %vm722, %v2188, %v2192
        %v2196 = vsel %vm722, %v2190, %v2194
        %v2197 = vsel %vm722, %v2192, %v2188
        %v2198 = vsel %vm722, %v2194, %v2190
        %v2199 = vmul.f32 %v2197, %v733
        %v2200 = vmul.f32 %v2195, %v737
        %v2201 = vmul.f32 %v2198, %v733
        %v2202 = vmul.f32 %v2196, %v737
        %2203 = vrot.lane.b32.xlu0 %v2163, 15
        %v2204 = vpop.permute.xlu0 %2203
        %2205 = vrot.lane.b32.xlu0 %v2165, 15
        %v2206 = vpop.permute.xlu0 %2205
        %2207 = vrot.lane.b32.xlu0 %v2164, 15
        %v2208 = vpop.permute.xlu0 %2207
        %2209 = vrot.lane.b32.xlu0 %v2166, 15
        %v2210 = vpop.permute.xlu0 %2209
        %v2211 = vsel %vm752, %v2204, %v2208
        %v2212 = vsel %vm752, %v2206, %v2210
        %v2213 = vsel %vm752, %v2208, %v2204
        %v2214 = vsel %vm752, %v2210, %v2206
        %v2215 = vmul.f32 %v2213, %v763
        %v2216 = vmul.f32 %v2211, %v767
        %v2217 = vmul.f32 %v2214, %v763
        %v2218 = vmul.f32 %v2212, %v767
        %2219 = vrot.lane.b32.xlu0 %v2163, 1
        %v2220 = vpop.permute.xlu0 %2219
        %2221 = vrot.lane.b32.xlu0 %v2165, 1
        %v2222 = vpop.permute.xlu0 %2221
        %2223 = vrot.lane.b32.xlu0 %v2164, 1
        %v2224 = vpop.permute.xlu0 %2223
        %2225 = vrot.lane.b32.xlu0 %v2166, 1
        %v2226 = vpop.permute.xlu0 %2225
        %v2227 = vsel %vm782, %v2220, %v2224
        %v2228 = vsel %vm782, %v2222, %v2226
        %v2229 = vsel %vm782, %v2224, %v2220
        %v2230 = vsel %vm782, %v2226, %v2222
        %v2231 = vmul.f32 %v2229, %v793
        %v2232 = vmul.f32 %v2227, %v797
        %v2233 = vmul.f32 %v2230, %v793
        %v2234 = vmul.f32 %v2228, %v797
        %2235 = vrot.lane.b32.xlu0 %v2163, 127
        %v2236 = vpop.permute.xlu0 %2235
        %2237 = vrot.lane.b32.xlu0 %v2165, 127
        %v2238 = vpop.permute.xlu0 %2237
        %2239 = vrot.lane.b32.xlu0 %v2164, 127
        %v2240 = vpop.permute.xlu0 %2239
        %2241 = vrot.lane.b32.xlu0 %v2166, 127
        %v2242 = vpop.permute.xlu0 %2241
        %v2243 = vsel %vm812, %v2236, %v2240
        %v2244 = vsel %vm812, %v2238, %v2242
        %v2245 = vsel %vm812, %v2240, %v2236
        %v2246 = vsel %vm812, %v2242, %v2238
        %v2247 = vmul.f32 %v2243, %v823
        %v2248 = vmul.f32 %v2245, %v827
        %v2249 = vmul.f32 %v2244, %v823
        %v2250 = vmul.f32 %v2246, %v827
        %2251 = vrot.lane.b32.xlu0 %v2163, 113
        %v2252 = vpop.permute.xlu0 %2251
        %2253 = vrot.lane.b32.xlu0 %v2165, 113
        %v2254 = vpop.permute.xlu0 %2253
        %2255 = vrot.lane.b32.xlu0 %v2164, 113
        %v2256 = vpop.permute.xlu0 %2255
        %2257 = vrot.lane.b32.xlu0 %v2166, 113
        %v2258 = vpop.permute.xlu0 %2257
        %v2259 = vsel %vm842, %v2252, %v2256
        %v2260 = vsel %vm842, %v2254, %v2258
        %v2261 = vsel %vm842, %v2256, %v2252
        %v2262 = vsel %vm842, %v2258, %v2254
        %v2263 = vmul.f32 %v2259, %v853
        %v2264 = vmul.f32 %v2261, %v857
        %v2265 = vmul.f32 %v2260, %v853
        %v2266 = vmul.f32 %v2262, %v857
        %2267 = vrot.lane.b32.xlu0 %v2163, 112
        %v2268 = vpop.permute.xlu0 %2267
        %2269 = vrot.lane.b32.xlu0 %v2165, 112
        %v2270 = vpop.permute.xlu0 %2269
        %2271 = vrot.lane.b32.xlu0 %v2164, 112
        %v2272 = vpop.permute.xlu0 %2271
        %2273 = vrot.lane.b32.xlu0 %v2166, 112
        %v2274 = vpop.permute.xlu0 %2273
        %v2275 = vsel %vm872, %v2268, %v2272
        %v2276 = vsel %vm872, %v2270, %v2274
        %v2277 = vsel %vm872, %v2272, %v2268
        %v2278 = vsel %vm872, %v2274, %v2270
        %v2279 = vmul.f32 %v2275, %v883
        %v2280 = vmul.f32 %v2277, %v887
        %v2281 = vmul.f32 %v2276, %v883
        %v2282 = vmul.f32 %v2278, %v887
        %2283 = vrot.lane.b32.xlu0 %v2163, 111
        %v2284 = vpop.permute.xlu0 %2283
        %2285 = vrot.lane.b32.xlu0 %v2165, 111
        %v2286 = vpop.permute.xlu0 %2285
        %2287 = vrot.lane.b32.xlu0 %v2164, 111
        %v2288 = vpop.permute.xlu0 %2287
        %2289 = vrot.lane.b32.xlu0 %v2166, 111
        %v2290 = vpop.permute.xlu0 %2289
        %v2291 = vsel %vm902, %v2284, %v2288
        %v2292 = vsel %vm902, %v2286, %v2290
        %v2293 = vsel %vm902, %v2288, %v2284
        %v2294 = vsel %vm902, %v2290, %v2286
        %v2295 = vmul.f32 %v2291, %v913
        %v2296 = vmul.f32 %v2293, %v917
        %v2297 = vmul.f32 %v2292, %v913
        %v2298 = vmul.f32 %v2294, %v917
        %v2299 = vld [vmem:[%s6] sm:$0xff]
        %v2300 = vld [vmem:[%s6 + $0x8] sm:$0xff]
        %2302 = vset.pattern.permute.xlu0 0
        %2303 = vperm.xlu0 %2302, %v2299
        %v2304 = vpop.permute.xlu0 %2303
        %2307 = vset.pattern.permute.xlu0 0
        %2308 = vperm.xlu0 %2307, %v2300
        %v2309 = vpop.permute.xlu0 %2308
        %v2312 = vsel %vm948, %v2168, 0
        %v2315 = vsel %vm948, %v2170, 0
        %2317 = vmatprep.subr.mxu0 %v2184
        %2318 = vmatpush1.msra.mxu0 %v2183
        %2319 = vmatprep.subr.mxu0 %v2186
        %2320 = vmatpush1.msra.mxu0 %v2185
        %2321 = vmatprep.subr.mxu0 %v2200
        %2322 = vmatpush1.msra.mxu0 %v2199
        %2323 = vmatprep.subr.mxu0 %v2202
        %2324 = vmatpush1.msra.mxu0 %v2201
        %2325 = vmatprep.subr.mxu0 %v2216
        %2326 = vmatpush1.msra.mxu0 %v2215
        %2327 = vmatprep.subr.mxu0 %v2218
        %2328 = vmatpush1.msra.mxu0 %v2217
        %2329 = vmatprep.subr.mxu0 %v2232
        %2330 = vmatpush1.msra.mxu0 %v2231
        %2331 = vmatprep.subr.mxu0 %v2234
        %2332 = vmatpush1.msra.mxu0 %v2233
        %2333 = vmatprep.subr.mxu0 %v2164
        %2334 = vmatpush1.msra.mxu0 %v2163
        %2335 = vmatprep.subr.mxu0 %v2166
        %2336 = vmatpush1.msra.mxu0 %v2165
        %2337 = vmatprep.subr.mxu0 %v2248
        %2338 = vmatpush1.msra.mxu0 %v2247
        %2339 = vmatprep.subr.mxu0 %v2250
        %2340 = vmatpush1.msra.mxu0 %v2249
        %2341 = vmatprep.subr.mxu0 %v2264
        %2342 = vmatpush1.msra.mxu0 %v2263
        %2343 = vmatprep.subr.mxu0 %v2266
        %2344 = vmatpush1.msra.mxu0 %v2265
        %2345 = vmatprep.subr.mxu0 %v2280
        %2346 = vmatpush1.msra.mxu0 %v2279
        %2347 = vmatprep.subr.mxu0 %v2282
        %2348 = vmatpush1.msra.mxu0 %v2281
        %2349 = vmatprep.subr.mxu0 %v2296
        %2350 = vmatpush1.msra.mxu0 %v2295
        %2351 = vmatprep.subr.mxu0 %v2298
        %2352 = vmatpush1.msra.mxu0 %v2297
        %2353 = vmatprep.subr.mxu0 0.0
        %2354 = vmatpush1.msra.mxu0 0.0
        %2355 = vmatprep.subr.mxu0 0.0
        %2356 = vmatpush1.msra.mxu0 0.0
        %2357 = vmatprep.subr.mxu0 0.0
        %2358 = vmatpush1.msra.mxu0 0.0
        %2359 = vmatprep.subr.mxu0 0.0
        %2360 = vmatpush1.msra.mxu0 0.0
        %2361 = vmatprep.subr.mxu0 0.0
        %2362 = vmatpush1.msra.mxu0 0.0
        %2363 = vmatprep.subr.mxu0 0.0
        %2364 = vmatpush1.msra.mxu0 0.0
        %2365 = vmatprep.subr.mxu0 0.0
        %2366 = vmatpush1.msra.mxu0 0.0
        %2367 = vmatprep.subr.mxu0 0.0
        %2368 = vmatpush1.msra.mxu0 0.0
        %2369 = vmatprep.subr.mxu0 0.0
        %2370 = vmatpush1.msra.mxu0 0.0
        %2371 = vmatprep.subr.mxu0 0.0
        %2372 = vmatpush1.msra.mxu0 0.0
        %2373 = vmatprep.subr.mxu0 0.0
        %2374 = vmatpush1.msra.mxu0 0.0
        %2375 = vmatprep.subr.mxu0 0.0
        %2376 = vmatpush1.msra.mxu0 0.0
        %2377 = vmatprep.subr.mxu0 0.0
        %2378 = vmatpush1.msra.mxu0 0.0
        %2379 = vmatprep.subr.mxu0 0.0
        %2380 = vmatpush1.msra.mxu0 0.0
        %2381 = vmatprep.mubr.f32.mxu0 %v2312
        %2382 = vmatmul.mubr.f32.gmra.mrb[0].mxu0 %v2167
        %v2383 = vpop.f32.mrb[0].mxu0
        %v2384 = vadd.f32 %v2304, %v2383
        %v2385 = vpop.f32.mrb[0].mxu0
        %v2386 = vadd.f32 %v2304, %v2385
        %2387 = vmatprep.mubr.f32.mxu0 %v2315
        %2388 = vmatmul.mubr.f32.gmra.mrb[0].mxu0 %v2169
        %v2389 = vpop.f32.mrb[0].mxu0
        %v2390 = vadd.f32 %v2309, %v2389
        %v2391 = vpop.f32.mrb[0].mxu0
        %v2392 = vadd.f32 %v2309, %v2391
        %2393 = vdwg.mxu0
        %v2394 = vadd.f32 %v671, %v2384
        %v2395 = vadd.f32 %v672, %v2386
        %v2396 = vadd.f32 %v673, %v2390
        %v2397 = vadd.f32 %v674, %v2392
        %v2398 = vmul.f32 %v2394, 0.5
        %v2399 = vmul.f32 %v2395, 0.5
        %v2400 = vmul.f32 %v2396, 0.5
        %v2401 = vmul.f32 %v2397, 0.5
        %v2402 = vmul.f32 %v2394, 0.044715
        %v2403 = vmul.f32 %v2395, 0.044715
        %v2404 = vmul.f32 %v2396, 0.044715
        %v2405 = vmul.f32 %v2397, 0.044715
        %v2406 = vmul.f32 %v2402, %v2394
        %v2407 = vmul.f32 %v2403, %v2395
        %v2408 = vmul.f32 %v2404, %v2396
        %v2409 = vmul.f32 %v2405, %v2397
        %v2410 = vmul.f32 %v2406, %v2394
        %v2411 = vmul.f32 %v2407, %v2395
        %v2412 = vmul.f32 %v2408, %v2396
        %v2413 = vmul.f32 %v2409, %v2397
        %v2414 = vadd.f32 %v2394, %v2410
        %v2415 = vadd.f32 %v2395, %v2411
        %v2416 = vadd.f32 %v2396, %v2412
        %v2417 = vadd.f32 %v2397, %v2413
        %v2418 = vmul.f32 %v2414, 0.7978846
        %v2419 = vmul.f32 %v2415, 0.7978846
        %v2420 = vmul.f32 %v2416, 0.7978846
        %v2421 = vmul.f32 %v2417, 0.7978846
        %v2422 = vtanh.pop %v2418
        %v2423 = vtanh.pop %v2419
        %v2424 = vtanh.pop %v2420
        %v2425 = vtanh.pop %v2421
        %v2426 = vadd.f32 %v2422, 1.0
        %v2427 = vadd.f32 %v2423, 1.0
        %v2428 = vadd.f32 %v2424, 1.0
        %v2429 = vadd.f32 %v2425, 1.0
        %v2430 = vmul.f32 %v2398, %v2426
        %v2431 = vmul.f32 %v2399, %v2427
        %v2432 = vmul.f32 %v2400, %v2428
        %v2433 = vmul.f32 %v2401, %v2429
        %s2434 = scalar_lea.vmem %s3, 64
        %v2435 = vld [vmem:[%s2434] sm:$0xff]
        %v2436 = vld [vmem:[%s2434 + $0x8] sm:$0xff]
        %v2437 = vld [vmem:[%s2434 + $0x10] sm:$0xff]
        %v2438 = vld [vmem:[%s2434 + $0x18] sm:$0xff]
        %v2439 = vld [vmem:[%s2434 + $0x20] sm:$0xff]
        %v2440 = vld [vmem:[%s2434 + $0x28] sm:$0xff]
        %v2441 = vld [vmem:[%s2434 + $0x30] sm:$0xff]
        %v2442 = vld [vmem:[%s2434 + $0x38] sm:$0xff]
        %2443 = vrot.lane.b32.xlu0 %v2394, 17
        %v2444 = vpop.permute.xlu0 %2443
        %2445 = vrot.lane.b32.xlu0 %v2396, 17
        %v2446 = vpop.permute.xlu0 %2445
        %2447 = vrot.lane.b32.xlu0 %v2395, 17
        %v2448 = vpop.permute.xlu0 %2447
        %2449 = vrot.lane.b32.xlu0 %v2397, 17
        %v2450 = vpop.permute.xlu0 %2449
        %v2451 = vsel %vm693, %v2444, %v2448
        %v2452 = vsel %vm693, %v2446, %v2450
        %v2453 = vsel %vm693, %v2448, %v2444
        %v2454 = vsel %vm693, %v2450, %v2446
        %v2455 = vmul.f32 %v2453, %v703
        %v2456 = vmul.f32 %v2451, %v707
        %v2457 = vmul.f32 %v2454, %v703
        %v2458 = vmul.f32 %v2452, %v707
        %2459 = vrot.lane.b32.xlu0 %v2394, 16
        %v2460 = vpop.permute.xlu0 %2459
        %2461 = vrot.lane.b32.xlu0 %v2396, 16
        %v2462 = vpop.permute.xlu0 %2461
        %2463 = vrot.lane.b32.xlu0 %v2395, 16
        %v2464 = vpop.permute.xlu0 %2463
        %2465 = vrot.lane.b32.xlu0 %v2397, 16
        %v2466 = vpop.permute.xlu0 %2465
        %v2467 = vsel %vm722, %v2460, %v2464
        %v2468 = vsel %vm722, %v2462, %v2466
        %v2469 = vsel %vm722, %v2464, %v2460
        %v2470 = vsel %vm722, %v2466, %v2462
        %v2471 = vmul.f32 %v2469, %v733
        %v2472 = vmul.f32 %v2467, %v737
        %v2473 = vmul.f32 %v2470, %v733
        %v2474 = vmul.f32 %v2468, %v737
        %2475 = vrot.lane.b32.xlu0 %v2394, 15
        %v2476 = vpop.permute.xlu0 %2475
        %2477 = vrot.lane.b32.xlu0 %v2396, 15
        %v2478 = vpop.permute.xlu0 %2477
        %2479 = vrot.lane.b32.xlu0 %v2395, 15
        %v2480 = vpop.permute.xlu0 %2479
        %2481 = vrot.lane.b32.xlu0 %v2397, 15
        %v2482 = vpop.permute.xlu0 %2481
        %v2483 = vsel %vm752, %v2476, %v2480
        %v2484 = vsel %vm752, %v2478, %v2482
        %v2485 = vsel %vm752, %v2480, %v2476
        %v2486 = vsel %vm752, %v2482, %v2478
        %v2487 = vmul.f32 %v2485, %v763
        %v2488 = vmul.f32 %v2483, %v767
        %v2489 = vmul.f32 %v2486, %v763
        %v2490 = vmul.f32 %v2484, %v767
        %2491 = vrot.lane.b32.xlu0 %v2394, 1
        %v2492 = vpop.permute.xlu0 %2491
        %2493 = vrot.lane.b32.xlu0 %v2396, 1
        %v2494 = vpop.permute.xlu0 %2493
        %2495 = vrot.lane.b32.xlu0 %v2395, 1
        %v2496 = vpop.permute.xlu0 %2495
        %2497 = vrot.lane.b32.xlu0 %v2397, 1
        %v2498 = vpop.permute.xlu0 %2497
        %v2499 = vsel %vm782, %v2492, %v2496
        %v2500 = vsel %vm782, %v2494, %v2498
        %v2501 = vsel %vm782, %v2496, %v2492
        %v2502 = vsel %vm782, %v2498, %v2494
        %v2503 = vmul.f32 %v2501, %v793
        %v2504 = vmul.f32 %v2499, %v797
        %v2505 = vmul.f32 %v2502, %v793
        %v2506 = vmul.f32 %v2500, %v797
        %2507 = vrot.lane.b32.xlu0 %v2394, 127
        %v2508 = vpop.permute.xlu0 %2507
        %2509 = vrot.lane.b32.xlu0 %v2396, 127
        %v2510 = vpop.permute.xlu0 %2509
        %2511 = vrot.lane.b32.xlu0 %v2395, 127
        %v2512 = vpop.permute.xlu0 %2511
        %2513 = vrot.lane.b32.xlu0 %v2397, 127
        %v2514 = vpop.permute.xlu0 %2513
        %v2515 = vsel %vm812, %v2508, %v2512
        %v2516 = vsel %vm812, %v2510, %v2514
        %v2517 = vsel %vm812, %v2512, %v2508
        %v2518 = vsel %vm812, %v2514, %v2510
        %v2519 = vmul.f32 %v2515, %v823
        %v2520 = vmul.f32 %v2517, %v827
        %v2521 = vmul.f32 %v2516, %v823
        %v2522 = vmul.f32 %v2518, %v827
        %2523 = vrot.lane.b32.xlu0 %v2394, 113
        %v2524 = vpop.permute.xlu0 %2523
        %2525 = vrot.lane.b32.xlu0 %v2396, 113
        %v2526 = vpop.permute.xlu0 %2525
        %2527 = vrot.lane.b32.xlu0 %v2395, 113
        %v2528 = vpop.permute.xlu0 %2527
        %2529 = vrot.lane.b32.xlu0 %v2397, 113
        %v2530 = vpop.permute.xlu0 %2529
        %v2531 = vsel %vm842, %v2524, %v2528
        %v2532 = vsel %vm842, %v2526, %v2530
        %v2533 = vsel %vm842, %v2528, %v2524
        %v2534 = vsel %vm842, %v2530, %v2526
        %v2535 = vmul.f32 %v2531, %v853
        %v2536 = vmul.f32 %v2533, %v857
        %v2537 = vmul.f32 %v2532, %v853
        %v2538 = vmul.f32 %v2534, %v857
        %2539 = vrot.lane.b32.xlu0 %v2394, 112
        %v2540 = vpop.permute.xlu0 %2539
        %2541 = vrot.lane.b32.xlu0 %v2396, 112
        %v2542 = vpop.permute.xlu0 %2541
        %2543 = vrot.lane.b32.xlu0 %v2395, 112
        %v2544 = vpop.permute.xlu0 %2543
        %2545 = vrot.lane.b32.xlu0 %v2397, 112
        %v2546 = vpop.permute.xlu0 %2545
        %v2547 = vsel %vm872, %v2540, %v2544
        %v2548 = vsel %vm872, %v2542, %v2546
        %v2549 = vsel %vm872, %v2544, %v2540
        %v2550 = vsel %vm872, %v2546, %v2542
        %v2551 = vmul.f32 %v2547, %v883
        %v2552 = vmul.f32 %v2549, %v887
        %v2553 = vmul.f32 %v2548, %v883
        %v2554 = vmul.f32 %v2550, %v887
        %2555 = vrot.lane.b32.xlu0 %v2394, 111
        %v2556 = vpop.permute.xlu0 %2555
        %2557 = vrot.lane.b32.xlu0 %v2396, 111
        %v2558 = vpop.permute.xlu0 %2557
        %2559 = vrot.lane.b32.xlu0 %v2395, 111
        %v2560 = vpop.permute.xlu0 %2559
        %2561 = vrot.lane.b32.xlu0 %v2397, 111
        %v2562 = vpop.permute.xlu0 %2561
        %v2563 = vsel %vm902, %v2556, %v2560
        %v2564 = vsel %vm902, %v2558, %v2562
        %v2565 = vsel %vm902, %v2560, %v2556
        %v2566 = vsel %vm902, %v2562, %v2558
        %v2567 = vmul.f32 %v2563, %v913
        %v2568 = vmul.f32 %v2565, %v917
        %v2569 = vmul.f32 %v2564, %v913
        %v2570 = vmul.f32 %v2566, %v917
        %s2571 = scalar_lea.vmem %s4, 32
        %v2572 = vld [vmem:[%s2571] sm:$0xff]
        %v2573 = vld [vmem:[%s2571 + $0x8] sm:$0xff]
        %v2574 = vld [vmem:[%s2571 + $0x10] sm:$0xff]
        %v2575 = vld [vmem:[%s2571 + $0x18] sm:$0xff]
        %2577 = vset.pattern.permute.xlu0 0
        %2578 = vperm.xlu0 %2577, %v2572
        %v2579 = vpop.permute.xlu0 %2578
        %2582 = vset.pattern.permute.xlu0 0
        %2583 = vperm.xlu0 %2582, %v2573
        %v2584 = vpop.permute.xlu0 %2583
        %2587 = vset.pattern.permute.xlu0 0
        %2588 = vperm.xlu0 %2587, %v2574
        %v2589 = vpop.permute.xlu0 %2588
        %2592 = vset.pattern.permute.xlu0 0
        %2593 = vperm.xlu0 %2592, %v2575
        %v2594 = vpop.permute.xlu0 %2593
        %v2597 = vsel %vm948, %v2436, 0
        %v2600 = vsel %vm948, %v2438, 0
        %v2603 = vsel %vm948, %v2440, 0
        %v2606 = vsel %vm948, %v2442, 0
        %2608 = vmatprep.subr.mxu0 %v2456
        %2609 = vmatpush1.msra.mxu0 %v2455
        %2610 = vmatprep.subr.mxu0 %v2458
        %2611 = vmatpush1.msra.mxu0 %v2457
        %2612 = vmatprep.subr.mxu0 %v2472
        %2613 = vmatpush1.msra.mxu0 %v2471
        %2614 = vmatprep.subr.mxu0 %v2474
        %2615 = vmatpush1.msra.mxu0 %v2473
        %2616 = vmatprep.subr.mxu0 %v2488
        %2617 = vmatpush1.msra.mxu0 %v2487
        %2618 = vmatprep.subr.mxu0 %v2490
        %2619 = vmatpush1.msra.mxu0 %v2489
        %2620 = vmatprep.subr.mxu0 %v2504
        %2621 = vmatpush1.msra.mxu0 %v2503
        %2622 = vmatprep.subr.mxu0 %v2506
        %2623 = vmatpush1.msra.mxu0 %v2505
        %2624 = vmatprep.subr.mxu0 %v2395
        %2625 = vmatpush1.msra.mxu0 %v2394
        %2626 = vmatprep.subr.mxu0 %v2397
        %2627 = vmatpush1.msra.mxu0 %v2396
        %2628 = vmatprep.subr.mxu0 %v2520
        %2629 = vmatpush1.msra.mxu0 %v2519
        %2630 = vmatprep.subr.mxu0 %v2522
        %2631 = vmatpush1.msra.mxu0 %v2521
        %2632 = vmatprep.subr.mxu0 %v2536
        %2633 = vmatpush1.msra.mxu0 %v2535
        %2634 = vmatprep.subr.mxu0 %v2538
        %2635 = vmatpush1.msra.mxu0 %v2537
        %2636 = vmatprep.subr.mxu0 %v2552
        %2637 = vmatpush1.msra.mxu0 %v2551
        %2638 = vmatprep.subr.mxu0 %v2554
        %2639 = vmatpush1.msra.mxu0 %v2553
        %2640 = vmatprep.subr.mxu0 %v2568
        %2641 = vmatpush1.msra.mxu0 %v2567
        %2642 = vmatprep.subr.mxu0 %v2570
        %2643 = vmatpush1.msra.mxu0 %v2569
        %2644 = vmatprep.subr.mxu0 0.0
        %2645 = vmatpush1.msra.mxu0 0.0
        %2646 = vmatprep.subr.mxu0 0.0
        %2647 = vmatpush1.msra.mxu0 0.0
        %2648 = vmatprep.subr.mxu0 0.0
        %2649 = vmatpush1.msra.mxu0 0.0
        %2650 = vmatprep.subr.mxu0 0.0
        %2651 = vmatpush1.msra.mxu0 0.0
        %2652 = vmatprep.subr.mxu0 0.0
        %2653 = vmatpush1.msra.mxu0 0.0
        %2654 = vmatprep.subr.mxu0 0.0
        %2655 = vmatpush1.msra.mxu0 0.0
        %2656 = vmatprep.subr.mxu0 0.0
        %2657 = vmatpush1.msra.mxu0 0.0
        %2658 = vmatprep.subr.mxu0 0.0
        %2659 = vmatpush1.msra.mxu0 0.0
        %2660 = vmatprep.subr.mxu0 0.0
        %2661 = vmatpush1.msra.mxu0 0.0
        %2662 = vmatprep.subr.mxu0 0.0
        %2663 = vmatpush1.msra.mxu0 0.0
        %2664 = vmatprep.subr.mxu0 0.0
        %2665 = vmatpush1.msra.mxu0 0.0
        %2666 = vmatprep.subr.mxu0 0.0
        %2667 = vmatpush1.msra.mxu0 0.0
        %2668 = vmatprep.subr.mxu0 0.0
        %2669 = vmatpush1.msra.mxu0 0.0
        %2670 = vmatprep.subr.mxu0 0.0
        %2671 = vmatpush1.msra.mxu0 0.0
        %2672 = vmatprep.mubr.f32.mxu0 %v2597
        %2673 = vmatmul.mubr.f32.gmra.mrb[0].mxu0 %v2435
        %v2674 = vpop.f32.mrb[0].mxu0
        %v2675 = vadd.f32 %v2579, %v2674
        %v2676 = vpop.f32.mrb[0].mxu0
        %v2677 = vadd.f32 %v2579, %v2676
        %2678 = vmatprep.mubr.f32.mxu0 %v2600
        %2679 = vmatmul.mubr.f32.gmra.mrb[0].mxu0 %v2437
        %v2680 = vpop.f32.mrb[0].mxu0
        %v2681 = vadd.f32 %v2584, %v2680
        %v2682 = vpop.f32.mrb[0].mxu0
        %v2683 = vadd.f32 %v2584, %v2682
        %2684 = vmatprep.mubr.f32.mxu0 %v2603
        %2685 = vmatmul.mubr.f32.gmra.mrb[0].mxu0 %v2439
        %v2686 = vpop.f32.mrb[0].mxu0
        %v2687 = vadd.f32 %v2589, %v2686
        %v2688 = vpop.f32.mrb[0].mxu0
        %v2689 = vadd.f32 %v2589, %v2688
        %2690 = vmatprep.mubr.f32.mxu0 %v2606
        %2691 = vmatmul.mubr.f32.gmra.mrb[0].mxu0 %v2441
        %v2692 = vpop.f32.mrb[0].mxu0
        %v2693 = vadd.f32 %v2594, %v2692
        %v2694 = vpop.f32.mrb[0].mxu0
        %v2695 = vadd.f32 %v2594, %v2694
        %2696 = vdwg.mxu0
        %v2697 = vmul.f32 %v2675, 0.5
        %v2698 = vmul.f32 %v2677, 0.5
        %v2699 = vmul.f32 %v2681, 0.5
        %v2700 = vmul.f32 %v2683, 0.5
        %v2701 = vmul.f32 %v2687, 0.5
        %v2702 = vmul.f32 %v2689, 0.5
        %v2703 = vmul.f32 %v2693, 0.5
        %v2704 = vmul.f32 %v2695, 0.5
        %v2705 = vmul.f32 %v2675, 0.044715
        %v2706 = vmul.f32 %v2677, 0.044715
        %v2707 = vmul.f32 %v2681, 0.044715
        %v2708 = vmul.f32 %v2683, 0.044715
        %v2709 = vmul.f32 %v2687, 0.044715
        %v2710 = vmul.f32 %v2689, 0.044715
        %v2711 = vmul.f32 %v2693, 0.044715
        %v2712 = vmul.f32 %v2695, 0.044715
        %v2713 = vmul.f32 %v2705, %v2675
        %v2714 = vmul.f32 %v2706, %v2677
        %v2715 = vmul.f32 %v2707, %v2681
        %v2716 = vmul.f32 %v2708, %v2683
        %v2717 = vmul.f32 %v2709, %v2687
        %v2718 = vmul.f32 %v2710, %v2689
        %v2719 = vmul.f32 %v2711, %v2693
        %v2720 = vmul.f32 %v2712, %v2695
        %v2721 = vmul.f32 %v2713, %v2675
        %v2722 = vmul.f32 %v2714, %v2677
        %v2723 = vmul.f32 %v2715, %v2681
        %v2724 = vmul.f32 %v2716, %v2683
        %v2725 = vmul.f32 %v2717, %v2687
        %v2726 = vmul.f32 %v2718, %v2689
        %v2727 = vmul.f32 %v2719, %v2693
        %v2728 = vmul.f32 %v2720, %v2695
        %v2729 = vadd.f32 %v2675, %v2721
        %v2730 = vadd.f32 %v2677, %v2722
        %v2731 = vadd.f32 %v2681, %v2723
        %v2732 = vadd.f32 %v2683, %v2724
        %v2733 = vadd.f32 %v2687, %v2725
        %v2734 = vadd.f32 %v2689, %v2726
        %v2735 = vadd.f32 %v2693, %v2727
        %v2736 = vadd.f32 %v2695, %v2728
        %v2737 = vmul.f32 %v2729, 0.7978846
        %v2738 = vmul.f32 %v2730, 0.7978846
        %v2739 = vmul.f32 %v2731, 0.7978846
        %v2740 = vmul.f32 %v2732, 0.7978846
        %v2741 = vmul.f32 %v2733, 0.7978846
        %v2742 = vmul.f32 %v2734, 0.7978846
        %v2743 = vmul.f32 %v2735, 0.7978846
        %v2744 = vmul.f32 %v2736, 0.7978846
        %v2745 = vtanh.pop %v2737
        %v2746 = vtanh.pop %v2738
        %v2747 = vtanh.pop %v2739
        %v2748 = vtanh.pop %v2740
        %v2749 = vtanh.pop %v2741
        %v2750 = vtanh.pop %v2742
        %v2751 = vtanh.pop %v2743
        %v2752 = vtanh.pop %v2744
        %v2753 = vadd.f32 %v2745, 1.0
        %v2754 = vadd.f32 %v2746, 1.0
        %v2755 = vadd.f32 %v2747, 1.0
        %v2756 = vadd.f32 %v2748, 1.0
        %v2757 = vadd.f32 %v2749, 1.0
        %v2758 = vadd.f32 %v2750, 1.0
        %v2759 = vadd.f32 %v2751, 1.0
        %v2760 = vadd.f32 %v2752, 1.0
        %v2761 = vmul.f32 %v2697, %v2753
        %v2762 = vmul.f32 %v2698, %v2754
        %v2763 = vmul.f32 %v2699, %v2755
        %v2764 = vmul.f32 %v2700, %v2756
        %v2765 = vmul.f32 %v2701, %v2757
        %v2766 = vmul.f32 %v2702, %v2758
        %v2767 = vmul.f32 %v2703, %v2759
        %v2768 = vmul.f32 %v2704, %v2760
        %v2769 = vadd.f32 %v2394, %v2761
        %v2770 = vadd.f32 %v2395, %v2762
        %v2771 = vadd.f32 %v2396, %v2763
        %v2772 = vadd.f32 %v2397, %v2764
        %v2773 = vadd.f32 %v2769, %v2765
        %v2774 = vadd.f32 %v2770, %v2766
        %v2775 = vadd.f32 %v2771, %v2767
        %v2776 = vadd.f32 %v2772, %v2768
        %2777 = vrot.lane.b32.xlu0 %v2773, 127
        %v2778 = vpop.permute.xlu0 %2777
        %2779 = vrot.lane.b32.xlu0 %v2775, 127
        %v2780 = vpop.permute.xlu0 %2779
        %2781 = vrot.lane.b32.xlu0 %v2774, 127
        %v2782 = vpop.permute.xlu0 %2781
        %2783 = vrot.lane.b32.xlu0 %v2776, 127
        %v2784 = vpop.permute.xlu0 %2783
        %v2785 = vsel %vm812, %v2778, %v2782
        %v2786 = vsel %vm812, %v2780, %v2784
        %v2787 = vsel %vm812, %v2782, %v2778
        %v2788 = vsel %vm812, %v2784, %v2780
        %v2789 = vmul.f32 %v2785, %v1147
        %v2790 = vmul.f32 %v2787, %v1151
        %v2791 = vmul.f32 %v2786, %v1147
        %v2792 = vmul.f32 %v2788, %v1151
        %2793 = vrot.lane.b32.xlu0 %v2773, 15
        %v2794 = vpop.permute.xlu0 %2793
        %2795 = vrot.lane.b32.xlu0 %v2775, 15
        %v2796 = vpop.permute.xlu0 %2795
        %2797 = vrot.lane.b32.xlu0 %v2774, 15
        %v2798 = vpop.permute.xlu0 %2797
        %2799 = vrot.lane.b32.xlu0 %v2776, 15
        %v2800 = vpop.permute.xlu0 %2799
        %v2801 = vsel %vm752, %v2794, %v2798
        %v2802 = vsel %vm752, %v2796, %v2800
        %v2803 = vsel %vm752, %v2798, %v2794
        %v2804 = vsel %vm752, %v2800, %v2796
        %v2805 = vmul.f32 %v2803, %v1175
        %v2806 = vmul.f32 %v2801, %v1179
        %v2807 = vmul.f32 %v2804, %v1175
        %v2808 = vmul.f32 %v2802, %v1179
        %v2809 = vadd.f32 %v2789, %v2805
        %v2810 = vadd.f32 %v2790, %v2806
        %v2811 = vadd.f32 %v2791, %v2807
        %v2812 = vadd.f32 %v2792, %v2808
        %v2813 = vadd.f32 %v2773, %v2809
        %v2814 = vadd.f32 %v2774, %v2810
        %v2815 = vadd.f32 %v2775, %v2811
        %v2816 = vadd.f32 %v2776, %v2812
        %2817 = vrot.lane.b32.xlu0 %v2813, 126
        %v2818 = vpop.permute.xlu0 %2817
        %2819 = vrot.lane.b32.xlu0 %v2815, 126
        %v2820 = vpop.permute.xlu0 %2819
        %2821 = vrot.lane.b32.xlu0 %v2814, 126
        %v2822 = vpop.permute.xlu0 %2821
        %2823 = vrot.lane.b32.xlu0 %v2816, 126
        %v2824 = vpop.permute.xlu0 %2823
        %v2825 = vsel %vm1204, %v2818, %v2822
        %v2826 = vsel %vm1204, %v2820, %v2824
        %v2827 = vsel %vm1204, %v2822, %v2818
        %v2828 = vsel %vm1204, %v2824, %v2820
        %v2829 = vmul.f32 %v2825, %v1213
        %v2830 = vmul.f32 %v2827, %v1217
        %v2831 = vmul.f32 %v2826, %v1213
        %v2832 = vmul.f32 %v2828, %v1217
        %2833 = vrot.lane.b32.xlu0 %v2813, 14
        %v2834 = vpop.permute.xlu0 %2833
        %2835 = vrot.lane.b32.xlu0 %v2815, 14
        %v2836 = vpop.permute.xlu0 %2835
        %2837 = vrot.lane.b32.xlu0 %v2814, 14
        %v2838 = vpop.permute.xlu0 %2837
        %2839 = vrot.lane.b32.xlu0 %v2816, 14
        %v2840 = vpop.permute.xlu0 %2839
        %v2841 = vsel %vm1232, %v2834, %v2838
        %v2842 = vsel %vm1232, %v2836, %v2840
        %v2843 = vsel %vm1232, %v2838, %v2834
        %v2844 = vsel %vm1232, %v2840, %v2836
        %v2845 = vmul.f32 %v2843, %v1242
        %v2846 = vmul.f32 %v2841, %v1246
        %v2847 = vmul.f32 %v2844, %v1242
        %v2848 = vmul.f32 %v2842, %v1246
        %v2849 = vadd.f32 %v2829, %v2845
        %v2850 = vadd.f32 %v2830, %v2846
        %v2851 = vadd.f32 %v2831, %v2847
        %v2852 = vadd.f32 %v2832, %v2848
        %v2853 = vadd.f32 %v2813, %v2849
        %v2854 = vadd.f32 %v2814, %v2850
        %v2855 = vadd.f32 %v2815, %v2851
        %v2856 = vadd.f32 %v2816, %v2852
        %2857 = vrot.lane.b32.xlu0 %v2853, 124
        %v2858 = vpop.permute.xlu0 %2857
        %2859 = vrot.lane.b32.xlu0 %v2855, 124
        %v2860 = vpop.permute.xlu0 %2859
        %2861 = vrot.lane.b32.xlu0 %v2854, 124
        %v2862 = vpop.permute.xlu0 %2861
        %2863 = vrot.lane.b32.xlu0 %v2856, 124
        %v2864 = vpop.permute.xlu0 %2863
        %v2865 = vsel %vm1271, %v2858, %v2862
        %v2866 = vsel %vm1271, %v2860, %v2864
        %v2867 = vsel %vm1271, %v2862, %v2858
        %v2868 = vsel %vm1271, %v2864, %v2860
        %v2869 = vmul.f32 %v2865, %v1280
        %v2870 = vmul.f32 %v2867, %v1284
        %v2871 = vmul.f32 %v2866, %v1280
        %v2872 = vmul.f32 %v2868, %v1284
        %2873 = vrot.lane.b32.xlu0 %v2853, 12
        %v2874 = vpop.permute.xlu0 %2873
        %2875 = vrot.lane.b32.xlu0 %v2855, 12
        %v2876 = vpop.permute.xlu0 %2875
        %2877 = vrot.lane.b32.xlu0 %v2854, 12
        %v2878 = vpop.permute.xlu0 %2877
        %2879 = vrot.lane.b32.xlu0 %v2856, 12
        %v2880 = vpop.permute.xlu0 %2879
        %v2881 = vsel %vm1299, %v2874, %v2878
        %v2882 = vsel %vm1299, %v2876, %v2880
        %v2883 = vsel %vm1299, %v2878, %v2874
        %v2884 = vsel %vm1299, %v2880, %v2876
        %v2885 = vmul.f32 %v2883, %v1309
        %v2886 = vmul.f32 %v2881, %v1313
        %v2887 = vmul.f32 %v2884, %v1309
        %v2888 = vmul.f32 %v2882, %v1313
        %v2889 = vadd.f32 %v2869, %v2885
        %v2890 = vadd.f32 %v2870, %v2886
        %v2891 = vadd.f32 %v2871, %v2887
        %v2892 = vadd.f32 %v2872, %v2888
        %v2893 = vadd.f32 %v2853, %v2889
        %v2894 = vadd.f32 %v2854, %v2890
        %v2895 = vadd.f32 %v2855, %v2891
        %v2896 = vadd.f32 %v2856, %v2892
        %2897 = vrot.lane.b32.xlu0 %v2893, 120
        %v2898 = vpop.permute.xlu0 %2897
        %2899 = vrot.lane.b32.xlu0 %v2895, 120
        %v2900 = vpop.permute.xlu0 %2899
        %2901 = vrot.lane.b32.xlu0 %v2894, 120
        %v2902 = vpop.permute.xlu0 %2901
        %2903 = vrot.lane.b32.xlu0 %v2896, 120
        %v2904 = vpop.permute.xlu0 %2903
        %v2905 = vsel %vm1338, %v2898, %v2902
        %v2906 = vsel %vm1338, %v2900, %v2904
        %v2907 = vsel %vm1338, %v2902, %v2898
        %v2908 = vsel %vm1338, %v2904, %v2900
        %v2909 = vmul.f32 %v2905, %v1347
        %v2910 = vmul.f32 %v2907, %v1351
        %v2911 = vmul.f32 %v2906, %v1347
        %v2912 = vmul.f32 %v2908, %v1351
        %2913 = vrot.lane.b32.xlu0 %v2893, 8
        %v2914 = vpop.permute.xlu0 %2913
        %2915 = vrot.lane.b32.xlu0 %v2895, 8
        %v2916 = vpop.permute.xlu0 %2915
        %2917 = vrot.lane.b32.xlu0 %v2894, 8
        %v2918 = vpop.permute.xlu0 %2917
        %2919 = vrot.lane.b32.xlu0 %v2896, 8
        %v2920 = vpop.permute.xlu0 %2919
        %v2921 = vsel %vm1366, %v2914, %v2918
        %v2922 = vsel %vm1366, %v2916, %v2920
        %v2923 = vsel %vm1366, %v2918, %v2914
        %v2924 = vsel %vm1366, %v2920, %v2916
        %v2925 = vmul.f32 %v2923, %v1376
        %v2926 = vmul.f32 %v2921, %v1380
        %v2927 = vmul.f32 %v2924, %v1376
        %v2928 = vmul.f32 %v2922, %v1380
        %v2929 = vadd.f32 %v2909, %v2925
        %v2930 = vadd.f32 %v2910, %v2926
        %v2931 = vadd.f32 %v2911, %v2927
        %v2932 = vadd.f32 %v2912, %v2928
        %v2933 = vadd.f32 %v2893, %v2929
        %v2934 = vadd.f32 %v2894, %v2930
        %v2935 = vadd.f32 %v2895, %v2931
        %v2936 = vadd.f32 %v2896, %v2932
        %v2937 = vmul.f32 %v2933, 0.0625
        %v2938 = vmul.f32 %v2934, 0.0625
        %v2939 = vmul.f32 %v2935, 0.0625
        %v2940 = vmul.f32 %v2936, 0.0625
        %2941 = vrot.lane.b32.xlu0 %v2773, 112
        %v2942 = vpop.permute.xlu0 %2941
        %2943 = vrot.lane.b32.xlu0 %v2775, 112
        %v2944 = vpop.permute.xlu0 %2943
        %2945 = vrot.lane.b32.xlu0 %v2774, 112
        %v2946 = vpop.permute.xlu0 %2945
        %2947 = vrot.lane.b32.xlu0 %v2776, 112
        %v2948 = vpop.permute.xlu0 %2947
        %v2949 = vsel %vm872, %v2942, %v2946
        %v2950 = vsel %vm872, %v2944, %v2948
        %v2951 = vsel %vm872, %v2946, %v2942
        %v2952 = vsel %vm872, %v2948, %v2944
        %v2953 = vmax.f32 %v2773, %v2949
        %v2954 = vmax.f32 %v2774, %v2951
        %v2955 = vmax.f32 %v2775, %v2950
        %v2956 = vmax.f32 %v2776, %v2952
        %2957 = vrot.lane.b32.xlu0 %v2953, 96
        %v2958 = vpop.permute.xlu0 %2957
        %2959 = vrot.lane.b32.xlu0 %v2955, 96
        %v2960 = vpop.permute.xlu0 %2959
        %2961 = vrot.lane.b32.xlu0 %v2954, 96
        %v2962 = vpop.permute.xlu0 %2961
        %2963 = vrot.lane.b32.xlu0 %v2956, 96
        %v2964 = vpop.permute.xlu0 %2963
        %v2965 = vsel %vm1423, %v2958, %v2962
        %v2966 = vsel %vm1423, %v2960, %v2964
        %v2967 = vsel %vm1423, %v2962, %v2958
        %v2968 = vsel %vm1423, %v2964, %v2960
        %v2969 = vmax.f32 %v2953, %v2965
        %v2970 = vmax.f32 %v2954, %v2967
        %v2971 = vmax.f32 %v2955, %v2966
        %v2972 = vmax.f32 %v2956, %v2968
        %2973 = vrot.lane.b32.xlu0 %v2969, 64
        %v2974 = vpop.permute.xlu0 %2973
        %2975 = vrot.lane.b32.xlu0 %v2971, 64
        %v2976 = vpop.permute.xlu0 %2975
        %2977 = vrot.lane.b32.xlu0 %v2970, 64
        %v2978 = vpop.permute.xlu0 %2977
        %2979 = vrot.lane.b32.xlu0 %v2972, 64
        %v2980 = vpop.permute.xlu0 %2979
        %v2981 = vsel %vm1440, %v2974, %v2978
        %v2982 = vsel %vm1440, %v2976, %v2980
        %v2983 = vsel %vm1440, %v2978, %v2974
        %v2984 = vsel %vm1440, %v2980, %v2976
        %v2985 = vmax.f32 %v2969, %v2981
        %v2986 = vmax.f32 %v2970, %v2983
        %v2987 = vmax.f32 %v2971, %v2982
        %v2988 = vmax.f32 %v2972, %v2984
        %v2989 = vmax.f32 %v2985, %v2986
        %v2990 = vmax.f32 %v2987, %v2988
        %s2991 = scalar_lea.vmem %s7, 8
        %v2992 = vld [vmem:[%s2991] sm:$0xff]
        %s2993 = scalar_lea.vmem %s8, 8
        %v2994 = vld [vmem:[%s2993] sm:$0xff]
        %2996 = vset.pattern.permute.xlu0 0
        %2997 = vperm.xlu0 %2996, %v2994
        %v2998 = vpop.permute.xlu0 %2997
        %v3001 = vsel %vm948, %v2992, 0
        %3003 = vmatprep.subr.mxu0 %v2938
        %3004 = vmatpush1.msra.mxu0 %v2937
        %3005 = vmatprep.subr.mxu0 %v2940
        %3006 = vmatpush1.msra.mxu0 %v2939
        %3007 = vmatprep.subr.mxu0 0.0
        %3008 = vmatpush1.msra.mxu0 0.0
        %3009 = vmatprep.subr.mxu0 0.0
        %3010 = vmatpush1.msra.mxu0 0.0
        %3011 = vmatprep.subr.mxu0 0.0
        %3012 = vmatpush1.msra.mxu0 0.0
        %3013 = vmatprep.subr.mxu0 0.0
        %3014 = vmatpush1.msra.mxu0 0.0
        %3015 = vmatprep.subr.mxu0 0.0
        %3016 = vmatpush1.msra.mxu0 0.0
        %3017 = vmatprep.subr.mxu0 0.0
        %3018 = vmatpush1.msra.mxu0 0.0
        %3019 = vmatprep.subr.mxu0 0.0
        %3020 = vmatpush1.msra.mxu0 0.0
        %3021 = vmatprep.subr.mxu0 0.0
        %3022 = vmatpush1.msra.mxu0 0.0
        %3023 = vmatprep.subr.mxu0 0.0
        %3024 = vmatpush1.msra.mxu0 0.0
        %3025 = vmatprep.subr.mxu0 0.0
        %3026 = vmatpush1.msra.mxu0 0.0
        %3027 = vmatprep.subr.mxu0 0.0
        %3028 = vmatpush1.msra.mxu0 0.0
        %3029 = vmatprep.subr.mxu0 0.0
        %3030 = vmatpush1.msra.mxu0 0.0
        %3031 = vmatprep.subr.mxu0 0.0
        %3032 = vmatpush1.msra.mxu0 0.0
        %3033 = vmatprep.subr.mxu0 0.0
        %3034 = vmatpush1.msra.mxu0 0.0
        %3035 = vmatprep.subr.mxu0 0.0
        %3036 = vmatpush1.msra.mxu0 0.0
        %3037 = vmatprep.subr.mxu0 0.0
        %3038 = vmatpush1.msra.mxu0 0.0
        %3039 = vmatprep.subr.mxu0 0.0
        %3040 = vmatpush1.msra.mxu0 0.0
        %3041 = vmatprep.subr.mxu0 0.0
        %3042 = vmatpush1.msra.mxu0 0.0
        %3043 = vmatprep.subr.mxu0 0.0
        %3044 = vmatpush1.msra.mxu0 0.0
        %3045 = vmatprep.subr.mxu0 0.0
        %3046 = vmatpush1.msra.mxu0 0.0
        %3047 = vmatprep.subr.mxu0 0.0
        %3048 = vmatpush1.msra.mxu0 0.0
        %3049 = vmatprep.subr.mxu0 0.0
        %3050 = vmatpush1.msra.mxu0 0.0
        %3051 = vmatprep.subr.mxu0 0.0
        %3052 = vmatpush1.msra.mxu0 0.0
        %3053 = vmatprep.subr.mxu0 0.0
        %3054 = vmatpush1.msra.mxu0 0.0
        %3055 = vmatprep.subr.mxu0 0.0
        %3056 = vmatpush1.msra.mxu0 0.0
        %3057 = vmatprep.subr.mxu0 0.0
        %3058 = vmatpush1.msra.mxu0 0.0
        %3059 = vmatprep.subr.mxu0 0.0
        %3060 = vmatpush1.msra.mxu0 0.0
        %3061 = vmatprep.subr.mxu0 0.0
        %3062 = vmatpush1.msra.mxu0 0.0
        %3063 = vmatprep.subr.mxu0 0.0
        %3064 = vmatpush1.msra.mxu0 0.0
        %3065 = vmatprep.subr.mxu0 0.0
        %3066 = vmatpush1.msra.mxu0 0.0
        %3067 = vmatprep.mubr.f32.mxu0 0.0
        %3068 = vmatmul.mubr.f32.gmra.mrb[0].mxu0 %v3001
        %v3069 = vpop.f32.mrb[0].mxu0
        %v3070 = vadd.f32 %v2998, %v3069
        %v3071 = vpop.f32.mrb[0].mxu0
        %v3072 = vadd.f32 %v2998, %v3071
        %3073 = vdwg.mxu0
        %v3074 = vmul.f32 %v3070, 0.5
        %v3075 = vmul.f32 %v3072, 0.5
        %v3076 = vmul.f32 %v3070, 0.044715
        %v3077 = vmul.f32 %v3072, 0.044715
        %v3078 = vmul.f32 %v3076, %v3070
        %v3079 = vmul.f32 %v3077, %v3072
        %v3080 = vmul.f32 %v3078, %v3070
        %v3081 = vmul.f32 %v3079, %v3072
        %v3082 = vadd.f32 %v3070, %v3080
        %v3083 = vadd.f32 %v3072, %v3081
        %v3084 = vmul.f32 %v3082, 0.7978846
        %v3085 = vmul.f32 %v3083, 0.7978846
        %v3086 = vtanh.pop %v3084
        %v3087 = vtanh.pop %v3085
        %v3088 = vadd.f32 %v3086, 1.0
        %v3089 = vadd.f32 %v3087, 1.0
        %v3090 = vmul.f32 %v3074, %v3088
        %v3091 = vmul.f32 %v3075, %v3089
        %3092 = vmatprep.subr.mxu0 %v2989
        %3093 = vmatpush1.msra.mxu0 %v2989
        %3094 = vmatprep.subr.mxu0 %v2990
        %3095 = vmatpush1.msra.mxu0 %v2990
        %3096 = vmatprep.subr.mxu0 0.0
        %3097 = vmatpush1.msra.mxu0 0.0
        %3098 = vmatprep.subr.mxu0 0.0
        %3099 = vmatpush1.msra.mxu0 0.0
        %3100 = vmatprep.subr.mxu0 0.0
        %3101 = vmatpush1.msra.mxu0 0.0
        %3102 = vmatprep.subr.mxu0 0.0
        %3103 = vmatpush1.msra.mxu0 0.0
        %3104 = vmatprep.subr.mxu0 0.0
        %3105 = vmatpush1.msra.mxu0 0.0
        %3106 = vmatprep.subr.mxu0 0.0
        %3107 = vmatpush1.msra.mxu0 0.0
        %3108 = vmatprep.subr.mxu0 0.0
        %3109 = vmatpush1.msra.mxu0 0.0
        %3110 = vmatprep.subr.mxu0 0.0
        %3111 = vmatpush1.msra.mxu0 0.0
        %3112 = vmatprep.subr.mxu0 0.0
        %3113 = vmatpush1.msra.mxu0 0.0
        %3114 = vmatprep.subr.mxu0 0.0
        %3115 = vmatpush1.msra.mxu0 0.0
        %3116 = vmatprep.subr.mxu0 0.0
        %3117 = vmatpush1.msra.mxu0 0.0
        %3118 = vmatprep.subr.mxu0 0.0
        %3119 = vmatpush1.msra.mxu0 0.0
        %3120 = vmatprep.subr.mxu0 0.0
        %3121 = vmatpush1.msra.mxu0 0.0
        %3122 = vmatprep.subr.mxu0 0.0
        %3123 = vmatpush1.msra.mxu0 0.0
        %3124 = vmatprep.subr.mxu0 0.0
        %3125 = vmatpush1.msra.mxu0 0.0
        %3126 = vmatprep.subr.mxu0 0.0
        %3127 = vmatpush1.msra.mxu0 0.0
        %3128 = vmatprep.subr.mxu0 0.0
        %3129 = vmatpush1.msra.mxu0 0.0
        %3130 = vmatprep.subr.mxu0 0.0
        %3131 = vmatpush1.msra.mxu0 0.0
        %3132 = vmatprep.subr.mxu0 0.0
        %3133 = vmatpush1.msra.mxu0 0.0
        %3134 = vmatprep.subr.mxu0 0.0
        %3135 = vmatpush1.msra.mxu0 0.0
        %3136 = vmatprep.subr.mxu0 0.0
        %3137 = vmatpush1.msra.mxu0 0.0
        %3138 = vmatprep.subr.mxu0 0.0
        %3139 = vmatpush1.msra.mxu0 0.0
        %3140 = vmatprep.subr.mxu0 0.0
        %3141 = vmatpush1.msra.mxu0 0.0
        %3142 = vmatprep.subr.mxu0 0.0
        %3143 = vmatpush1.msra.mxu0 0.0
        %3144 = vmatprep.subr.mxu0 0.0
        %3145 = vmatpush1.msra.mxu0 0.0
        %3146 = vmatprep.subr.mxu0 0.0
        %3147 = vmatpush1.msra.mxu0 0.0
        %3148 = vmatprep.subr.mxu0 0.0
        %3149 = vmatpush1.msra.mxu0 0.0
        %3150 = vmatprep.subr.mxu0 0.0
        %3151 = vmatpush1.msra.mxu0 0.0
        %3152 = vmatprep.subr.mxu0 0.0
        %3153 = vmatpush1.msra.mxu0 0.0
        %3154 = vmatprep.subr.mxu0 0.0
        %3155 = vmatpush1.msra.mxu0 0.0
        %3156 = vmatprep.mubr.f32.mxu0 0.0
        %3157 = vmatmul.mubr.f32.gmra.mrb[0].mxu0 %v3001
        %v3158 = vpop.f32.mrb[0].mxu0
        %v3159 = vadd.f32 %v2998, %v3158
        %v3160 = vpop.f32.mrb[0].mxu0
        %v3161 = vadd.f32 %v2998, %v3160
        %3162 = vdwg.mxu0
        %v3163 = vmul.f32 %v3159, 0.5
        %v3164 = vmul.f32 %v3161, 0.5
        %v3165 = vmul.f32 %v3159, 0.044715
        %v3166 = vmul.f32 %v3161, 0.044715
        %v3167 = vmul.f32 %v3165, %v3159
        %v3168 = vmul.f32 %v3166, %v3161
        %v3169 = vmul.f32 %v3167, %v3159
        %v3170 = vmul.f32 %v3168, %v3161
        %v3171 = vadd.f32 %v3159, %v3169
        %v3172 = vadd.f32 %v3161, %v3170
        %v3173 = vmul.f32 %v3171, 0.7978846
        %v3174 = vmul.f32 %v3172, 0.7978846
        %v3175 = vtanh.pop %v3173
        %v3176 = vtanh.pop %v3174
        %v3177 = vadd.f32 %v3175, 1.0
        %v3178 = vadd.f32 %v3176, 1.0
        %v3179 = vmul.f32 %v3163, %v3177
        %v3180 = vmul.f32 %v3164, %v3178
        %s3181 = scalar_lea.vmem %s9, 16
        %v3182 = vld [vmem:[%s3181] sm:$0xff]
        %v3183 = vld [vmem:[%s3181 + $0x8] sm:$0xff]
        %3184 = vrot.lane.b32.xlu0 %v3090, 16
        %v3185 = vpop.permute.xlu0 %3184
        %3186 = vrot.lane.b32.xlu0 %v3091, 16
        %v3187 = vpop.permute.xlu0 %3186
        %v3188 = vsel %vm722, %v3185, %v3187
        %v3189 = vsel %vm722, %v3187, %v3185
        %v3190 = vmul.f32 %v3189, %v733
        %v3191 = vmul.f32 %v3188, %v737
        %3192 = vrot.lane.b32.xlu0 %v3090, 112
        %v3193 = vpop.permute.xlu0 %3192
        %3194 = vrot.lane.b32.xlu0 %v3091, 112
        %v3195 = vpop.permute.xlu0 %3194
        %v3196 = vsel %vm872, %v3193, %v3195
        %v3197 = vsel %vm872, %v3195, %v3193
        %v3198 = vmul.f32 %v3196, %v883
        %v3199 = vmul.f32 %v3197, %v887
        %s3200 = scalar_lea.vmem %s11, 16
        %v3201 = vld [vmem:[%s3200] sm:$0xff]
        %v3202 = vld [vmem:[%s3200 + $0x8] sm:$0xff]
        %3204 = vset.pattern.permute.xlu0 0
        %3205 = vperm.xlu0 %3204, %v3201
        %v3206 = vpop.permute.xlu0 %3205
        %3209 = vset.pattern.permute.xlu0 0
        %3210 = vperm.xlu0 %3209, %v3202
        %v3211 = vpop.permute.xlu0 %3210
        %v3214 = vsel %vm1669, %v3182, 0
        %v3217 = vsel %vm1669, %v3183, 0
        %3219 = vmatprep.subr.mxu0 %v3191
        %3220 = vmatpush1.msra.mxu0 %v3190
        %3221 = vmatprep.subr.mxu0 %v3091
        %3222 = vmatpush1.msra.mxu0 %v3090
        %3223 = vmatprep.subr.mxu0 %v3199
        %3224 = vmatpush1.msra.mxu0 %v3198
        %3225 = vmatprep.subr.mxu0 0.0
        %3226 = vmatpush1.msra.mxu0 0.0
        %3227 = vmatprep.subr.mxu0 0.0
        %3228 = vmatpush1.msra.mxu0 0.0
        %3229 = vmatprep.subr.mxu0 0.0
        %3230 = vmatpush1.msra.mxu0 0.0
        %3231 = vmatprep.subr.mxu0 0.0
        %3232 = vmatpush1.msra.mxu0 0.0
        %3233 = vmatprep.subr.mxu0 0.0
        %3234 = vmatpush1.msra.mxu0 0.0
        %3235 = vmatprep.subr.mxu0 0.0
        %3236 = vmatpush1.msra.mxu0 0.0
        %3237 = vmatprep.subr.mxu0 0.0
        %3238 = vmatpush1.msra.mxu0 0.0
        %3239 = vmatprep.subr.mxu0 0.0
        %3240 = vmatpush1.msra.mxu0 0.0
        %3241 = vmatprep.subr.mxu0 0.0
        %3242 = vmatpush1.msra.mxu0 0.0
        %3243 = vmatprep.subr.mxu0 0.0
        %3244 = vmatpush1.msra.mxu0 0.0
        %3245 = vmatprep.subr.mxu0 0.0
        %3246 = vmatpush1.msra.mxu0 0.0
        %3247 = vmatprep.subr.mxu0 0.0
        %3248 = vmatpush1.msra.mxu0 0.0
        %3249 = vmatprep.subr.mxu0 0.0
        %3250 = vmatpush1.msra.mxu0 0.0
        %3251 = vmatprep.subr.mxu0 0.0
        %3252 = vmatpush1.msra.mxu0 0.0
        %3253 = vmatprep.subr.mxu0 0.0
        %3254 = vmatpush1.msra.mxu0 0.0
        %3255 = vmatprep.subr.mxu0 0.0
        %3256 = vmatpush1.msra.mxu0 0.0
        %3257 = vmatprep.subr.mxu0 0.0
        %3258 = vmatpush1.msra.mxu0 0.0
        %3259 = vmatprep.subr.mxu0 0.0
        %3260 = vmatpush1.msra.mxu0 0.0
        %3261 = vmatprep.subr.mxu0 0.0
        %3262 = vmatpush1.msra.mxu0 0.0
        %3263 = vmatprep.subr.mxu0 0.0
        %3264 = vmatpush1.msra.mxu0 0.0
        %3265 = vmatprep.subr.mxu0 0.0
        %3266 = vmatpush1.msra.mxu0 0.0
        %3267 = vmatprep.subr.mxu0 0.0
        %3268 = vmatpush1.msra.mxu0 0.0
        %3269 = vmatprep.subr.mxu0 0.0
        %3270 = vmatpush1.msra.mxu0 0.0
        %3271 = vmatprep.subr.mxu0 0.0
        %3272 = vmatpush1.msra.mxu0 0.0
        %3273 = vmatprep.subr.mxu0 0.0
        %3274 = vmatpush1.msra.mxu0 0.0
        %3275 = vmatprep.subr.mxu0 0.0
        %3276 = vmatpush1.msra.mxu0 0.0
        %3277 = vmatprep.subr.mxu0 0.0
        %3278 = vmatpush1.msra.mxu0 0.0
        %3279 = vmatprep.subr.mxu0 0.0
        %3280 = vmatpush1.msra.mxu0 0.0
        %3281 = vmatprep.subr.mxu0 0.0
        %3282 = vmatpush1.msra.mxu0 0.0
        %3283 = vmatprep.mubr.f32.mxu0 0.0
        %3284 = vmatmul.mubr.f32.gmra.mrb[0].mxu0 %v3214
        %v3285 = vpop.f32.mrb[0].mxu0
        %v3286 = vadd.f32 %v3206, %v3285
        %v3287 = vpop.f32.mrb[0].mxu0
        %v3288 = vadd.f32 %v3206, %v3287
        %3289 = vmatprep.mubr.f32.mxu0 0.0
        %3290 = vmatmul.mubr.f32.gmra.mrb[0].mxu0 %v3217
        %v3291 = vpop.f32.mrb[0].mxu0
        %v3292 = vadd.f32 %v3211, %v3291
        %v3293 = vpop.f32.mrb[0].mxu0
        %v3294 = vadd.f32 %v3211, %v3293
        %3295 = vdwg.mxu0
        %s3296 = scalar_lea.vmem %s10, 16
        %v3297 = vld [vmem:[%s3296] sm:$0xff]
        %v3298 = vld [vmem:[%s3296 + $0x8] sm:$0xff]
        %3299 = vrot.lane.b32.xlu0 %v3179, 1
        %v3300 = vpop.permute.xlu0 %3299
        %3301 = vrot.lane.b32.xlu0 %v3180, 1
        %v3302 = vpop.permute.xlu0 %3301
        %v3303 = vsel %vm782, %v3300, %v3302
        %v3304 = vsel %vm782, %v3302, %v3300
        %v3305 = vmul.f32 %v3304, %v793
        %v3306 = vmul.f32 %v3303, %v797
        %3307 = vrot.lane.b32.xlu0 %v3179, 127
        %v3308 = vpop.permute.xlu0 %3307
        %3309 = vrot.lane.b32.xlu0 %v3180, 127
        %v3310 = vpop.permute.xlu0 %3309
        %v3311 = vsel %vm812, %v3308, %v3310
        %v3312 = vsel %vm812, %v3310, %v3308
        %v3313 = vmul.f32 %v3311, %v823
        %v3314 = vmul.f32 %v3312, %v827
        %v3316 = vsel %vm1669, %v3297, 0
        %v3319 = vsel %vm1669, %v3298, 0
        %3321 = vmatprep.subr.mxu0 %v3306
        %3322 = vmatpush1.msra.mxu0 %v3305
        %3323 = vmatprep.subr.mxu0 %v3180
        %3324 = vmatpush1.msra.mxu0 %v3179
        %3325 = vmatprep.subr.mxu0 %v3314
        %3326 = vmatpush1.msra.mxu0 %v3313
        %3327 = vmatprep.subr.mxu0 0.0
        %3328 = vmatpush1.msra.mxu0 0.0
        %3329 = vmatprep.subr.mxu0 0.0
        %3330 = vmatpush1.msra.mxu0 0.0
        %3331 = vmatprep.subr.mxu0 0.0
        %3332 = vmatpush1.msra.mxu0 0.0
        %3333 = vmatprep.subr.mxu0 0.0
        %3334 = vmatpush1.msra.mxu0 0.0
        %3335 = vmatprep.subr.mxu0 0.0
        %3336 = vmatpush1.msra.mxu0 0.0
        %3337 = vmatprep.subr.mxu0 0.0
        %3338 = vmatpush1.msra.mxu0 0.0
        %3339 = vmatprep.subr.mxu0 0.0
        %3340 = vmatpush1.msra.mxu0 0.0
        %3341 = vmatprep.subr.mxu0 0.0
        %3342 = vmatpush1.msra.mxu0 0.0
        %3343 = vmatprep.subr.mxu0 0.0
        %3344 = vmatpush1.msra.mxu0 0.0
        %3345 = vmatprep.subr.mxu0 0.0
        %3346 = vmatpush1.msra.mxu0 0.0
        %3347 = vmatprep.subr.mxu0 0.0
        %3348 = vmatpush1.msra.mxu0 0.0
        %3349 = vmatprep.subr.mxu0 0.0
        %3350 = vmatpush1.msra.mxu0 0.0
        %3351 = vmatprep.subr.mxu0 0.0
        %3352 = vmatpush1.msra.mxu0 0.0
        %3353 = vmatprep.subr.mxu0 0.0
        %3354 = vmatpush1.msra.mxu0 0.0
        %3355 = vmatprep.subr.mxu0 0.0
        %3356 = vmatpush1.msra.mxu0 0.0
        %3357 = vmatprep.subr.mxu0 0.0
        %3358 = vmatpush1.msra.mxu0 0.0
        %3359 = vmatprep.subr.mxu0 0.0
        %3360 = vmatpush1.msra.mxu0 0.0
        %3361 = vmatprep.subr.mxu0 0.0
        %3362 = vmatpush1.msra.mxu0 0.0
        %3363 = vmatprep.subr.mxu0 0.0
        %3364 = vmatpush1.msra.mxu0 0.0
        %3365 = vmatprep.subr.mxu0 0.0
        %3366 = vmatpush1.msra.mxu0 0.0
        %3367 = vmatprep.subr.mxu0 0.0
        %3368 = vmatpush1.msra.mxu0 0.0
        %3369 = vmatprep.subr.mxu0 0.0
        %3370 = vmatpush1.msra.mxu0 0.0
        %3371 = vmatprep.subr.mxu0 0.0
        %3372 = vmatpush1.msra.mxu0 0.0
        %3373 = vmatprep.subr.mxu0 0.0
        %3374 = vmatpush1.msra.mxu0 0.0
        %3375 = vmatprep.subr.mxu0 0.0
        %3376 = vmatpush1.msra.mxu0 0.0
        %3377 = vmatprep.subr.mxu0 0.0
        %3378 = vmatpush1.msra.mxu0 0.0
        %3379 = vmatprep.subr.mxu0 0.0
        %3380 = vmatpush1.msra.mxu0 0.0
        %3381 = vmatprep.subr.mxu0 0.0
        %3382 = vmatpush1.msra.mxu0 0.0
        %3383 = vmatprep.subr.mxu0 0.0
        %3384 = vmatpush1.msra.mxu0 0.0
        %3385 = vmatprep.mubr.f32.mxu0 0.0
        %3386 = vmatmul.mubr.f32.gmra.mrb[0].mxu0 %v3316
        %v3387 = vpop.f32.mrb[0].mxu0
        %v3388 = vadd.f32 %v3206, %v3387
        %v3389 = vpop.f32.mrb[0].mxu0
        %v3390 = vadd.f32 %v3206, %v3389
        %3391 = vmatprep.mubr.f32.mxu0 0.0
        %3392 = vmatmul.mubr.f32.gmra.mrb[0].mxu0 %v3319
        %v3393 = vpop.f32.mrb[0].mxu0
        %v3394 = vadd.f32 %v3211, %v3393
        %v3395 = vpop.f32.mrb[0].mxu0
        %v3396 = vadd.f32 %v3211, %v3395
        %3397 = vdwg.mxu0
        %s3398 = sld [smem:[#allocation2 + $0x80]]
        %s3399 = sld [smem:[#allocation2 + $0x81]]
        %v3400 = vstv %s3398
        %v3401 = vmul.f32 %v2937, %v3400
        %v3402 = vmul.f32 %v2938, %v3400
        %v3403 = vmul.f32 %v2939, %v3400
        %v3404 = vmul.f32 %v2940, %v3400
        %s3405 = ssub.f32 1.0, %s3398
        %v3406 = vstv %s3405
        %v3407 = vmul.f32 %v3286, %v3406
        %v3408 = vmul.f32 %v3288, %v3406
        %v3409 = vmul.f32 %v3292, %v3406
        %v3410 = vmul.f32 %v3294, %v3406
        %v3411 = vadd.f32 %v3401, %v3407
        %v3412 = vadd.f32 %v3402, %v3408
        %v3413 = vadd.f32 %v3403, %v3409
        %v3414 = vadd.f32 %v3404, %v3410
        %v3415 = vstv %s3399
        %v3416 = vmul.f32 %v2989, %v3415
        %v3417 = vmul.f32 %v2990, %v3415
        %s3418 = ssub.f32 1.0, %s3399
        %v3419 = vstv %s3418
        %v3420 = vmul.f32 %v3388, %v3419
        %v3421 = vmul.f32 %v3390, %v3419
        %v3422 = vmul.f32 %v3394, %v3419
        %v3423 = vmul.f32 %v3396, %v3419
        %v3424 = vadd.f32 %v3416, %v3420
        %v3425 = vadd.f32 %v3416, %v3421
        %v3426 = vadd.f32 %v3417, %v3422
        %v3427 = vadd.f32 %v3417, %v3423
        %s3428 = scalar_lea.vmem %s12, 16
        %v3429 = vld [vmem:[%s3428] sm:$0xff]
        %v3430 = vld [vmem:[%s3428 + $0x8] sm:$0xff]
        %3431 = vrot.lane.b32.xlu0 %v3411, 16
        %v3432 = vpop.permute.xlu0 %3431
        %3433 = vrot.lane.b32.xlu0 %v3413, 16
        %v3434 = vpop.permute.xlu0 %3433
        %3435 = vrot.lane.b32.xlu0 %v3412, 16
        %v3436 = vpop.permute.xlu0 %3435
        %3437 = vrot.lane.b32.xlu0 %v3414, 16
        %v3438 = vpop.permute.xlu0 %3437
        %v3439 = vsel %vm722, %v3432, %v3436
        %v3440 = vsel %vm722, %v3434, %v3438
        %v3441 = vsel %vm722, %v3436, %v3432
        %v3442 = vsel %vm722, %v3438, %v3434
        %v3443 = vmul.f32 %v3441, %v733
        %v3444 = vmul.f32 %v3439, %v737
        %v3445 = vmul.f32 %v3442, %v733
        %v3446 = vmul.f32 %v3440, %v737
        %3447 = vrot.lane.b32.xlu0 %v3411, 112
        %v3448 = vpop.permute.xlu0 %3447
        %3449 = vrot.lane.b32.xlu0 %v3413, 112
        %v3450 = vpop.permute.xlu0 %3449
        %3451 = vrot.lane.b32.xlu0 %v3412, 112
        %v3452 = vpop.permute.xlu0 %3451
        %3453 = vrot.lane.b32.xlu0 %v3414, 112
        %v3454 = vpop.permute.xlu0 %3453
        %v3455 = vsel %vm872, %v3448, %v3452
        %v3456 = vsel %vm872, %v3450, %v3454
        %v3457 = vsel %vm872, %v3452, %v3448
        %v3458 = vsel %vm872, %v3454, %v3450
        %v3459 = vmul.f32 %v3455, %v883
        %v3460 = vmul.f32 %v3457, %v887
        %v3461 = vmul.f32 %v3456, %v883
        %v3462 = vmul.f32 %v3458, %v887
        %s3463 = scalar_lea.vmem %s14, 16
        %v3464 = vld [vmem:[%s3463] sm:$0xff]
        %v3465 = vld [vmem:[%s3463 + $0x8] sm:$0xff]
        %3467 = vset.pattern.permute.xlu0 0
        %3468 = vperm.xlu0 %3467, %v3464
        %v3469 = vpop.permute.xlu0 %3468
        %3472 = vset.pattern.permute.xlu0 0
        %3473 = vperm.xlu0 %3472, %v3465
        %v3474 = vpop.permute.xlu0 %3473
        %v3477 = vsel %vm1930, %v3429, 0
        %v3480 = vsel %vm1930, %v3430, 0
        %3482 = vmatprep.subr.mxu0 %v3444
        %3483 = vmatpush1.msra.mxu0 %v3443
        %3484 = vmatprep.subr.mxu0 %v3446
        %3485 = vmatpush1.msra.mxu0 %v3445
        %3486 = vmatprep.subr.mxu0 %v3412
        %3487 = vmatpush1.msra.mxu0 %v3411
        %3488 = vmatprep.subr.mxu0 %v3414
        %3489 = vmatpush1.msra.mxu0 %v3413
        %3490 = vmatprep.subr.mxu0 %v3460
        %3491 = vmatpush1.msra.mxu0 %v3459
        %3492 = vmatprep.subr.mxu0 %v3462
        %3493 = vmatpush1.msra.mxu0 %v3461
        %3494 = vmatprep.subr.mxu0 0.0
        %3495 = vmatpush1.msra.mxu0 0.0
        %3496 = vmatprep.subr.mxu0 0.0
        %3497 = vmatpush1.msra.mxu0 0.0
        %3498 = vmatprep.subr.mxu0 0.0
        %3499 = vmatpush1.msra.mxu0 0.0
        %3500 = vmatprep.subr.mxu0 0.0
        %3501 = vmatpush1.msra.mxu0 0.0
        %3502 = vmatprep.subr.mxu0 0.0
        %3503 = vmatpush1.msra.mxu0 0.0
        %3504 = vmatprep.subr.mxu0 0.0
        %3505 = vmatpush1.msra.mxu0 0.0
        %3506 = vmatprep.subr.mxu0 0.0
        %3507 = vmatpush1.msra.mxu0 0.0
        %3508 = vmatprep.subr.mxu0 0.0
        %3509 = vmatpush1.msra.mxu0 0.0
        %3510 = vmatprep.subr.mxu0 0.0
        %3511 = vmatpush1.msra.mxu0 0.0
        %3512 = vmatprep.subr.mxu0 0.0
        %3513 = vmatpush1.msra.mxu0 0.0
        %3514 = vmatprep.subr.mxu0 0.0
        %3515 = vmatpush1.msra.mxu0 0.0
        %3516 = vmatprep.subr.mxu0 0.0
        %3517 = vmatpush1.msra.mxu0 0.0
        %3518 = vmatprep.subr.mxu0 0.0
        %3519 = vmatpush1.msra.mxu0 0.0
        %3520 = vmatprep.subr.mxu0 0.0
        %3521 = vmatpush1.msra.mxu0 0.0
        %3522 = vmatprep.subr.mxu0 0.0
        %3523 = vmatpush1.msra.mxu0 0.0
        %3524 = vmatprep.subr.mxu0 0.0
        %3525 = vmatpush1.msra.mxu0 0.0
        %3526 = vmatprep.subr.mxu0 0.0
        %3527 = vmatpush1.msra.mxu0 0.0
        %3528 = vmatprep.subr.mxu0 0.0
        %3529 = vmatpush1.msra.mxu0 0.0
        %3530 = vmatprep.subr.mxu0 0.0
        %3531 = vmatpush1.msra.mxu0 0.0
        %3532 = vmatprep.subr.mxu0 0.0
        %3533 = vmatpush1.msra.mxu0 0.0
        %3534 = vmatprep.subr.mxu0 0.0
        %3535 = vmatpush1.msra.mxu0 0.0
        %3536 = vmatprep.subr.mxu0 0.0
        %3537 = vmatpush1.msra.mxu0 0.0
        %3538 = vmatprep.subr.mxu0 0.0
        %3539 = vmatpush1.msra.mxu0 0.0
        %3540 = vmatprep.subr.mxu0 0.0
        %3541 = vmatpush1.msra.mxu0 0.0
        %3542 = vmatprep.subr.mxu0 0.0
        %3543 = vmatpush1.msra.mxu0 0.0
        %3544 = vmatprep.subr.mxu0 0.0
        %3545 = vmatpush1.msra.mxu0 0.0
        %3546 = vmatprep.mubr.f32.mxu0 0.0
        %3547 = vmatmul.mubr.f32.gmra.mrb[0].mxu0 %v3477
        %v3548 = vpop.f32.mrb[0].mxu0
        %v3549 = vadd.f32 %v3469, %v3548
        %v3550 = vpop.f32.mrb[0].mxu0
        %v3551 = vadd.f32 %v3469, %v3550
        %3552 = vmatprep.mubr.f32.mxu0 0.0
        %3553 = vmatmul.mubr.f32.gmra.mrb[0].mxu0 %v3480
        %v3554 = vpop.f32.mrb[0].mxu0
        %v3555 = vadd.f32 %v3474, %v3554
        %v3556 = vpop.f32.mrb[0].mxu0
        %v3557 = vadd.f32 %v3474, %v3556
        %3558 = vdwg.mxu0
        %s3559 = scalar_lea.vmem %s13, 16
        %v3560 = vld [vmem:[%s3559] sm:$0xff]
        %v3561 = vld [vmem:[%s3559 + $0x8] sm:$0xff]
        %3562 = vrot.lane.b32.xlu0 %v3424, 1
        %v3563 = vpop.permute.xlu0 %3562
        %3564 = vrot.lane.b32.xlu0 %v3426, 1
        %v3565 = vpop.permute.xlu0 %3564
        %3566 = vrot.lane.b32.xlu0 %v3425, 1
        %v3567 = vpop.permute.xlu0 %3566
        %3568 = vrot.lane.b32.xlu0 %v3427, 1
        %v3569 = vpop.permute.xlu0 %3568
        %v3570 = vsel %vm782, %v3563, %v3567
        %v3571 = vsel %vm782, %v3565, %v3569
        %v3572 = vsel %vm782, %v3567, %v3563
        %v3573 = vsel %vm782, %v3569, %v3565
        %v3574 = vmul.f32 %v3572, %v793
        %v3575 = vmul.f32 %v3570, %v797
        %v3576 = vmul.f32 %v3573, %v793
        %v3577 = vmul.f32 %v3571, %v797
        %3578 = vrot.lane.b32.xlu0 %v3424, 127
        %v3579 = vpop.permute.xlu0 %3578
        %3580 = vrot.lane.b32.xlu0 %v3426, 127
        %v3581 = vpop.permute.xlu0 %3580
        %3582 = vrot.lane.b32.xlu0 %v3425, 127
        %v3583 = vpop.permute.xlu0 %3582
        %3584 = vrot.lane.b32.xlu0 %v3427, 127
        %v3585 = vpop.permute.xlu0 %3584
        %v3586 = vsel %vm812, %v3579, %v3583
        %v3587 = vsel %vm812, %v3581, %v3585
        %v3588 = vsel %vm812, %v3583, %v3579
        %v3589 = vsel %vm812, %v3585, %v3581
        %v3590 = vmul.f32 %v3586, %v823
        %v3591 = vmul.f32 %v3588, %v827
        %v3592 = vmul.f32 %v3587, %v823
        %v3593 = vmul.f32 %v3589, %v827
        %v3595 = vsel %vm1930, %v3560, 0
        %v3598 = vsel %vm1930, %v3561, 0
        %3600 = vmatprep.subr.mxu0 %v3575
        %3601 = vmatpush1.msra.mxu0 %v3574
        %3602 = vmatprep.subr.mxu0 %v3577
        %3603 = vmatpush1.msra.mxu0 %v3576
        %3604 = vmatprep.subr.mxu0 %v3425
        %3605 = vmatpush1.msra.mxu0 %v3424
        %3606 = vmatprep.subr.mxu0 %v3427
        %3607 = vmatpush1.msra.mxu0 %v3426
        %3608 = vmatprep.subr.mxu0 %v3591
        %3609 = vmatpush1.msra.mxu0 %v3590
        %3610 = vmatprep.subr.mxu0 %v3593
        %3611 = vmatpush1.msra.mxu0 %v3592
        %3612 = vmatprep.subr.mxu0 0.0
        %3613 = vmatpush1.msra.mxu0 0.0
        %3614 = vmatprep.subr.mxu0 0.0
        %3615 = vmatpush1.msra.mxu0 0.0
        %3616 = vmatprep.subr.mxu0 0.0
        %3617 = vmatpush1.msra.mxu0 0.0
        %3618 = vmatprep.subr.mxu0 0.0
        %3619 = vmatpush1.msra.mxu0 0.0
        %3620 = vmatprep.subr.mxu0 0.0
        %3621 = vmatpush1.msra.mxu0 0.0
        %3622 = vmatprep.subr.mxu0 0.0
        %3623 = vmatpush1.msra.mxu0 0.0
        %3624 = vmatprep.subr.mxu0 0.0
        %3625 = vmatpush1.msra.mxu0 0.0
        %3626 = vmatprep.subr.mxu0 0.0
        %3627 = vmatpush1.msra.mxu0 0.0
        %3628 = vmatprep.subr.mxu0 0.0
        %3629 = vmatpush1.msra.mxu0 0.0
        %3630 = vmatprep.subr.mxu0 0.0
        %3631 = vmatpush1.msra.mxu0 0.0
        %3632 = vmatprep.subr.mxu0 0.0
        %3633 = vmatpush1.msra.mxu0 0.0
        %3634 = vmatprep.subr.mxu0 0.0
        %3635 = vmatpush1.msra.mxu0 0.0
        %3636 = vmatprep.subr.mxu0 0.0
        %3637 = vmatpush1.msra.mxu0 0.0
        %3638 = vmatprep.subr.mxu0 0.0
        %3639 = vmatpush1.msra.mxu0 0.0
        %3640 = vmatprep.subr.mxu0 0.0
        %3641 = vmatpush1.msra.mxu0 0.0
        %3642 = vmatprep.subr.mxu0 0.0
        %3643 = vmatpush1.msra.mxu0 0.0
        %3644 = vmatprep.subr.mxu0 0.0
        %3645 = vmatpush1.msra.mxu0 0.0
        %3646 = vmatprep.subr.mxu0 0.0
        %3647 = vmatpush1.msra.mxu0 0.0
        %3648 = vmatprep.subr.mxu0 0.0
        %3649 = vmatpush1.msra.mxu0 0.0
        %3650 = vmatprep.subr.mxu0 0.0
        %3651 = vmatpush1.msra.mxu0 0.0
        %3652 = vmatprep.subr.mxu0 0.0
        %3653 = vmatpush1.msra.mxu0 0.0
        %3654 = vmatprep.subr.mxu0 0.0
        %3655 = vmatpush1.msra.mxu0 0.0
        %3656 = vmatprep.subr.mxu0 0.0
        %3657 = vmatpush1.msra.mxu0 0.0
        %3658 = vmatprep.subr.mxu0 0.0
        %3659 = vmatpush1.msra.mxu0 0.0
        %3660 = vmatprep.subr.mxu0 0.0
        %3661 = vmatpush1.msra.mxu0 0.0
        %3662 = vmatprep.subr.mxu0 0.0
        %3663 = vmatpush1.msra.mxu0 0.0
        %3664 = vmatprep.mubr.f32.mxu0 0.0
        %3665 = vmatmul.mubr.f32.gmra.mrb[0].mxu0 %v3595
        %v3666 = vpop.f32.mrb[0].mxu0
        %v3667 = vadd.f32 %v3469, %v3666
        %v3668 = vpop.f32.mrb[0].mxu0
        %v3669 = vadd.f32 %v3469, %v3668
        %3670 = vmatprep.mubr.f32.mxu0 0.0
        %3671 = vmatmul.mubr.f32.gmra.mrb[0].mxu0 %v3598
        %v3672 = vpop.f32.mrb[0].mxu0
        %v3673 = vadd.f32 %v3474, %v3672
        %v3674 = vpop.f32.mrb[0].mxu0
        %v3675 = vadd.f32 %v3474, %v3674
        %3676 = vdwg.mxu0
        %v3677 = vmul.f32 %v3549, %v3667
        %v3678 = vmul.f32 %v3551, %v3669
        %v3679 = vmul.f32 %v3555, %v3673
        %v3680 = vmul.f32 %v3557, %v3675
        %v3681 = vsub.f32 0.0, %v3677
        %v3682 = vsub.f32 0.0, %v3678
        %v3683 = vsub.f32 0.0, %v3679
        %v3684 = vsub.f32 0.0, %v3680
        %v3685 = vmul.f32 %v3681, 1.442695
        %v3686 = vpow.pop %v3685
        %v3687 = vmul.f32 %v3682, 1.442695
        %v3688 = vpow.pop %v3687
        %v3689 = vmul.f32 %v3683, 1.442695
        %v3690 = vpow.pop %v3689
        %v3691 = vmul.f32 %v3684, 1.442695
        %v3692 = vpow.pop %v3691
        %v3693 = vadd.f32 %v3686, 1.0
        %v3694 = vadd.f32 %v3688, 1.0
        %v3695 = vadd.f32 %v3690, 1.0
        %v3696 = vadd.f32 %v3692, 1.0
        %v3697 = vrcp.pop %v3693
        %v3698 = vmul.f32 1.0, %v3697
        %v3699 = vrcp.pop %v3694
        %v3700 = vmul.f32 1.0, %v3699
        %v3701 = vrcp.pop %v3695
        %v3702 = vmul.f32 1.0, %v3701
        %v3703 = vrcp.pop %v3696
        %v3704 = vmul.f32 1.0, %v3703
        %v3705 = vmul.f32 %v2773, %v3698
        %v3706 = vmul.f32 %v2774, %v3700
        %v3707 = vmul.f32 %v2775, %v3702
        %v3708 = vmul.f32 %v2776, %v3704
        %v3709 = vadd.f32 %v2773, %v3705
        %v3710 = vadd.f32 %v2774, %v3706
        %v3711 = vadd.f32 %v2775, %v3707
        %v3712 = vadd.f32 %v2776, %v3708
        %s3713 = scalar_lea.vmem %s5, 32
        %v3714 = vld [vmem:[%s3713] sm:$0xff]
        %v3715 = vld [vmem:[%s3713 + $0x8] sm:$0xff]
        %v3716 = vld [vmem:[%s3713 + $0x10] sm:$0xff]
        %v3717 = vld [vmem:[%s3713 + $0x18] sm:$0xff]
        %3718 = vrot.lane.b32.xlu0 %v3709, 17
        %v3719 = vpop.permute.xlu0 %3718
        %3720 = vrot.lane.b32.xlu0 %v3711, 17
        %v3721 = vpop.permute.xlu0 %3720
        %3722 = vrot.lane.b32.xlu0 %v3710, 17
        %v3723 = vpop.permute.xlu0 %3722
        %3724 = vrot.lane.b32.xlu0 %v3712, 17
        %v3725 = vpop.permute.xlu0 %3724
        %v3726 = vsel %vm693, %v3719, %v3723
        %v3727 = vsel %vm693, %v3721, %v3725
        %v3728 = vsel %vm693, %v3723, %v3719
        %v3729 = vsel %vm693, %v3725, %v3721
        %v3730 = vmul.f32 %v3728, %v703
        %v3731 = vmul.f32 %v3726, %v707
        %v3732 = vmul.f32 %v3729, %v703
        %v3733 = vmul.f32 %v3727, %v707
        %3734 = vrot.lane.b32.xlu0 %v3709, 16
        %v3735 = vpop.permute.xlu0 %3734
        %3736 = vrot.lane.b32.xlu0 %v3711, 16
        %v3737 = vpop.permute.xlu0 %3736
        %3738 = vrot.lane.b32.xlu0 %v3710, 16
        %v3739 = vpop.permute.xlu0 %3738
        %3740 = vrot.lane.b32.xlu0 %v3712, 16
        %v3741 = vpop.permute.xlu0 %3740
        %v3742 = vsel %vm722, %v3735, %v3739
        %v3743 = vsel %vm722, %v3737, %v3741
        %v3744 = vsel %vm722, %v3739, %v3735
        %v3745 = vsel %vm722, %v3741, %v3737
        %v3746 = vmul.f32 %v3744, %v733
        %v3747 = vmul.f32 %v3742, %v737
        %v3748 = vmul.f32 %v3745, %v733
        %v3749 = vmul.f32 %v3743, %v737
        %3750 = vrot.lane.b32.xlu0 %v3709, 15
        %v3751 = vpop.permute.xlu0 %3750
        %3752 = vrot.lane.b32.xlu0 %v3711, 15
        %v3753 = vpop.permute.xlu0 %3752
        %3754 = vrot.lane.b32.xlu0 %v3710, 15
        %v3755 = vpop.permute.xlu0 %3754
        %3756 = vrot.lane.b32.xlu0 %v3712, 15
        %v3757 = vpop.permute.xlu0 %3756
        %v3758 = vsel %vm752, %v3751, %v3755
        %v3759 = vsel %vm752, %v3753, %v3757
        %v3760 = vsel %vm752, %v3755, %v3751
        %v3761 = vsel %vm752, %v3757, %v3753
        %v3762 = vmul.f32 %v3760, %v763
        %v3763 = vmul.f32 %v3758, %v767
        %v3764 = vmul.f32 %v3761, %v763
        %v3765 = vmul.f32 %v3759, %v767
        %3766 = vrot.lane.b32.xlu0 %v3709, 1
        %v3767 = vpop.permute.xlu0 %3766
        %3768 = vrot.lane.b32.xlu0 %v3711, 1
        %v3769 = vpop.permute.xlu0 %3768
        %3770 = vrot.lane.b32.xlu0 %v3710, 1
        %v3771 = vpop.permute.xlu0 %3770
        %3772 = vrot.lane.b32.xlu0 %v3712, 1
        %v3773 = vpop.permute.xlu0 %3772
        %v3774 = vsel %vm782, %v3767, %v3771
        %v3775 = vsel %vm782, %v3769, %v3773
        %v3776 = vsel %vm782, %v3771, %v3767
        %v3777 = vsel %vm782, %v3773, %v3769
        %v3778 = vmul.f32 %v3776, %v793
        %v3779 = vmul.f32 %v3774, %v797
        %v3780 = vmul.f32 %v3777, %v793
        %v3781 = vmul.f32 %v3775, %v797
        %3782 = vrot.lane.b32.xlu0 %v3709, 127
        %v3783 = vpop.permute.xlu0 %3782
        %3784 = vrot.lane.b32.xlu0 %v3711, 127
        %v3785 = vpop.permute.xlu0 %3784
        %3786 = vrot.lane.b32.xlu0 %v3710, 127
        %v3787 = vpop.permute.xlu0 %3786
        %3788 = vrot.lane.b32.xlu0 %v3712, 127
        %v3789 = vpop.permute.xlu0 %3788
        %v3790 = vsel %vm812, %v3783, %v3787
        %v3791 = vsel %vm812, %v3785, %v3789
        %v3792 = vsel %vm812, %v3787, %v3783
        %v3793 = vsel %vm812, %v3789, %v3785
        %v3794 = vmul.f32 %v3790, %v823
        %v3795 = vmul.f32 %v3792, %v827
        %v3796 = vmul.f32 %v3791, %v823
        %v3797 = vmul.f32 %v3793, %v827
        %3798 = vrot.lane.b32.xlu0 %v3709, 113
        %v3799 = vpop.permute.xlu0 %3798
        %3800 = vrot.lane.b32.xlu0 %v3711, 113
        %v3801 = vpop.permute.xlu0 %3800
        %3802 = vrot.lane.b32.xlu0 %v3710, 113
        %v3803 = vpop.permute.xlu0 %3802
        %3804 = vrot.lane.b32.xlu0 %v3712, 113
        %v3805 = vpop.permute.xlu0 %3804
        %v3806 = vsel %vm842, %v3799, %v3803
        %v3807 = vsel %vm842, %v3801, %v3805
        %v3808 = vsel %vm842, %v3803, %v3799
        %v3809 = vsel %vm842, %v3805, %v3801
        %v3810 = vmul.f32 %v3806, %v853
        %v3811 = vmul.f32 %v3808, %v857
        %v3812 = vmul.f32 %v3807, %v853
        %v3813 = vmul.f32 %v3809, %v857
        %3814 = vrot.lane.b32.xlu0 %v3709, 112
        %v3815 = vpop.permute.xlu0 %3814
        %3816 = vrot.lane.b32.xlu0 %v3711, 112
        %v3817 = vpop.permute.xlu0 %3816
        %3818 = vrot.lane.b32.xlu0 %v3710, 112
        %v3819 = vpop.permute.xlu0 %3818
        %3820 = vrot.lane.b32.xlu0 %v3712, 112
        %v3821 = vpop.permute.xlu0 %3820
        %v3822 = vsel %vm872, %v3815, %v3819
        %v3823 = vsel %vm872, %v3817, %v3821
        %v3824 = vsel %vm872, %v3819, %v3815
        %v3825 = vsel %vm872, %v3821, %v3817
        %v3826 = vmul.f32 %v3822, %v883
        %v3827 = vmul.f32 %v3824, %v887
        %v3828 = vmul.f32 %v3823, %v883
        %v3829 = vmul.f32 %v3825, %v887
        %3830 = vrot.lane.b32.xlu0 %v3709, 111
        %v3831 = vpop.permute.xlu0 %3830
        %3832 = vrot.lane.b32.xlu0 %v3711, 111
        %v3833 = vpop.permute.xlu0 %3832
        %3834 = vrot.lane.b32.xlu0 %v3710, 111
        %v3835 = vpop.permute.xlu0 %3834
        %3836 = vrot.lane.b32.xlu0 %v3712, 111
        %v3837 = vpop.permute.xlu0 %3836
        %v3838 = vsel %vm902, %v3831, %v3835
        %v3839 = vsel %vm902, %v3833, %v3837
        %v3840 = vsel %vm902, %v3835, %v3831
        %v3841 = vsel %vm902, %v3837, %v3833
        %v3842 = vmul.f32 %v3838, %v913
        %v3843 = vmul.f32 %v3840, %v917
        %v3844 = vmul.f32 %v3839, %v913
        %v3845 = vmul.f32 %v3841, %v917
        %s3846 = scalar_lea.vmem %s6, 16
        %v3847 = vld [vmem:[%s3846] sm:$0xff]
        %v3848 = vld [vmem:[%s3846 + $0x8] sm:$0xff]
        %3850 = vset.pattern.permute.xlu0 0
        %3851 = vperm.xlu0 %3850, %v3847
        %v3852 = vpop.permute.xlu0 %3851
        %3855 = vset.pattern.permute.xlu0 0
        %3856 = vperm.xlu0 %3855, %v3848
        %v3857 = vpop.permute.xlu0 %3856
        %v3860 = vsel %vm948, %v3715, 0
        %v3863 = vsel %vm948, %v3717, 0
        %3865 = vmatprep.subr.mxu0 %v3731
        %3866 = vmatpush1.msra.mxu0 %v3730
        %3867 = vmatprep.subr.mxu0 %v3733
        %3868 = vmatpush1.msra.mxu0 %v3732
        %3869 = vmatprep.subr.mxu0 %v3747
        %3870 = vmatpush1.msra.mxu0 %v3746
        %3871 = vmatprep.subr.mxu0 %v3749
        %3872 = vmatpush1.msra.mxu0 %v3748
        %3873 = vmatprep.subr.mxu0 %v3763
        %3874 = vmatpush1.msra.mxu0 %v3762
        %3875 = vmatprep.subr.mxu0 %v3765
        %3876 = vmatpush1.msra.mxu0 %v3764
        %3877 = vmatprep.subr.mxu0 %v3779
        %3878 = vmatpush1.msra.mxu0 %v3778
        %3879 = vmatprep.subr.mxu0 %v3781
        %3880 = vmatpush1.msra.mxu0 %v3780
        %3881 = vmatprep.subr.mxu0 %v3710
        %3882 = vmatpush1.msra.mxu0 %v3709
        %3883 = vmatprep.subr.mxu0 %v3712
        %3884 = vmatpush1.msra.mxu0 %v3711
        %3885 = vmatprep.subr.mxu0 %v3795
        %3886 = vmatpush1.msra.mxu0 %v3794
        %3887 = vmatprep.subr.mxu0 %v3797
        %3888 = vmatpush1.msra.mxu0 %v3796
        %3889 = vmatprep.subr.mxu0 %v3811
        %3890 = vmatpush1.msra.mxu0 %v3810
        %3891 = vmatprep.subr.mxu0 %v3813
        %3892 = vmatpush1.msra.mxu0 %v3812
        %3893 = vmatprep.subr.mxu0 %v3827
        %3894 = vmatpush1.msra.mxu0 %v3826
        %3895 = vmatprep.subr.mxu0 %v3829
        %3896 = vmatpush1.msra.mxu0 %v3828
        %3897 = vmatprep.subr.mxu0 %v3843
        %3898 = vmatpush1.msra.mxu0 %v3842
        %3899 = vmatprep.subr.mxu0 %v3845
        %3900 = vmatpush1.msra.mxu0 %v3844
        %3901 = vmatprep.subr.mxu0 0.0
        %3902 = vmatpush1.msra.mxu0 0.0
        %3903 = vmatprep.subr.mxu0 0.0
        %3904 = vmatpush1.msra.mxu0 0.0
        %3905 = vmatprep.subr.mxu0 0.0
        %3906 = vmatpush1.msra.mxu0 0.0
        %3907 = vmatprep.subr.mxu0 0.0
        %3908 = vmatpush1.msra.mxu0 0.0
        %3909 = vmatprep.subr.mxu0 0.0
        %3910 = vmatpush1.msra.mxu0 0.0
        %3911 = vmatprep.subr.mxu0 0.0
        %3912 = vmatpush1.msra.mxu0 0.0
        %3913 = vmatprep.subr.mxu0 0.0
        %3914 = vmatpush1.msra.mxu0 0.0
        %3915 = vmatprep.subr.mxu0 0.0
        %3916 = vmatpush1.msra.mxu0 0.0
        %3917 = vmatprep.subr.mxu0 0.0
        %3918 = vmatpush1.msra.mxu0 0.0
        %3919 = vmatprep.subr.mxu0 0.0
        %3920 = vmatpush1.msra.mxu0 0.0
        %3921 = vmatprep.subr.mxu0 0.0
        %3922 = vmatpush1.msra.mxu0 0.0
        %3923 = vmatprep.subr.mxu0 0.0
        %3924 = vmatpush1.msra.mxu0 0.0
        %3925 = vmatprep.subr.mxu0 0.0
        %3926 = vmatpush1.msra.mxu0 0.0
        %3927 = vmatprep.subr.mxu0 0.0
        %3928 = vmatpush1.msra.mxu0 0.0
        %3929 = vmatprep.mubr.f32.mxu0 %v3860
        %3930 = vmatmul.mubr.f32.gmra.mrb[0].mxu0 %v3714
        %v3931 = vpop.f32.mrb[0].mxu0
        %v3932 = vadd.f32 %v3852, %v3931
        %v3933 = vpop.f32.mrb[0].mxu0
        %v3934 = vadd.f32 %v3852, %v3933
        %3935 = vmatprep.mubr.f32.mxu0 %v3863
        %3936 = vmatmul.mubr.f32.gmra.mrb[0].mxu0 %v3716
        %v3937 = vpop.f32.mrb[0].mxu0
        %v3938 = vadd.f32 %v3857, %v3937
        %v3939 = vpop.f32.mrb[0].mxu0
        %v3940 = vadd.f32 %v3857, %v3939
        %3941 = vdwg.mxu0
        %v3942 = vadd.f32 %v2394, %v3932
        %v3943 = vadd.f32 %v2395, %v3934
        %v3944 = vadd.f32 %v2396, %v3938
        %v3945 = vadd.f32 %v2397, %v3940
        %v3946 = vmul.f32 %v3942, 0.5
        %v3947 = vmul.f32 %v3943, 0.5
        %v3948 = vmul.f32 %v3944, 0.5
        %v3949 = vmul.f32 %v3945, 0.5
        %v3950 = vmul.f32 %v3942, 0.044715
        %v3951 = vmul.f32 %v3943, 0.044715
        %v3952 = vmul.f32 %v3944, 0.044715
        %v3953 = vmul.f32 %v3945, 0.044715
        %v3954 = vmul.f32 %v3950, %v3942
        %v3955 = vmul.f32 %v3951, %v3943
        %v3956 = vmul.f32 %v3952, %v3944
        %v3957 = vmul.f32 %v3953, %v3945
        %v3958 = vmul.f32 %v3954, %v3942
        %v3959 = vmul.f32 %v3955, %v3943
        %v3960 = vmul.f32 %v3956, %v3944
        %v3961 = vmul.f32 %v3957, %v3945
        %v3962 = vadd.f32 %v3942, %v3958
        %v3963 = vadd.f32 %v3943, %v3959
        %v3964 = vadd.f32 %v3944, %v3960
        %v3965 = vadd.f32 %v3945, %v3961
        %v3966 = vmul.f32 %v3962, 0.7978846
        %v3967 = vmul.f32 %v3963, 0.7978846
        %v3968 = vmul.f32 %v3964, 0.7978846
        %v3969 = vmul.f32 %v3965, 0.7978846
        %v3970 = vtanh.pop %v3966
        %v3971 = vtanh.pop %v3967
        %v3972 = vtanh.pop %v3968
        %v3973 = vtanh.pop %v3969
        %v3974 = vadd.f32 %v3970, 1.0
        %v3975 = vadd.f32 %v3971, 1.0
        %v3976 = vadd.f32 %v3972, 1.0
        %v3977 = vadd.f32 %v3973, 1.0
        %v3978 = vmul.f32 %v3946, %v3974
        %v3979 = vmul.f32 %v3947, %v3975
        %v3980 = vmul.f32 %v3948, %v3976
        %v3981 = vmul.f32 %v3949, %v3977
        %s3982 = scalar_lea.vmem %s3, 128
        %v3983 = vld [vmem:[%s3982] sm:$0xff]
        %v3984 = vld [vmem:[%s3982 + $0x8] sm:$0xff]
        %v3985 = vld [vmem:[%s3982 + $0x10] sm:$0xff]
        %v3986 = vld [vmem:[%s3982 + $0x18] sm:$0xff]
        %v3987 = vld [vmem:[%s3982 + $0x20] sm:$0xff]
        %v3988 = vld [vmem:[%s3982 + $0x28] sm:$0xff]
        %v3989 = vld [vmem:[%s3982 + $0x30] sm:$0xff]
        %v3990 = vld [vmem:[%s3982 + $0x38] sm:$0xff]
        %3991 = vrot.lane.b32.xlu0 %v3942, 17
        %v3992 = vpop.permute.xlu0 %3991
        %3993 = vrot.lane.b32.xlu0 %v3944, 17
        %v3994 = vpop.permute.xlu0 %3993
        %3995 = vrot.lane.b32.xlu0 %v3943, 17
        %v3996 = vpop.permute.xlu0 %3995
        %3997 = vrot.lane.b32.xlu0 %v3945, 17
        %v3998 = vpop.permute.xlu0 %3997
        %v3999 = vsel %vm693, %v3992, %v3996
        %v4000 = vsel %vm693, %v3994, %v3998
        %v4001 = vsel %vm693, %v3996, %v3992
        %v4002 = vsel %vm693, %v3998, %v3994
        %v4003 = vmul.f32 %v4001, %v703
        %v4004 = vmul.f32 %v3999, %v707
        %v4005 = vmul.f32 %v4002, %v703
        %v4006 = vmul.f32 %v4000, %v707
        %4007 = vrot.lane.b32.xlu0 %v3942, 16
        %v4008 = vpop.permute.xlu0 %4007
        %4009 = vrot.lane.b32.xlu0 %v3944, 16
        %v4010 = vpop.permute.xlu0 %4009
        %4011 = vrot.lane.b32.xlu0 %v3943, 16
        %v4012 = vpop.permute.xlu0 %4011
        %4013 = vrot.lane.b32.xlu0 %v3945, 16
        %v4014 = vpop.permute.xlu0 %4013
        %v4015 = vsel %vm722, %v4008, %v4012
        %v4016 = vsel %vm722, %v4010, %v4014
        %v4017 = vsel %vm722, %v4012, %v4008
        %v4018 = vsel %vm722, %v4014, %v4010
        %v4019 = vmul.f32 %v4017, %v733
        %v4020 = vmul.f32 %v4015, %v737
        %v4021 = vmul.f32 %v4018, %v733
        %v4022 = vmul.f32 %v4016, %v737
        %4023 = vrot.lane.b32.xlu0 %v3942, 15
        %v4024 = vpop.permute.xlu0 %4023
        %4025 = vrot.lane.b32.xlu0 %v3944, 15
        %v4026 = vpop.permute.xlu0 %4025
        %4027 = vrot.lane.b32.xlu0 %v3943, 15
        %v4028 = vpop.permute.xlu0 %4027
        %4029 = vrot.lane.b32.xlu0 %v3945, 15
        %v4030 = vpop.permute.xlu0 %4029
        %v4031 = vsel %vm752, %v4024, %v4028
        %v4032 = vsel %vm752, %v4026, %v4030
        %v4033 = vsel %vm752, %v4028, %v4024
        %v4034 = vsel %vm752, %v4030, %v4026
        %v4035 = vmul.f32 %v4033, %v763
        %v4036 = vmul.f32 %v4031, %v767
        %v4037 = vmul.f32 %v4034, %v763
        %v4038 = vmul.f32 %v4032, %v767
        %4039 = vrot.lane.b32.xlu0 %v3942, 1
        %v4040 = vpop.permute.xlu0 %4039
        %4041 = vrot.lane.b32.xlu0 %v3944, 1
        %v4042 = vpop.permute.xlu0 %4041
        %4043 = vrot.lane.b32.xlu0 %v3943, 1
        %v4044 = vpop.permute.xlu0 %4043
        %4045 = vrot.lane.b32.xlu0 %v3945, 1
        %v4046 = vpop.permute.xlu0 %4045
        %v4047 = vsel %vm782, %v4040, %v4044
        %v4048 = vsel %vm782, %v4042, %v4046
        %v4049 = vsel %vm782, %v4044, %v4040
        %v4050 = vsel %vm782, %v4046, %v4042
        %v4051 = vmul.f32 %v4049, %v793
        %v4052 = vmul.f32 %v4047, %v797
        %v4053 = vmul.f32 %v4050, %v793
        %v4054 = vmul.f32 %v4048, %v797
        %4055 = vrot.lane.b32.xlu0 %v3942, 127
        %v4056 = vpop.permute.xlu0 %4055
        %4057 = vrot.lane.b32.xlu0 %v3944, 127
        %v4058 = vpop.permute.xlu0 %4057
        %4059 = vrot.lane.b32.xlu0 %v3943, 127
        %v4060 = vpop.permute.xlu0 %4059
        %4061 = vrot.lane.b32.xlu0 %v3945, 127
        %v4062 = vpop.permute.xlu0 %4061
        %v4063 = vsel %vm812, %v4056, %v4060
        %v4064 = vsel %vm812, %v4058, %v4062
        %v4065 = vsel %vm812, %v4060, %v4056
        %v4066 = vsel %vm812, %v4062, %v4058
        %v4067 = vmul.f32 %v4063, %v823
        %v4068 = vmul.f32 %v4065, %v827
        %v4069 = vmul.f32 %v4064, %v823
        %v4070 = vmul.f32 %v4066, %v827
        %4071 = vrot.lane.b32.xlu0 %v3942, 113
        %v4072 = vpop.permute.xlu0 %4071
        %4073 = vrot.lane.b32.xlu0 %v3944, 113
        %v4074 = vpop.permute.xlu0 %4073
        %4075 = vrot.lane.b32.xlu0 %v3943, 113
        %v4076 = vpop.permute.xlu0 %4075
        %4077 = vrot.lane.b32.xlu0 %v3945, 113
        %v4078 = vpop.permute.xlu0 %4077
        %v4079 = vsel %vm842, %v4072, %v4076
        %v4080 = vsel %vm842, %v4074, %v4078
        %v4081 = vsel %vm842, %v4076, %v4072
        %v4082 = vsel %vm842, %v4078, %v4074
        %v4083 = vmul.f32 %v4079, %v853
        %v4084 = vmul.f32 %v4081, %v857
        %v4085 = vmul.f32 %v4080, %v853
        %v4086 = vmul.f32 %v4082, %v857
        %4087 = vrot.lane.b32.xlu0 %v3942, 112
        %v4088 = vpop.permute.xlu0 %4087
        %4089 = vrot.lane.b32.xlu0 %v3944, 112
        %v4090 = vpop.permute.xlu0 %4089
        %4091 = vrot.lane.b32.xlu0 %v3943, 112
        %v4092 = vpop.permute.xlu0 %4091
        %4093 = vrot.lane.b32.xlu0 %v3945, 112
        %v4094 = vpop.permute.xlu0 %4093
        %v4095 = vsel %vm872, %v4088, %v4092
        %v4096 = vsel %vm872, %v4090, %v4094
        %v4097 = vsel %vm872, %v4092, %v4088
        %v4098 = vsel %vm872, %v4094, %v4090
        %v4099 = vmul.f32 %v4095, %v883
        %v4100 = vmul.f32 %v4097, %v887
        %v4101 = vmul.f32 %v4096, %v883
        %v4102 = vmul.f32 %v4098, %v887
        %4103 = vrot.lane.b32.xlu0 %v3942, 111
        %v4104 = vpop.permute.xlu0 %4103
        %4105 = vrot.lane.b32.xlu0 %v3944, 111
        %v4106 = vpop.permute.xlu0 %4105
        %4107 = vrot.lane.b32.xlu0 %v3943, 111
        %v4108 = vpop.permute.xlu0 %4107
        %4109 = vrot.lane.b32.xlu0 %v3945, 111
        %v4110 = vpop.permute.xlu0 %4109
        %v4111 = vsel %vm902, %v4104, %v4108
        %v4112 = vsel %vm902, %v4106, %v4110
        %v4113 = vsel %vm902, %v4108, %v4104
        %v4114 = vsel %vm902, %v4110, %v4106
        %v4115 = vmul.f32 %v4111, %v913
        %v4116 = vmul.f32 %v4113, %v917
        %v4117 = vmul.f32 %v4112, %v913
        %v4118 = vmul.f32 %v4114, %v917
        %s4119 = scalar_lea.vmem %s4, 64
        %v4120 = vld [vmem:[%s4119] sm:$0xff]
        %v4121 = vld [vmem:[%s4119 + $0x8] sm:$0xff]
        %v4122 = vld [vmem:[%s4119 + $0x10] sm:$0xff]
        %v4123 = vld [vmem:[%s4119 + $0x18] sm:$0xff]
        %4125 = vset.pattern.permute.xlu0 0
        %4126 = vperm.xlu0 %4125, %v4120
        %v4127 = vpop.permute.xlu0 %4126
        %4130 = vset.pattern.permute.xlu0 0
        %4131 = vperm.xlu0 %4130, %v4121
        %v4132 = vpop.permute.xlu0 %4131
        %4135 = vset.pattern.permute.xlu0 0
        %4136 = vperm.xlu0 %4135, %v4122
        %v4137 = vpop.permute.xlu0 %4136
        %4140 = vset.pattern.permute.xlu0 0
        %4141 = vperm.xlu0 %4140, %v4123
        %v4142 = vpop.permute.xlu0 %4141
        %v4145 = vsel %vm948, %v3984, 0
        %v4148 = vsel %vm948, %v3986, 0
        %v4151 = vsel %vm948, %v3988, 0
        %v4154 = vsel %vm948, %v3990, 0
        %4156 = vmatprep.subr.mxu0 %v4004
        %4157 = vmatpush1.msra.mxu0 %v4003
        %4158 = vmatprep.subr.mxu0 %v4006
        %4159 = vmatpush1.msra.mxu0 %v4005
        %4160 = vmatprep.subr.mxu0 %v4020
        %4161 = vmatpush1.msra.mxu0 %v4019
        %4162 = vmatprep.subr.mxu0 %v4022
        %4163 = vmatpush1.msra.mxu0 %v4021
        %4164 = vmatprep.subr.mxu0 %v4036
        %4165 = vmatpush1.msra.mxu0 %v4035
        %4166 = vmatprep.subr.mxu0 %v4038
        %4167 = vmatpush1.msra.mxu0 %v4037
        %4168 = vmatprep.subr.mxu0 %v4052
        %4169 = vmatpush1.msra.mxu0 %v4051
        %4170 = vmatprep.subr.mxu0 %v4054
        %4171 = vmatpush1.msra.mxu0 %v4053
        %4172 = vmatprep.subr.mxu0 %v3943
        %4173 = vmatpush1.msra.mxu0 %v3942
        %4174 = vmatprep.subr.mxu0 %v3945
        %4175 = vmatpush1.msra.mxu0 %v3944
        %4176 = vmatprep.subr.mxu0 %v4068
        %4177 = vmatpush1.msra.mxu0 %v4067
        %4178 = vmatprep.subr.mxu0 %v4070
        %4179 = vmatpush1.msra.mxu0 %v4069
        %4180 = vmatprep.subr.mxu0 %v4084
        %4181 = vmatpush1.msra.mxu0 %v4083
        %4182 = vmatprep.subr.mxu0 %v4086
        %4183 = vmatpush1.msra.mxu0 %v4085
        %4184 = vmatprep.subr.mxu0 %v4100
        %4185 = vmatpush1.msra.mxu0 %v4099
        %4186 = vmatprep.subr.mxu0 %v4102
        %4187 = vmatpush1.msra.mxu0 %v4101
        %4188 = vmatprep.subr.mxu0 %v4116
        %4189 = vmatpush1.msra.mxu0 %v4115
        %4190 = vmatprep.subr.mxu0 %v4118
        %4191 = vmatpush1.msra.mxu0 %v4117
        %4192 = vmatprep.subr.mxu0 0.0
        %4193 = vmatpush1.msra.mxu0 0.0
        %4194 = vmatprep.subr.mxu0 0.0
        %4195 = vmatpush1.msra.mxu0 0.0
        %4196 = vmatprep.subr.mxu0 0.0
        %4197 = vmatpush1.msra.mxu0 0.0
        %4198 = vmatprep.subr.mxu0 0.0
        %4199 = vmatpush1.msra.mxu0 0.0
        %4200 = vmatprep.subr.mxu0 0.0
        %4201 = vmatpush1.msra.mxu0 0.0
        %4202 = vmatprep.subr.mxu0 0.0
        %4203 = vmatpush1.msra.mxu0 0.0
        %4204 = vmatprep.subr.mxu0 0.0
        %4205 = vmatpush1.msra.mxu0 0.0
        %4206 = vmatprep.subr.mxu0 0.0
        %4207 = vmatpush1.msra.mxu0 0.0
        %4208 = vmatprep.subr.mxu0 0.0
        %4209 = vmatpush1.msra.mxu0 0.0
        %4210 = vmatprep.subr.mxu0 0.0
        %4211 = vmatpush1.msra.mxu0 0.0
        %4212 = vmatprep.subr.mxu0 0.0
        %4213 = vmatpush1.msra.mxu0 0.0
        %4214 = vmatprep.subr.mxu0 0.0
        %4215 = vmatpush1.msra.mxu0 0.0
        %4216 = vmatprep.subr.mxu0 0.0
        %4217 = vmatpush1.msra.mxu0 0.0
        %4218 = vmatprep.subr.mxu0 0.0
        %4219 = vmatpush1.msra.mxu0 0.0
        %4220 = vmatprep.mubr.f32.mxu0 %v4145
        %4221 = vmatmul.mubr.f32.gmra.mrb[0].mxu0 %v3983
        %v4222 = vpop.f32.mrb[0].mxu0
        %v4223 = vadd.f32 %v4127, %v4222
        %v4224 = vpop.f32.mrb[0].mxu0
        %v4225 = vadd.f32 %v4127, %v4224
        %4226 = vmatprep.mubr.f32.mxu0 %v4148
        %4227 = vmatmul.mubr.f32.gmra.mrb[0].mxu0 %v3985
        %v4228 = vpop.f32.mrb[0].mxu0
        %v4229 = vadd.f32 %v4132, %v4228
        %v4230 = vpop.f32.mrb[0].mxu0
        %v4231 = vadd.f32 %v4132, %v4230
        %4232 = vmatprep.mubr.f32.mxu0 %v4151
        %4233 = vmatmul.mubr.f32.gmra.mrb[0].mxu0 %v3987
        %v4234 = vpop.f32.mrb[0].mxu0
        %v4235 = vadd.f32 %v4137, %v4234
        %v4236 = vpop.f32.mrb[0].mxu0
        %v4237 = vadd.f32 %v4137, %v4236
        %4238 = vmatprep.mubr.f32.mxu0 %v4154
        %4239 = vmatmul.mubr.f32.gmra.mrb[0].mxu0 %v3989
        %v4240 = vpop.f32.mrb[0].mxu0
        %v4241 = vadd.f32 %v4142, %v4240
        %v4242 = vpop.f32.mrb[0].mxu0
        %v4243 = vadd.f32 %v4142, %v4242
        %4244 = vdwg.mxu0
        %v4245 = vmul.f32 %v4223, 0.5
        %v4246 = vmul.f32 %v4225, 0.5
        %v4247 = vmul.f32 %v4229, 0.5
        %v4248 = vmul.f32 %v4231, 0.5
        %v4249 = vmul.f32 %v4235, 0.5
        %v4250 = vmul.f32 %v4237, 0.5
        %v4251 = vmul.f32 %v4241, 0.5
        %v4252 = vmul.f32 %v4243, 0.5
        %v4253 = vmul.f32 %v4223, 0.044715
        %v4254 = vmul.f32 %v4225, 0.044715
        %v4255 = vmul.f32 %v4229, 0.044715
        %v4256 = vmul.f32 %v4231, 0.044715
        %v4257 = vmul.f32 %v4235, 0.044715
        %v4258 = vmul.f32 %v4237, 0.044715
        %v4259 = vmul.f32 %v4241, 0.044715
        %v4260 = vmul.f32 %v4243, 0.044715
        %v4261 = vmul.f32 %v4253, %v4223
        %v4262 = vmul.f32 %v4254, %v4225
        %v4263 = vmul.f32 %v4255, %v4229
        %v4264 = vmul.f32 %v4256, %v4231
        %v4265 = vmul.f32 %v4257, %v4235
        %v4266 = vmul.f32 %v4258, %v4237
        %v4267 = vmul.f32 %v4259, %v4241
        %v4268 = vmul.f32 %v4260, %v4243
        %v4269 = vmul.f32 %v4261, %v4223
        %v4270 = vmul.f32 %v4262, %v4225
        %v4271 = vmul.f32 %v4263, %v4229
        %v4272 = vmul.f32 %v4264, %v4231
        %v4273 = vmul.f32 %v4265, %v4235
        %v4274 = vmul.f32 %v4266, %v4237
        %v4275 = vmul.f32 %v4267, %v4241
        %v4276 = vmul.f32 %v4268, %v4243
        %v4277 = vadd.f32 %v4223, %v4269
        %v4278 = vadd.f32 %v4225, %v4270
        %v4279 = vadd.f32 %v4229, %v4271
        %v4280 = vadd.f32 %v4231, %v4272
        %v4281 = vadd.f32 %v4235, %v4273
        %v4282 = vadd.f32 %v4237, %v4274
        %v4283 = vadd.f32 %v4241, %v4275
        %v4284 = vadd.f32 %v4243, %v4276
        %v4285 = vmul.f32 %v4277, 0.7978846
        %v4286 = vmul.f32 %v4278, 0.7978846
        %v4287 = vmul.f32 %v4279, 0.7978846
        %v4288 = vmul.f32 %v4280, 0.7978846
        %v4289 = vmul.f32 %v4281, 0.7978846
        %v4290 = vmul.f32 %v4282, 0.7978846
        %v4291 = vmul.f32 %v4283, 0.7978846
        %v4292 = vmul.f32 %v4284, 0.7978846
        %v4293 = vtanh.pop %v4285
        %v4294 = vtanh.pop %v4286
        %v4295 = vtanh.pop %v4287
        %v4296 = vtanh.pop %v4288
        %v4297 = vtanh.pop %v4289
        %v4298 = vtanh.pop %v4290
        %v4299 = vtanh.pop %v4291
        %v4300 = vtanh.pop %v4292
        %v4301 = vadd.f32 %v4293, 1.0
        %v4302 = vadd.f32 %v4294, 1.0
        %v4303 = vadd.f32 %v4295, 1.0
        %v4304 = vadd.f32 %v4296, 1.0
        %v4305 = vadd.f32 %v4297, 1.0
        %v4306 = vadd.f32 %v4298, 1.0
        %v4307 = vadd.f32 %v4299, 1.0
        %v4308 = vadd.f32 %v4300, 1.0
        %v4309 = vmul.f32 %v4245, %v4301
        %v4310 = vmul.f32 %v4246, %v4302
        %v4311 = vmul.f32 %v4247, %v4303
        %v4312 = vmul.f32 %v4248, %v4304
        %v4313 = vmul.f32 %v4249, %v4305
        %v4314 = vmul.f32 %v4250, %v4306
        %v4315 = vmul.f32 %v4251, %v4307
        %v4316 = vmul.f32 %v4252, %v4308
        %v4317 = vadd.f32 %v3942, %v4309
        %v4318 = vadd.f32 %v3943, %v4310
        %v4319 = vadd.f32 %v3944, %v4311
        %v4320 = vadd.f32 %v3945, %v4312
        %v4321 = vadd.f32 %v4317, %v4313
        %v4322 = vadd.f32 %v4318, %v4314
        %v4323 = vadd.f32 %v4319, %v4315
        %v4324 = vadd.f32 %v4320, %v4316
        %4325 = vrot.lane.b32.xlu0 %v4321, 127
        %v4326 = vpop.permute.xlu0 %4325
        %4327 = vrot.lane.b32.xlu0 %v4323, 127
        %v4328 = vpop.permute.xlu0 %4327
        %4329 = vrot.lane.b32.xlu0 %v4322, 127
        %v4330 = vpop.permute.xlu0 %4329
        %4331 = vrot.lane.b32.xlu0 %v4324, 127
        %v4332 = vpop.permute.xlu0 %4331
        %v4333 = vsel %vm812, %v4326, %v4330
        %v4334 = vsel %vm812, %v4328, %v4332
        %v4335 = vsel %vm812, %v4330, %v4326
        %v4336 = vsel %vm812, %v4332, %v4328
        %v4337 = vmul.f32 %v4333, %v1147
        %v4338 = vmul.f32 %v4335, %v1151
        %v4339 = vmul.f32 %v4334, %v1147
        %v4340 = vmul.f32 %v4336, %v1151
        %4341 = vrot.lane.b32.xlu0 %v4321, 15
        %v4342 = vpop.permute.xlu0 %4341
        %4343 = vrot.lane.b32.xlu0 %v4323, 15
        %v4344 = vpop.permute.xlu0 %4343
        %4345 = vrot.lane.b32.xlu0 %v4322, 15
        %v4346 = vpop.permute.xlu0 %4345
        %4347 = vrot.lane.b32.xlu0 %v4324, 15
        %v4348 = vpop.permute.xlu0 %4347
        %v4349 = vsel %vm752, %v4342, %v4346
        %v4350 = vsel %vm752, %v4344, %v4348
        %v4351 = vsel %vm752, %v4346, %v4342
        %v4352 = vsel %vm752, %v4348, %v4344
        %v4353 = vmul.f32 %v4351, %v1175
        %v4354 = vmul.f32 %v4349, %v1179
        %v4355 = vmul.f32 %v4352, %v1175
        %v4356 = vmul.f32 %v4350, %v1179
        %v4357 = vadd.f32 %v4337, %v4353
        %v4358 = vadd.f32 %v4338, %v4354
        %v4359 = vadd.f32 %v4339, %v4355
        %v4360 = vadd.f32 %v4340, %v4356
        %v4361 = vadd.f32 %v4321, %v4357
        %v4362 = vadd.f32 %v4322, %v4358
        %v4363 = vadd.f32 %v4323, %v4359
        %v4364 = vadd.f32 %v4324, %v4360
        %4365 = vrot.lane.b32.xlu0 %v4361, 126
        %v4366 = vpop.permute.xlu0 %4365
        %4367 = vrot.lane.b32.xlu0 %v4363, 126
        %v4368 = vpop.permute.xlu0 %4367
        %4369 = vrot.lane.b32.xlu0 %v4362, 126
        %v4370 = vpop.permute.xlu0 %4369
        %4371 = vrot.lane.b32.xlu0 %v4364, 126
        %v4372 = vpop.permute.xlu0 %4371
        %v4373 = vsel %vm1204, %v4366, %v4370
        %v4374 = vsel %vm1204, %v4368, %v4372
        %v4375 = vsel %vm1204, %v4370, %v4366
        %v4376 = vsel %vm1204, %v4372, %v4368
        %v4377 = vmul.f32 %v4373, %v1213
        %v4378 = vmul.f32 %v4375, %v1217
        %v4379 = vmul.f32 %v4374, %v1213
        %v4380 = vmul.f32 %v4376, %v1217
        %4381 = vrot.lane.b32.xlu0 %v4361, 14
        %v4382 = vpop.permute.xlu0 %4381
        %4383 = vrot.lane.b32.xlu0 %v4363, 14
        %v4384 = vpop.permute.xlu0 %4383
        %4385 = vrot.lane.b32.xlu0 %v4362, 14
        %v4386 = vpop.permute.xlu0 %4385
        %4387 = vrot.lane.b32.xlu0 %v4364, 14
        %v4388 = vpop.permute.xlu0 %4387
        %v4389 = vsel %vm1232, %v4382, %v4386
        %v4390 = vsel %vm1232, %v4384, %v4388
        %v4391 = vsel %vm1232, %v4386, %v4382
        %v4392 = vsel %vm1232, %v4388, %v4384
        %v4393 = vmul.f32 %v4391, %v1242
        %v4394 = vmul.f32 %v4389, %v1246
        %v4395 = vmul.f32 %v4392, %v1242
        %v4396 = vmul.f32 %v4390, %v1246
        %v4397 = vadd.f32 %v4377, %v4393
        %v4398 = vadd.f32 %v4378, %v4394
        %v4399 = vadd.f32 %v4379, %v4395
        %v4400 = vadd.f32 %v4380, %v4396
        %v4401 = vadd.f32 %v4361, %v4397
        %v4402 = vadd.f32 %v4362, %v4398
        %v4403 = vadd.f32 %v4363, %v4399
        %v4404 = vadd.f32 %v4364, %v4400
        %4405 = vrot.lane.b32.xlu0 %v4401, 124
        %v4406 = vpop.permute.xlu0 %4405
        %4407 = vrot.lane.b32.xlu0 %v4403, 124
        %v4408 = vpop.permute.xlu0 %4407
        %4409 = vrot.lane.b32.xlu0 %v4402, 124
        %v4410 = vpop.permute.xlu0 %4409
        %4411 = vrot.lane.b32.xlu0 %v4404, 124
        %v4412 = vpop.permute.xlu0 %4411
        %v4413 = vsel %vm1271, %v4406, %v4410
        %v4414 = vsel %vm1271, %v4408, %v4412
        %v4415 = vsel %vm1271, %v4410, %v4406
        %v4416 = vsel %vm1271, %v4412, %v4408
        %v4417 = vmul.f32 %v4413, %v1280
        %v4418 = vmul.f32 %v4415, %v1284
        %v4419 = vmul.f32 %v4414, %v1280
        %v4420 = vmul.f32 %v4416, %v1284
        %4421 = vrot.lane.b32.xlu0 %v4401, 12
        %v4422 = vpop.permute.xlu0 %4421
        %4423 = vrot.lane.b32.xlu0 %v4403, 12
        %v4424 = vpop.permute.xlu0 %4423
        %4425 = vrot.lane.b32.xlu0 %v4402, 12
        %v4426 = vpop.permute.xlu0 %4425
        %4427 = vrot.lane.b32.xlu0 %v4404, 12
        %v4428 = vpop.permute.xlu0 %4427
        %v4429 = vsel %vm1299, %v4422, %v4426
        %v4430 = vsel %vm1299, %v4424, %v4428
        %v4431 = vsel %vm1299, %v4426, %v4422
        %v4432 = vsel %vm1299, %v4428, %v4424
        %v4433 = vmul.f32 %v4431, %v1309
        %v4434 = vmul.f32 %v4429, %v1313
        %v4435 = vmul.f32 %v4432, %v1309
        %v4436 = vmul.f32 %v4430, %v1313
        %v4437 = vadd.f32 %v4417, %v4433
        %v4438 = vadd.f32 %v4418, %v4434
        %v4439 = vadd.f32 %v4419, %v4435
        %v4440 = vadd.f32 %v4420, %v4436
        %v4441 = vadd.f32 %v4401, %v4437
        %v4442 = vadd.f32 %v4402, %v4438
        %v4443 = vadd.f32 %v4403, %v4439
        %v4444 = vadd.f32 %v4404, %v4440
        %4445 = vrot.lane.b32.xlu0 %v4441, 120
        %v4446 = vpop.permute.xlu0 %4445
        %4447 = vrot.lane.b32.xlu0 %v4443, 120
        %v4448 = vpop.permute.xlu0 %4447
        %4449 = vrot.lane.b32.xlu0 %v4442, 120
        %v4450 = vpop.permute.xlu0 %4449
        %4451 = vrot.lane.b32.xlu0 %v4444, 120
        %v4452 = vpop.permute.xlu0 %4451
        %v4453 = vsel %vm1338, %v4446, %v4450
        %v4454 = vsel %vm1338, %v4448, %v4452
        %v4455 = vsel %vm1338, %v4450, %v4446
        %v4456 = vsel %vm1338, %v4452, %v4448
        %v4457 = vmul.f32 %v4453, %v1347
        %v4458 = vmul.f32 %v4455, %v1351
        %v4459 = vmul.f32 %v4454, %v1347
        %v4460 = vmul.f32 %v4456, %v1351
        %4461 = vrot.lane.b32.xlu0 %v4441, 8
        %v4462 = vpop.permute.xlu0 %4461
        %4463 = vrot.lane.b32.xlu0 %v4443, 8
        %v4464 = vpop.permute.xlu0 %4463
        %4465 = vrot.lane.b32.xlu0 %v4442, 8
        %v4466 = vpop.permute.xlu0 %4465
        %4467 = vrot.lane.b32.xlu0 %v4444, 8
        %v4468 = vpop.permute.xlu0 %4467
        %v4469 = vsel %vm1366, %v4462, %v4466
        %v4470 = vsel %vm1366, %v4464, %v4468
        %v4471 = vsel %vm1366, %v4466, %v4462
        %v4472 = vsel %vm1366, %v4468, %v4464
        %v4473 = vmul.f32 %v4471, %v1376
        %v4474 = vmul.f32 %v4469, %v1380
        %v4475 = vmul.f32 %v4472, %v1376
        %v4476 = vmul.f32 %v4470, %v1380
        %v4477 = vadd.f32 %v4457, %v4473
        %v4478 = vadd.f32 %v4458, %v4474
        %v4479 = vadd.f32 %v4459, %v4475
        %v4480 = vadd.f32 %v4460, %v4476
        %v4481 = vadd.f32 %v4441, %v4477
        %v4482 = vadd.f32 %v4442, %v4478
        %v4483 = vadd.f32 %v4443, %v4479
        %v4484 = vadd.f32 %v4444, %v4480
        %v4485 = vmul.f32 %v4481, 0.0625
        %v4486 = vmul.f32 %v4482, 0.0625
        %v4487 = vmul.f32 %v4483, 0.0625
        %v4488 = vmul.f32 %v4484, 0.0625
        %4489 = vrot.lane.b32.xlu0 %v4321, 112
        %v4490 = vpop.permute.xlu0 %4489
        %4491 = vrot.lane.b32.xlu0 %v4323, 112
        %v4492 = vpop.permute.xlu0 %4491
        %4493 = vrot.lane.b32.xlu0 %v4322, 112
        %v4494 = vpop.permute.xlu0 %4493
        %4495 = vrot.lane.b32.xlu0 %v4324, 112
        %v4496 = vpop.permute.xlu0 %4495
        %v4497 = vsel %vm872, %v4490, %v4494
        %v4498 = vsel %vm872, %v4492, %v4496
        %v4499 = vsel %vm872, %v4494, %v4490
        %v4500 = vsel %vm872, %v4496, %v4492
        %v4501 = vmax.f32 %v4321, %v4497
        %v4502 = vmax.f32 %v4322, %v4499
        %v4503 = vmax.f32 %v4323, %v4498
        %v4504 = vmax.f32 %v4324, %v4500
        %4505 = vrot.lane.b32.xlu0 %v4501, 96
        %v4506 = vpop.permute.xlu0 %4505
        %4507 = vrot.lane.b32.xlu0 %v4503, 96
        %v4508 = vpop.permute.xlu0 %4507
        %4509 = vrot.lane.b32.xlu0 %v4502, 96
        %v4510 = vpop.permute.xlu0 %4509
        %4511 = vrot.lane.b32.xlu0 %v4504, 96
        %v4512 = vpop.permute.xlu0 %4511
        %v4513 = vsel %vm1423, %v4506, %v4510
        %v4514 = vsel %vm1423, %v4508, %v4512
        %v4515 = vsel %vm1423, %v4510, %v4506
        %v4516 = vsel %vm1423, %v4512, %v4508
        %v4517 = vmax.f32 %v4501, %v4513
        %v4518 = vmax.f32 %v4502, %v4515
        %v4519 = vmax.f32 %v4503, %v4514
        %v4520 = vmax.f32 %v4504, %v4516
        %4521 = vrot.lane.b32.xlu0 %v4517, 64
        %v4522 = vpop.permute.xlu0 %4521
        %4523 = vrot.lane.b32.xlu0 %v4519, 64
        %v4524 = vpop.permute.xlu0 %4523
        %4525 = vrot.lane.b32.xlu0 %v4518, 64
        %v4526 = vpop.permute.xlu0 %4525
        %4527 = vrot.lane.b32.xlu0 %v4520, 64
        %v4528 = vpop.permute.xlu0 %4527
        %v4529 = vsel %vm1440, %v4522, %v4526
        %v4530 = vsel %vm1440, %v4524, %v4528
        %v4531 = vsel %vm1440, %v4526, %v4522
        %v4532 = vsel %vm1440, %v4528, %v4524
        %v4533 = vmax.f32 %v4517, %v4529
        %v4534 = vmax.f32 %v4518, %v4531
        %v4535 = vmax.f32 %v4519, %v4530
        %v4536 = vmax.f32 %v4520, %v4532
        %v4537 = vmax.f32 %v4533, %v4534
        %v4538 = vmax.f32 %v4535, %v4536
        %s4539 = scalar_lea.vmem %s7, 16
        %v4540 = vld [vmem:[%s4539] sm:$0xff]
        %s4541 = scalar_lea.vmem %s8, 16
        %v4542 = vld [vmem:[%s4541] sm:$0xff]
        %4544 = vset.pattern.permute.xlu0 0
        %4545 = vperm.xlu0 %4544, %v4542
        %v4546 = vpop.permute.xlu0 %4545
        %v4549 = vsel %vm948, %v4540, 0
        %4551 = vmatprep.subr.mxu0 %v4486
        %4552 = vmatpush1.msra.mxu0 %v4485
        %4553 = vmatprep.subr.mxu0 %v4488
        %4554 = vmatpush1.msra.mxu0 %v4487
        %4555 = vmatprep.subr.mxu0 0.0
        %4556 = vmatpush1.msra.mxu0 0.0
        %4557 = vmatprep.subr.mxu0 0.0
        %4558 = vmatpush1.msra.mxu0 0.0
        %4559 = vmatprep.subr.mxu0 0.0
        %4560 = vmatpush1.msra.mxu0 0.0
        %4561 = vmatprep.subr.mxu0 0.0
        %4562 = vmatpush1.msra.mxu0 0.0
        %4563 = vmatprep.subr.mxu0 0.0
        %4564 = vmatpush1.msra.mxu0 0.0
        %4565 = vmatprep.subr.mxu0 0.0
        %4566 = vmatpush1.msra.mxu0 0.0
        %4567 = vmatprep.subr.mxu0 0.0
        %4568 = vmatpush1.msra.mxu0 0.0
        %4569 = vmatprep.subr.mxu0 0.0
        %4570 = vmatpush1.msra.mxu0 0.0
        %4571 = vmatprep.subr.mxu0 0.0
        %4572 = vmatpush1.msra.mxu0 0.0
        %4573 = vmatprep.subr.mxu0 0.0
        %4574 = vmatpush1.msra.mxu0 0.0
        %4575 = vmatprep.subr.mxu0 0.0
        %4576 = vmatpush1.msra.mxu0 0.0
        %4577 = vmatprep.subr.mxu0 0.0
        %4578 = vmatpush1.msra.mxu0 0.0
        %4579 = vmatprep.subr.mxu0 0.0
        %4580 = vmatpush1.msra.mxu0 0.0
        %4581 = vmatprep.subr.mxu0 0.0
        %4582 = vmatpush1.msra.mxu0 0.0
        %4583 = vmatprep.subr.mxu0 0.0
        %4584 = vmatpush1.msra.mxu0 0.0
        %4585 = vmatprep.subr.mxu0 0.0
        %4586 = vmatpush1.msra.mxu0 0.0
        %4587 = vmatprep.subr.mxu0 0.0
        %4588 = vmatpush1.msra.mxu0 0.0
        %4589 = vmatprep.subr.mxu0 0.0
        %4590 = vmatpush1.msra.mxu0 0.0
        %4591 = vmatprep.subr.mxu0 0.0
        %4592 = vmatpush1.msra.mxu0 0.0
        %4593 = vmatprep.subr.mxu0 0.0
        %4594 = vmatpush1.msra.mxu0 0.0
        %4595 = vmatprep.subr.mxu0 0.0
        %4596 = vmatpush1.msra.mxu0 0.0
        %4597 = vmatprep.subr.mxu0 0.0
        %4598 = vmatpush1.msra.mxu0 0.0
        %4599 = vmatprep.subr.mxu0 0.0
        %4600 = vmatpush1.msra.mxu0 0.0
        %4601 = vmatprep.subr.mxu0 0.0
        %4602 = vmatpush1.msra.mxu0 0.0
        %4603 = vmatprep.subr.mxu0 0.0
        %4604 = vmatpush1.msra.mxu0 0.0
        %4605 = vmatprep.subr.mxu0 0.0
        %4606 = vmatpush1.msra.mxu0 0.0
        %4607 = vmatprep.subr.mxu0 0.0
        %4608 = vmatpush1.msra.mxu0 0.0
        %4609 = vmatprep.subr.mxu0 0.0
        %4610 = vmatpush1.msra.mxu0 0.0
        %4611 = vmatprep.subr.mxu0 0.0
        %4612 = vmatpush1.msra.mxu0 0.0
        %4613 = vmatprep.subr.mxu0 0.0
        %4614 = vmatpush1.msra.mxu0 0.0
        %4615 = vmatprep.mubr.f32.mxu0 0.0
        %4616 = vmatmul.mubr.f32.gmra.mrb[0].mxu0 %v4549
        %v4617 = vpop.f32.mrb[0].mxu0
        %v4618 = vadd.f32 %v4546, %v4617
        %v4619 = vpop.f32.mrb[0].mxu0
        %v4620 = vadd.f32 %v4546, %v4619
        %4621 = vdwg.mxu0
        %v4622 = vmul.f32 %v4618, 0.5
        %v4623 = vmul.f32 %v4620, 0.5
        %v4624 = vmul.f32 %v4618, 0.044715
        %v4625 = vmul.f32 %v4620, 0.044715
        %v4626 = vmul.f32 %v4624, %v4618
        %v4627 = vmul.f32 %v4625, %v4620
        %v4628 = vmul.f32 %v4626, %v4618
        %v4629 = vmul.f32 %v4627, %v4620
        %v4630 = vadd.f32 %v4618, %v4628
        %v4631 = vadd.f32 %v4620, %v4629
        %v4632 = vmul.f32 %v4630, 0.7978846
        %v4633 = vmul.f32 %v4631, 0.7978846
        %v4634 = vtanh.pop %v4632
        %v4635 = vtanh.pop %v4633
        %v4636 = vadd.f32 %v4634, 1.0
        %v4637 = vadd.f32 %v4635, 1.0
        %v4638 = vmul.f32 %v4622, %v4636
        %v4639 = vmul.f32 %v4623, %v4637
        %4640 = vmatprep.subr.mxu0 %v4537
        %4641 = vmatpush1.msra.mxu0 %v4537
        %4642 = vmatprep.subr.mxu0 %v4538
        %4643 = vmatpush1.msra.mxu0 %v4538
        %4644 = vmatprep.subr.mxu0 0.0
        %4645 = vmatpush1.msra.mxu0 0.0
        %4646 = vmatprep.subr.mxu0 0.0
        %4647 = vmatpush1.msra.mxu0 0.0
        %4648 = vmatprep.subr.mxu0 0.0
        %4649 = vmatpush1.msra.mxu0 0.0
        %4650 = vmatprep.subr.mxu0 0.0
        %4651 = vmatpush1.msra.mxu0 0.0
        %4652 = vmatprep.subr.mxu0 0.0
        %4653 = vmatpush1.msra.mxu0 0.0
        %4654 = vmatprep.subr.mxu0 0.0
        %4655 = vmatpush1.msra.mxu0 0.0
        %4656 = vmatprep.subr.mxu0 0.0
        %4657 = vmatpush1.msra.mxu0 0.0
        %4658 = vmatprep.subr.mxu0 0.0
        %4659 = vmatpush1.msra.mxu0 0.0
        %4660 = vmatprep.subr.mxu0 0.0
        %4661 = vmatpush1.msra.mxu0 0.0
        %4662 = vmatprep.subr.mxu0 0.0
        %4663 = vmatpush1.msra.mxu0 0.0
        %4664 = vmatprep.subr.mxu0 0.0
        %4665 = vmatpush1.msra.mxu0 0.0
        %4666 = vmatprep.subr.mxu0 0.0
        %4667 = vmatpush1.msra.mxu0 0.0
        %4668 = vmatprep.subr.mxu0 0.0
        %4669 = vmatpush1.msra.mxu0 0.0
        %4670 = vmatprep.subr.mxu0 0.0
        %4671 = vmatpush1.msra.mxu0 0.0
        %4672 = vmatprep.subr.mxu0 0.0
        %4673 = vmatpush1.msra.mxu0 0.0
        %4674 = vmatprep.subr.mxu0 0.0
        %4675 = vmatpush1.msra.mxu0 0.0
        %4676 = vmatprep.subr.mxu0 0.0
        %4677 = vmatpush1.msra.mxu0 0.0
        %4678 = vmatprep.subr.mxu0 0.0
        %4679 = vmatpush1.msra.mxu0 0.0
        %4680 = vmatprep.subr.mxu0 0.0
        %4681 = vmatpush1.msra.mxu0 0.0
        %4682 = vmatprep.subr.mxu0 0.0
        %4683 = vmatpush1.msra.mxu0 0.0
        %4684 = vmatprep.subr.mxu0 0.0
        %4685 = vmatpush1.msra.mxu0 0.0
        %4686 = vmatprep.subr.mxu0 0.0
        %4687 = vmatpush1.msra.mxu0 0.0
        %4688 = vmatprep.subr.mxu0 0.0
        %4689 = vmatpush1.msra.mxu0 0.0
        %4690 = vmatprep.subr.mxu0 0.0
        %4691 = vmatpush1.msra.mxu0 0.0
        %4692 = vmatprep.subr.mxu0 0.0
        %4693 = vmatpush1.msra.mxu0 0.0
        %4694 = vmatprep.subr.mxu0 0.0
        %4695 = vmatpush1.msra.mxu0 0.0
        %4696 = vmatprep.subr.mxu0 0.0
        %4697 = vmatpush1.msra.mxu0 0.0
        %4698 = vmatprep.subr.mxu0 0.0
        %4699 = vmatpush1.msra.mxu0 0.0
        %4700 = vmatprep.subr.mxu0 0.0
        %4701 = vmatpush1.msra.mxu0 0.0
        %4702 = vmatprep.subr.mxu0 0.0
        %4703 = vmatpush1.msra.mxu0 0.0
        %4704 = vmatprep.mubr.f32.mxu0 0.0
        %4705 = vmatmul.mubr.f32.gmra.mrb[0].mxu0 %v4549
        %v4706 = vpop.f32.mrb[0].mxu0
        %v4707 = vadd.f32 %v4546, %v4706
        %v4708 = vpop.f32.mrb[0].mxu0
        %v4709 = vadd.f32 %v4546, %v4708
        %4710 = vdwg.mxu0
        %v4711 = vmul.f32 %v4707, 0.5
        %v4712 = vmul.f32 %v4709, 0.5
        %v4713 = vmul.f32 %v4707, 0.044715
        %v4714 = vmul.f32 %v4709, 0.044715
        %v4715 = vmul.f32 %v4713, %v4707
        %v4716 = vmul.f32 %v4714, %v4709
        %v4717 = vmul.f32 %v4715, %v4707
        %v4718 = vmul.f32 %v4716, %v4709
        %v4719 = vadd.f32 %v4707, %v4717
        %v4720 = vadd.f32 %v4709, %v4718
        %v4721 = vmul.f32 %v4719, 0.7978846
        %v4722 = vmul.f32 %v4720, 0.7978846
        %v4723 = vtanh.pop %v4721
        %v4724 = vtanh.pop %v4722
        %v4725 = vadd.f32 %v4723, 1.0
        %v4726 = vadd.f32 %v4724, 1.0
        %v4727 = vmul.f32 %v4711, %v4725
        %v4728 = vmul.f32 %v4712, %v4726
        %s4729 = scalar_lea.vmem %s9, 32
        %v4730 = vld [vmem:[%s4729] sm:$0xff]
        %v4731 = vld [vmem:[%s4729 + $0x8] sm:$0xff]
        %4732 = vrot.lane.b32.xlu0 %v4638, 16
        %v4733 = vpop.permute.xlu0 %4732
        %4734 = vrot.lane.b32.xlu0 %v4639, 16
        %v4735 = vpop.permute.xlu0 %4734
        %v4736 = vsel %vm722, %v4733, %v4735
        %v4737 = vsel %vm722, %v4735, %v4733
        %v4738 = vmul.f32 %v4737, %v733
        %v4739 = vmul.f32 %v4736, %v737
        %4740 = vrot.lane.b32.xlu0 %v4638, 112
        %v4741 = vpop.permute.xlu0 %4740
        %4742 = vrot.lane.b32.xlu0 %v4639, 112
        %v4743 = vpop.permute.xlu0 %4742
        %v4744 = vsel %vm872, %v4741, %v4743
        %v4745 = vsel %vm872, %v4743, %v4741
        %v4746 = vmul.f32 %v4744, %v883
        %v4747 = vmul.f32 %v4745, %v887
        %s4748 = scalar_lea.vmem %s11, 32
        %v4749 = vld [vmem:[%s4748] sm:$0xff]
        %v4750 = vld [vmem:[%s4748 + $0x8] sm:$0xff]
        %4752 = vset.pattern.permute.xlu0 0
        %4753 = vperm.xlu0 %4752, %v4749
        %v4754 = vpop.permute.xlu0 %4753
        %4757 = vset.pattern.permute.xlu0 0
        %4758 = vperm.xlu0 %4757, %v4750
        %v4759 = vpop.permute.xlu0 %4758
        %v4762 = vsel %vm1669, %v4730, 0
        %v4765 = vsel %vm1669, %v4731, 0
        %4767 = vmatprep.subr.mxu0 %v4739
        %4768 = vmatpush1.msra.mxu0 %v4738
        %4769 = vmatprep.subr.mxu0 %v4639
        %4770 = vmatpush1.msra.mxu0 %v4638
        %4771 = vmatprep.subr.mxu0 %v4747
        %4772 = vmatpush1.msra.mxu0 %v4746
        %4773 = vmatprep.subr.mxu0 0.0
        %4774 = vmatpush1.msra.mxu0 0.0
        %4775 = vmatprep.subr.mxu0 0.0
        %4776 = vmatpush1.msra.mxu0 0.0
        %4777 = vmatprep.subr.mxu0 0.0
        %4778 = vmatpush1.msra.mxu0 0.0
        %4779 = vmatprep.subr.mxu0 0.0
        %4780 = vmatpush1.msra.mxu0 0.0
        %4781 = vmatprep.subr.mxu0 0.0
        %4782 = vmatpush1.msra.mxu0 0.0
        %4783 = vmatprep.subr.mxu0 0.0
        %4784 = vmatpush1.msra.mxu0 0.0
        %4785 = vmatprep.subr.mxu0 0.0
        %4786 = vmatpush1.msra.mxu0 0.0
        %4787 = vmatprep.subr.mxu0 0.0
        %4788 = vmatpush1.msra.mxu0 0.0
        %4789 = vmatprep.subr.mxu0 0.0
        %4790 = vmatpush1.msra.mxu0 0.0
        %4791 = vmatprep.subr.mxu0 0.0
        %4792 = vmatpush1.msra.mxu0 0.0
        %4793 = vmatprep.subr.mxu0 0.0
        %4794 = vmatpush1.msra.mxu0 0.0
        %4795 = vmatprep.subr.mxu0 0.0
        %4796 = vmatpush1.msra.mxu0 0.0
        %4797 = vmatprep.subr.mxu0 0.0
        %4798 = vmatpush1.msra.mxu0 0.0
        %4799 = vmatprep.subr.mxu0 0.0
        %4800 = vmatpush1.msra.mxu0 0.0
        %4801 = vmatprep.subr.mxu0 0.0
        %4802 = vmatpush1.msra.mxu0 0.0
        %4803 = vmatprep.subr.mxu0 0.0
        %4804 = vmatpush1.msra.mxu0 0.0
        %4805 = vmatprep.subr.mxu0 0.0
        %4806 = vmatpush1.msra.mxu0 0.0
        %4807 = vmatprep.subr.mxu0 0.0
        %4808 = vmatpush1.msra.mxu0 0.0
        %4809 = vmatprep.subr.mxu0 0.0
        %4810 = vmatpush1.msra.mxu0 0.0
        %4811 = vmatprep.subr.mxu0 0.0
        %4812 = vmatpush1.msra.mxu0 0.0
        %4813 = vmatprep.subr.mxu0 0.0
        %4814 = vmatpush1.msra.mxu0 0.0
        %4815 = vmatprep.subr.mxu0 0.0
        %4816 = vmatpush1.msra.mxu0 0.0
        %4817 = vmatprep.subr.mxu0 0.0
        %4818 = vmatpush1.msra.mxu0 0.0
        %4819 = vmatprep.subr.mxu0 0.0
        %4820 = vmatpush1.msra.mxu0 0.0
        %4821 = vmatprep.subr.mxu0 0.0
        %4822 = vmatpush1.msra.mxu0 0.0
        %4823 = vmatprep.subr.mxu0 0.0
        %4824 = vmatpush1.msra.mxu0 0.0
        %4825 = vmatprep.subr.mxu0 0.0
        %4826 = vmatpush1.msra.mxu0 0.0
        %4827 = vmatprep.subr.mxu0 0.0
        %4828 = vmatpush1.msra.mxu0 0.0
        %4829 = vmatprep.subr.mxu0 0.0
        %4830 = vmatpush1.msra.mxu0 0.0
        %4831 = vmatprep.mubr.f32.mxu0 0.0
        %4832 = vmatmul.mubr.f32.gmra.mrb[0].mxu0 %v4762
        %v4833 = vpop.f32.mrb[0].mxu0
        %v4834 = vadd.f32 %v4754, %v4833
        %v4835 = vpop.f32.mrb[0].mxu0
        %v4836 = vadd.f32 %v4754, %v4835
        %4837 = vmatprep.mubr.f32.mxu0 0.0
        %4838 = vmatmul.mubr.f32.gmra.mrb[0].mxu0 %v4765
        %v4839 = vpop.f32.mrb[0].mxu0
        %v4840 = vadd.f32 %v4759, %v4839
        %v4841 = vpop.f32.mrb[0].mxu0
        %v4842 = vadd.f32 %v4759, %v4841
        %4843 = vdwg.mxu0
        %s4844 = scalar_lea.vmem %s10, 32
        %v4845 = vld [vmem:[%s4844] sm:$0xff]
        %v4846 = vld [vmem:[%s4844 + $0x8] sm:$0xff]
        %4847 = vrot.lane.b32.xlu0 %v4727, 1
        %v4848 = vpop.permute.xlu0 %4847
        %4849 = vrot.lane.b32.xlu0 %v4728, 1
        %v4850 = vpop.permute.xlu0 %4849
        %v4851 = vsel %vm782, %v4848, %v4850
        %v4852 = vsel %vm782, %v4850, %v4848
        %v4853 = vmul.f32 %v4852, %v793
        %v4854 = vmul.f32 %v4851, %v797
        %4855 = vrot.lane.b32.xlu0 %v4727, 127
        %v4856 = vpop.permute.xlu0 %4855
        %4857 = vrot.lane.b32.xlu0 %v4728, 127
        %v4858 = vpop.permute.xlu0 %4857
        %v4859 = vsel %vm812, %v4856, %v4858
        %v4860 = vsel %vm812, %v4858, %v4856
        %v4861 = vmul.f32 %v4859, %v823
        %v4862 = vmul.f32 %v4860, %v827
        %v4864 = vsel %vm1669, %v4845, 0
        %v4867 = vsel %vm1669, %v4846, 0
        %4869 = vmatprep.subr.mxu0 %v4854
        %4870 = vmatpush1.msra.mxu0 %v4853
        %4871 = vmatprep.subr.mxu0 %v4728
        %4872 = vmatpush1.msra.mxu0 %v4727
        %4873 = vmatprep.subr.mxu0 %v4862
        %4874 = vmatpush1.msra.mxu0 %v4861
        %4875 = vmatprep.subr.mxu0 0.0
        %4876 = vmatpush1.msra.mxu0 0.0
        %4877 = vmatprep.subr.mxu0 0.0
        %4878 = vmatpush1.msra.mxu0 0.0
        %4879 = vmatprep.subr.mxu0 0.0
        %4880 = vmatpush1.msra.mxu0 0.0
        %4881 = vmatprep.subr.mxu0 0.0
        %4882 = vmatpush1.msra.mxu0 0.0
        %4883 = vmatprep.subr.mxu0 0.0
        %4884 = vmatpush1.msra.mxu0 0.0
        %4885 = vmatprep.subr.mxu0 0.0
        %4886 = vmatpush1.msra.mxu0 0.0
        %4887 = vmatprep.subr.mxu0 0.0
        %4888 = vmatpush1.msra.mxu0 0.0
        %4889 = vmatprep.subr.mxu0 0.0
        %4890 = vmatpush1.msra.mxu0 0.0
        %4891 = vmatprep.subr.mxu0 0.0
        %4892 = vmatpush1.msra.mxu0 0.0
        %4893 = vmatprep.subr.mxu0 0.0
        %4894 = vmatpush1.msra.mxu0 0.0
        %4895 = vmatprep.subr.mxu0 0.0
        %4896 = vmatpush1.msra.mxu0 0.0
        %4897 = vmatprep.subr.mxu0 0.0
        %4898 = vmatpush1.msra.mxu0 0.0
        %4899 = vmatprep.subr.mxu0 0.0
        %4900 = vmatpush1.msra.mxu0 0.0
        %4901 = vmatprep.subr.mxu0 0.0
        %4902 = vmatpush1.msra.mxu0 0.0
        %4903 = vmatprep.subr.mxu0 0.0
        %4904 = vmatpush1.msra.mxu0 0.0
        %4905 = vmatprep.subr.mxu0 0.0
        %4906 = vmatpush1.msra.mxu0 0.0
        %4907 = vmatprep.subr.mxu0 0.0
        %4908 = vmatpush1.msra.mxu0 0.0
        %4909 = vmatprep.subr.mxu0 0.0
        %4910 = vmatpush1.msra.mxu0 0.0
        %4911 = vmatprep.subr.mxu0 0.0
        %4912 = vmatpush1.msra.mxu0 0.0
        %4913 = vmatprep.subr.mxu0 0.0
        %4914 = vmatpush1.msra.mxu0 0.0
        %4915 = vmatprep.subr.mxu0 0.0
        %4916 = vmatpush1.msra.mxu0 0.0
        %4917 = vmatprep.subr.mxu0 0.0
        %4918 = vmatpush1.msra.mxu0 0.0
        %4919 = vmatprep.subr.mxu0 0.0
        %4920 = vmatpush1.msra.mxu0 0.0
        %4921 = vmatprep.subr.mxu0 0.0
        %4922 = vmatpush1.msra.mxu0 0.0
        %4923 = vmatprep.subr.mxu0 0.0
        %4924 = vmatpush1.msra.mxu0 0.0
        %4925 = vmatprep.subr.mxu0 0.0
        %4926 = vmatpush1.msra.mxu0 0.0
        %4927 = vmatprep.subr.mxu0 0.0
        %4928 = vmatpush1.msra.mxu0 0.0
        %4929 = vmatprep.subr.mxu0 0.0
        %4930 = vmatpush1.msra.mxu0 0.0
        %4931 = vmatprep.subr.mxu0 0.0
        %4932 = vmatpush1.msra.mxu0 0.0
        %4933 = vmatprep.mubr.f32.mxu0 0.0
        %4934 = vmatmul.mubr.f32.gmra.mrb[0].mxu0 %v4864
        %v4935 = vpop.f32.mrb[0].mxu0
        %v4936 = vadd.f32 %v4754, %v4935
        %v4937 = vpop.f32.mrb[0].mxu0
        %v4938 = vadd.f32 %v4754, %v4937
        %4939 = vmatprep.mubr.f32.mxu0 0.0
        %4940 = vmatmul.mubr.f32.gmra.mrb[0].mxu0 %v4867
        %v4941 = vpop.f32.mrb[0].mxu0
        %v4942 = vadd.f32 %v4759, %v4941
        %v4943 = vpop.f32.mrb[0].mxu0
        %v4944 = vadd.f32 %v4759, %v4943
        %4945 = vdwg.mxu0
        %s4946 = sld [smem:[#allocation2 + $0x100]]
        %s4947 = sld [smem:[#allocation2 + $0x101]]
        %v4948 = vstv %s4946
        %v4949 = vmul.f32 %v4485, %v4948
        %v4950 = vmul.f32 %v4486, %v4948
        %v4951 = vmul.f32 %v4487, %v4948
        %v4952 = vmul.f32 %v4488, %v4948
        %s4953 = ssub.f32 1.0, %s4946
        %v4954 = vstv %s4953
        %v4955 = vmul.f32 %v4834, %v4954
        %v4956 = vmul.f32 %v4836, %v4954
        %v4957 = vmul.f32 %v4840, %v4954
        %v4958 = vmul.f32 %v4842, %v4954
        %v4959 = vadd.f32 %v4949, %v4955
        %v4960 = vadd.f32 %v4950, %v4956
        %v4961 = vadd.f32 %v4951, %v4957
        %v4962 = vadd.f32 %v4952, %v4958
        %v4963 = vstv %s4947
        %v4964 = vmul.f32 %v4537, %v4963
        %v4965 = vmul.f32 %v4538, %v4963
        %s4966 = ssub.f32 1.0, %s4947
        %v4967 = vstv %s4966
        %v4968 = vmul.f32 %v4936, %v4967
        %v4969 = vmul.f32 %v4938, %v4967
        %v4970 = vmul.f32 %v4942, %v4967
        %v4971 = vmul.f32 %v4944, %v4967
        %v4972 = vadd.f32 %v4964, %v4968
        %v4973 = vadd.f32 %v4964, %v4969
        %v4974 = vadd.f32 %v4965, %v4970
        %v4975 = vadd.f32 %v4965, %v4971
        %s4976 = scalar_lea.vmem %s12, 32
        %v4977 = vld [vmem:[%s4976] sm:$0xff]
        %v4978 = vld [vmem:[%s4976 + $0x8] sm:$0xff]
        %4979 = vrot.lane.b32.xlu0 %v4959, 16
        %v4980 = vpop.permute.xlu0 %4979
        %4981 = vrot.lane.b32.xlu0 %v4961, 16
        %v4982 = vpop.permute.xlu0 %4981
        %4983 = vrot.lane.b32.xlu0 %v4960, 16
        %v4984 = vpop.permute.xlu0 %4983
        %4985 = vrot.lane.b32.xlu0 %v4962, 16
        %v4986 = vpop.permute.xlu0 %4985
        %v4987 = vsel %vm722, %v4980, %v4984
        %v4988 = vsel %vm722, %v4982, %v4986
        %v4989 = vsel %vm722, %v4984, %v4980
        %v4990 = vsel %vm722, %v4986, %v4982
        %v4991 = vmul.f32 %v4989, %v733
        %v4992 = vmul.f32 %v4987, %v737
        %v4993 = vmul.f32 %v4990, %v733
        %v4994 = vmul.f32 %v4988, %v737
        %4995 = vrot.lane.b32.xlu0 %v4959, 112
        %v4996 = vpop.permute.xlu0 %4995
        %4997 = vrot.lane.b32.xlu0 %v4961, 112
        %v4998 = vpop.permute.xlu0 %4997
        %4999 = vrot.lane.b32.xlu0 %v4960, 112
        %v5000 = vpop.permute.xlu0 %4999
        %5001 = vrot.lane.b32.xlu0 %v4962, 112
        %v5002 = vpop.permute.xlu0 %5001
        %v5003 = vsel %vm872, %v4996, %v5000
        %v5004 = vsel %vm872, %v4998, %v5002
        %v5005 = vsel %vm872, %v5000, %v4996
        %v5006 = vsel %vm872, %v5002, %v4998
        %v5007 = vmul.f32 %v5003, %v883
        %v5008 = vmul.f32 %v5005, %v887
        %v5009 = vmul.f32 %v5004, %v883
        %v5010 = vmul.f32 %v5006, %v887
        %s5011 = scalar_lea.vmem %s14, 32
        %v5012 = vld [vmem:[%s5011] sm:$0xff]
        %v5013 = vld [vmem:[%s5011 + $0x8] sm:$0xff]
        %5015 = vset.pattern.permute.xlu0 0
        %5016 = vperm.xlu0 %5015, %v5012
        %v5017 = vpop.permute.xlu0 %5016
        %5020 = vset.pattern.permute.xlu0 0
        %5021 = vperm.xlu0 %5020, %v5013
        %v5022 = vpop.permute.xlu0 %5021
        %v5025 = vsel %vm1930, %v4977, 0
        %v5028 = vsel %vm1930, %v4978, 0
        %5030 = vmatprep.subr.mxu0 %v4992
        %5031 = vmatpush1.msra.mxu0 %v4991
        %5032 = vmatprep.subr.mxu0 %v4994
        %5033 = vmatpush1.msra.mxu0 %v4993
        %5034 = vmatprep.subr.mxu0 %v4960
        %5035 = vmatpush1.msra.mxu0 %v4959
        %5036 = vmatprep.subr.mxu0 %v4962
        %5037 = vmatpush1.msra.mxu0 %v4961
        %5038 = vmatprep.subr.mxu0 %v5008
        %5039 = vmatpush1.msra.mxu0 %v5007
        %5040 = vmatprep.subr.mxu0 %v5010
        %5041 = vmatpush1.msra.mxu0 %v5009
        %5042 = vmatprep.subr.mxu0 0.0
        %5043 = vmatpush1.msra.mxu0 0.0
        %5044 = vmatprep.subr.mxu0 0.0
        %5045 = vmatpush1.msra.mxu0 0.0
        %5046 = vmatprep.subr.mxu0 0.0
        %5047 = vmatpush1.msra.mxu0 0.0
        %5048 = vmatprep.subr.mxu0 0.0
        %5049 = vmatpush1.msra.mxu0 0.0
        %5050 = vmatprep.subr.mxu0 0.0
        %5051 = vmatpush1.msra.mxu0 0.0
        %5052 = vmatprep.subr.mxu0 0.0
        %5053 = vmatpush1.msra.mxu0 0.0
        %5054 = vmatprep.subr.mxu0 0.0
        %5055 = vmatpush1.msra.mxu0 0.0
        %5056 = vmatprep.subr.mxu0 0.0
        %5057 = vmatpush1.msra.mxu0 0.0
        %5058 = vmatprep.subr.mxu0 0.0
        %5059 = vmatpush1.msra.mxu0 0.0
        %5060 = vmatprep.subr.mxu0 0.0
        %5061 = vmatpush1.msra.mxu0 0.0
        %5062 = vmatprep.subr.mxu0 0.0
        %5063 = vmatpush1.msra.mxu0 0.0
        %5064 = vmatprep.subr.mxu0 0.0
        %5065 = vmatpush1.msra.mxu0 0.0
        %5066 = vmatprep.subr.mxu0 0.0
        %5067 = vmatpush1.msra.mxu0 0.0
        %5068 = vmatprep.subr.mxu0 0.0
        %5069 = vmatpush1.msra.mxu0 0.0
        %5070 = vmatprep.subr.mxu0 0.0
        %5071 = vmatpush1.msra.mxu0 0.0
        %5072 = vmatprep.subr.mxu0 0.0
        %5073 = vmatpush1.msra.mxu0 0.0
        %5074 = vmatprep.subr.mxu0 0.0
        %5075 = vmatpush1.msra.mxu0 0.0
        %5076 = vmatprep.subr.mxu0 0.0
        %5077 = vmatpush1.msra.mxu0 0.0
        %5078 = vmatprep.subr.mxu0 0.0
        %5079 = vmatpush1.msra.mxu0 0.0
        %5080 = vmatprep.subr.mxu0 0.0
        %5081 = vmatpush1.msra.mxu0 0.0
        %5082 = vmatprep.subr.mxu0 0.0
        %5083 = vmatpush1.msra.mxu0 0.0
        %5084 = vmatprep.subr.mxu0 0.0
        %5085 = vmatpush1.msra.mxu0 0.0
        %5086 = vmatprep.subr.mxu0 0.0
        %5087 = vmatpush1.msra.mxu0 0.0
        %5088 = vmatprep.subr.mxu0 0.0
        %5089 = vmatpush1.msra.mxu0 0.0
        %5090 = vmatprep.subr.mxu0 0.0
        %5091 = vmatpush1.msra.mxu0 0.0
        %5092 = vmatprep.subr.mxu0 0.0
        %5093 = vmatpush1.msra.mxu0 0.0
        %5094 = vmatprep.mubr.f32.mxu0 0.0
        %5095 = vmatmul.mubr.f32.gmra.mrb[0].mxu0 %v5025
        %v5096 = vpop.f32.mrb[0].mxu0
        %v5097 = vadd.f32 %v5017, %v5096
        %v5098 = vpop.f32.mrb[0].mxu0
        %v5099 = vadd.f32 %v5017, %v5098
        %5100 = vmatprep.mubr.f32.mxu0 0.0
        %5101 = vmatmul.mubr.f32.gmra.mrb[0].mxu0 %v5028
        %v5102 = vpop.f32.mrb[0].mxu0
        %v5103 = vadd.f32 %v5022, %v5102
        %v5104 = vpop.f32.mrb[0].mxu0
        %v5105 = vadd.f32 %v5022, %v5104
        %5106 = vdwg.mxu0
        %s5107 = scalar_lea.vmem %s13, 32
        %v5108 = vld [vmem:[%s5107] sm:$0xff]
        %v5109 = vld [vmem:[%s5107 + $0x8] sm:$0xff]
        %5110 = vrot.lane.b32.xlu0 %v4972, 1
        %v5111 = vpop.permute.xlu0 %5110
        %5112 = vrot.lane.b32.xlu0 %v4974, 1
        %v5113 = vpop.permute.xlu0 %5112
        %5114 = vrot.lane.b32.xlu0 %v4973, 1
        %v5115 = vpop.permute.xlu0 %5114
        %5116 = vrot.lane.b32.xlu0 %v4975, 1
        %v5117 = vpop.permute.xlu0 %5116
        %v5118 = vsel %vm782, %v5111, %v5115
        %v5119 = vsel %vm782, %v5113, %v5117
        %v5120 = vsel %vm782, %v5115, %v5111
        %v5121 = vsel %vm782, %v5117, %v5113
        %v5122 = vmul.f32 %v5120, %v793
        %v5123 = vmul.f32 %v5118, %v797
        %v5124 = vmul.f32 %v5121, %v793
        %v5125 = vmul.f32 %v5119, %v797
        %5126 = vrot.lane.b32.xlu0 %v4972, 127
        %v5127 = vpop.permute.xlu0 %5126
        %5128 = vrot.lane.b32.xlu0 %v4974, 127
        %v5129 = vpop.permute.xlu0 %5128
        %5130 = vrot.lane.b32.xlu0 %v4973, 127
        %v5131 = vpop.permute.xlu0 %5130
        %5132 = vrot.lane.b32.xlu0 %v4975, 127
        %v5133 = vpop.permute.xlu0 %5132
        %v5134 = vsel %vm812, %v5127, %v5131
        %v5135 = vsel %vm812, %v5129, %v5133
        %v5136 = vsel %vm812, %v5131, %v5127
        %v5137 = vsel %vm812, %v5133, %v5129
        %v5138 = vmul.f32 %v5134, %v823
        %v5139 = vmul.f32 %v5136, %v827
        %v5140 = vmul.f32 %v5135, %v823
        %v5141 = vmul.f32 %v5137, %v827
        %v5143 = vsel %vm1930, %v5108, 0
        %v5146 = vsel %vm1930, %v5109, 0
        %5148 = vmatprep.subr.mxu0 %v5123
        %5149 = vmatpush1.msra.mxu0 %v5122
        %5150 = vmatprep.subr.mxu0 %v5125
        %5151 = vmatpush1.msra.mxu0 %v5124
        %5152 = vmatprep.subr.mxu0 %v4973
        %5153 = vmatpush1.msra.mxu0 %v4972
        %5154 = vmatprep.subr.mxu0 %v4975
        %5155 = vmatpush1.msra.mxu0 %v4974
        %5156 = vmatprep.subr.mxu0 %v5139
        %5157 = vmatpush1.msra.mxu0 %v5138
        %5158 = vmatprep.subr.mxu0 %v5141
        %5159 = vmatpush1.msra.mxu0 %v5140
        %5160 = vmatprep.subr.mxu0 0.0
        %5161 = vmatpush1.msra.mxu0 0.0
        %5162 = vmatprep.subr.mxu0 0.0
        %5163 = vmatpush1.msra.mxu0 0.0
        %5164 = vmatprep.subr.mxu0 0.0
        %5165 = vmatpush1.msra.mxu0 0.0
        %5166 = vmatprep.subr.mxu0 0.0
        %5167 = vmatpush1.msra.mxu0 0.0
        %5168 = vmatprep.subr.mxu0 0.0
        %5169 = vmatpush1.msra.mxu0 0.0
        %5170 = vmatprep.subr.mxu0 0.0
        %5171 = vmatpush1.msra.mxu0 0.0
        %5172 = vmatprep.subr.mxu0 0.0
        %5173 = vmatpush1.msra.mxu0 0.0
        %5174 = vmatprep.subr.mxu0 0.0
        %5175 = vmatpush1.msra.mxu0 0.0
        %5176 = vmatprep.subr.mxu0 0.0
        %5177 = vmatpush1.msra.mxu0 0.0
        %5178 = vmatprep.subr.mxu0 0.0
        %5179 = vmatpush1.msra.mxu0 0.0
        %5180 = vmatprep.subr.mxu0 0.0
        %5181 = vmatpush1.msra.mxu0 0.0
        %5182 = vmatprep.subr.mxu0 0.0
        %5183 = vmatpush1.msra.mxu0 0.0
        %5184 = vmatprep.subr.mxu0 0.0
        %5185 = vmatpush1.msra.mxu0 0.0
        %5186 = vmatprep.subr.mxu0 0.0
        %5187 = vmatpush1.msra.mxu0 0.0
        %5188 = vmatprep.subr.mxu0 0.0
        %5189 = vmatpush1.msra.mxu0 0.0
        %5190 = vmatprep.subr.mxu0 0.0
        %5191 = vmatpush1.msra.mxu0 0.0
        %5192 = vmatprep.subr.mxu0 0.0
        %5193 = vmatpush1.msra.mxu0 0.0
        %5194 = vmatprep.subr.mxu0 0.0
        %5195 = vmatpush1.msra.mxu0 0.0
        %5196 = vmatprep.subr.mxu0 0.0
        %5197 = vmatpush1.msra.mxu0 0.0
        %5198 = vmatprep.subr.mxu0 0.0
        %5199 = vmatpush1.msra.mxu0 0.0
        %5200 = vmatprep.subr.mxu0 0.0
        %5201 = vmatpush1.msra.mxu0 0.0
        %5202 = vmatprep.subr.mxu0 0.0
        %5203 = vmatpush1.msra.mxu0 0.0
        %5204 = vmatprep.subr.mxu0 0.0
        %5205 = vmatpush1.msra.mxu0 0.0
        %5206 = vmatprep.subr.mxu0 0.0
        %5207 = vmatpush1.msra.mxu0 0.0
        %5208 = vmatprep.subr.mxu0 0.0
        %5209 = vmatpush1.msra.mxu0 0.0
        %5210 = vmatprep.subr.mxu0 0.0
        %5211 = vmatpush1.msra.mxu0 0.0
        %5212 = vmatprep.mubr.f32.mxu0 0.0
        %5213 = vmatmul.mubr.f32.gmra.mrb[0].mxu0 %v5143
        %v5214 = vpop.f32.mrb[0].mxu0
        %v5215 = vadd.f32 %v5017, %v5214
        %v5216 = vpop.f32.mrb[0].mxu0
        %v5217 = vadd.f32 %v5017, %v5216
        %5218 = vmatprep.mubr.f32.mxu0 0.0
        %5219 = vmatmul.mubr.f32.gmra.mrb[0].mxu0 %v5146
        %v5220 = vpop.f32.mrb[0].mxu0
        %v5221 = vadd.f32 %v5022, %v5220
        %v5222 = vpop.f32.mrb[0].mxu0
        %v5223 = vadd.f32 %v5022, %v5222
        %5224 = vdwg.mxu0
        %v5225 = vmul.f32 %v5097, %v5215
        %v5226 = vmul.f32 %v5099, %v5217
        %v5227 = vmul.f32 %v5103, %v5221
        %v5228 = vmul.f32 %v5105, %v5223
        %v5229 = vsub.f32 0.0, %v5225
        %v5230 = vsub.f32 0.0, %v5226
        %v5231 = vsub.f32 0.0, %v5227
        %v5232 = vsub.f32 0.0, %v5228
        %v5233 = vmul.f32 %v5229, 1.442695
        %v5234 = vpow.pop %v5233
        %v5235 = vmul.f32 %v5230, 1.442695
        %v5236 = vpow.pop %v5235
        %v5237 = vmul.f32 %v5231, 1.442695
        %v5238 = vpow.pop %v5237
        %v5239 = vmul.f32 %v5232, 1.442695
        %v5240 = vpow.pop %v5239
        %v5241 = vadd.f32 %v5234, 1.0
        %v5242 = vadd.f32 %v5236, 1.0
        %v5243 = vadd.f32 %v5238, 1.0
        %v5244 = vadd.f32 %v5240, 1.0
        %v5245 = vrcp.pop %v5241
        %v5246 = vmul.f32 1.0, %v5245
        %v5247 = vrcp.pop %v5242
        %v5248 = vmul.f32 1.0, %v5247
        %v5249 = vrcp.pop %v5243
        %v5250 = vmul.f32 1.0, %v5249
        %v5251 = vrcp.pop %v5244
        %v5252 = vmul.f32 1.0, %v5251
        %v5253 = vmul.f32 %v4321, %v5246
        %v5254 = vmul.f32 %v4322, %v5248
        %v5255 = vmul.f32 %v4323, %v5250
        %v5256 = vmul.f32 %v4324, %v5252
        %v5257 = vadd.f32 %v4321, %v5253
        %v5258 = vadd.f32 %v4322, %v5254
        %v5259 = vadd.f32 %v4323, %v5255
        %v5260 = vadd.f32 %v4324, %v5256
        %s5261 = scalar_lea.vmem %s5, 64
        %v5262 = vld [vmem:[%s5261] sm:$0xff]
        %v5263 = vld [vmem:[%s5261 + $0x8] sm:$0xff]
        %v5264 = vld [vmem:[%s5261 + $0x10] sm:$0xff]
        %v5265 = vld [vmem:[%s5261 + $0x18] sm:$0xff]
        %5266 = vrot.lane.b32.xlu0 %v5257, 17
        %v5267 = vpop.permute.xlu0 %5266
        %5268 = vrot.lane.b32.xlu0 %v5259, 17
        %v5269 = vpop.permute.xlu0 %5268
        %5270 = vrot.lane.b32.xlu0 %v5258, 17
        %v5271 = vpop.permute.xlu0 %5270
        %5272 = vrot.lane.b32.xlu0 %v5260, 17
        %v5273 = vpop.permute.xlu0 %5272
        %v5274 = vsel %vm693, %v5267, %v5271
        %v5275 = vsel %vm693, %v5269, %v5273
        %v5276 = vsel %vm693, %v5271, %v5267
        %v5277 = vsel %vm693, %v5273, %v5269
        %v5278 = vmul.f32 %v5276, %v703
        %v5279 = vmul.f32 %v5274, %v707
        %v5280 = vmul.f32 %v5277, %v703
        %v5281 = vmul.f32 %v5275, %v707
        %5282 = vrot.lane.b32.xlu0 %v5257, 16
        %v5283 = vpop.permute.xlu0 %5282
        %5284 = vrot.lane.b32.xlu0 %v5259, 16
        %v5285 = vpop.permute.xlu0 %5284
        %5286 = vrot.lane.b32.xlu0 %v5258, 16
        %v5287 = vpop.permute.xlu0 %5286
        %5288 = vrot.lane.b32.xlu0 %v5260, 16
        %v5289 = vpop.permute.xlu0 %5288
        %v5290 = vsel %vm722, %v5283, %v5287
        %v5291 = vsel %vm722, %v5285, %v5289
        %v5292 = vsel %vm722, %v5287, %v5283
        %v5293 = vsel %vm722, %v5289, %v5285
        %v5294 = vmul.f32 %v5292, %v733
        %v5295 = vmul.f32 %v5290, %v737
        %v5296 = vmul.f32 %v5293, %v733
        %v5297 = vmul.f32 %v5291, %v737
        %5298 = vrot.lane.b32.xlu0 %v5257, 15
        %v5299 = vpop.permute.xlu0 %5298
        %5300 = vrot.lane.b32.xlu0 %v5259, 15
        %v5301 = vpop.permute.xlu0 %5300
        %5302 = vrot.lane.b32.xlu0 %v5258, 15
        %v5303 = vpop.permute.xlu0 %5302
        %5304 = vrot.lane.b32.xlu0 %v5260, 15
        %v5305 = vpop.permute.xlu0 %5304
        %v5306 = vsel %vm752, %v5299, %v5303
        %v5307 = vsel %vm752, %v5301, %v5305
        %v5308 = vsel %vm752, %v5303, %v5299
        %v5309 = vsel %vm752, %v5305, %v5301
        %v5310 = vmul.f32 %v5308, %v763
        %v5311 = vmul.f32 %v5306, %v767
        %v5312 = vmul.f32 %v5309, %v763
        %v5313 = vmul.f32 %v5307, %v767
        %5314 = vrot.lane.b32.xlu0 %v5257, 1
        %v5315 = vpop.permute.xlu0 %5314
        %5316 = vrot.lane.b32.xlu0 %v5259, 1
        %v5317 = vpop.permute.xlu0 %5316
        %5318 = vrot.lane.b32.xlu0 %v5258, 1
        %v5319 = vpop.permute.xlu0 %5318
        %5320 = vrot.lane.b32.xlu0 %v5260, 1
        %v5321 = vpop.permute.xlu0 %5320
        %v5322 = vsel %vm782, %v5315, %v5319
        %v5323 = vsel %vm782, %v5317, %v5321
        %v5324 = vsel %vm782, %v5319, %v5315
        %v5325 = vsel %vm782, %v5321, %v5317
        %v5326 = vmul.f32 %v5324, %v793
        %v5327 = vmul.f32 %v5322, %v797
        %v5328 = vmul.f32 %v5325, %v793
        %v5329 = vmul.f32 %v5323, %v797
        %5330 = vrot.lane.b32.xlu0 %v5257, 127
        %v5331 = vpop.permute.xlu0 %5330
        %5332 = vrot.lane.b32.xlu0 %v5259, 127
        %v5333 = vpop.permute.xlu0 %5332
        %5334 = vrot.lane.b32.xlu0 %v5258, 127
        %v5335 = vpop.permute.xlu0 %5334
        %5336 = vrot.lane.b32.xlu0 %v5260, 127
        %v5337 = vpop.permute.xlu0 %5336
        %v5338 = vsel %vm812, %v5331, %v5335
        %v5339 = vsel %vm812, %v5333, %v5337
        %v5340 = vsel %vm812, %v5335, %v5331
        %v5341 = vsel %vm812, %v5337, %v5333
        %v5342 = vmul.f32 %v5338, %v823
        %v5343 = vmul.f32 %v5340, %v827
        %v5344 = vmul.f32 %v5339, %v823
        %v5345 = vmul.f32 %v5341, %v827
        %5346 = vrot.lane.b32.xlu0 %v5257, 113
        %v5347 = vpop.permute.xlu0 %5346
        %5348 = vrot.lane.b32.xlu0 %v5259, 113
        %v5349 = vpop.permute.xlu0 %5348
        %5350 = vrot.lane.b32.xlu0 %v5258, 113
        %v5351 = vpop.permute.xlu0 %5350
        %5352 = vrot.lane.b32.xlu0 %v5260, 113
        %v5353 = vpop.permute.xlu0 %5352
        %v5354 = vsel %vm842, %v5347, %v5351
        %v5355 = vsel %vm842, %v5349, %v5353
        %v5356 = vsel %vm842, %v5351, %v5347
        %v5357 = vsel %vm842, %v5353, %v5349
        %v5358 = vmul.f32 %v5354, %v853
        %v5359 = vmul.f32 %v5356, %v857
        %v5360 = vmul.f32 %v5355, %v853
        %v5361 = vmul.f32 %v5357, %v857
        %5362 = vrot.lane.b32.xlu0 %v5257, 112
        %v5363 = vpop.permute.xlu0 %5362
        %5364 = vrot.lane.b32.xlu0 %v5259, 112
        %v5365 = vpop.permute.xlu0 %5364
        %5366 = vrot.lane.b32.xlu0 %v5258, 112
        %v5367 = vpop.permute.xlu0 %5366
        %5368 = vrot.lane.b32.xlu0 %v5260, 112
        %v5369 = vpop.permute.xlu0 %5368
        %v5370 = vsel %vm872, %v5363, %v5367
        %v5371 = vsel %vm872, %v5365, %v5369
        %v5372 = vsel %vm872, %v5367, %v5363
        %v5373 = vsel %vm872, %v5369, %v5365
        %v5374 = vmul.f32 %v5370, %v883
        %v5375 = vmul.f32 %v5372, %v887
        %v5376 = vmul.f32 %v5371, %v883
        %v5377 = vmul.f32 %v5373, %v887
        %5378 = vrot.lane.b32.xlu0 %v5257, 111
        %v5379 = vpop.permute.xlu0 %5378
        %5380 = vrot.lane.b32.xlu0 %v5259, 111
        %v5381 = vpop.permute.xlu0 %5380
        %5382 = vrot.lane.b32.xlu0 %v5258, 111
        %v5383 = vpop.permute.xlu0 %5382
        %5384 = vrot.lane.b32.xlu0 %v5260, 111
        %v5385 = vpop.permute.xlu0 %5384
        %v5386 = vsel %vm902, %v5379, %v5383
        %v5387 = vsel %vm902, %v5381, %v5385
        %v5388 = vsel %vm902, %v5383, %v5379
        %v5389 = vsel %vm902, %v5385, %v5381
        %v5390 = vmul.f32 %v5386, %v913
        %v5391 = vmul.f32 %v5388, %v917
        %v5392 = vmul.f32 %v5387, %v913
        %v5393 = vmul.f32 %v5389, %v917
        %s5394 = scalar_lea.vmem %s6, 32
        %v5395 = vld [vmem:[%s5394] sm:$0xff]
        %v5396 = vld [vmem:[%s5394 + $0x8] sm:$0xff]
        %5398 = vset.pattern.permute.xlu0 0
        %5399 = vperm.xlu0 %5398, %v5395
        %v5400 = vpop.permute.xlu0 %5399
        %5403 = vset.pattern.permute.xlu0 0
        %5404 = vperm.xlu0 %5403, %v5396
        %v5405 = vpop.permute.xlu0 %5404
        %v5408 = vsel %vm948, %v5263, 0
        %v5411 = vsel %vm948, %v5265, 0
        %5413 = vmatprep.subr.mxu0 %v5279
        %5414 = vmatpush1.msra.mxu0 %v5278
        %5415 = vmatprep.subr.mxu0 %v5281
        %5416 = vmatpush1.msra.mxu0 %v5280
        %5417 = vmatprep.subr.mxu0 %v5295
        %5418 = vmatpush1.msra.mxu0 %v5294
        %5419 = vmatprep.subr.mxu0 %v5297
        %5420 = vmatpush1.msra.mxu0 %v5296
        %5421 = vmatprep.subr.mxu0 %v5311
        %5422 = vmatpush1.msra.mxu0 %v5310
        %5423 = vmatprep.subr.mxu0 %v5313
        %5424 = vmatpush1.msra.mxu0 %v5312
        %5425 = vmatprep.subr.mxu0 %v5327
        %5426 = vmatpush1.msra.mxu0 %v5326
        %5427 = vmatprep.subr.mxu0 %v5329
        %5428 = vmatpush1.msra.mxu0 %v5328
        %5429 = vmatprep.subr.mxu0 %v5258
        %5430 = vmatpush1.msra.mxu0 %v5257
        %5431 = vmatprep.subr.mxu0 %v5260
        %5432 = vmatpush1.msra.mxu0 %v5259
        %5433 = vmatprep.subr.mxu0 %v5343
        %5434 = vmatpush1.msra.mxu0 %v5342
        %5435 = vmatprep.subr.mxu0 %v5345
        %5436 = vmatpush1.msra.mxu0 %v5344
        %5437 = vmatprep.subr.mxu0 %v5359
        %5438 = vmatpush1.msra.mxu0 %v5358
        %5439 = vmatprep.subr.mxu0 %v5361
        %5440 = vmatpush1.msra.mxu0 %v5360
        %5441 = vmatprep.subr.mxu0 %v5375
        %5442 = vmatpush1.msra.mxu0 %v5374
        %5443 = vmatprep.subr.mxu0 %v5377
        %5444 = vmatpush1.msra.mxu0 %v5376
        %5445 = vmatprep.subr.mxu0 %v5391
        %5446 = vmatpush1.msra.mxu0 %v5390
        %5447 = vmatprep.subr.mxu0 %v5393
        %5448 = vmatpush1.msra.mxu0 %v5392
        %5449 = vmatprep.subr.mxu0 0.0
        %5450 = vmatpush1.msra.mxu0 0.0
        %5451 = vmatprep.subr.mxu0 0.0
        %5452 = vmatpush1.msra.mxu0 0.0
        %5453 = vmatprep.subr.mxu0 0.0
        %5454 = vmatpush1.msra.mxu0 0.0
        %5455 = vmatprep.subr.mxu0 0.0
        %5456 = vmatpush1.msra.mxu0 0.0
        %5457 = vmatprep.subr.mxu0 0.0
        %5458 = vmatpush1.msra.mxu0 0.0
        %5459 = vmatprep.subr.mxu0 0.0
        %5460 = vmatpush1.msra.mxu0 0.0
        %5461 = vmatprep.subr.mxu0 0.0
        %5462 = vmatpush1.msra.mxu0 0.0
        %5463 = vmatprep.subr.mxu0 0.0
        %5464 = vmatpush1.msra.mxu0 0.0
        %5465 = vmatprep.subr.mxu0 0.0
        %5466 = vmatpush1.msra.mxu0 0.0
        %5467 = vmatprep.subr.mxu0 0.0
        %5468 = vmatpush1.msra.mxu0 0.0
        %5469 = vmatprep.subr.mxu0 0.0
        %5470 = vmatpush1.msra.mxu0 0.0
        %5471 = vmatprep.subr.mxu0 0.0
        %5472 = vmatpush1.msra.mxu0 0.0
        %5473 = vmatprep.subr.mxu0 0.0
        %5474 = vmatpush1.msra.mxu0 0.0
        %5475 = vmatprep.subr.mxu0 0.0
        %5476 = vmatpush1.msra.mxu0 0.0
        %5477 = vmatprep.mubr.f32.mxu0 %v5408
        %5478 = vmatmul.mubr.f32.gmra.mrb[0].mxu0 %v5262
        %v5479 = vpop.f32.mrb[0].mxu0
        %v5480 = vadd.f32 %v5400, %v5479
        %v5481 = vpop.f32.mrb[0].mxu0
        %v5482 = vadd.f32 %v5400, %v5481
        %5483 = vmatprep.mubr.f32.mxu0 %v5411
        %5484 = vmatmul.mubr.f32.gmra.mrb[0].mxu0 %v5264
        %v5485 = vpop.f32.mrb[0].mxu0
        %v5486 = vadd.f32 %v5405, %v5485
        %v5487 = vpop.f32.mrb[0].mxu0
        %v5488 = vadd.f32 %v5405, %v5487
        %5489 = vdwg.mxu0
        %v5490 = vadd.f32 %v3942, %v5480
        %v5491 = vadd.f32 %v3943, %v5482
        %v5492 = vadd.f32 %v3944, %v5486
        %v5493 = vadd.f32 %v3945, %v5488
        %v5494 = vmul.f32 %v5490, 0.5
        %v5495 = vmul.f32 %v5491, 0.5
        %v5496 = vmul.f32 %v5492, 0.5
        %v5497 = vmul.f32 %v5493, 0.5
        %v5498 = vmul.f32 %v5490, 0.044715
        %v5499 = vmul.f32 %v5491, 0.044715
        %v5500 = vmul.f32 %v5492, 0.044715
        %v5501 = vmul.f32 %v5493, 0.044715
        %v5502 = vmul.f32 %v5498, %v5490
        %v5503 = vmul.f32 %v5499, %v5491
        %v5504 = vmul.f32 %v5500, %v5492
        %v5505 = vmul.f32 %v5501, %v5493
        %v5506 = vmul.f32 %v5502, %v5490
        %v5507 = vmul.f32 %v5503, %v5491
        %v5508 = vmul.f32 %v5504, %v5492
        %v5509 = vmul.f32 %v5505, %v5493
        %v5510 = vadd.f32 %v5490, %v5506
        %v5511 = vadd.f32 %v5491, %v5507
        %v5512 = vadd.f32 %v5492, %v5508
        %v5513 = vadd.f32 %v5493, %v5509
        %v5514 = vmul.f32 %v5510, 0.7978846
        %v5515 = vmul.f32 %v5511, 0.7978846
        %v5516 = vmul.f32 %v5512, 0.7978846
        %v5517 = vmul.f32 %v5513, 0.7978846
        %v5518 = vtanh.pop %v5514
        %v5519 = vtanh.pop %v5515
        %v5520 = vtanh.pop %v5516
        %v5521 = vtanh.pop %v5517
        %v5522 = vadd.f32 %v5518, 1.0
        %v5523 = vadd.f32 %v5519, 1.0
        %v5524 = vadd.f32 %v5520, 1.0
        %v5525 = vadd.f32 %v5521, 1.0
        %v5526 = vmul.f32 %v5494, %v5522
        %v5527 = vmul.f32 %v5495, %v5523
        %v5528 = vmul.f32 %v5496, %v5524
        %v5529 = vmul.f32 %v5497, %v5525
        %v5530 = vadd.f32 %v2430, %v2431
        %5531 = vadd.xlane.f32.xlu0 %v5530
        %v5532 = vpop.xlane.xlu0 %5531
        %v5533 = vadd.f32 %v2432, %v2433
        %5534 = vadd.xlane.f32.xlu0 %v5533
        %v5535 = vpop.xlane.xlu0 %5534
        %v5536 = vadd.f32 %v3978, %v3979
        %5537 = vadd.xlane.f32.xlu0 %v5536
        %v5538 = vpop.xlane.xlu0 %5537
        %v5539 = vadd.f32 %v3980, %v3981
        %5540 = vadd.xlane.f32.xlu0 %v5539
        %v5541 = vpop.xlane.xlu0 %5540
        %v5542 = vadd.f32 %v5526, %v5527
        %5543 = vadd.xlane.f32.xlu0 %v5542
        %v5544 = vpop.xlane.xlu0 %5543
        %v5545 = vadd.f32 %v5528, %v5529
        %5546 = vadd.xlane.f32.xlu0 %v5545
        %v5547 = vpop.xlane.xlu0 %5546
        %v5548 = vrcp.pop 256.0
        %v5549 = vmul.f32 %v5532, %v5548
        %v5550 = vmul.f32 %v5535, %v5548
        %v5551 = vmul.f32 %v5538, %v5548
        %v5552 = vmul.f32 %v5541, %v5548
        %v5553 = vmul.f32 %v5544, %v5548
        %v5554 = vmul.f32 %v5547, %v5548
        %v5555 = vld [vmem:[%s16] sm:$0x7]
        %v5556 = vld [vmem:[%s17] sm:$0x7]
        %v5558 = vsel %vm1930, %v5555, 0
        %5560 = vmatprep.subr.mxu0 0.0
        %5561 = vmatpush1.msra.mxu0 %v5549
        %5562 = vmatprep.subr.mxu0 0.0
        %5563 = vmatpush1.msra.mxu0 %v5550
        %5564 = vmatprep.subr.mxu0 0.0
        %5565 = vmatpush1.msra.mxu0 %v5551
        %5566 = vmatprep.subr.mxu0 0.0
        %5567 = vmatpush1.msra.mxu0 %v5552
        %5568 = vmatprep.subr.mxu0 0.0
        %5569 = vmatpush1.msra.mxu0 %v5553
        %5570 = vmatprep.subr.mxu0 0.0
        %5571 = vmatpush1.msra.mxu0 %v5554
        %5572 = vmatprep.subr.mxu0 0.0
        %5573 = vmatpush1.msra.mxu0 0.0
        %5574 = vmatprep.subr.mxu0 0.0
        %5575 = vmatpush1.msra.mxu0 0.0
        %5576 = vmatprep.subr.mxu0 0.0
        %5577 = vmatpush1.msra.mxu0 0.0
        %5578 = vmatprep.subr.mxu0 0.0
        %5579 = vmatpush1.msra.mxu0 0.0
        %5580 = vmatprep.subr.mxu0 0.0
        %5581 = vmatpush1.msra.mxu0 0.0
        %5582 = vmatprep.subr.mxu0 0.0
        %5583 = vmatpush1.msra.mxu0 0.0
        %5584 = vmatprep.subr.mxu0 0.0
        %5585 = vmatpush1.msra.mxu0 0.0
        %5586 = vmatprep.subr.mxu0 0.0
        %5587 = vmatpush1.msra.mxu0 0.0
        %5588 = vmatprep.subr.mxu0 0.0
        %5589 = vmatpush1.msra.mxu0 0.0
        %5590 = vmatprep.subr.mxu0 0.0
        %5591 = vmatpush1.msra.mxu0 0.0
        %5592 = vmatprep.subr.mxu0 0.0
        %5593 = vmatpush1.msra.mxu0 0.0
        %5594 = vmatprep.subr.mxu0 0.0
        %5595 = vmatpush1.msra.mxu0 0.0
        %5596 = vmatprep.subr.mxu0 0.0
        %5597 = vmatpush1.msra.mxu0 0.0
        %5598 = vmatprep.subr.mxu0 0.0
        %5599 = vmatpush1.msra.mxu0 0.0
        %5600 = vmatprep.subr.mxu0 0.0
        %5601 = vmatpush1.msra.mxu0 0.0
        %5602 = vmatprep.subr.mxu0 0.0
        %5603 = vmatpush1.msra.mxu0 0.0
        %5604 = vmatprep.subr.mxu0 0.0
        %5605 = vmatpush1.msra.mxu0 0.0
        %5606 = vmatprep.subr.mxu0 0.0
        %5607 = vmatpush1.msra.mxu0 0.0
        %5608 = vmatprep.subr.mxu0 0.0
        %5609 = vmatpush1.msra.mxu0 0.0
        %5610 = vmatprep.subr.mxu0 0.0
        %5611 = vmatpush1.msra.mxu0 0.0
        %5612 = vmatprep.subr.mxu0 0.0
        %5613 = vmatpush1.msra.mxu0 0.0
        %5614 = vmatprep.subr.mxu0 0.0
        %5615 = vmatpush1.msra.mxu0 0.0
        %5616 = vmatprep.subr.mxu0 0.0
        %5617 = vmatpush1.msra.mxu0 0.0
        %5618 = vmatprep.subr.mxu0 0.0
        %5619 = vmatpush1.msra.mxu0 0.0
        %5620 = vmatprep.subr.mxu0 0.0
        %5621 = vmatpush1.msra.mxu0 0.0
        %5622 = vmatprep.subr.mxu0 0.0
        %5623 = vmatpush1.msra.mxu0 0.0
        %5624 = vmatprep.mubr.f32.mxu0 0.0
        %5625 = vmatmul.mubr.f32.gmra.mrb[0].mxu0 %v5558
        %v5626 = vpop.f32.mrb[0].mxu0
        %v5627 = vadd.f32 %v5556, %v5626
        %v5628 = vpop.f32.mrb[0].mxu0
        %5629 = vdwg.mxu0
        %v5630 = vmax.f32 %v5627, 0.0
        %v5631 = vld [vmem:[%s18] sm:$0xff]
        %v5632 = vld [vmem:[%s18 + $0x8] sm:$0xff]
        %v5633 = vld [vmem:[%s18 + $0x10] sm:$0xff]
        %v5634 = vld [vmem:[%s18 + $0x18] sm:$0xff]
        %v5635 = vld [vmem:[%s18 + $0x20] sm:$0xff]
        %v5636 = vld [vmem:[%s18 + $0x28] sm:$0xff]
        %v5637 = vld [vmem:[%s19] sm:$0xff]
        %v5638 = vld [vmem:[%s19 + $0x8] sm:$0xff]
        %v5639 = vld [vmem:[%s19 + $0x10] sm:$0xff]
        %v5640 = vld [vmem:[%s19 + $0x18] sm:$0xff]
        %v5641 = vld [vmem:[%s19 + $0x20] sm:$0xff]
        %v5642 = vld [vmem:[%s19 + $0x28] sm:$0xff]
        %vm5643 = vcmask 23552
        %v5645 = vsel %vm5643, %v5631, 0
        %v5648 = vsel %vm5643, %v5632, 0
        %v5651 = vsel %vm5643, %v5633, 0
        %v5654 = vsel %vm5643, %v5634, 0
        %v5657 = vsel %vm5643, %v5635, 0
        %v5660 = vsel %vm5643, %v5636, 0
        %vm5662 = vcmask 1042432
        %v5664 = vsel %vm5662, %v5630, 0
        %5666 = vmatprep.subr.mxu0 0.0
        %5667 = vmatpush1.msra.mxu0 %v5664
        %5668 = vmatprep.subr.mxu0 0.0
        %5669 = vmatpush1.msra.mxu0 0.0
        %5670 = vmatprep.subr.mxu0 0.0
        %5671 = vmatpush1.msra.mxu0 0.0
        %5672 = vmatprep.subr.mxu0 0.0
        %5673 = vmatpush1.msra.mxu0 0.0
        %5674 = vmatprep.subr.mxu0 0.0
        %5675 = vmatpush1.msra.mxu0 0.0
        %5676 = vmatprep.subr.mxu0 0.0
        %5677 = vmatpush1.msra.mxu0 0.0
        %5678 = vmatprep.subr.mxu0 0.0
        %5679 = vmatpush1.msra.mxu0 0.0
        %5680 = vmatprep.subr.mxu0 0.0
        %5681 = vmatpush1.msra.mxu0 0.0
        %5682 = vmatprep.subr.mxu0 0.0
        %5683 = vmatpush1.msra.mxu0 0.0
        %5684 = vmatprep.subr.mxu0 0.0
        %5685 = vmatpush1.msra.mxu0 0.0
        %5686 = vmatprep.subr.mxu0 0.0
        %5687 = vmatpush1.msra.mxu0 0.0
        %5688 = vmatprep.subr.mxu0 0.0
        %5689 = vmatpush1.msra.mxu0 0.0
        %5690 = vmatprep.subr.mxu0 0.0
        %5691 = vmatpush1.msra.mxu0 0.0
        %5692 = vmatprep.subr.mxu0 0.0
        %5693 = vmatpush1.msra.mxu0 0.0
        %5694 = vmatprep.subr.mxu0 0.0
        %5695 = vmatpush1.msra.mxu0 0.0
        %5696 = vmatprep.subr.mxu0 0.0
        %5697 = vmatpush1.msra.mxu0 0.0
        %5698 = vmatprep.subr.mxu0 0.0
        %5699 = vmatpush1.msra.mxu0 0.0
        %5700 = vmatprep.subr.mxu0 0.0
        %5701 = vmatpush1.msra.mxu0 0.0
        %5702 = vmatprep.subr.mxu0 0.0
        %5703 = vmatpush1.msra.mxu0 0.0
        %5704 = vmatprep.subr.mxu0 0.0
        %5705 = vmatpush1.msra.mxu0 0.0
        %5706 = vmatprep.subr.mxu0 0.0
        %5707 = vmatpush1.msra.mxu0 0.0
        %5708 = vmatprep.subr.mxu0 0.0
        %5709 = vmatpush1.msra.mxu0 0.0
        %5710 = vmatprep.subr.mxu0 0.0
        %5711 = vmatpush1.msra.mxu0 0.0
        %5712 = vmatprep.subr.mxu0 0.0
        %5713 = vmatpush1.msra.mxu0 0.0
        %5714 = vmatprep.subr.mxu0 0.0
        %5715 = vmatpush1.msra.mxu0 0.0
        %5716 = vmatprep.subr.mxu0 0.0
        %5717 = vmatpush1.msra.mxu0 0.0
        %5718 = vmatprep.subr.mxu0 0.0
        %5719 = vmatpush1.msra.mxu0 0.0
        %5720 = vmatprep.subr.mxu0 0.0
        %5721 = vmatpush1.msra.mxu0 0.0
        %5722 = vmatprep.subr.mxu0 0.0
        %5723 = vmatpush1.msra.mxu0 0.0
        %5724 = vmatprep.subr.mxu0 0.0
        %5725 = vmatpush1.msra.mxu0 0.0
        %5726 = vmatprep.subr.mxu0 0.0
        %5727 = vmatpush1.msra.mxu0 0.0
        %5728 = vmatprep.subr.mxu0 0.0
        %5729 = vmatpush1.msra.mxu0 0.0
        %5730 = vmatprep.mubr.f32.mxu0 0.0
        %5731 = vmatmul.mubr.f32.gmra.mrb[0].mxu0 %v5645
        %v5732 = vpop.f32.mrb[0].mxu0
        %v5733 = vadd.f32 %v5637, %v5732
        %v5734 = vpop.f32.mrb[0].mxu0
        %5735 = vmatprep.mubr.f32.mxu0 0.0
        %5736 = vmatmul.mubr.f32.gmra.mrb[0].mxu0 %v5648
        %v5737 = vpop.f32.mrb[0].mxu0
        %v5738 = vadd.f32 %v5638, %v5737
        %v5739 = vpop.f32.mrb[0].mxu0
        %5740 = vmatprep.mubr.f32.mxu0 0.0
        %5741 = vmatmul.mubr.f32.gmra.mrb[0].mxu0 %v5651
        %v5742 = vpop.f32.mrb[0].mxu0
        %v5743 = vadd.f32 %v5639, %v5742
        %v5744 = vpop.f32.mrb[0].mxu0
        %5745 = vmatprep.mubr.f32.mxu0 0.0
        %5746 = vmatmul.mubr.f32.gmra.mrb[0].mxu0 %v5654
        %v5747 = vpop.f32.mrb[0].mxu0
        %v5748 = vadd.f32 %v5640, %v5747
        %v5749 = vpop.f32.mrb[0].mxu0
        %5750 = vmatprep.mubr.f32.mxu0 0.0
        %5751 = vmatmul.mubr.f32.gmra.mrb[0].mxu0 %v5657
        %v5752 = vpop.f32.mrb[0].mxu0
        %v5753 = vadd.f32 %v5641, %v5752
        %v5754 = vpop.f32.mrb[0].mxu0
        %5755 = vmatprep.mubr.f32.mxu0 0.0
        %5756 = vmatmul.mubr.f32.gmra.mrb[0].mxu0 %v5660
        %v5757 = vpop.f32.mrb[0].mxu0
        %v5758 = vadd.f32 %v5642, %v5757
        %v5759 = vpop.f32.mrb[0].mxu0
        %5760 = vdwg.mxu0
        %v5761 = vsub.f32 0.0, %v5733
        %v5762 = vsub.f32 0.0, %v5738
        %v5763 = vsub.f32 0.0, %v5743
        %v5764 = vsub.f32 0.0, %v5748
        %v5765 = vsub.f32 0.0, %v5753
        %v5766 = vsub.f32 0.0, %v5758
        %v5767 = vmul.f32 %v5761, 1.442695
        %v5768 = vpow.pop %v5767
        %v5769 = vmul.f32 %v5762, 1.442695
        %v5770 = vpow.pop %v5769
        %v5771 = vmul.f32 %v5763, 1.442695
        %v5772 = vpow.pop %v5771
        %v5773 = vmul.f32 %v5764, 1.442695
        %v5774 = vpow.pop %v5773
        %v5775 = vmul.f32 %v5765, 1.442695
        %v5776 = vpow.pop %v5775
        %v5777 = vmul.f32 %v5766, 1.442695
        %v5778 = vpow.pop %v5777
        %v5779 = vadd.f32 %v5768, 1.0
        %v5780 = vadd.f32 %v5770, 1.0
        %v5781 = vadd.f32 %v5772, 1.0
        %v5782 = vadd.f32 %v5774, 1.0
        %v5783 = vadd.f32 %v5776, 1.0
        %v5784 = vadd.f32 %v5778, 1.0
        %v5785 = vrcp.pop %v5779
        %v5786 = vmul.f32 1.0, %v5785
        %v5787 = vrcp.pop %v5780
        %v5788 = vmul.f32 1.0, %v5787
        %v5789 = vrcp.pop %v5781
        %v5790 = vmul.f32 1.0, %v5789
        %v5791 = vrcp.pop %v5782
        %v5792 = vmul.f32 1.0, %v5791
        %v5793 = vrcp.pop %v5783
        %v5794 = vmul.f32 1.0, %v5793
        %v5795 = vrcp.pop %v5784
        %v5796 = vmul.f32 1.0, %v5795
        %v5797 = vld [vmem:[%s20] sm:$0xff]
        %v5798 = vld [vmem:[%s20 + $0x8] sm:$0xff]
        %5799 = vxpose.xlu0.b32.start [1/16] %v5786, 128
        %5800 = vxpose.xlu0.b32.cont [2/16] %v5788, 128
        %5801 = vxpose.xlu0.b32.cont [3/16] %v5790, 128
        %5802 = vxpose.xlu0.b32.cont [4/16] %v5792, 128
        %5803 = vxpose.xlu0.b32.cont [5/16] %v5794, 128
        %5804 = vxpose.xlu0.b32.cont [6/16] %v5796, 128
        %5805 = vxpose.xlu0.b32.cont [7/16] 0.0, 128
        %5806 = vxpose.xlu0.b32.cont [8/16] 0.0, 128
        %5807 = vxpose.xlu0.b32.cont [9/16] 0.0, 128
        %5808 = vxpose.xlu0.b32.cont [10/16] 0.0, 128
        %5809 = vxpose.xlu0.b32.cont [11/16] 0.0, 128
        %5810 = vxpose.xlu0.b32.cont [12/16] 0.0, 128
        %5811 = vxpose.xlu0.b32.cont [13/16] 0.0, 128
        %5812 = vxpose.xlu0.b32.cont [14/16] 0.0, 128
        %5813 = vxpose.xlu0.b32.cont [15/16] 0.0, 128
        %5814 = vxpose.xlu0.b32.end [16/16] 0.0, 128
        %v5815 = vpop.trf.xlu0
        %v5816 = vpop.trf.xlu0
        %v5817 = vpop.trf.xlu0
        %v5818 = vpop.trf.xlu0
        %v5819 = vpop.trf.xlu0
        %v5820 = vpop.trf.xlu0
        %v5821 = vpop.trf.xlu0
        %v5822 = vpop.trf.xlu0
        %v5823 = vpop.trf.xlu0
        %v5824 = vpop.trf.xlu0
        %v5825 = vpop.trf.xlu0
        %v5826 = vpop.trf.xlu0
        %v5827 = vpop.trf.xlu0
        %v5828 = vpop.trf.xlu0
        %v5829 = vpop.trf.xlu0
        %v5830 = vpop.trf.xlu0
        %v5831 = vlaneseq
        %v5832 = vshrl.u32 %v5831, 7
        %v5833 = vsub.s32 0, %v5832
        %v5834 = vrot.slane %v5815, %v5833
        %v5835 = vmul.f32 %v5797, %v5834
        %v5836 = vmul.f32 %v5798, %v5834
        %v5838 = vsel %vm1930, %v5835, 0
        %v5841 = vsel %vm1930, %v5836, 0
        %5843 = vmatprep.subr.mxu0 %v2431
        %5844 = vmatpush1.msra.mxu0 %v2430
        %5845 = vmatprep.subr.mxu0 %v2433
        %5846 = vmatpush1.msra.mxu0 %v2432
        %5847 = vmatprep.subr.mxu0 %v3979
        %5848 = vmatpush1.msra.mxu0 %v3978
        %5849 = vmatprep.subr.mxu0 %v3981
        %5850 = vmatpush1.msra.mxu0 %v3980
        %5851 = vmatprep.subr.mxu0 %v5527
        %5852 = vmatpush1.msra.mxu0 %v5526
        %5853 = vmatprep.subr.mxu0 %v5529
        %5854 = vmatpush1.msra.mxu0 %v5528
        %5855 = vmatprep.subr.mxu0 0.0
        %5856 = vmatpush1.msra.mxu0 0.0
        %5857 = vmatprep.subr.mxu0 0.0
        %5858 = vmatpush1.msra.mxu0 0.0
        %5859 = vmatprep.subr.mxu0 0.0
        %5860 = vmatpush1.msra.mxu0 0.0
        %5861 = vmatprep.subr.mxu0 0.0
        %5862 = vmatpush1.msra.mxu0 0.0
        %5863 = vmatprep.subr.mxu0 0.0
        %5864 = vmatpush1.msra.mxu0 0.0
        %5865 = vmatprep.subr.mxu0 0.0
        %5866 = vmatpush1.msra.mxu0 0.0
        %5867 = vmatprep.subr.mxu0 0.0
        %5868 = vmatpush1.msra.mxu0 0.0
        %5869 = vmatprep.subr.mxu0 0.0
        %5870 = vmatpush1.msra.mxu0 0.0
        %5871 = vmatprep.subr.mxu0 0.0
        %5872 = vmatpush1.msra.mxu0 0.0
        %5873 = vmatprep.subr.mxu0 0.0
        %5874 = vmatpush1.msra.mxu0 0.0
        %5875 = vmatprep.subr.mxu0 0.0
        %5876 = vmatpush1.msra.mxu0 0.0
        %5877 = vmatprep.subr.mxu0 0.0
        %5878 = vmatpush1.msra.mxu0 0.0
        %5879 = vmatprep.subr.mxu0 0.0
        %5880 = vmatpush1.msra.mxu0 0.0
        %5881 = vmatprep.subr.mxu0 0.0
        %5882 = vmatpush1.msra.mxu0 0.0
        %5883 = vmatprep.subr.mxu0 0.0
        %5884 = vmatpush1.msra.mxu0 0.0
        %5885 = vmatprep.subr.mxu0 0.0
        %5886 = vmatpush1.msra.mxu0 0.0
        %5887 = vmatprep.subr.mxu0 0.0
        %5888 = vmatpush1.msra.mxu0 0.0
        %5889 = vmatprep.subr.mxu0 0.0
        %5890 = vmatpush1.msra.mxu0 0.0
        %5891 = vmatprep.subr.mxu0 0.0
        %5892 = vmatpush1.msra.mxu0 0.0
        %5893 = vmatprep.subr.mxu0 0.0
        %5894 = vmatpush1.msra.mxu0 0.0
        %5895 = vmatprep.subr.mxu0 0.0
        %5896 = vmatpush1.msra.mxu0 0.0
        %5897 = vmatprep.subr.mxu0 0.0
        %5898 = vmatpush1.msra.mxu0 0.0
        %5899 = vmatprep.subr.mxu0 0.0
        %5900 = vmatpush1.msra.mxu0 0.0
        %5901 = vmatprep.subr.mxu0 0.0
        %5902 = vmatpush1.msra.mxu0 0.0
        %5903 = vmatprep.subr.mxu0 0.0
        %5904 = vmatpush1.msra.mxu0 0.0
        %5905 = vmatprep.subr.mxu0 0.0
        %5906 = vmatpush1.msra.mxu0 0.0
        %5907 = vmatprep.mubr.f32.mxu0 0.0
        %5908 = vmatmul.mubr.f32.gmra.mrb[0].mxu0 %v5838
        %v5909 = vpop.f32.mrb[0].mxu0
        %v5910 = vadd.f32 0.0, %v5909
        %v5911 = vpop.f32.mrb[0].mxu0
        %v5912 = vadd.f32 0.0, %v5911
        %5913 = vmatprep.mubr.f32.mxu0 0.0
        %5914 = vmatmul.mubr.f32.gmra.mrb[0].mxu0 %v5841
        %v5915 = vpop.f32.mrb[0].mxu0
        %v5916 = vadd.f32 0.0, %v5915
        %v5917 = vpop.f32.mrb[0].mxu0
        %v5918 = vadd.f32 0.0, %v5917
        %5919 = vdwg.mxu0
        %5920 = vst [vmem:[%s670] sm:$0xff] %v5910
        %5921 = vst [vmem:[%s670 + $0x8] sm:$0xff] %v5912
        %5922 = vst [vmem:[%s670 + $0x10] sm:$0xff] %v5916
        %5923 = vst [vmem:[%s670 + $0x18] sm:$0xff] %v5918
        %p5924 = scmp.lt.s32.totalorder %s33, 1
        %s5925 = scalar_select %p5924, %s33, 1
        %s5926 = smul.addr %s5925, 4
        %s5927 = smul.addr %s5926, 8
        %s5928 = scalar_lea.vmem %s21, %s5927
        // Predicated region
        $region109: #{multi_gdfn_forward.1} parent=103 // pred_check
          %p5929 = pneg %p497
        $region110: #{multi_gdfn_forward.1} parent=103 // pred_check_branch
          %5931 = sbr.rel (%p5929) target = $region112
        $region111: #{multi_gdfn_forward.1} parent=103 // pred_region
          _
        $region112: #{multi_gdfn_forward.1} parent=103 // pred_fallthru
          _
      $region104: #{multi_gdfn_forward.1} parent=5 // pred_fallthru
        _
      %p5932 = scmp.le.s32.totalorder 2, %s28
      // Predicated region
      $region113: #{multi_gdfn_forward.1} parent=5 // pred_check
        %p5933 = pneg %p5932
      $region114: #{multi_gdfn_forward.1} parent=5 // pred_check_branch
        %5935 = sbr.rel (%p5933) target = $region116
      $region115: #{multi_gdfn_forward.1} parent=5 // pred_region
        %s5936 = ssub.s32 %s28, 2
        // Predicated region
        $region117: #{multi_gdfn_forward.1} parent=115 // pred_check
          %p5937 = pneg %p503
        $region118: #{multi_gdfn_forward.1} parent=115 // pred_check_branch
          %5939 = sbr.rel (%p5937) target = $region120
        $region119: #{multi_gdfn_forward.1} parent=115 // pred_region
          %p5940 = scmp.lt.s32.totalorder %s34, 1
          %s5941 = scalar_select %p5940, %s34, 1
          %s5942 = smul.addr %s5941, 4
          %s5943 = smul.addr %s5942, 8
          %s5944 = scalar_lea.vmem %s21, %s5943
        $region120: #{multi_gdfn_forward.1} parent=115 // pred_fallthru
          _
      $region116: #{multi_gdfn_forward.1} parent=5 // pred_fallthru
        _
    $region6: #{multi_gdfn_forward.1} parent=1 // loop_footer
      %s32 = sadd.s32 1, %s28
    $region7: #{multi_gdfn_forward.1} parent=1 // loop_footer_branch
      %27 = sbr.rel target = $region3
    $region8: #{multi_gdfn_forward.1} parent=1 // loop_exit
      _
    %5945 = vsyncpa [#allocation3], 1
    %s5946 = scalar_lea.sflag [#allocation3], 1
    %5947 = vsyncpa %s5946, 1

</llo_original>
